<compile_context>
chip_gen: v6e
topology: v6e:2x2x1
jax: 0.10.0
libtpu: 0.0.40
codegen_flags: <defaults>
</compile_context>

<pallas_src>
import functools

import jax
import jax.numpy as jnp
from jax.experimental import pallas as pl
from jax.experimental.pallas import tpu as pltpu

EPS = 1e-5
LANE = 128
K_CONV = 3

_VMEM_SPEC = pl.BlockSpec(memory_space=pltpu.MemorySpace.VMEM)


def _derive_vmem_limit():
    """Per-generation VMEM budget: ~3/4 of physical (v5e/v6e 128 MiB -> 96 MiB,
    v7x 64 MiB -> 48 MiB), safe fallback when the query is unavailable."""
    cap = 64 * 1024 * 1024
    try:
        info = pltpu.get_tpu_info()
        for name in ("vmem_capacity_bytes", "vmem_bytes", "vmem_size_bytes"):
            v = getattr(info, name, None)
            if isinstance(v, int) and v > 0:
                cap = v
                break
    except Exception:
        pass
    return min(cap * 3 // 4, 100 * 1024 * 1024)


VMEM_LIMIT = _derive_vmem_limit()

# Below this total padded-bf16 weight footprint an MLP is fused into one pallas_call.
FUSE_WEIGHT_BYTES = 2 * 1024 * 1024


def round_up(n, m=LANE):
    return ((n + m - 1) // m) * m


def pick_tn(M, K, N):
    """Largest N tile that fits the per-generation VMEM budget (x resident +
    double-buffered w/out tiles); prefer >=2 grid steps for v7x dual-TC."""
    budget = int(VMEM_LIMIT * 0.6)
    tn = None
    for cand in (4096, 2048, 1024, 512, 256, 128):
        if cand > N or N % cand:
            continue
        need = M * K * 2 + 2 * K * cand * 2 + 2 * M * cand * 4 + M * cand * 4
        if need <= budget:
            tn = cand
            break
    if tn is None:
        tn = 128 if N % 128 == 0 else N
    if tn == N and N >= 256 and (N // 2) % 128 == 0:
        tn = N // 2
    return tn


# ----------------------------------------------------------------------------
# Shared in-kernel math: bias + (segmented) BatchNorm + ReLU on an f32 tile
# ----------------------------------------------------------------------------

def _apply_bn(h, gamma, beta, n_seg):
    """Training-mode BatchNorm1d (biased variance) applied independently per
    contiguous row segment (one segment per view).  Two-pass f32 variance."""
    M = h.shape[0]
    seg = M // n_seg
    parts = []
    for s in range(n_seg):
        hs = h if n_seg == 1 else h[s * seg:(s + 1) * seg]
        mean = jnp.sum(hs, axis=0, keepdims=True) * (1.0 / seg)
        c = hs - mean
        var = jnp.sum(c * c, axis=0, keepdims=True) * (1.0 / seg)
        scale = gamma * jax.lax.rsqrt(var + EPS)
        parts.append(c * scale + beta)
    return parts[0] if n_seg == 1 else jnp.concatenate(parts, axis=0)


def _layer_post(h, b, gamma, beta, flags, n_seg):
    if flags["bias"]:
        h = h + b
    if flags["bn"]:
        h = _apply_bn(h, gamma, beta, n_seg)
    if flags["relu"]:
        h = jnp.maximum(h, 0.0)
    return h


# ----------------------------------------------------------------------------
# Backbone kernel: fused im2col (9 shifted-slice matmuls) + bias + ReLU + GAP
# ----------------------------------------------------------------------------

def make_backbone_kernel(H, W, K=K_CONV):
    HW = H * W
    inv_hw = 1.0 / HW

    def kernel(x_ref, w_ref, b_ref, out_ref):
        xv = x_ref[0]                                   # (H+K-1, W+K-1, Cin_pad) bf16
        cin = xv.shape[-1]
        acc = None
        # Conv3x3 "same" as K*K shifted-slice matmuls accumulated in f32; the input
        # slab is read from HBM once per view (no im2col materialization).
        for t in range(K * K):
            ki, kj = t // K, t % K
            xs = xv[ki:ki + H, kj:kj + W, :].reshape(HW, cin)
            d = jnp.dot(xs, w_ref[t], preferred_element_type=jnp.float32)
            acc = d if acc is None else acc + d
        h = jnp.maximum(acc + b_ref[...], 0.0)          # bias + ReLU  (HW, Cout_pad) f32
        # Global average pool: sublane (XLU) reduction in f32 — no pool matmul.
        out_ref[0] = jnp.sum(h, axis=0, keepdims=True) * inv_hw

    return kernel


def backbone_forward(bb_params, x_nchw):
    """One pallas_call over all views; grid over views is 'parallel'."""
    w_taps, bias = bb_params            # (K*K, Cin_pad, Cout_pad) bf16, (1, Cout_pad) f32
    NB, C, H, W = x_nchw.shape
    KK, cin_p, cout_p = w_taps.shape
    pad = K_CONV // 2

    # NCHW -> NHWC, spatial "same" padding, channel padded to a lane multiple.
    x = jnp.transpose(x_nchw, (0, 2, 3, 1))
    x = jnp.pad(x, ((0, 0), (pad, pad), (pad, pad), (0, cin_p - C))).astype(jnp.bfloat16)

    flops = NB * KK * 2 * H * W * cin_p * cout_p
    bytes_accessed = int(x.size * 2 + w_taps.size * 2 + bias.size * 4 + NB * cout_p * 4)

    out = pl.pallas_call(
        make_backbone_kernel(H, W, K_CONV),
        out_shape=jax.ShapeDtypeStruct((NB, 1, cout_p), jnp.float32),
        grid_spec=pltpu.PrefetchScalarGridSpec(
            num_scalar_prefetch=0,
            grid=(NB,),
            in_specs=[
                pl.BlockSpec((1, H + 2 * pad, W + 2 * pad, cin_p),
                             lambda v: (v, 0, 0, 0)),
                # Constant block index -> weights DMA'd once, stay VMEM-resident.
                pl.BlockSpec((KK, cin_p, cout_p), lambda v: (0, 0, 0)),
                pl.BlockSpec((1, cout_p), lambda v: (0, 0)),
            ],
            out_specs=pl.BlockSpec((1, 1, cout_p), lambda v: (v, 0, 0))),
        compiler_params=pltpu.CompilerParams(
            dimension_semantics=("parallel",),
            vmem_limit_bytes=VMEM_LIMIT),
        cost_estimate=pl.CostEstimate(flops=flops, transcendentals=0,
                                      bytes_accessed=bytes_accessed),
    )(x, w_taps, bias)
    return out.reshape(NB, cout_p)      # padded cols are exactly 0


# ----------------------------------------------------------------------------
# Tiled Linear (+bias +segmented BN +ReLU): grid over N only, x VMEM-resident
# ----------------------------------------------------------------------------

def make_layer_kernel(flags, n_seg):
    has_bias, has_bn = flags["bias"], flags["bn"]

    def kernel(*refs):
        x_ref, w_ref = refs[0], refs[1]
        idx = 2
        b = g = be = None
        if has_bias:
            b = refs[idx][...]; idx += 1
        if has_bn:
            g = refs[idx][...]; be = refs[idx + 1][...]; idx += 2
        out_ref = refs[idx]
        # Whole-K contraction in a single MXU pass; M stays whole so BN over axis 0
        # is exact for each N tile.
        h = jnp.dot(x_ref[...], w_ref[...], preferred_element_type=jnp.float32)
        h = _layer_post(h, b, g, be, flags, n_seg)
        out_ref[...] = h.astype(out_ref.dtype)

    return kernel


def linear_layer(x, w, bias, gamma, beta, *, flags, n_seg, out_dtype):
    M, K = x.shape
    Kw, N = w.shape
    assert K == Kw
    tn = pick_tn(M, K, N)

    operands = [x, w]
    in_specs = [pl.BlockSpec((M, K), lambda n: (0, 0)),       # resident, fetched once
                pl.BlockSpec((K, tn), lambda n: (0, n))]
    vec_spec = pl.BlockSpec((1, tn), lambda n: (0, n))
    if flags["bias"]:
        operands.append(bias); in_specs.append(vec_spec)
    if flags["bn"]:
        operands += [gamma, beta]; in_specs += [vec_spec, vec_spec]

    flops = 2 * M * K * N
    bytes_accessed = int(M * K * 2 + K * N * 2 + M * N * jnp.dtype(out_dtype).itemsize)

    return pl.pallas_call(
        make_layer_kernel(flags, n_seg),
        out_shape=jax.ShapeDtypeStruct((M, N), out_dtype),
        grid_spec=pltpu.PrefetchScalarGridSpec(
            num_scalar_prefetch=0,
            grid=(N // tn,),
            in_specs=in_specs,
            out_specs=pl.BlockSpec((M, tn), lambda n: (0, n))),
        compiler_params=pltpu.CompilerParams(
            dimension_semantics=("parallel",),
            vmem_limit_bytes=VMEM_LIMIT),
        cost_estimate=pl.CostEstimate(flops=flops, transcendentals=0,
                                      bytes_accessed=bytes_accessed),
    )(*operands)


# ----------------------------------------------------------------------------
# Fused small-MLP kernel: all layers chained in one pallas_call (weights resident)
# ----------------------------------------------------------------------------

def make_fused_mlp_kernel(specs, n_seg):
    n_layers = len(specs)

    def kernel(*refs):
        idx = 0
        h = refs[idx][...]; idx += 1                    # (M, in_pad) bf16
        for li, s in enumerate(specs):
            w = refs[idx][...]; idx += 1
            b = g = be = None
            if s["bias"]:
                b = refs[idx][...]; idx += 1
            if s["bn"]:
                g = refs[idx][...]; be = refs[idx + 1][...]; idx += 2
            acc = jnp.dot(h, w, preferred_element_type=jnp.float32)
            acc = _layer_post(acc, b, g, be, s, n_seg)
            if li == n_layers - 1:
                out_ref = refs[idx]
                out_ref[...] = acc.astype(out_ref.dtype)
            else:
                h = acc.astype(jnp.bfloat16)

    return kernel


def fused_mlp_forward(params, specs, x, n_seg):
    M = x.shape[0]
    operands = [x]
    for p, s in zip(params, specs):
        operands.append(p["w"])
        if s["bias"]:
            operands.append(p["b"])
        if s["bn"]:
            operands += [p["gamma"], p["beta"]]
    out_pad = specs[-1]["out_pad"]
    flops = int(sum(2 * M * s["in_pad"] * s["out_pad"] for s in specs))
    bytes_accessed = int(sum(int(op.size) * op.dtype.itemsize for op in operands)
                         + M * out_pad * 4)
    return pl.pallas_call(
        make_fused_mlp_kernel(specs, n_seg),
        out_shape=jax.ShapeDtypeStruct((M, out_pad), jnp.float32),
        in_specs=[_VMEM_SPEC] * len(operands),
        out_specs=_VMEM_SPEC,
        compiler_params=pltpu.CompilerParams(vmem_limit_bytes=VMEM_LIMIT),
        cost_estimate=pl.CostEstimate(flops=flops, transcendentals=0,
                                      bytes_accessed=bytes_accessed),
    )(*operands)


def mlp_forward(params, specs, x, n_seg):
    """Input padded/cast once; small MLPs fuse into one call, big ones run the
    tiled layer kernel per layer (activations stay bf16, final layer emits f32)."""
    assert x.shape[0] % n_seg == 0, "segmented BN needs equal contiguous row blocks"
    s0 = specs[0]
    pad = s0["in_pad"] - x.shape[1]
    assert pad >= 0
    if pad:
        x = jnp.pad(x, ((0, 0), (0, pad)))
    x = x.astype(jnp.bfloat16)

    total_w_bytes = sum(int(p["w"].size) * p["w"].dtype.itemsize for p in params)
    if total_w_bytes <= FUSE_WEIGHT_BYTES:
        return fused_mlp_forward(params, specs, x, n_seg)

    h = x
    for i, (p, s) in enumerate(zip(params, specs)):
        last = i == len(specs) - 1
        h = linear_layer(h, p["w"], p.get("b"), p.get("gamma"), p.get("beta"),
                         flags=s, n_seg=n_seg,
                         out_dtype=jnp.float32 if last else jnp.bfloat16)
    return h                                            # (M, out_pad of last layer)


# ----------------------------------------------------------------------------
# Parameter construction (matches _init_weights: N(0, 0.01), bias=0), lane-padded
# ----------------------------------------------------------------------------

def build_mlp(key, in_dim, out_dims, layer_flags):
    params, specs = [], []
    d_in = in_dim
    for d_out, flags in zip(out_dims, layer_flags):
        p_in, p_out = round_up(d_in), round_up(d_out)
        key, k = jax.random.split(key)
        w = jax.random.normal(k, (d_in, d_out), jnp.float32) * 0.01
        w = jnp.pad(w, ((0, p_in - d_in), (0, p_out - d_out))).astype(jnp.bfloat16)
        layer = {"w": w}
        if flags["bias"]:
            layer["b"] = jnp.zeros((1, p_out), jnp.float32)
        if flags["bn"]:
            layer["gamma"] = jnp.pad(jnp.ones((1, d_out), jnp.float32),
                                     ((0, 0), (0, p_out - d_out)))
            layer["beta"] = jnp.zeros((1, p_out), jnp.float32)
        params.append(layer)
        specs.append(dict(flags, in_dim=d_in, out_dim=d_out, in_pad=p_in, out_pad=p_out))
        d_in = d_out
    return params, specs


def init_backbone_params(key, c_in, c_out, K=K_CONV):
    """Synthetic backbone: Conv2d(c_in, c_out, 3, pad=1) -> ReLU -> GAP -> flatten,
    fc = Identity (repre_dim == c_out).  Weight stored per-tap as
    (K*K, Cin_pad, Cout_pad) for the fused shifted-slice conv kernel."""
    w = jax.random.normal(key, (c_out, c_in, K, K), jnp.float32) * 0.1
    cin_p, cout_p = round_up(c_in), round_up(c_out)
    w_taps = jnp.transpose(w, (2, 3, 1, 0)).reshape(K * K, c_in, c_out)
    w_taps = jnp.pad(w_taps, ((0, 0), (0, cin_p - c_in),
                              (0, cout_p - c_out))).astype(jnp.bfloat16)
    bias = jnp.zeros((1, cout_p), jnp.float32)
    return (w_taps, bias)


# ----------------------------------------------------------------------------
# Essl_Vicreg forward
# ----------------------------------------------------------------------------

def essl_vicreg_forward(params, cfg, x1, x2, x1_contr, x2_contr):
    B = x1.shape[0]
    repre_dim = cfg["repre_dim"]

    # One backbone call for all 4 views; conv/ReLU/pool are per-sample so batching
    # is exact (weights DMA'd once, (4B,)-parallel grid).
    x_all = jnp.concatenate([x1, x2, x1_contr, x2_contr], axis=0)
    feats = backbone_forward(params["backbone"], x_all)         # (4B, Cout_pad) f32

    # Temporal predictor on concatenated time-step features (single batch -> n_seg=1).
    z_cat = jnp.concatenate([feats[:B, :repre_dim], feats[B:2 * B, :repre_dim]], axis=1)
    pred = mlp_forward(params["temp_pred"], cfg["temp_specs"], z_cat, n_seg=1)[:, :1]

    # Projector over BOTH contrastive views in one pass; per-view BN stats (n_seg=2)
    # reproduce the two independent projector(b3)/projector(b4) calls.
    z12 = mlp_forward(params["projector"], cfg["proj_specs"], feats[2 * B:], n_seg=2)
    z12 = z12[:, :cfg["proj_out"]]
    # norm_embed=False, relu_embed=False -> no post-processing of z1/z2.
    return z12[:B], z12[B:], pred


if __name__ == "__main__":
    # Small, shape-consistent configuration.
    B, C_IN, H, W = 2, 4, 16, 16
    REPRE_DIM = 32                               # backbone feature dim (fc.in_features)
    PROJ_HIDDEN = (1024, 1024, 128)              # downsized from (8192, 8192, 8192);
                                                 # big enough to exercise the tiled path
    TEMP_IN = REPRE_DIM * 2                      # 64
    TEMP_HIDDEN = (TEMP_IN // 2, TEMP_IN // 4, 1)    # (32, 16, 1)

    proj_flags = [
        {"bias": True, "bn": True, "relu": True},
        {"bias": True, "bn": True, "relu": True},
        {"bias": False, "bn": False, "relu": False},   # proj_bias_last=False, norm_last=False
    ]
    temp_flags = [
        {"bias": True, "bn": True, "relu": True},
        {"bias": True, "bn": True, "relu": True},
        {"bias": True, "bn": False, "relu": False},    # bias_last=True
    ]

    key = jax.random.PRNGKey(0)
    k_bb, k_proj, k_temp, k1, k2, k3, k4 = jax.random.split(key, 7)

    proj_params, proj_specs = build_mlp(k_proj, REPRE_DIM, PROJ_HIDDEN, proj_flags)
    temp_params, temp_specs = build_mlp(k_temp, TEMP_IN, TEMP_HIDDEN, temp_flags)

    params = {
        "backbone": init_backbone_params(k_bb, C_IN, REPRE_DIM),
        "projector": proj_params,
        "temp_pred": temp_params,
    }
    cfg = {
        "repre_dim": REPRE_DIM,
        "proj_out": PROJ_HIDDEN[-1],
        "proj_specs": proj_specs,
        "temp_specs": temp_specs,
    }

    x1 = jax.random.normal(k1, (B, C_IN, H, W), jnp.float32)     # NCHW, like PyTorch
    x2 = jax.random.normal(k2, (B, C_IN, H, W), jnp.float32)
    x1_contr = jax.random.normal(k3, (B, C_IN, H, W), jnp.float32)
    x2_contr = jax.random.normal(k4, (B, C_IN, H, W), jnp.float32)

    fwd = jax.jit(functools.partial(essl_vicreg_forward, params, cfg))
    z1, z2, pred = fwd(x1, x2, x1_contr, x2_contr)
    jax.block_until_ready((z1, z2, pred))

    assert z1.shape == (B, PROJ_HIDDEN[-1])
    assert z2.shape == (B, PROJ_HIDDEN[-1])
    assert pred.shape == (B, 1)
    assert bool(jnp.all(jnp.isfinite(z1)) & jnp.all(jnp.isfinite(z2))
                & jnp.all(jnp.isfinite(pred)))
    print("KERNEL_OK")
</pallas_src>

<mosaic_0001>
module attributes {stable_mosaic.version = 11 : i64} {
  func.func @kernel(%arg0: i32, %arg1: memref<1x18x18x128xbf16, #tpu.memory_space<vmem>>, %arg2: memref<9x128x128xbf16, #tpu.memory_space<vmem>>, %arg3: memref<1x128xf32, #tpu.memory_space<vmem>>, %arg4: memref<1x1x128xf32, #tpu.memory_space<vmem>>) attributes {dimension_semantics = [#tpu.dimension_semantics<parallel>], iteration_bounds = array<i64: 8>, scalar_prefetch = 0 : i64, scratch_operands = 0 : i64, tpu.core_type = #tpu.core_type<tc>, window_params = [{transform_indices = @transform_0, window_bounds = array<i64: 1, 18, 18, 128>}, {pipeline_mode = #tpu.pipeline_mode<synchronous>, transform_indices = @transform_1, window_bounds = array<i64: 9, 128, 128>}, {pipeline_mode = #tpu.pipeline_mode<synchronous>, transform_indices = @transform_2, window_bounds = array<i64: 1, 128>}, {transform_indices = @transform_3, window_bounds = array<i64: 1, 1, 128>}]} {
    %c0 = arith.constant 0 : index
    %c0_0 = arith.constant 0 : index
    %c0_1 = arith.constant 0 : index
    %c0_2 = arith.constant 0 : index
    %0 = vector.load %arg1[%c0, %c0_0, %c0_1, %c0_2] : memref<1x18x18x128xbf16, #tpu.memory_space<vmem>>, vector<1x18x18x128xbf16>
    %1 = vector.shape_cast %0 : vector<1x18x18x128xbf16> to vector<18x18x128xbf16>
    %2 = vector.extract_strided_slice %1 {offsets = [0, 0, 0], sizes = [16, 16, 128], strides = [1, 1, 1]} : vector<18x18x128xbf16> to vector<16x16x128xbf16>
    %3 = vector.shape_cast %2 : vector<16x16x128xbf16> to vector<256x128xbf16>
    %c0_3 = arith.constant 0 : index
    %c0_4 = arith.constant 0 : index
    %c0_5 = arith.constant 0 : index
    %4 = vector.load %arg2[%c0_3, %c0_4, %c0_5] : memref<9x128x128xbf16, #tpu.memory_space<vmem>>, vector<1x128x128xbf16>
    %5 = vector.shape_cast %4 : vector<1x128x128xbf16> to vector<128x128xbf16>
    %cst = arith.constant dense<0.000000e+00> : vector<256x128xf32>
    %6 = tpu.matmul %3, %5, %cst {dimension_numbers = #tpu.dot_dimension_numbers<[1], [0], [0], [1], [0, 0, 1, 1], [], []>} : vector<256x128xbf16>, vector<128x128xbf16>, vector<256x128xf32> -> vector<256x128xf32>
    %7 = vector.extract_strided_slice %1 {offsets = [0, 1, 0], sizes = [16, 16, 128], strides = [1, 1, 1]} : vector<18x18x128xbf16> to vector<16x16x128xbf16>
    %8 = vector.shape_cast %7 : vector<16x16x128xbf16> to vector<256x128xbf16>
    %c1 = arith.constant 1 : index
    %c0_6 = arith.constant 0 : index
    %c0_7 = arith.constant 0 : index
    %9 = vector.load %arg2[%c1, %c0_6, %c0_7] : memref<9x128x128xbf16, #tpu.memory_space<vmem>>, vector<1x128x128xbf16>
    %10 = vector.shape_cast %9 : vector<1x128x128xbf16> to vector<128x128xbf16>
    %cst_8 = arith.constant dense<0.000000e+00> : vector<256x128xf32>
    %11 = tpu.matmul %8, %10, %cst_8 {dimension_numbers = #tpu.dot_dimension_numbers<[1], [0], [0], [1], [0, 0, 1, 1], [], []>} : vector<256x128xbf16>, vector<128x128xbf16>, vector<256x128xf32> -> vector<256x128xf32>
    %12 = arith.addf %6, %11 : vector<256x128xf32>
    %13 = vector.extract_strided_slice %1 {offsets = [0, 2, 0], sizes = [16, 16, 128], strides = [1, 1, 1]} : vector<18x18x128xbf16> to vector<16x16x128xbf16>
    %14 = vector.shape_cast %13 : vector<16x16x128xbf16> to vector<256x128xbf16>
    %c2 = arith.constant 2 : index
    %c0_9 = arith.constant 0 : index
    %c0_10 = arith.constant 0 : index
    %15 = vector.load %arg2[%c2, %c0_9, %c0_10] : memref<9x128x128xbf16, #tpu.memory_space<vmem>>, vector<1x128x128xbf16>
    %16 = vector.shape_cast %15 : vector<1x128x128xbf16> to vector<128x128xbf16>
    %cst_11 = arith.constant dense<0.000000e+00> : vector<256x128xf32>
    %17 = tpu.matmul %14, %16, %cst_11 {dimension_numbers = #tpu.dot_dimension_numbers<[1], [0], [0], [1], [0, 0, 1, 1], [], []>} : vector<256x128xbf16>, vector<128x128xbf16>, vector<256x128xf32> -> vector<256x128xf32>
    %18 = arith.addf %12, %17 : vector<256x128xf32>
    %19 = vector.extract_strided_slice %1 {offsets = [1, 0, 0], sizes = [16, 16, 128], strides = [1, 1, 1]} : vector<18x18x128xbf16> to vector<16x16x128xbf16>
    %20 = vector.shape_cast %19 : vector<16x16x128xbf16> to vector<256x128xbf16>
    %c3 = arith.constant 3 : index
    %c0_12 = arith.constant 0 : index
    %c0_13 = arith.constant 0 : index
    %21 = vector.load %arg2[%c3, %c0_12, %c0_13] : memref<9x128x128xbf16, #tpu.memory_space<vmem>>, vector<1x128x128xbf16>
    %22 = vector.shape_cast %21 : vector<1x128x128xbf16> to vector<128x128xbf16>
    %cst_14 = arith.constant dense<0.000000e+00> : vector<256x128xf32>
    %23 = tpu.matmul %20, %22, %cst_14 {dimension_numbers = #tpu.dot_dimension_numbers<[1], [0], [0], [1], [0, 0, 1, 1], [], []>} : vector<256x128xbf16>, vector<128x128xbf16>, vector<256x128xf32> -> vector<256x128xf32>
    %24 = arith.addf %18, %23 : vector<256x128xf32>
    %25 = vector.extract_strided_slice %1 {offsets = [1, 1, 0], sizes = [16, 16, 128], strides = [1, 1, 1]} : vector<18x18x128xbf16> to vector<16x16x128xbf16>
    %26 = vector.shape_cast %25 : vector<16x16x128xbf16> to vector<256x128xbf16>
    %c4 = arith.constant 4 : index
    %c0_15 = arith.constant 0 : index
    %c0_16 = arith.constant 0 : index
    %27 = vector.load %arg2[%c4, %c0_15, %c0_16] : memref<9x128x128xbf16, #tpu.memory_space<vmem>>, vector<1x128x128xbf16>
    %28 = vector.shape_cast %27 : vector<1x128x128xbf16> to vector<128x128xbf16>
    %cst_17 = arith.constant dense<0.000000e+00> : vector<256x128xf32>
    %29 = tpu.matmul %26, %28, %cst_17 {dimension_numbers = #tpu.dot_dimension_numbers<[1], [0], [0], [1], [0, 0, 1, 1], [], []>} : vector<256x128xbf16>, vector<128x128xbf16>, vector<256x128xf32> -> vector<256x128xf32>
    %30 = arith.addf %24, %29 : vector<256x128xf32>
    %31 = vector.extract_strided_slice %1 {offsets = [1, 2, 0], sizes = [16, 16, 128], strides = [1, 1, 1]} : vector<18x18x128xbf16> to vector<16x16x128xbf16>
    %32 = vector.shape_cast %31 : vector<16x16x128xbf16> to vector<256x128xbf16>
    %c5 = arith.constant 5 : index
    %c0_18 = arith.constant 0 : index
    %c0_19 = arith.constant 0 : index
    %33 = vector.load %arg2[%c5, %c0_18, %c0_19] : memref<9x128x128xbf16, #tpu.memory_space<vmem>>, vector<1x128x128xbf16>
    %34 = vector.shape_cast %33 : vector<1x128x128xbf16> to vector<128x128xbf16>
    %cst_20 = arith.constant dense<0.000000e+00> : vector<256x128xf32>
    %35 = tpu.matmul %32, %34, %cst_20 {dimension_numbers = #tpu.dot_dimension_numbers<[1], [0], [0], [1], [0, 0, 1, 1], [], []>} : vector<256x128xbf16>, vector<128x128xbf16>, vector<256x128xf32> -> vector<256x128xf32>
    %36 = arith.addf %30, %35 : vector<256x128xf32>
    %37 = vector.extract_strided_slice %1 {offsets = [2, 0, 0], sizes = [16, 16, 128], strides = [1, 1, 1]} : vector<18x18x128xbf16> to vector<16x16x128xbf16>
    %38 = vector.shape_cast %37 : vector<16x16x128xbf16> to vector<256x128xbf16>
    %c6 = arith.constant 6 : index
    %c0_21 = arith.constant 0 : index
    %c0_22 = arith.constant 0 : index
    %39 = vector.load %arg2[%c6, %c0_21, %c0_22] : memref<9x128x128xbf16, #tpu.memory_space<vmem>>, vector<1x128x128xbf16>
    %40 = vector.shape_cast %39 : vector<1x128x128xbf16> to vector<128x128xbf16>
    %cst_23 = arith.constant dense<0.000000e+00> : vector<256x128xf32>
    %41 = tpu.matmul %38, %40, %cst_23 {dimension_numbers = #tpu.dot_dimension_numbers<[1], [0], [0], [1], [0, 0, 1, 1], [], []>} : vector<256x128xbf16>, vector<128x128xbf16>, vector<256x128xf32> -> vector<256x128xf32>
    %42 = arith.addf %36, %41 : vector<256x128xf32>
    %43 = vector.extract_strided_slice %1 {offsets = [2, 1, 0], sizes = [16, 16, 128], strides = [1, 1, 1]} : vector<18x18x128xbf16> to vector<16x16x128xbf16>
    %44 = vector.shape_cast %43 : vector<16x16x128xbf16> to vector<256x128xbf16>
    %c7 = arith.constant 7 : index
    %c0_24 = arith.constant 0 : index
    %c0_25 = arith.constant 0 : index
    %45 = vector.load %arg2[%c7, %c0_24, %c0_25] : memref<9x128x128xbf16, #tpu.memory_space<vmem>>, vector<1x128x128xbf16>
    %46 = vector.shape_cast %45 : vector<1x128x128xbf16> to vector<128x128xbf16>
    %cst_26 = arith.constant dense<0.000000e+00> : vector<256x128xf32>
    %47 = tpu.matmul %44, %46, %cst_26 {dimension_numbers = #tpu.dot_dimension_numbers<[1], [0], [0], [1], [0, 0, 1, 1], [], []>} : vector<256x128xbf16>, vector<128x128xbf16>, vector<256x128xf32> -> vector<256x128xf32>
    %48 = arith.addf %42, %47 : vector<256x128xf32>
    %49 = vector.extract_strided_slice %1 {offsets = [2, 2, 0], sizes = [16, 16, 128], strides = [1, 1, 1]} : vector<18x18x128xbf16> to vector<16x16x128xbf16>
    %50 = vector.shape_cast %49 : vector<16x16x128xbf16> to vector<256x128xbf16>
    %c8 = arith.constant 8 : index
    %c0_27 = arith.constant 0 : index
    %c0_28 = arith.constant 0 : index
    %51 = vector.load %arg2[%c8, %c0_27, %c0_28] : memref<9x128x128xbf16, #tpu.memory_space<vmem>>, vector<1x128x128xbf16>
    %52 = vector.shape_cast %51 : vector<1x128x128xbf16> to vector<128x128xbf16>
    %cst_29 = arith.constant dense<0.000000e+00> : vector<256x128xf32>
    %53 = tpu.matmul %50, %52, %cst_29 {dimension_numbers = #tpu.dot_dimension_numbers<[1], [0], [0], [1], [0, 0, 1, 1], [], []>} : vector<256x128xbf16>, vector<128x128xbf16>, vector<256x128xf32> -> vector<256x128xf32>
    %54 = arith.addf %48, %53 : vector<256x128xf32>
    %c0_30 = arith.constant 0 : index
    %c0_31 = arith.constant 0 : index
    %55 = vector.load %arg3[%c0_30, %c0_31] : memref<1x128xf32, #tpu.memory_space<vmem>>, vector<1x128xf32>
    %56 = vector.broadcast %55 : vector<1x128xf32> to vector<256x128xf32>
    %57 = arith.addf %54, %56 : vector<256x128xf32>
    %cst_32 = arith.constant 0.000000e+00 : f32
    %58 = vector.broadcast %cst_32 : f32 to vector<256x128xf32>
    %59 = arith.maximumf %57, %58 : vector<256x128xf32>
    %cst_33 = arith.constant dense<0.000000e+00> : vector<128xf32>
    %60 = vector.multi_reduction <add>, %59, %cst_33 [0] : vector<256x128xf32> to vector<128xf32>
    %61 = vector.shape_cast %60 : vector<128xf32> to vector<1x128xf32>
    %cst_34 = arith.constant 3.906250e-03 : f32
    %62 = vector.broadcast %cst_34 : f32 to vector<1x128xf32>
    %63 = arith.mulf %61, %62 : vector<1x128xf32>
    %c0_35 = arith.constant 0 : index
    %c0_36 = arith.constant 0 : index
    %c0_37 = arith.constant 0 : index
    %64 = vector.load %arg4[%c0_35, %c0_36, %c0_37] : memref<1x1x128xf32, #tpu.memory_space<vmem>>, vector<1x1x128xf32>
    %65 = vector.shape_cast %64 : vector<1x1x128xf32> to vector<1x128xf32>
    %66 = vector.shape_cast %63 : vector<1x128xf32> to vector<1x1x128xf32>
    tpu.vector_store %arg4[%c0_35, %c0_36, %c0_37], %66 {strides = array<i32>} : memref<1x1x128xf32, #tpu.memory_space<vmem>>, vector<1x1x128xf32>,
    return
  }
  func.func @transform_0(%arg0: i32) -> (i32, i32, i32, i32) {
    %c0_i32 = arith.constant 0 : i32
    %c0_i32_0 = arith.constant 0 : i32
    %c0_i32_1 = arith.constant 0 : i32
    %c0_i32_2 = arith.constant 0 : i32
    return %arg0, %c0_i32, %c0_i32_0, %c0_i32_1 : i32, i32, i32, i32
  }
  func.func @transform_1(%arg0: i32) -> (i32, i32, i32) {
    %c0_i32 = arith.constant 0 : i32
    %c0_i32_0 = arith.constant 0 : i32
    %c0_i32_1 = arith.constant 0 : i32
    %c0_i32_2 = arith.constant 0 : i32
    return %c0_i32, %c0_i32_0, %c0_i32_1 : i32, i32, i32
  }
  func.func @transform_2(%arg0: i32) -> (i32, i32) {
    %c0_i32 = arith.constant 0 : i32
    %c0_i32_0 = arith.constant 0 : i32
    %c0_i32_1 = arith.constant 0 : i32
    return %c0_i32, %c0_i32_0 : i32, i32
  }
  func.func @transform_3(%arg0: i32) -> (i32, i32, i32) {
    %c0_i32 = arith.constant 0 : i32
    %c0_i32_0 = arith.constant 0 : i32
    %c0_i32_1 = arith.constant 0 : i32
    return %arg0, %c0_i32, %c0_i32_0 : i32, i32, i32
  }
}

module attributes {stable_mosaic.version = 11 : i64} {
  func.func @kernel(%arg0: i32, %arg1: memref<4x128xbf16, #tpu.memory_space<vmem>>, %arg2: memref<128x512xbf16, #tpu.memory_space<vmem>>, %arg3: memref<1x512xf32, #tpu.memory_space<vmem>>, %arg4: memref<1x512xf32, #tpu.memory_space<vmem>>, %arg5: memref<1x512xf32, #tpu.memory_space<vmem>>, %arg6: memref<4x512xbf16, #tpu.memory_space<vmem>>) attributes {dimension_semantics = [#tpu.dimension_semantics<parallel>], iteration_bounds = array<i64: 2>, scalar_prefetch = 0 : i64, scratch_operands = 0 : i64, tpu.core_type = #tpu.core_type<tc>, window_params = [{pipeline_mode = #tpu.pipeline_mode<synchronous>, transform_indices = @transform_0, window_bounds = array<i64: 4, 128>}, {transform_indices = @transform_1, window_bounds = array<i64: 128, 512>}, {transform_indices = @transform_2, window_bounds = array<i64: 1, 512>}, {transform_indices = @transform_3, window_bounds = array<i64: 1, 512>}, {transform_indices = @transform_4, window_bounds = array<i64: 1, 512>}, {transform_indices = @transform_5, window_bounds = array<i64: 4, 512>}]} {
    %c0 = arith.constant 0 : index
    %c0_0 = arith.constant 0 : index
    %0 = vector.load %arg3[%c0, %c0_0] : memref<1x512xf32, #tpu.memory_space<vmem>>, vector<1x512xf32>
    %c0_1 = arith.constant 0 : index
    %c0_2 = arith.constant 0 : index
    %1 = vector.load %arg4[%c0_1, %c0_2] : memref<1x512xf32, #tpu.memory_space<vmem>>, vector<1x512xf32>
    %c0_3 = arith.constant 0 : index
    %c0_4 = arith.constant 0 : index
    %2 = vector.load %arg5[%c0_3, %c0_4] : memref<1x512xf32, #tpu.memory_space<vmem>>, vector<1x512xf32>
    %c0_5 = arith.constant 0 : index
    %c0_6 = arith.constant 0 : index
    %3 = vector.load %arg1[%c0_5, %c0_6] : memref<4x128xbf16, #tpu.memory_space<vmem>>, vector<4x128xbf16>
    %c0_7 = arith.constant 0 : index
    %c0_8 = arith.constant 0 : index
    %4 = vector.load %arg2[%c0_7, %c0_8] : memref<128x512xbf16, #tpu.memory_space<vmem>>, vector<128x512xbf16>
    %cst = arith.constant dense<0.000000e+00> : vector<4x512xf32>
    %5 = tpu.matmul %3, %4, %cst {dimension_numbers = #tpu.dot_dimension_numbers<[1], [0], [0], [1], [0, 0, 1, 1], [], []>} : vector<4x128xbf16>, vector<128x512xbf16>, vector<4x512xf32> -> vector<4x512xf32>
    %6 = vector.broadcast %0 : vector<1x512xf32> to vector<4x512xf32>
    %7 = arith.addf %5, %6 : vector<4x512xf32>
    %8 = vector.extract_strided_slice %7 {offsets = [0, 0], sizes = [2, 512], strides = [1, 1]} : vector<4x512xf32> to vector<2x512xf32>
    %cst_9 = arith.constant dense<0.000000e+00> : vector<512xf32>
    %9 = vector.multi_reduction <add>, %8, %cst_9 [0] : vector<2x512xf32> to vector<512xf32>
    %10 = vector.shape_cast %9 : vector<512xf32> to vector<1x512xf32>
    %cst_10 = arith.constant 5.000000e-01 : f32
    %11 = vector.broadcast %cst_10 : f32 to vector<1x512xf32>
    %12 = arith.mulf %10, %11 : vector<1x512xf32>
    %13 = vector.broadcast %12 : vector<1x512xf32> to vector<2x512xf32>
    %14 = arith.subf %8, %13 : vector<2x512xf32>
    %15 = arith.mulf %14, %14 : vector<2x512xf32>
    %cst_11 = arith.constant dense<0.000000e+00> : vector<512xf32>
    %16 = vector.multi_reduction <add>, %15, %cst_11 [0] : vector<2x512xf32> to vector<512xf32>
    %17 = vector.shape_cast %16 : vector<512xf32> to vector<1x512xf32>
    %cst_12 = arith.constant 5.000000e-01 : f32
    %18 = vector.broadcast %cst_12 : f32 to vector<1x512xf32>
    %19 = arith.mulf %17, %18 : vector<1x512xf32>
    %cst_13 = arith.constant 9.99999974E-6 : f32
    %20 = vector.broadcast %cst_13 : f32 to vector<1x512xf32>
    %21 = arith.addf %19, %20 : vector<1x512xf32>
    %22 = math.rsqrt %21 : vector<1x512xf32>
    %23 = arith.mulf %1, %22 : vector<1x512xf32>
    %24 = vector.broadcast %23 : vector<1x512xf32> to vector<2x512xf32>
    %25 = arith.mulf %14, %24 : vector<2x512xf32>
    %26 = vector.broadcast %2 : vector<1x512xf32> to vector<2x512xf32>
    %27 = arith.addf %25, %26 : vector<2x512xf32>
    %28 = vector.extract_strided_slice %7 {offsets = [2, 0], sizes = [2, 512], strides = [1, 1]} : vector<4x512xf32> to vector<2x512xf32>
    %cst_14 = arith.constant dense<0.000000e+00> : vector<512xf32>
    %29 = vector.multi_reduction <add>, %28, %cst_14 [0] : vector<2x512xf32> to vector<512xf32>
    %30 = vector.shape_cast %29 : vector<512xf32> to vector<1x512xf32>
    %cst_15 = arith.constant 5.000000e-01 : f32
    %31 = vector.broadcast %cst_15 : f32 to vector<1x512xf32>
    %32 = arith.mulf %30, %31 : vector<1x512xf32>
    %33 = vector.broadcast %32 : vector<1x512xf32> to vector<2x512xf32>
    %34 = arith.subf %28, %33 : vector<2x512xf32>
    %35 = arith.mulf %34, %34 : vector<2x512xf32>
    %cst_16 = arith.constant dense<0.000000e+00> : vector<512xf32>
    %36 = vector.multi_reduction <add>, %35, %cst_16 [0] : vector<2x512xf32> to vector<512xf32>
    %37 = vector.shape_cast %36 : vector<512xf32> to vector<1x512xf32>
    %cst_17 = arith.constant 5.000000e-01 : f32
    %38 = vector.broadcast %cst_17 : f32 to vector<1x512xf32>
    %39 = arith.mulf %37, %38 : vector<1x512xf32>
    %cst_18 = arith.constant 9.99999974E-6 : f32
    %40 = vector.broadcast %cst_18 : f32 to vector<1x512xf32>
    %41 = arith.addf %39, %40 : vector<1x512xf32>
    %42 = math.rsqrt %41 : vector<1x512xf32>
    %43 = arith.mulf %1, %42 : vector<1x512xf32>
    %44 = vector.broadcast %43 : vector<1x512xf32> to vector<2x512xf32>
    %45 = arith.mulf %34, %44 : vector<2x512xf32>
    %46 = vector.broadcast %2 : vector<1x512xf32> to vector<2x512xf32>
    %47 = arith.addf %45, %46 : vector<2x512xf32>
    %48 = tpu.concatenate %27, %47 in 0 : vector<2x512xf32>, vector<2x512xf32> -> vector<4x512xf32>
    %cst_19 = arith.constant 0.000000e+00 : f32
    %49 = vector.broadcast %cst_19 : f32 to vector<4x512xf32>
    %50 = arith.maximumf %48, %49 : vector<4x512xf32>
    %51 = arith.truncf %50 : vector<4x512xf32> to vector<4x512xbf16>
    %c0_20 = arith.constant 0 : index
    %c0_21 = arith.constant 0 : index
    %52 = vector.load %arg6[%c0_20, %c0_21] : memref<4x512xbf16, #tpu.memory_space<vmem>>, vector<4x512xbf16>
    tpu.vector_store %arg6[%c0_20, %c0_21], %51 {strides = array<i32>} : memref<4x512xbf16, #tpu.memory_space<vmem>>, vector<4x512xbf16>,
    return
  }
  func.func @transform_0(%arg0: i32) -> (i32, i32) {
    %c0_i32 = arith.constant 0 : i32
    %c0_i32_0 = arith.constant 0 : i32
    %c0_i32_1 = arith.constant 0 : i32
    return %c0_i32, %c0_i32_0 : i32, i32
  }
  func.func @transform_1(%arg0: i32) -> (i32, i32) {
    %c0_i32 = arith.constant 0 : i32
    %c0_i32_0 = arith.constant 0 : i32
    return %c0_i32, %arg0 : i32, i32
  }
  func.func @transform_2(%arg0: i32) -> (i32, i32) {
    %c0_i32 = arith.constant 0 : i32
    %c0_i32_0 = arith.constant 0 : i32
    return %c0_i32, %arg0 : i32, i32
  }
  func.func @transform_3(%arg0: i32) -> (i32, i32) {
    %c0_i32 = arith.constant 0 : i32
    %c0_i32_0 = arith.constant 0 : i32
    return %c0_i32, %arg0 : i32, i32
  }
  func.func @transform_4(%arg0: i32) -> (i32, i32) {
    %c0_i32 = arith.constant 0 : i32
    %c0_i32_0 = arith.constant 0 : i32
    return %c0_i32, %arg0 : i32, i32
  }
  func.func @transform_5(%arg0: i32) -> (i32, i32) {
    %c0_i32 = arith.constant 0 : i32
    %c0_i32_0 = arith.constant 0 : i32
    return %c0_i32, %arg0 : i32, i32
  }
}

module attributes {stable_mosaic.version = 11 : i64} {
  func.func @kernel(%arg0: i32, %arg1: memref<4x1024xbf16, #tpu.memory_space<vmem>>, %arg2: memref<1024x512xbf16, #tpu.memory_space<vmem>>, %arg3: memref<1x512xf32, #tpu.memory_space<vmem>>, %arg4: memref<1x512xf32, #tpu.memory_space<vmem>>, %arg5: memref<1x512xf32, #tpu.memory_space<vmem>>, %arg6: memref<4x512xbf16, #tpu.memory_space<vmem>>) attributes {dimension_semantics = [#tpu.dimension_semantics<parallel>], iteration_bounds = array<i64: 2>, scalar_prefetch = 0 : i64, scratch_operands = 0 : i64, tpu.core_type = #tpu.core_type<tc>, window_params = [{pipeline_mode = #tpu.pipeline_mode<synchronous>, transform_indices = @transform_0, window_bounds = array<i64: 4, 1024>}, {transform_indices = @transform_1, window_bounds = array<i64: 1024, 512>}, {transform_indices = @transform_2, window_bounds = array<i64: 1, 512>}, {transform_indices = @transform_3, window_bounds = array<i64: 1, 512>}, {transform_indices = @transform_4, window_bounds = array<i64: 1, 512>}, {transform_indices = @transform_5, window_bounds = array<i64: 4, 512>}]} {
    %c0 = arith.constant 0 : index
    %c0_0 = arith.constant 0 : index
    %0 = vector.load %arg3[%c0, %c0_0] : memref<1x512xf32, #tpu.memory_space<vmem>>, vector<1x512xf32>
    %c0_1 = arith.constant 0 : index
    %c0_2 = arith.constant 0 : index
    %1 = vector.load %arg4[%c0_1, %c0_2] : memref<1x512xf32, #tpu.memory_space<vmem>>, vector<1x512xf32>
    %c0_3 = arith.constant 0 : index
    %c0_4 = arith.constant 0 : index
    %2 = vector.load %arg5[%c0_3, %c0_4] : memref<1x512xf32, #tpu.memory_space<vmem>>, vector<1x512xf32>
    %c0_5 = arith.constant 0 : index
    %c0_6 = arith.constant 0 : index
    %3 = vector.load %arg1[%c0_5, %c0_6] : memref<4x1024xbf16, #tpu.memory_space<vmem>>, vector<4x1024xbf16>
    %c0_7 = arith.constant 0 : index
    %c0_8 = arith.constant 0 : index
    %4 = vector.load %arg2[%c0_7, %c0_8] : memref<1024x512xbf16, #tpu.memory_space<vmem>>, vector<1024x512xbf16>
    %cst = arith.constant dense<0.000000e+00> : vector<4x512xf32>
    %5 = tpu.matmul %3, %4, %cst {dimension_numbers = #tpu.dot_dimension_numbers<[1], [0], [0], [1], [0, 0, 1, 1], [], []>} : vector<4x1024xbf16>, vector<1024x512xbf16>, vector<4x512xf32> -> vector<4x512xf32>
    %6 = vector.broadcast %0 : vector<1x512xf32> to vector<4x512xf32>
    %7 = arith.addf %5, %6 : vector<4x512xf32>
    %8 = vector.extract_strided_slice %7 {offsets = [0, 0], sizes = [2, 512], strides = [1, 1]} : vector<4x512xf32> to vector<2x512xf32>
    %cst_9 = arith.constant dense<0.000000e+00> : vector<512xf32>
    %9 = vector.multi_reduction <add>, %8, %cst_9 [0] : vector<2x512xf32> to vector<512xf32>
    %10 = vector.shape_cast %9 : vector<512xf32> to vector<1x512xf32>
    %cst_10 = arith.constant 5.000000e-01 : f32
    %11 = vector.broadcast %cst_10 : f32 to vector<1x512xf32>
    %12 = arith.mulf %10, %11 : vector<1x512xf32>
    %13 = vector.broadcast %12 : vector<1x512xf32> to vector<2x512xf32>
    %14 = arith.subf %8, %13 : vector<2x512xf32>
    %15 = arith.mulf %14, %14 : vector<2x512xf32>
    %cst_11 = arith.constant dense<0.000000e+00> : vector<512xf32>
    %16 = vector.multi_reduction <add>, %15, %cst_11 [0] : vector<2x512xf32> to vector<512xf32>
    %17 = vector.shape_cast %16 : vector<512xf32> to vector<1x512xf32>
    %cst_12 = arith.constant 5.000000e-01 : f32
    %18 = vector.broadcast %cst_12 : f32 to vector<1x512xf32>
    %19 = arith.mulf %17, %18 : vector<1x512xf32>
    %cst_13 = arith.constant 9.99999974E-6 : f32
    %20 = vector.broadcast %cst_13 : f32 to vector<1x512xf32>
    %21 = arith.addf %19, %20 : vector<1x512xf32>
    %22 = math.rsqrt %21 : vector<1x512xf32>
    %23 = arith.mulf %1, %22 : vector<1x512xf32>
    %24 = vector.broadcast %23 : vector<1x512xf32> to vector<2x512xf32>
    %25 = arith.mulf %14, %24 : vector<2x512xf32>
    %26 = vector.broadcast %2 : vector<1x512xf32> to vector<2x512xf32>
    %27 = arith.addf %25, %26 : vector<2x512xf32>
    %28 = vector.extract_strided_slice %7 {offsets = [2, 0], sizes = [2, 512], strides = [1, 1]} : vector<4x512xf32> to vector<2x512xf32>
    %cst_14 = arith.constant dense<0.000000e+00> : vector<512xf32>
    %29 = vector.multi_reduction <add>, %28, %cst_14 [0] : vector<2x512xf32> to vector<512xf32>
    %30 = vector.shape_cast %29 : vector<512xf32> to vector<1x512xf32>
    %cst_15 = arith.constant 5.000000e-01 : f32
    %31 = vector.broadcast %cst_15 : f32 to vector<1x512xf32>
    %32 = arith.mulf %30, %31 : vector<1x512xf32>
    %33 = vector.broadcast %32 : vector<1x512xf32> to vector<2x512xf32>
    %34 = arith.subf %28, %33 : vector<2x512xf32>
    %35 = arith.mulf %34, %34 : vector<2x512xf32>
    %cst_16 = arith.constant dense<0.000000e+00> : vector<512xf32>
    %36 = vector.multi_reduction <add>, %35, %cst_16 [0] : vector<2x512xf32> to vector<512xf32>
    %37 = vector.shape_cast %36 : vector<512xf32> to vector<1x512xf32>
    %cst_17 = arith.constant 5.000000e-01 : f32
    %38 = vector.broadcast %cst_17 : f32 to vector<1x512xf32>
    %39 = arith.mulf %37, %38 : vector<1x512xf32>
    %cst_18 = arith.constant 9.99999974E-6 : f32
    %40 = vector.broadcast %cst_18 : f32 to vector<1x512xf32>
    %41 = arith.addf %39, %40 : vector<1x512xf32>
    %42 = math.rsqrt %41 : vector<1x512xf32>
    %43 = arith.mulf %1, %42 : vector<1x512xf32>
    %44 = vector.broadcast %43 : vector<1x512xf32> to vector<2x512xf32>
    %45 = arith.mulf %34, %44 : vector<2x512xf32>
    %46 = vector.broadcast %2 : vector<1x512xf32> to vector<2x512xf32>
    %47 = arith.addf %45, %46 : vector<2x512xf32>
    %48 = tpu.concatenate %27, %47 in 0 : vector<2x512xf32>, vector<2x512xf32> -> vector<4x512xf32>
    %cst_19 = arith.constant 0.000000e+00 : f32
    %49 = vector.broadcast %cst_19 : f32 to vector<4x512xf32>
    %50 = arith.maximumf %48, %49 : vector<4x512xf32>
    %51 = arith.truncf %50 : vector<4x512xf32> to vector<4x512xbf16>
    %c0_20 = arith.constant 0 : index
    %c0_21 = arith.constant 0 : index
    %52 = vector.load %arg6[%c0_20, %c0_21] : memref<4x512xbf16, #tpu.memory_space<vmem>>, vector<4x512xbf16>
    tpu.vector_store %arg6[%c0_20, %c0_21], %51 {strides = array<i32>} : memref<4x512xbf16, #tpu.memory_space<vmem>>, vector<4x512xbf16>,
    return
  }
  func.func @transform_0(%arg0: i32) -> (i32, i32) {
    %c0_i32 = arith.constant 0 : i32
    %c0_i32_0 = arith.constant 0 : i32
    %c0_i32_1 = arith.constant 0 : i32
    return %c0_i32, %c0_i32_0 : i32, i32
  }
  func.func @transform_1(%arg0: i32) -> (i32, i32) {
    %c0_i32 = arith.constant 0 : i32
    %c0_i32_0 = arith.constant 0 : i32
    return %c0_i32, %arg0 : i32, i32
  }
  func.func @transform_2(%arg0: i32) -> (i32, i32) {
    %c0_i32 = arith.constant 0 : i32
    %c0_i32_0 = arith.constant 0 : i32
    return %c0_i32, %arg0 : i32, i32
  }
  func.func @transform_3(%arg0: i32) -> (i32, i32) {
    %c0_i32 = arith.constant 0 : i32
    %c0_i32_0 = arith.constant 0 : i32
    return %c0_i32, %arg0 : i32, i32
  }
  func.func @transform_4(%arg0: i32) -> (i32, i32) {
    %c0_i32 = arith.constant 0 : i32
    %c0_i32_0 = arith.constant 0 : i32
    return %c0_i32, %arg0 : i32, i32
  }
  func.func @transform_5(%arg0: i32) -> (i32, i32) {
    %c0_i32 = arith.constant 0 : i32
    %c0_i32_0 = arith.constant 0 : i32
    return %c0_i32, %arg0 : i32, i32
  }
}

module attributes {stable_mosaic.version = 11 : i64} {
  func.func @kernel(%arg0: i32, %arg1: memref<4x1024xbf16, #tpu.memory_space<vmem>>, %arg2: memref<1024x128xbf16, #tpu.memory_space<vmem>>, %arg3: memref<4x128xf32, #tpu.memory_space<vmem>>) attributes {dimension_semantics = [#tpu.dimension_semantics<parallel>], iteration_bounds = array<i64: 1>, scalar_prefetch = 0 : i64, scratch_operands = 0 : i64, tpu.core_type = #tpu.core_type<tc>, window_params = [{pipeline_mode = #tpu.pipeline_mode<synchronous>, transform_indices = @transform_0, window_bounds = array<i64: 4, 1024>}, {transform_indices = @transform_1, window_bounds = array<i64: 1024, 128>}, {transform_indices = @transform_2, window_bounds = array<i64: 4, 128>}]} {
    %c0 = arith.constant 0 : index
    %c0_0 = arith.constant 0 : index
    %0 = vector.load %arg1[%c0, %c0_0] : memref<4x1024xbf16, #tpu.memory_space<vmem>>, vector<4x1024xbf16>
    %c0_1 = arith.constant 0 : index
    %c0_2 = arith.constant 0 : index
    %1 = vector.load %arg2[%c0_1, %c0_2] : memref<1024x128xbf16, #tpu.memory_space<vmem>>, vector<1024x128xbf16>
    %cst = arith.constant dense<0.000000e+00> : vector<4x128xf32>
    %2 = tpu.matmul %0, %1, %cst {dimension_numbers = #tpu.dot_dimension_numbers<[1], [0], [0], [1], [0, 0, 1, 1], [], []>} : vector<4x1024xbf16>, vector<1024x128xbf16>, vector<4x128xf32> -> vector<4x128xf32>
    %c0_3 = arith.constant 0 : index
    %c0_4 = arith.constant 0 : index
    %3 = vector.load %arg3[%c0_3, %c0_4] : memref<4x128xf32, #tpu.memory_space<vmem>>, vector<4x128xf32>
    tpu.vector_store %arg3[%c0_3, %c0_4], %2 {strides = array<i32>} : memref<4x128xf32, #tpu.memory_space<vmem>>, vector<4x128xf32>,
    return
  }
  func.func @transform_0(%arg0: i32) -> (i32, i32) {
    %c0_i32 = arith.constant 0 : i32
    %c0_i32_0 = arith.constant 0 : i32
    %c0_i32_1 = arith.constant 0 : i32
    return %c0_i32, %c0_i32_0 : i32, i32
  }
  func.func @transform_1(%arg0: i32) -> (i32, i32) {
    %c0_i32 = arith.constant 0 : i32
    %c0_i32_0 = arith.constant 0 : i32
    return %c0_i32, %arg0 : i32, i32
  }
  func.func @transform_2(%arg0: i32) -> (i32, i32) {
    %c0_i32 = arith.constant 0 : i32
    %c0_i32_0 = arith.constant 0 : i32
    return %c0_i32, %arg0 : i32, i32
  }
}

module attributes {stable_mosaic.version = 11 : i64} {
  func.func @kernel(%arg0: memref<2x128xbf16, #tpu.memory_space<vmem>>, %arg1: memref<128x128xbf16, #tpu.memory_space<vmem>>, %arg2: memref<1x128xf32, #tpu.memory_space<vmem>>, %arg3: memref<1x128xf32, #tpu.memory_space<vmem>>, %arg4: memref<1x128xf32, #tpu.memory_space<vmem>>, %arg5: memref<128x128xbf16, #tpu.memory_space<vmem>>, %arg6: memref<1x128xf32, #tpu.memory_space<vmem>>, %arg7: memref<1x128xf32, #tpu.memory_space<vmem>>, %arg8: memref<1x128xf32, #tpu.memory_space<vmem>>, %arg9: memref<128x128xbf16, #tpu.memory_space<vmem>>, %arg10: memref<1x128xf32, #tpu.memory_space<vmem>>, %arg11: memref<2x128xf32, #tpu.memory_space<vmem>>) attributes {dimension_semantics = [], scalar_prefetch = 0 : i64, scratch_operands = 0 : i64, tpu.core_type = #tpu.core_type<tc>} {
    %c0 = arith.constant 0 : index
    %c0_0 = arith.constant 0 : index
    %0 = vector.load %arg0[%c0, %c0_0] : memref<2x128xbf16, #tpu.memory_space<vmem>>, vector<2x128xbf16>
    %c0_1 = arith.constant 0 : index
    %c0_2 = arith.constant 0 : index
    %1 = vector.load %arg1[%c0_1, %c0_2] : memref<128x128xbf16, #tpu.memory_space<vmem>>, vector<128x128xbf16>
    %c0_3 = arith.constant 0 : index
    %c0_4 = arith.constant 0 : index
    %2 = vector.load %arg2[%c0_3, %c0_4] : memref<1x128xf32, #tpu.memory_space<vmem>>, vector<1x128xf32>
    %c0_5 = arith.constant 0 : index
    %c0_6 = arith.constant 0 : index
    %3 = vector.load %arg3[%c0_5, %c0_6] : memref<1x128xf32, #tpu.memory_space<vmem>>, vector<1x128xf32>
    %c0_7 = arith.constant 0 : index
    %c0_8 = arith.constant 0 : index
    %4 = vector.load %arg4[%c0_7, %c0_8] : memref<1x128xf32, #tpu.memory_space<vmem>>, vector<1x128xf32>
    %cst = arith.constant dense<0.000000e+00> : vector<2x128xf32>
    %5 = tpu.matmul %0, %1, %cst {dimension_numbers = #tpu.dot_dimension_numbers<[1], [0], [0], [1], [0, 0, 1, 1], [], []>} : vector<2x128xbf16>, vector<128x128xbf16>, vector<2x128xf32> -> vector<2x128xf32>
    %6 = vector.broadcast %2 : vector<1x128xf32> to vector<2x128xf32>
    %7 = arith.addf %5, %6 : vector<2x128xf32>
    %cst_9 = arith.constant dense<0.000000e+00> : vector<128xf32>
    %8 = vector.multi_reduction <add>, %7, %cst_9 [0] : vector<2x128xf32> to vector<128xf32>
    %9 = vector.shape_cast %8 : vector<128xf32> to vector<1x128xf32>
    %cst_10 = arith.constant 5.000000e-01 : f32
    %10 = vector.broadcast %cst_10 : f32 to vector<1x128xf32>
    %11 = arith.mulf %9, %10 : vector<1x128xf32>
    %12 = vector.broadcast %11 : vector<1x128xf32> to vector<2x128xf32>
    %13 = arith.subf %7, %12 : vector<2x128xf32>
    %14 = arith.mulf %13, %13 : vector<2x128xf32>
    %cst_11 = arith.constant dense<0.000000e+00> : vector<128xf32>
    %15 = vector.multi_reduction <add>, %14, %cst_11 [0] : vector<2x128xf32> to vector<128xf32>
    %16 = vector.shape_cast %15 : vector<128xf32> to vector<1x128xf32>
    %cst_12 = arith.constant 5.000000e-01 : f32
    %17 = vector.broadcast %cst_12 : f32 to vector<1x128xf32>
    %18 = arith.mulf %16, %17 : vector<1x128xf32>
    %cst_13 = arith.constant 9.99999974E-6 : f32
    %19 = vector.broadcast %cst_13 : f32 to vector<1x128xf32>
    %20 = arith.addf %18, %19 : vector<1x128xf32>
    %21 = math.rsqrt %20 : vector<1x128xf32>
    %22 = arith.mulf %3, %21 : vector<1x128xf32>
    %23 = vector.broadcast %22 : vector<1x128xf32> to vector<2x128xf32>
    %24 = arith.mulf %13, %23 : vector<2x128xf32>
    %25 = vector.broadcast %4 : vector<1x128xf32> to vector<2x128xf32>
    %26 = arith.addf %24, %25 : vector<2x128xf32>
    %cst_14 = arith.constant 0.000000e+00 : f32
    %27 = vector.broadcast %cst_14 : f32 to vector<2x128xf32>
    %28 = arith.maximumf %26, %27 : vector<2x128xf32>
    %29 = arith.truncf %28 : vector<2x128xf32> to vector<2x128xbf16>
    %c0_15 = arith.constant 0 : index
    %c0_16 = arith.constant 0 : index
    %30 = vector.load %arg5[%c0_15, %c0_16] : memref<128x128xbf16, #tpu.memory_space<vmem>>, vector<128x128xbf16>
    %c0_17 = arith.constant 0 : index
    %c0_18 = arith.constant 0 : index
    %31 = vector.load %arg6[%c0_17, %c0_18] : memref<1x128xf32, #tpu.memory_space<vmem>>, vector<1x128xf32>
    %c0_19 = arith.constant 0 : index
    %c0_20 = arith.constant 0 : index
    %32 = vector.load %arg7[%c0_19, %c0_20] : memref<1x128xf32, #tpu.memory_space<vmem>>, vector<1x128xf32>
    %c0_21 = arith.constant 0 : index
    %c0_22 = arith.constant 0 : index
    %33 = vector.load %arg8[%c0_21, %c0_22] : memref<1x128xf32, #tpu.memory_space<vmem>>, vector<1x128xf32>
    %cst_23 = arith.constant dense<0.000000e+00> : vector<2x128xf32>
    %34 = tpu.matmul %29, %30, %cst_23 {dimension_numbers = #tpu.dot_dimension_numbers<[1], [0], [0], [1], [0, 0, 1, 1], [], []>} : vector<2x128xbf16>, vector<128x128xbf16>, vector<2x128xf32> -> vector<2x128xf32>
    %35 = vector.broadcast %31 : vector<1x128xf32> to vector<2x128xf32>
    %36 = arith.addf %34, %35 : vector<2x128xf32>
    %cst_24 = arith.constant dense<0.000000e+00> : vector<128xf32>
    %37 = vector.multi_reduction <add>, %36, %cst_24 [0] : vector<2x128xf32> to vector<128xf32>
    %38 = vector.shape_cast %37 : vector<128xf32> to vector<1x128xf32>
    %cst_25 = arith.constant 5.000000e-01 : f32
    %39 = vector.broadcast %cst_25 : f32 to vector<1x128xf32>
    %40 = arith.mulf %38, %39 : vector<1x128xf32>
    %41 = vector.broadcast %40 : vector<1x128xf32> to vector<2x128xf32>
    %42 = arith.subf %36, %41 : vector<2x128xf32>
    %43 = arith.mulf %42, %42 : vector<2x128xf32>
    %cst_26 = arith.constant dense<0.000000e+00> : vector<128xf32>
    %44 = vector.multi_reduction <add>, %43, %cst_26 [0] : vector<2x128xf32> to vector<128xf32>
    %45 = vector.shape_cast %44 : vector<128xf32> to vector<1x128xf32>
    %cst_27 = arith.constant 5.000000e-01 : f32
    %46 = vector.broadcast %cst_27 : f32 to vector<1x128xf32>
    %47 = arith.mulf %45, %46 : vector<1x128xf32>
    %cst_28 = arith.constant 9.99999974E-6 : f32
    %48 = vector.broadcast %cst_28 : f32 to vector<1x128xf32>
    %49 = arith.addf %47, %48 : vector<1x128xf32>
    %50 = math.rsqrt %49 : vector<1x128xf32>
    %51 = arith.mulf %32, %50 : vector<1x128xf32>
    %52 = vector.broadcast %51 : vector<1x128xf32> to vector<2x128xf32>
    %53 = arith.mulf %42, %52 : vector<2x128xf32>
    %54 = vector.broadcast %33 : vector<1x128xf32> to vector<2x128xf32>
    %55 = arith.addf %53, %54 : vector<2x128xf32>
    %cst_29 = arith.constant 0.000000e+00 : f32
    %56 = vector.broadcast %cst_29 : f32 to vector<2x128xf32>
    %57 = arith.maximumf %55, %56 : vector<2x128xf32>
    %58 = arith.truncf %57 : vector<2x128xf32> to vector<2x128xbf16>
    %c0_30 = arith.constant 0 : index
    %c0_31 = arith.constant 0 : index
    %59 = vector.load %arg9[%c0_30, %c0_31] : memref<128x128xbf16, #tpu.memory_space<vmem>>, vector<128x128xbf16>
    %c0_32 = arith.constant 0 : index
    %c0_33 = arith.constant 0 : index
    %60 = vector.load %arg10[%c0_32, %c0_33] : memref<1x128xf32, #tpu.memory_space<vmem>>, vector<1x128xf32>
    %cst_34 = arith.constant dense<0.000000e+00> : vector<2x128xf32>
    %61 = tpu.matmul %58, %59, %cst_34 {dimension_numbers = #tpu.dot_dimension_numbers<[1], [0], [0], [1], [0, 0, 1, 1], [], []>} : vector<2x128xbf16>, vector<128x128xbf16>, vector<2x128xf32> -> vector<2x128xf32>
    %62 = vector.broadcast %60 : vector<1x128xf32> to vector<2x128xf32>
    %63 = arith.addf %61, %62 : vector<2x128xf32>
    %c0_35 = arith.constant 0 : index
    %c0_36 = arith.constant 0 : index
    %64 = vector.load %arg11[%c0_35, %c0_36] : memref<2x128xf32, #tpu.memory_space<vmem>>, vector<2x128xf32>
    tpu.vector_store %arg11[%c0_35, %c0_36], %63 {strides = array<i32>} : memref<2x128xf32, #tpu.memory_space<vmem>>, vector<2x128xf32>,
    return
  }
}

</mosaic_0001>

<llo_original>
// kernel: essl_vicreg_forward.7
$region0: #{essl_vicreg_forward.7}
  #allocation0 [shape = 'u32[]', space=smem, size = 0x4, offset = 0x4, fixed_abs, tag = 'smem constant byte address 0x4 - core index']
  #allocation1 [shape = 'u32[144,128]{1,0:T(1,128)}', space=vmem, size = 0x12000, scoped, tag = 'internal scratch']
  %s0 = inlined_call_operand.vmem [shape: bf16[4,128], index: 0, kind: input, shape index: {}]
  %s1 = inlined_call_operand.vmem [shape: bf16[128,1024], index: 1, kind: input, shape index: {}]
  %s2 = inlined_call_operand.vmem [shape: f32[1,1024], index: 2, kind: input, shape index: {}, may-alias: {2,4}]
  %s3 = inlined_call_operand.vmem [shape: f32[1,1024], index: 3, kind: input, shape index: {}]
  %s4 = inlined_call_operand.vmem [shape: f32[1,1024], index: 4, kind: input, shape index: {}, may-alias: {2,4}]
  %s5 = inlined_call_operand.vmem [shape: bf16[4,1024], index: 5, kind: output, shape index: {}]
  %s6 = sld [smem:[#allocation0]]
  $region76: #{essl_vicreg_forward.7} parent=0
    _
  %s8 = ssub.s32 1, %s6
  %s9 = scalar_select 0, %s8, %s6
  $region1: #{essl_vicreg_forward.7} parent=0
    #allocation2 [shape = 'u8[262144]{0}', space=vmem, size = 0x40000, scoped, tag = 'input window, operand 1']
    loop: start=0, step=1, limit=4
    $region2: #{essl_vicreg_forward.7} parent=1 // loop_pre_header
      _
    $region3: #{essl_vicreg_forward.7} parent=1 // loop_header
      %s11 = sphi 0, %s15
      %p12 = scmp.ge.s32.totalorder %s11, 4
      %s19 = sphi 0, %s19
      %s21 = sphi 0, %s19
      %s22 = sphi 0, %s21
      %s36 = sphi 0, %s22
      %s42 = sphi 0, %s44
      %s45 = sphi 0, %s42
      %s46 = sphi 0, %s45
      %s62 = sphi 0, %s46
      %s68 = sphi 0, %s70
      %s71 = sphi 0, %s68
      %s72 = sphi 0, %s71
      %s88 = sphi 0, %s72
      %s94 = sphi 0, %s96
      %s97 = sphi 0, %s94
      %s98 = sphi 0, %s97
      %s114 = sphi 0, %s98
      %s120 = sphi 0, %s122
      %s123 = sphi 0, %s120
      %s124 = sphi 0, %s123
      %s140 = sphi 0, %s124
      %s146 = sphi 0, %s148
      %s149 = sphi 0, %s146
      %s150 = sphi 0, %s149
      %s166 = sphi 0, %s150
    $region4: #{essl_vicreg_forward.7} parent=1 // loop_header_branch
      %14 = sbr.rel (%p12) target = $region8
    $region5: #{essl_vicreg_forward.7} parent=1 // loop_body
      %s16 = ssub.s32 %s11, 1
      %s17 = ssub.s32 %s11, 2
      %s18 = sadd.s32 %s11, 1
      %s20 = sadd.s32 %s19, 1
      %p23 = scmp.eq.s32.totalorder %s11, 1
      %p24 = scmp.ne.s32.totalorder %s19, %s21
      %p25 = scmp.eq.s32.totalorder %s11, 0
      %p26 = por %p24, %p25
      %p27 = scmp.ne.s32.totalorder %s19, %s21
      %p28 = scmp.eq.s32.totalorder %s16, 1
      %p29 = por %p27, %p28
      %p30 = scmp.ne.s32.totalorder %s21, %s22
      %p31 = scmp.eq.s32.totalorder %s16, 0
      %p32 = por %p30, %p31
      %p33 = scmp.ne.s32.totalorder %s21, %s22
      %p34 = scmp.eq.s32.totalorder %s17, 1
      %p35 = por %p33, %p34
      %p37 = scmp.ne.s32.totalorder %s22, %s36
      %p38 = scmp.eq.s32.totalorder %s17, 0
      %p39 = por %p37, %p38
      %s40 = ssub.s32 %s11, %s18
      %p41 = scmp.eq.s32.totalorder %s40, 0
      %s43 = sadd.s32 %s42, 1
      %s44 = scalar_select %p41, %s42, %s43
      %p47 = pneg %p41
      %p48 = scmp.eq.s32.totalorder %s11, 1
      %p49 = por %p47, %p48
      %p50 = scmp.ne.s32.totalorder %s42, %s45
      %p51 = scmp.eq.s32.totalorder %s11, 0
      %p52 = por %p50, %p51
      %p53 = scmp.ne.s32.totalorder %s42, %s45
      %p54 = scmp.eq.s32.totalorder %s16, 1
      %p55 = por %p53, %p54
      %p56 = scmp.ne.s32.totalorder %s45, %s46
      %p57 = scmp.eq.s32.totalorder %s16, 0
      %p58 = por %p56, %p57
      %p59 = scmp.ne.s32.totalorder %s45, %s46
      %p60 = scmp.eq.s32.totalorder %s17, 1
      %p61 = por %p59, %p60
      %p63 = scmp.ne.s32.totalorder %s46, %s62
      %p64 = scmp.eq.s32.totalorder %s17, 0
      %p65 = por %p63, %p64
      %s66 = ssub.s32 %s11, %s18
      %p67 = scmp.eq.s32.totalorder %s66, 0
      %s69 = sadd.s32 %s68, 1
      %s70 = scalar_select %p67, %s68, %s69
      %p73 = pneg %p67
      %p74 = scmp.eq.s32.totalorder %s11, 1
      %p75 = por %p73, %p74
      %p76 = scmp.ne.s32.totalorder %s68, %s71
      %p77 = scmp.eq.s32.totalorder %s11, 0
      %p78 = por %p76, %p77
      %p79 = scmp.ne.s32.totalorder %s68, %s71
      %p80 = scmp.eq.s32.totalorder %s16, 1
      %p81 = por %p79, %p80
      %p82 = scmp.ne.s32.totalorder %s71, %s72
      %p83 = scmp.eq.s32.totalorder %s16, 0
      %p84 = por %p82, %p83
      %p85 = scmp.ne.s32.totalorder %s71, %s72
      %p86 = scmp.eq.s32.totalorder %s17, 1
      %p87 = por %p85, %p86
      %p89 = scmp.ne.s32.totalorder %s72, %s88
      %p90 = scmp.eq.s32.totalorder %s17, 0
      %p91 = por %p89, %p90
      %s92 = ssub.s32 %s11, %s18
      %p93 = scmp.eq.s32.totalorder %s92, 0
      %s95 = sadd.s32 %s94, 1
      %s96 = scalar_select %p93, %s94, %s95
      %p99 = pneg %p93
      %p100 = scmp.eq.s32.totalorder %s11, 1
      %p101 = por %p99, %p100
      %p102 = scmp.ne.s32.totalorder %s94, %s97
      %p103 = scmp.eq.s32.totalorder %s11, 0
      %p104 = por %p102, %p103
      %p105 = scmp.ne.s32.totalorder %s94, %s97
      %p106 = scmp.eq.s32.totalorder %s16, 1
      %p107 = por %p105, %p106
      %p108 = scmp.ne.s32.totalorder %s97, %s98
      %p109 = scmp.eq.s32.totalorder %s16, 0
      %p110 = por %p108, %p109
      %p111 = scmp.ne.s32.totalorder %s97, %s98
      %p112 = scmp.eq.s32.totalorder %s17, 1
      %p113 = por %p111, %p112
      %p115 = scmp.ne.s32.totalorder %s98, %s114
      %p116 = scmp.eq.s32.totalorder %s17, 0
      %p117 = por %p115, %p116
      %s118 = ssub.s32 %s11, %s18
      %p119 = scmp.eq.s32.totalorder %s118, 0
      %s121 = sadd.s32 %s120, 1
      %s122 = scalar_select %p119, %s120, %s121
      %p125 = pneg %p119
      %p126 = scmp.eq.s32.totalorder %s11, 1
      %p127 = por %p125, %p126
      %p128 = scmp.ne.s32.totalorder %s120, %s123
      %p129 = scmp.eq.s32.totalorder %s11, 0
      %p130 = por %p128, %p129
      %p131 = scmp.ne.s32.totalorder %s120, %s123
      %p132 = scmp.eq.s32.totalorder %s16, 1
      %p133 = por %p131, %p132
      %p134 = scmp.ne.s32.totalorder %s123, %s124
      %p135 = scmp.eq.s32.totalorder %s16, 0
      %p136 = por %p134, %p135
      %p137 = scmp.ne.s32.totalorder %s123, %s124
      %p138 = scmp.eq.s32.totalorder %s17, 1
      %p139 = por %p137, %p138
      %p141 = scmp.ne.s32.totalorder %s124, %s140
      %p142 = scmp.eq.s32.totalorder %s17, 0
      %p143 = por %p141, %p142
      %s144 = ssub.s32 %s11, %s18
      %p145 = scmp.eq.s32.totalorder %s144, 0
      %s147 = sadd.s32 %s146, 1
      %s148 = scalar_select %p145, %s146, %s147
      %p151 = pneg %p145
      %p152 = scmp.eq.s32.totalorder %s11, 1
      %p153 = por %p151, %p152
      %p154 = scmp.ne.s32.totalorder %s146, %s149
      %p155 = scmp.eq.s32.totalorder %s11, 0
      %p156 = por %p154, %p155
      %p157 = scmp.ne.s32.totalorder %s146, %s149
      %p158 = scmp.eq.s32.totalorder %s16, 1
      %p159 = por %p157, %p158
      %p160 = scmp.ne.s32.totalorder %s149, %s150
      %p161 = scmp.eq.s32.totalorder %s16, 0
      %p162 = por %p160, %p161
      %p163 = scmp.ne.s32.totalorder %s149, %s150
      %p164 = scmp.eq.s32.totalorder %s17, 1
      %p165 = por %p163, %p164
      %p167 = scmp.ne.s32.totalorder %s150, %s166
      %p168 = scmp.eq.s32.totalorder %s17, 0
      %p169 = por %p167, %p168
      %p170 = scmp.le.s32.totalorder 1, %s11
      %p171 = scmp.lt.s32.totalorder %s11, 3
      %p172 = pnand %p170, %p171
      %p173 = pneg %p172
      // Predicated region
      $region9: #{essl_vicreg_forward.7} parent=5 // pred_check
        _
      $region10: #{essl_vicreg_forward.7} parent=5 // pred_check_branch
        %175 = sbr.rel (%p172) target = $region12
      $region11: #{essl_vicreg_forward.7} parent=5 // pred_region
        %s176 = ssub.s32 %s11, 1
        // Predicated region
        $region13: #{essl_vicreg_forward.7} parent=11 // pred_check
          %p177 = pneg %p32
        $region14: #{essl_vicreg_forward.7} parent=11 // pred_check_branch
          %179 = sbr.rel (%p177) target = $region16
        $region15: #{essl_vicreg_forward.7} parent=11 // pred_region
          _
        $region16: #{essl_vicreg_forward.7} parent=11 // pred_fallthru
          _
      $region12: #{essl_vicreg_forward.7} parent=5 // pred_fallthru
        _
      %p180 = scmp.lt.s32.totalorder %s11, 2
      // Predicated region
      $region17: #{essl_vicreg_forward.7} parent=5 // pred_check
        %p181 = pneg %p180
      $region18: #{essl_vicreg_forward.7} parent=5 // pred_check_branch
        %183 = sbr.rel (%p181) target = $region20
      $region19: #{essl_vicreg_forward.7} parent=5 // pred_region
        // Predicated region
        $region21: #{essl_vicreg_forward.7} parent=19 // pred_check
          %p184 = pneg %p52
        $region22: #{essl_vicreg_forward.7} parent=19 // pred_check_branch
          %186 = sbr.rel (%p184) target = $region24
        $region23: #{essl_vicreg_forward.7} parent=19 // pred_region
          %s187 = sand.u32 %s42, 1
          %s188 = sand.u32 %s42, 1
          %s189 = smul.addr %s188, 256
          %s190 = scalar_lea.vmem [#allocation2], %s189
          %s191 = smul.u32 4, %s11
          %s192 = smul.addr %s191, 4
          %s193 = scalar_lea.vmem %s1, %s192
          // Predicated region
          $region25: #{essl_vicreg_forward.7} parent=23 // pred_check
            _
          $region26: #{essl_vicreg_forward.7} parent=23 // pred_check_branch
            %195 = sbr.rel (0) target = $region28
          $region27: #{essl_vicreg_forward.7} parent=23 // pred_region
            // Predicated region
            $region29: #{essl_vicreg_forward.7} parent=27 // pred_check
              _
            $region30: #{essl_vicreg_forward.7} parent=27 // pred_check_branch
              %197 = sbr.rel (0) target = $region32
            $region31: #{essl_vicreg_forward.7} parent=27 // pred_region
              loop: start=0, step=1, limit=1
              $region33: #{essl_vicreg_forward.7} parent=31 // loop_pre_header
                _
              $region34: #{essl_vicreg_forward.7} parent=31 // loop_header
                %s199 = sphi 0, %s203
                %p200 = scmp.ge.s32.totalorder %s199, 1
                %s204 = sphi %s193, %s193
                %s205 = sphi %s190, %s190
              $region35: #{essl_vicreg_forward.7} parent=31 // loop_header_branch
                %202 = sbr.rel (%p200) target = $region39
              $region36: #{essl_vicreg_forward.7} parent=31 // loop_body
                %v206 = vld [vmem:[%s204] sm:$0xff]
                %207 = vst [vmem:[%s205] sm:$0xff] %v206
                %v208 = vld [vmem:[%s204 + $0x8] sm:$0xff]
                %209 = vst [vmem:[%s205 + $0x8] sm:$0xff] %v208
                %v210 = vld [vmem:[%s204 + $0x20] sm:$0xff]
                %211 = vst [vmem:[%s205 + $0x10] sm:$0xff] %v210
                %v212 = vld [vmem:[%s204 + $0x28] sm:$0xff]
                %213 = vst [vmem:[%s205 + $0x18] sm:$0xff] %v212
                %v214 = vld [vmem:[%s204 + $0x40] sm:$0xff]
                %215 = vst [vmem:[%s205 + $0x20] sm:$0xff] %v214
                %v216 = vld [vmem:[%s204 + $0x48] sm:$0xff]
                %217 = vst [vmem:[%s205 + $0x28] sm:$0xff] %v216
                %v218 = vld [vmem:[%s204 + $0x60] sm:$0xff]
                %219 = vst [vmem:[%s205 + $0x30] sm:$0xff] %v218
                %v220 = vld [vmem:[%s204 + $0x68] sm:$0xff]
                %221 = vst [vmem:[%s205 + $0x38] sm:$0xff] %v220
                %v222 = vld [vmem:[%s204 + $0x80] sm:$0xff]
                %223 = vst [vmem:[%s205 + $0x40] sm:$0xff] %v222
                %v224 = vld [vmem:[%s204 + $0x88] sm:$0xff]
                %225 = vst [vmem:[%s205 + $0x48] sm:$0xff] %v224
                %v226 = vld [vmem:[%s204 + $0xa0] sm:$0xff]
                %227 = vst [vmem:[%s205 + $0x50] sm:$0xff] %v226
                %v228 = vld [vmem:[%s204 + $0xa8] sm:$0xff]
                %229 = vst [vmem:[%s205 + $0x58] sm:$0xff] %v228
                %v230 = vld [vmem:[%s204 + $0xc0] sm:$0xff]
                %231 = vst [vmem:[%s205 + $0x60] sm:$0xff] %v230
                %v232 = vld [vmem:[%s204 + $0xc8] sm:$0xff]
                %233 = vst [vmem:[%s205 + $0x68] sm:$0xff] %v232
                %v234 = vld [vmem:[%s204 + $0xe0] sm:$0xff]
                %235 = vst [vmem:[%s205 + $0x70] sm:$0xff] %v234
                %v236 = vld [vmem:[%s204 + $0xe8] sm:$0xff]
                %237 = vst [vmem:[%s205 + $0x78] sm:$0xff] %v236
                %v238 = vld [vmem:[%s204 + $0x100] sm:$0xff]
                %239 = vst [vmem:[%s205 + $0x80] sm:$0xff] %v238
                %v240 = vld [vmem:[%s204 + $0x108] sm:$0xff]
                %241 = vst [vmem:[%s205 + $0x88] sm:$0xff] %v240
                %v242 = vld [vmem:[%s204 + $0x120] sm:$0xff]
                %243 = vst [vmem:[%s205 + $0x90] sm:$0xff] %v242
                %v244 = vld [vmem:[%s204 + $0x128] sm:$0xff]
                %245 = vst [vmem:[%s205 + $0x98] sm:$0xff] %v244
                %v246 = vld [vmem:[%s204 + $0x140] sm:$0xff]
                %247 = vst [vmem:[%s205 + $0xa0] sm:$0xff] %v246
                %v248 = vld [vmem:[%s204 + $0x148] sm:$0xff]
                %249 = vst [vmem:[%s205 + $0xa8] sm:$0xff] %v248
                %v250 = vld [vmem:[%s204 + $0x160] sm:$0xff]
                %251 = vst [vmem:[%s205 + $0xb0] sm:$0xff] %v250
                %v252 = vld [vmem:[%s204 + $0x168] sm:$0xff]
                %253 = vst [vmem:[%s205 + $0xb8] sm:$0xff] %v252
                %v254 = vld [vmem:[%s204 + $0x180] sm:$0xff]
                %255 = vst [vmem:[%s205 + $0xc0] sm:$0xff] %v254
                %v256 = vld [vmem:[%s204 + $0x188] sm:$0xff]
                %257 = vst [vmem:[%s205 + $0xc8] sm:$0xff] %v256
                %v258 = vld [vmem:[%s204 + $0x1a0] sm:$0xff]
                %259 = vst [vmem:[%s205 + $0xd0] sm:$0xff] %v258
                %v260 = vld [vmem:[%s204 + $0x1a8] sm:$0xff]
                %261 = vst [vmem:[%s205 + $0xd8] sm:$0xff] %v260
                %v262 = vld [vmem:[%s204 + $0x1c0] sm:$0xff]
                %263 = vst [vmem:[%s205 + $0xe0] sm:$0xff] %v262
                %v264 = vld [vmem:[%s204 + $0x1c8] sm:$0xff]
                %265 = vst [vmem:[%s205 + $0xe8] sm:$0xff] %v264
                %v266 = vld [vmem:[%s204 + $0x1e0] sm:$0xff]
                %267 = vst [vmem:[%s205 + $0xf0] sm:$0xff] %v266
                %v268 = vld [vmem:[%s204 + $0x1e8] sm:$0xff]
                %269 = vst [vmem:[%s205 + $0xf8] sm:$0xff] %v268
              $region37: #{essl_vicreg_forward.7} parent=31 // loop_footer
                %s203 = sadd.s32 1, %s199
              $region38: #{essl_vicreg_forward.7} parent=31 // loop_footer_branch
                %198 = sbr.rel target = $region34
              $region39: #{essl_vicreg_forward.7} parent=31 // loop_exit
                _
            $region32: #{essl_vicreg_forward.7} parent=27 // pred_fallthru
              _
            // Predicated region
            $region40: #{essl_vicreg_forward.7} parent=27 // pred_check
              _
            $region41: #{essl_vicreg_forward.7} parent=27 // pred_check_branch
              %271 = sbr.rel target = $region43
            $region42: #{essl_vicreg_forward.7} parent=27 // pred_region
              _
            $region43: #{essl_vicreg_forward.7} parent=27 // pred_fallthru
              _
          $region28: #{essl_vicreg_forward.7} parent=23 // pred_fallthru
            _
          %272 = vnop
        $region24: #{essl_vicreg_forward.7} parent=19 // pred_fallthru
          _
        // Predicated region
        $region44: #{essl_vicreg_forward.7} parent=19 // pred_check
          %p273 = pneg %p78
        $region45: #{essl_vicreg_forward.7} parent=19 // pred_check_branch
          %275 = sbr.rel (%p273) target = $region47
        $region46: #{essl_vicreg_forward.7} parent=19 // pred_region
          %s276 = smul.u32 4, %s11
          %p277 = scmp.lt.s32.totalorder %s276, 7
          %s278 = scalar_select %p277, %s276, 7
          %s279 = scalar_lea.vmem %s2, %s278
          %s280 = smul.u32 4, %s11
        $region47: #{essl_vicreg_forward.7} parent=19 // pred_fallthru
          _
        // Predicated region
        $region48: #{essl_vicreg_forward.7} parent=19 // pred_check
          %p281 = pneg %p104
        $region49: #{essl_vicreg_forward.7} parent=19 // pred_check_branch
          %283 = sbr.rel (%p281) target = $region51
        $region50: #{essl_vicreg_forward.7} parent=19 // pred_region
          %s284 = smul.u32 4, %s11
          %p285 = scmp.lt.s32.totalorder %s284, 7
          %s286 = scalar_select %p285, %s284, 7
          %s287 = scalar_lea.vmem %s3, %s286
          %s288 = smul.u32 4, %s11
        $region51: #{essl_vicreg_forward.7} parent=19 // pred_fallthru
          _
        // Predicated region
        $region52: #{essl_vicreg_forward.7} parent=19 // pred_check
          %p289 = pneg %p130
        $region53: #{essl_vicreg_forward.7} parent=19 // pred_check_branch
          %291 = sbr.rel (%p289) target = $region55
        $region54: #{essl_vicreg_forward.7} parent=19 // pred_region
          %s292 = smul.u32 4, %s11
          %p293 = scmp.lt.s32.totalorder %s292, 7
          %s294 = scalar_select %p293, %s292, 7
          %s295 = scalar_lea.vmem %s4, %s294
          %s296 = smul.u32 4, %s11
        $region55: #{essl_vicreg_forward.7} parent=19 // pred_fallthru
          _
      $region20: #{essl_vicreg_forward.7} parent=5 // pred_fallthru
        _
      %p297 = scmp.le.s32.totalorder 1, %s11
      %p298 = scmp.lt.s32.totalorder %s11, 3
      %p299 = pnand %p297, %p298
      %p300 = pneg %p299
      // Predicated region
      $region56: #{essl_vicreg_forward.7} parent=5 // pred_check
        _
      $region57: #{essl_vicreg_forward.7} parent=5 // pred_check_branch
        %302 = sbr.rel (%p299) target = $region59
      $region58: #{essl_vicreg_forward.7} parent=5 // pred_region
        %s303 = ssub.s32 %s11, 1
        %s304 = sand.u32 %s45, 1
        %s305 = sand.u32 %s45, 1
        %s306 = smul.addr %s305, 256
        %s307 = scalar_lea.vmem [#allocation2], %s306
        // Predicated region
        $region60: #{essl_vicreg_forward.7} parent=58 // pred_check
          %p308 = pneg %p58
        $region61: #{essl_vicreg_forward.7} parent=58 // pred_check_branch
          %310 = sbr.rel (%p308) target = $region63
        $region62: #{essl_vicreg_forward.7} parent=58 // pred_region
          _
        $region63: #{essl_vicreg_forward.7} parent=58 // pred_fallthru
          _
        %p311 = pneg %p32
        %p312 = pneg %p29
        %s313 = sand.u32 %s45, 1
        %s314 = sand.u32 %s45, 1
        %s315 = smul.addr %s314, 256
        %s316 = scalar_lea.vmem [#allocation2], %s315
        %p317 = pneg %p58
        %p318 = pneg %p55
        %s319 = smul.u32 4, %s16
        %p320 = scmp.lt.s32.totalorder %s319, 7
        %s321 = scalar_select %p320, %s319, 7
        %s322 = scalar_lea.vmem %s2, %s321
        %p323 = pneg %p84
        %p324 = pneg %p81
        %s325 = smul.u32 4, %s16
        %p326 = scmp.lt.s32.totalorder %s325, 7
        %s327 = scalar_select %p326, %s325, 7
        %s328 = scalar_lea.vmem %s3, %s327
        %p329 = pneg %p110
        %p330 = pneg %p107
        %s331 = smul.u32 4, %s16
        %p332 = scmp.lt.s32.totalorder %s331, 7
        %s333 = scalar_select %p332, %s331, 7
        %s334 = scalar_lea.vmem %s4, %s333
        %p335 = pneg %p136
        %p336 = pneg %p133
        %p337 = pneg %p162
        %p338 = pneg %p159
        %s339 = smul.u32 4, %s16
        %p340 = scmp.lt.s32.totalorder %s339, 7
        %s341 = scalar_select %p340, %s339, 7
        %s342 = smul.addr %s341, 2
        %s343 = scalar_lea.vmem %s5, %s342
        %s344 = smul.u32 4, %s16
        %s345 = smul.u32 4, %s16
        %p346 = scmp.lt.s32.totalorder %s345, 7
        %s347 = scalar_select %p346, %s345, 7
        %s348 = scalar_lea.vmem %s2, %s347
        %s349 = smul.u32 4, %s16
        %s350 = smul.u32 4, %s16
        %p351 = scmp.lt.s32.totalorder %s350, 7
        %s352 = scalar_select %p351, %s350, 7
        %s353 = scalar_lea.vmem %s3, %s352
        %s354 = smul.u32 4, %s16
        %s355 = smul.u32 4, %s16
        %p356 = scmp.lt.s32.totalorder %s355, 7
        %s357 = scalar_select %p356, %s355, 7
        %s358 = scalar_lea.vmem %s4, %s357
        %s359 = smul.u32 4, %s16
        %s360 = smul.u32 4, %s16
        %p361 = scmp.lt.s32.totalorder %s360, 7
        %s362 = scalar_select %p361, %s360, 7
        %s363 = smul.addr %s362, 2
        %s364 = scalar_lea.vmem %s5, %s363
        %s365 = smul.u32 4, %s16
        %v367 = vld [vmem:[%s348] sm:$0xf]
        %v368 = vld [vmem:[%s353] sm:$0xf]
        %v369 = vld [vmem:[%s358] sm:$0xf]
        %v370 = vld [vmem:[%s0] sm:$0x3]
        %v371 = vld [vmem:[%s307] sm:$0xff]
        %v372 = vld [vmem:[%s307 + $0x8] sm:$0xff]
        %v373 = vld [vmem:[%s307 + $0x10] sm:$0xff]
        %v374 = vld [vmem:[%s307 + $0x18] sm:$0xff]
        %v375 = vld [vmem:[%s307 + $0x20] sm:$0xff]
        %v376 = vld [vmem:[%s307 + $0x28] sm:$0xff]
        %v377 = vld [vmem:[%s307 + $0x30] sm:$0xff]
        %v378 = vld [vmem:[%s307 + $0x38] sm:$0xff]
        %v379 = vld [vmem:[%s307 + $0x40] sm:$0xff]
        %v380 = vld [vmem:[%s307 + $0x48] sm:$0xff]
        %v381 = vld [vmem:[%s307 + $0x50] sm:$0xff]
        %v382 = vld [vmem:[%s307 + $0x58] sm:$0xff]
        %v383 = vld [vmem:[%s307 + $0x60] sm:$0xff]
        %v384 = vld [vmem:[%s307 + $0x68] sm:$0xff]
        %v385 = vld [vmem:[%s307 + $0x70] sm:$0xff]
        %v386 = vld [vmem:[%s307 + $0x78] sm:$0xff]
        %v387 = vld [vmem:[%s307 + $0x80] sm:$0xff]
        %v388 = vld [vmem:[%s307 + $0x88] sm:$0xff]
        %v389 = vld [vmem:[%s307 + $0x90] sm:$0xff]
        %v390 = vld [vmem:[%s307 + $0x98] sm:$0xff]
        %v391 = vld [vmem:[%s307 + $0xa0] sm:$0xff]
        %v392 = vld [vmem:[%s307 + $0xa8] sm:$0xff]
        %v393 = vld [vmem:[%s307 + $0xb0] sm:$0xff]
        %v394 = vld [vmem:[%s307 + $0xb8] sm:$0xff]
        %v395 = vld [vmem:[%s307 + $0xc0] sm:$0xff]
        %v396 = vld [vmem:[%s307 + $0xc8] sm:$0xff]
        %v397 = vld [vmem:[%s307 + $0xd0] sm:$0xff]
        %v398 = vld [vmem:[%s307 + $0xd8] sm:$0xff]
        %v399 = vld [vmem:[%s307 + $0xe0] sm:$0xff]
        %v400 = vld [vmem:[%s307 + $0xe8] sm:$0xff]
        %v401 = vld [vmem:[%s307 + $0xf0] sm:$0xff]
        %v402 = vld [vmem:[%s307 + $0xf8] sm:$0xff]
        %v404 = vlaneseq
        %v405 = vshrl.u32 %v404, 7
        %v406 = vsub.s32 0, %v405
        %v407 = vrot.slane %v367, %v406
        %v408 = vlaneseq
        %v409 = vshrl.u32 %v408, 7
        %v410 = vsub.s32 1, %v409
        %v411 = vrot.slane %v367, %v410
        %v412 = vlaneseq
        %v413 = vshrl.u32 %v412, 7
        %v414 = vsub.s32 2, %v413
        %v415 = vrot.slane %v367, %v414
        %v416 = vlaneseq
        %v417 = vshrl.u32 %v416, 7
        %v418 = vsub.s32 3, %v417
        %v419 = vrot.slane %v367, %v418
        %v456 = vunpack.c.l.b16 %v371
        %v457 = vunpack.c.h.b16 %v371
        %v458 = vunpack.c.l.b16 %v372
        %v459 = vunpack.c.h.b16 %v372
        %v460 = vunpack.c.l.b16 %v373
        %v461 = vunpack.c.h.b16 %v373
        %v462 = vunpack.c.l.b16 %v374
        %v463 = vunpack.c.h.b16 %v374
        %v464 = vunpack.c.l.b16 %v375
        %v465 = vunpack.c.h.b16 %v375
        %v466 = vunpack.c.l.b16 %v376
        %v467 = vunpack.c.h.b16 %v376
        %v468 = vunpack.c.l.b16 %v377
        %v469 = vunpack.c.h.b16 %v377
        %v470 = vunpack.c.l.b16 %v378
        %v471 = vunpack.c.h.b16 %v378
        %v472 = vunpack.c.l.b16 %v379
        %v473 = vunpack.c.h.b16 %v379
        %v474 = vunpack.c.l.b16 %v380
        %v475 = vunpack.c.h.b16 %v380
        %v476 = vunpack.c.l.b16 %v381
        %v477 = vunpack.c.h.b16 %v381
        %v478 = vunpack.c.l.b16 %v382
        %v479 = vunpack.c.h.b16 %v382
        %v480 = vunpack.c.l.b16 %v383
        %v481 = vunpack.c.h.b16 %v383
        %v482 = vunpack.c.l.b16 %v384
        %v483 = vunpack.c.h.b16 %v384
        %v484 = vunpack.c.l.b16 %v385
        %v485 = vunpack.c.h.b16 %v385
        %v486 = vunpack.c.l.b16 %v386
        %v487 = vunpack.c.h.b16 %v386
        %v488 = vunpack.c.l.b16 %v387
        %v489 = vunpack.c.h.b16 %v387
        %v490 = vunpack.c.l.b16 %v388
        %v491 = vunpack.c.h.b16 %v388
        %v492 = vunpack.c.l.b16 %v389
        %v493 = vunpack.c.h.b16 %v389
        %v494 = vunpack.c.l.b16 %v390
        %v495 = vunpack.c.h.b16 %v390
        %v496 = vunpack.c.l.b16 %v391
        %v497 = vunpack.c.h.b16 %v391
        %v498 = vunpack.c.l.b16 %v392
        %v499 = vunpack.c.h.b16 %v392
        %v500 = vunpack.c.l.b16 %v393
        %v501 = vunpack.c.h.b16 %v393
        %v502 = vunpack.c.l.b16 %v394
        %v503 = vunpack.c.h.b16 %v394
        %v504 = vunpack.c.l.b16 %v395
        %v505 = vunpack.c.h.b16 %v395
        %v506 = vunpack.c.l.b16 %v396
        %v507 = vunpack.c.h.b16 %v396
        %v508 = vunpack.c.l.b16 %v397
        %v509 = vunpack.c.h.b16 %v397
        %v510 = vunpack.c.l.b16 %v398
        %v511 = vunpack.c.h.b16 %v398
        %v512 = vunpack.c.l.b16 %v399
        %v513 = vunpack.c.h.b16 %v399
        %v514 = vunpack.c.l.b16 %v400
        %v515 = vunpack.c.h.b16 %v400
        %v516 = vunpack.c.l.b16 %v401
        %v517 = vunpack.c.h.b16 %v401
        %v518 = vunpack.c.l.b16 %v402
        %v519 = vunpack.c.h.b16 %v402
        %v520 = vpack.c.b16 %v460, %v456
        %v521 = vpack.c.b16 %v461, %v457
        %v522 = vpack.c.b16 %v462, %v458
        %v523 = vpack.c.b16 %v463, %v459
        %v524 = vpack.c.b16 %v468, %v464
        %v525 = vpack.c.b16 %v469, %v465
        %v526 = vpack.c.b16 %v470, %v466
        %v527 = vpack.c.b16 %v471, %v467
        %v528 = vpack.c.b16 %v476, %v472
        %v529 = vpack.c.b16 %v477, %v473
        %v530 = vpack.c.b16 %v478, %v474
        %v531 = vpack.c.b16 %v479, %v475
        %v532 = vpack.c.b16 %v484, %v480
        %v533 = vpack.c.b16 %v485, %v481
        %v534 = vpack.c.b16 %v486, %v482
        %v535 = vpack.c.b16 %v487, %v483
        %v536 = vpack.c.b16 %v492, %v488
        %v537 = vpack.c.b16 %v493, %v489
        %v538 = vpack.c.b16 %v494, %v490
        %v539 = vpack.c.b16 %v495, %v491
        %v540 = vpack.c.b16 %v500, %v496
        %v541 = vpack.c.b16 %v501, %v497
        %v542 = vpack.c.b16 %v502, %v498
        %v543 = vpack.c.b16 %v503, %v499
        %v544 = vpack.c.b16 %v508, %v504
        %v545 = vpack.c.b16 %v509, %v505
        %v546 = vpack.c.b16 %v510, %v506
        %v547 = vpack.c.b16 %v511, %v507
        %v548 = vpack.c.b16 %v516, %v512
        %v549 = vpack.c.b16 %v517, %v513
        %v550 = vpack.c.b16 %v518, %v514
        %v551 = vpack.c.b16 %v519, %v515
        %584 = vmatprep.subr.bf16.mxu0 %v549
        %585 = vmatpush1.bf16.msra.mxu0 %v548
        %586 = vmatprep.subr.bf16.mxu0 %v545
        %587 = vmatpush1.bf16.msra.mxu0 %v544
        %588 = vmatprep.subr.bf16.mxu0 %v541
        %589 = vmatpush1.bf16.msra.mxu0 %v540
        %590 = vmatprep.subr.bf16.mxu0 %v537
        %591 = vmatpush1.bf16.msra.mxu0 %v536
        %592 = vmatprep.subr.bf16.mxu0 %v533
        %593 = vmatpush1.bf16.msra.mxu0 %v532
        %594 = vmatprep.subr.bf16.mxu0 %v529
        %595 = vmatpush1.bf16.msra.mxu0 %v528
        %596 = vmatprep.subr.bf16.mxu0 %v525
        %597 = vmatpush1.bf16.msra.mxu0 %v524
        %598 = vmatprep.subr.bf16.mxu0 %v521
        %599 = vmatpush1.bf16.msra.mxu0 %v520
        %600 = vmatprep.subr.bf16.mxu0 0
        %601 = vmatpush2.bf16.msra.mxu0 0
        %602 = vmatprep.subr.bf16.mxu0 0
        %603 = vmatpush2.bf16.msra.mxu0 0
        %604 = vmatprep.subr.bf16.mxu0 0
        %605 = vmatpush2.bf16.msra.mxu0 0
        %606 = vmatprep.subr.bf16.mxu0 0
        %607 = vmatpush2.bf16.msra.mxu0 0
        %608 = vmatprep.subr.bf16.mxu0 0
        %609 = vmatpush2.bf16.msra.mxu0 0
        %610 = vmatprep.subr.bf16.mxu0 0
        %611 = vmatpush2.bf16.msra.mxu0 0
        %612 = vmatprep.subr.bf16.mxu0 0
        %613 = vmatpush2.bf16.msra.mxu0 0
        %614 = vmatprep.subr.bf16.mxu0 0
        %615 = vmatpush2.bf16.msra.mxu0 0
        %616 = vmatprep.mubr.bf16.mxu0 0
        %617 = vmatmul.mubr.bf16.gmra.mxu0 %v370
        %v618 = vpop.f32.mrf.mxu0
        %v619 = vadd.f32 %v407, %v618
        %v620 = vpop.f32.mrf.mxu0
        %v621 = vadd.f32 %v411, %v620
        %v622 = vpop.f32.mrf.mxu0
        %v623 = vpop.f32.mrf.mxu0
        %624 = vdwg.mxu0
        %625 = vmatprep.subr.bf16.mxu0 %v551
        %626 = vmatpush1.bf16.msra.mxu0 %v550
        %627 = vmatprep.subr.bf16.mxu0 %v547
        %628 = vmatpush1.bf16.msra.mxu0 %v546
        %629 = vmatprep.subr.bf16.mxu0 %v543
        %630 = vmatpush1.bf16.msra.mxu0 %v542
        %631 = vmatprep.subr.bf16.mxu0 %v539
        %632 = vmatpush1.bf16.msra.mxu0 %v538
        %633 = vmatprep.subr.bf16.mxu0 %v535
        %634 = vmatpush1.bf16.msra.mxu0 %v534
        %635 = vmatprep.subr.bf16.mxu0 %v531
        %636 = vmatpush1.bf16.msra.mxu0 %v530
        %637 = vmatprep.subr.bf16.mxu0 %v527
        %638 = vmatpush1.bf16.msra.mxu0 %v526
        %639 = vmatprep.subr.bf16.mxu0 %v523
        %640 = vmatpush1.bf16.msra.mxu0 %v522
        %641 = vmatprep.subr.bf16.mxu0 0
        %642 = vmatpush2.bf16.msra.mxu0 0
        %643 = vmatprep.subr.bf16.mxu0 0
        %644 = vmatpush2.bf16.msra.mxu0 0
        %645 = vmatprep.subr.bf16.mxu0 0
        %646 = vmatpush2.bf16.msra.mxu0 0
        %647 = vmatprep.subr.bf16.mxu0 0
        %648 = vmatpush2.bf16.msra.mxu0 0
        %649 = vmatprep.subr.bf16.mxu0 0
        %650 = vmatpush2.bf16.msra.mxu0 0
        %651 = vmatprep.subr.bf16.mxu0 0
        %652 = vmatpush2.bf16.msra.mxu0 0
        %653 = vmatprep.subr.bf16.mxu0 0
        %654 = vmatpush2.bf16.msra.mxu0 0
        %655 = vmatprep.subr.bf16.mxu0 0
        %656 = vmatpush2.bf16.msra.mxu0 0
        %657 = vmatprep.mubr.bf16.mxu0 0
        %658 = vmatmul.mubr.bf16.gmra.mxu0 %v370
        %v659 = vpop.f32.mrf.mxu0
        %v660 = vadd.f32 %v415, %v659
        %v661 = vpop.f32.mrf.mxu0
        %v662 = vadd.f32 %v419, %v661
        %v663 = vpop.f32.mrf.mxu0
        %v664 = vpop.f32.mrf.mxu0
        %665 = vdwg.mxu0
        %vm666 = vcmask 1041408
        %v667 = vsel %vm666, %v619, 0.0
        %v668 = vrot.slane %v667, 4
        %v669 = vadd.f32 %v667, %v668
        %v670 = vrot.slane %v669, 2
        %v671 = vadd.f32 %v669, %v670
        %v672 = vrot.slane %v671, 1
        %v673 = vadd.f32 %v671, %v672
        %v674 = vsel %vm666, %v621, 0.0
        %v675 = vrot.slane %v674, 4
        %v676 = vadd.f32 %v674, %v675
        %v677 = vrot.slane %v676, 2
        %v678 = vadd.f32 %v676, %v677
        %v679 = vrot.slane %v678, 1
        %v680 = vadd.f32 %v678, %v679
        %v681 = vsel %vm666, %v660, 0.0
        %v682 = vrot.slane %v681, 4
        %v683 = vadd.f32 %v681, %v682
        %v684 = vrot.slane %v683, 2
        %v685 = vadd.f32 %v683, %v684
        %v686 = vrot.slane %v685, 1
        %v687 = vadd.f32 %v685, %v686
        %v688 = vsel %vm666, %v662, 0.0
        %v689 = vrot.slane %v688, 4
        %v690 = vadd.f32 %v688, %v689
        %v691 = vrot.slane %v690, 2
        %v692 = vadd.f32 %v690, %v691
        %v693 = vrot.slane %v692, 1
        %v694 = vadd.f32 %v692, %v693
        %v695 = vmul.f32 %v673, 0.5
        %v696 = vmul.f32 %v680, 0.5
        %v697 = vmul.f32 %v687, 0.5
        %v698 = vmul.f32 %v694, 0.5
        %v699 = vsub.f32 %v619, %v695
        %v700 = vsub.f32 %v621, %v696
        %v701 = vsub.f32 %v660, %v697
        %v702 = vsub.f32 %v662, %v698
        %v703 = vmul.f32 %v699, %v699
        %v704 = vmul.f32 %v700, %v700
        %v705 = vmul.f32 %v701, %v701
        %v706 = vmul.f32 %v702, %v702
        %v707 = vsel %vm666, %v703, 0.0
        %v708 = vrot.slane %v707, 4
        %v709 = vadd.f32 %v707, %v708
        %v710 = vrot.slane %v709, 2
        %v711 = vadd.f32 %v709, %v710
        %v712 = vrot.slane %v711, 1
        %v713 = vadd.f32 %v711, %v712
        %v714 = vsel %vm666, %v704, 0.0
        %v715 = vrot.slane %v714, 4
        %v716 = vadd.f32 %v714, %v715
        %v717 = vrot.slane %v716, 2
        %v718 = vadd.f32 %v716, %v717
        %v719 = vrot.slane %v718, 1
        %v720 = vadd.f32 %v718, %v719
        %v721 = vsel %vm666, %v705, 0.0
        %v722 = vrot.slane %v721, 4
        %v723 = vadd.f32 %v721, %v722
        %v724 = vrot.slane %v723, 2
        %v725 = vadd.f32 %v723, %v724
        %v726 = vrot.slane %v725, 1
        %v727 = vadd.f32 %v725, %v726
        %v728 = vsel %vm666, %v706, 0.0
        %v729 = vrot.slane %v728, 4
        %v730 = vadd.f32 %v728, %v729
        %v731 = vrot.slane %v730, 2
        %v732 = vadd.f32 %v730, %v731
        %v733 = vrot.slane %v732, 1
        %v734 = vadd.f32 %v732, %v733
        %v735 = vmul.f32 %v713, 0.5
        %v736 = vmul.f32 %v720, 0.5
        %v737 = vmul.f32 %v727, 0.5
        %v738 = vmul.f32 %v734, 0.5
        %v739 = vadd.f32 %v735, 1e-05
        %v740 = vadd.f32 %v736, 1e-05
        %v741 = vadd.f32 %v737, 1e-05
        %v742 = vadd.f32 %v738, 1e-05
        %v743 = vrsqrt.pop %v739
        %v744 = vrsqrt.pop %v740
        %v745 = vrsqrt.pop %v741
        %v746 = vrsqrt.pop %v742
        %v751 = vcombine.low %v743, %v744
        %v752 = vcombine.low %v745, %v746
        %v754 = vunpack.c.l.s4 1966171168
        %v755 = vunpack.c.0.s8 %v754
        %v756 = vlaneseq
        %v757 = vshrl.u32 %v756, 7
        %v758 = vsub.s32 %v755, %v757
        %v759 = vrot.slane %v751, %v758
        %v761 = vunpack.c.l.s4 1966171168
        %v762 = vunpack.c.0.s8 %v761
        %v763 = vlaneseq
        %v764 = vshrl.u32 %v763, 7
        %v765 = vsub.s32 %v762, %v764
        %v766 = vrot.slane %v752, %v765
        %v767 = vcombine.low %v759, %v766
        %v769 = vunpack.c.l.s4 1966171168
        %v770 = vunpack.c.0.s8 %v769
        %v771 = vlaneseq
        %v772 = vshrl.u32 %v771, 7
        %v773 = vsub.s32 %v770, %v772
        %v774 = vrot.slane %v767, %v773
        %v776 = vmul.f32 %v368, %v774
        %v778 = vlaneseq
        %v779 = vshrl.u32 %v778, 7
        %v780 = vsub.s32 0, %v779
        %v781 = vrot.slane %v776, %v780
        %v782 = vlaneseq
        %v783 = vshrl.u32 %v782, 7
        %v784 = vsub.s32 1, %v783
        %v785 = vrot.slane %v776, %v784
        %v786 = vlaneseq
        %v787 = vshrl.u32 %v786, 7
        %v788 = vsub.s32 2, %v787
        %v789 = vrot.slane %v776, %v788
        %v790 = vlaneseq
        %v791 = vshrl.u32 %v790, 7
        %v792 = vsub.s32 3, %v791
        %v793 = vrot.slane %v776, %v792
        %v798 = vmul.f32 %v699, %v781
        %v799 = vmul.f32 %v700, %v785
        %v800 = vmul.f32 %v701, %v789
        %v801 = vmul.f32 %v702, %v793
        %v803 = vlaneseq
        %v804 = vshrl.u32 %v803, 7
        %v805 = vsub.s32 0, %v804
        %v806 = vrot.slane %v369, %v805
        %v807 = vlaneseq
        %v808 = vshrl.u32 %v807, 7
        %v809 = vsub.s32 1, %v808
        %v810 = vrot.slane %v369, %v809
        %v811 = vlaneseq
        %v812 = vshrl.u32 %v811, 7
        %v813 = vsub.s32 2, %v812
        %v814 = vrot.slane %v369, %v813
        %v815 = vlaneseq
        %v816 = vshrl.u32 %v815, 7
        %v817 = vsub.s32 3, %v816
        %v818 = vrot.slane %v369, %v817
        %v823 = vadd.f32 %v798, %v806
        %v824 = vadd.f32 %v799, %v810
        %v825 = vadd.f32 %v800, %v814
        %v826 = vadd.f32 %v801, %v818
        %v831 = vrot.slane %v619, 2
        %v832 = vrot.slane %v621, 2
        %v833 = vrot.slane %v660, 2
        %v834 = vrot.slane %v662, 2
        %v839 = vsel %vm666, %v831, 0.0
        %v840 = vrot.slane %v839, 4
        %v841 = vadd.f32 %v839, %v840
        %v842 = vrot.slane %v841, 2
        %v843 = vadd.f32 %v841, %v842
        %v844 = vrot.slane %v843, 1
        %v845 = vadd.f32 %v843, %v844
        %v846 = vsel %vm666, %v832, 0.0
        %v847 = vrot.slane %v846, 4
        %v848 = vadd.f32 %v846, %v847
        %v849 = vrot.slane %v848, 2
        %v850 = vadd.f32 %v848, %v849
        %v851 = vrot.slane %v850, 1
        %v852 = vadd.f32 %v850, %v851
        %v853 = vsel %vm666, %v833, 0.0
        %v854 = vrot.slane %v853, 4
        %v855 = vadd.f32 %v853, %v854
        %v856 = vrot.slane %v855, 2
        %v857 = vadd.f32 %v855, %v856
        %v858 = vrot.slane %v857, 1
        %v859 = vadd.f32 %v857, %v858
        %v860 = vsel %vm666, %v834, 0.0
        %v861 = vrot.slane %v860, 4
        %v862 = vadd.f32 %v860, %v861
        %v863 = vrot.slane %v862, 2
        %v864 = vadd.f32 %v862, %v863
        %v865 = vrot.slane %v864, 1
        %v866 = vadd.f32 %v864, %v865
        %v867 = vmul.f32 %v845, 0.5
        %v868 = vmul.f32 %v852, 0.5
        %v869 = vmul.f32 %v859, 0.5
        %v870 = vmul.f32 %v866, 0.5
        %v871 = vsub.f32 %v619, %v867
        %v872 = vsub.f32 %v621, %v868
        %v873 = vsub.f32 %v660, %v869
        %v874 = vsub.f32 %v662, %v870
        %v875 = vmul.f32 %v871, %v871
        %v876 = vmul.f32 %v872, %v872
        %v877 = vmul.f32 %v873, %v873
        %v878 = vmul.f32 %v874, %v874
        %v883 = vrot.slane %v875, 2
        %v884 = vrot.slane %v876, 2
        %v885 = vrot.slane %v877, 2
        %v886 = vrot.slane %v878, 2
        %v891 = vsel %vm666, %v883, 0.0
        %v892 = vrot.slane %v891, 4
        %v893 = vadd.f32 %v891, %v892
        %v894 = vrot.slane %v893, 2
        %v895 = vadd.f32 %v893, %v894
        %v896 = vrot.slane %v895, 1
        %v897 = vadd.f32 %v895, %v896
        %v898 = vsel %vm666, %v884, 0.0
        %v899 = vrot.slane %v898, 4
        %v900 = vadd.f32 %v898, %v899
        %v901 = vrot.slane %v900, 2
        %v902 = vadd.f32 %v900, %v901
        %v903 = vrot.slane %v902, 1
        %v904 = vadd.f32 %v902, %v903
        %v905 = vsel %vm666, %v885, 0.0
        %v906 = vrot.slane %v905, 4
        %v907 = vadd.f32 %v905, %v906
        %v908 = vrot.slane %v907, 2
        %v909 = vadd.f32 %v907, %v908
        %v910 = vrot.slane %v909, 1
        %v911 = vadd.f32 %v909, %v910
        %v912 = vsel %vm666, %v886, 0.0
        %v913 = vrot.slane %v912, 4
        %v914 = vadd.f32 %v912, %v913
        %v915 = vrot.slane %v914, 2
        %v916 = vadd.f32 %v914, %v915
        %v917 = vrot.slane %v916, 1
        %v918 = vadd.f32 %v916, %v917
        %v919 = vmul.f32 %v897, 0.5
        %v920 = vmul.f32 %v904, 0.5
        %v921 = vmul.f32 %v911, 0.5
        %v922 = vmul.f32 %v918, 0.5
        %v923 = vadd.f32 %v919, 1e-05
        %v924 = vadd.f32 %v920, 1e-05
        %v925 = vadd.f32 %v921, 1e-05
        %v926 = vadd.f32 %v922, 1e-05
        %v927 = vrsqrt.pop %v923
        %v928 = vrsqrt.pop %v924
        %v929 = vrsqrt.pop %v925
        %v930 = vrsqrt.pop %v926
        %v935 = vcombine.low %v927, %v928
        %v936 = vcombine.low %v929, %v930
        %v938 = vunpack.c.l.s4 1966171168
        %v939 = vunpack.c.0.s8 %v938
        %v940 = vlaneseq
        %v941 = vshrl.u32 %v940, 7
        %v942 = vsub.s32 %v939, %v941
        %v943 = vrot.slane %v935, %v942
        %v945 = vunpack.c.l.s4 1966171168
        %v946 = vunpack.c.0.s8 %v945
        %v947 = vlaneseq
        %v948 = vshrl.u32 %v947, 7
        %v949 = vsub.s32 %v946, %v948
        %v950 = vrot.slane %v936, %v949
        %v951 = vcombine.low %v943, %v950
        %v953 = vunpack.c.l.s4 1966171168
        %v954 = vunpack.c.0.s8 %v953
        %v955 = vlaneseq
        %v956 = vshrl.u32 %v955, 7
        %v957 = vsub.s32 %v954, %v956
        %v958 = vrot.slane %v951, %v957
        %v960 = vmul.f32 %v368, %v958
        %v962 = vlaneseq
        %v963 = vshrl.u32 %v962, 7
        %v964 = vsub.s32 0, %v963
        %v965 = vrot.slane %v960, %v964
        %v966 = vlaneseq
        %v967 = vshrl.u32 %v966, 7
        %v968 = vsub.s32 1, %v967
        %v969 = vrot.slane %v960, %v968
        %v970 = vlaneseq
        %v971 = vshrl.u32 %v970, 7
        %v972 = vsub.s32 2, %v971
        %v973 = vrot.slane %v960, %v972
        %v974 = vlaneseq
        %v975 = vshrl.u32 %v974, 7
        %v976 = vsub.s32 3, %v975
        %v977 = vrot.slane %v960, %v976
        %v982 = vmul.f32 %v871, %v965
        %v983 = vmul.f32 %v872, %v969
        %v984 = vmul.f32 %v873, %v973
        %v985 = vmul.f32 %v874, %v977
        %v986 = vadd.f32 %v982, %v806
        %v987 = vadd.f32 %v983, %v810
        %v988 = vadd.f32 %v984, %v814
        %v989 = vadd.f32 %v985, %v818
        %v990 = vsel %vm666, %v823, %v986
        %v991 = vsel %vm666, %v824, %v987
        %v992 = vsel %vm666, %v825, %v988
        %v993 = vsel %vm666, %v826, %v989
        %v994 = vmax.f32 %v990, 0.0
        %v995 = vmax.f32 %v991, 0.0
        %v996 = vmax.f32 %v992, 0.0
        %v997 = vmax.f32 %v993, 0.0
        %v998 = vpack.c.bf16 %v994, %v994
        %v999 = vpack.c.bf16 %v995, %v995
        %v1000 = vpack.c.bf16 %v996, %v996
        %v1001 = vpack.c.bf16 %v997, %v997
        %v1006 = vcombine.low %v998, %v999
        %v1007 = vcombine.low %v1000, %v1001
        %v1009 = vunpack.c.l.s4 1983009808
        %v1010 = vunpack.c.0.s8 %v1009
        %v1011 = vlaneseq
        %v1012 = vshrl.u32 %v1011, 7
        %v1013 = vsub.s32 %v1010, %v1012
        %v1014 = vrot.slane %v1006, %v1013
        %v1016 = vunpack.c.l.s4 1983009808
        %v1017 = vunpack.c.0.s8 %v1016
        %v1018 = vlaneseq
        %v1019 = vshrl.u32 %v1018, 7
        %v1020 = vsub.s32 %v1017, %v1019
        %v1021 = vrot.slane %v1007, %v1020
        %v1022 = vcombine.low %v1014, %v1021
        %1024 = vst [vmem:[%s364] sm:$0xff] %v1022
        %s1025 = smul.u32 4, %s16
        %p1026 = scmp.lt.s32.totalorder %s1025, 7
        %s1027 = scalar_select %p1026, %s1025, 7
        %s1028 = smul.addr %s1027, 2
        %s1029 = scalar_lea.vmem %s5, %s1028
        // Predicated region
        $region64: #{essl_vicreg_forward.7} parent=58 // pred_check
          %p1030 = pneg %p159
        $region65: #{essl_vicreg_forward.7} parent=58 // pred_check_branch
          %1032 = sbr.rel (%p1030) target = $region67
        $region66: #{essl_vicreg_forward.7} parent=58 // pred_region
          %s1033 = smul.u32 4, %s16
        $region67: #{essl_vicreg_forward.7} parent=58 // pred_fallthru
          _
      $region59: #{essl_vicreg_forward.7} parent=5 // pred_fallthru
        _
      %p1034 = scmp.le.s32.totalorder 2, %s11
      // Predicated region
      $region68: #{essl_vicreg_forward.7} parent=5 // pred_check
        %p1035 = pneg %p1034
      $region69: #{essl_vicreg_forward.7} parent=5 // pred_check_branch
        %1037 = sbr.rel (%p1035) target = $region71
      $region70: #{essl_vicreg_forward.7} parent=5 // pred_region
        %s1038 = ssub.s32 %s11, 2
        // Predicated region
        $region72: #{essl_vicreg_forward.7} parent=70 // pred_check
          %p1039 = pneg %p165
        $region73: #{essl_vicreg_forward.7} parent=70 // pred_check_branch
          %1041 = sbr.rel (%p1039) target = $region75
        $region74: #{essl_vicreg_forward.7} parent=70 // pred_region
          %s1042 = smul.u32 4, %s17
          %p1043 = scmp.lt.s32.totalorder %s1042, 7
          %s1044 = scalar_select %p1043, %s1042, 7
          %s1045 = smul.addr %s1044, 2
          %s1046 = scalar_lea.vmem %s5, %s1045
        $region75: #{essl_vicreg_forward.7} parent=70 // pred_fallthru
          _
      $region71: #{essl_vicreg_forward.7} parent=5 // pred_fallthru
        _
    $region6: #{essl_vicreg_forward.7} parent=1 // loop_footer
      %s15 = sadd.s32 1, %s11
    $region7: #{essl_vicreg_forward.7} parent=1 // loop_footer_branch
      %10 = sbr.rel target = $region3
    $region8: #{essl_vicreg_forward.7} parent=1 // loop_exit
      _

// kernel: essl_vicreg_forward.8
$region0: #{essl_vicreg_forward.8}
  #allocation0 [shape = 'u32[]', space=smem, size = 0x4, offset = 0x4, fixed_abs, tag = 'smem constant byte address 0x4 - core index']
  #allocation1 [shape = 'u32[144,128]{1,0:T(1,128)}', space=vmem, size = 0x12000, scoped, tag = 'internal scratch']
  %s0 = inlined_call_operand.vmem [shape: bf16[4,1024], index: 0, kind: input, shape index: {}]
  %s1 = inlined_call_operand.vmem [shape: bf16[1024,1024], index: 1, kind: input, shape index: {}]
  %s2 = inlined_call_operand.vmem [shape: f32[1,1024], index: 2, kind: input, shape index: {}, may-alias: {2,4}]
  %s3 = inlined_call_operand.vmem [shape: f32[1,1024], index: 3, kind: input, shape index: {}]
  %s4 = inlined_call_operand.vmem [shape: f32[1,1024], index: 4, kind: input, shape index: {}, may-alias: {2,4}]
  %s5 = inlined_call_operand.vmem [shape: bf16[4,1024], index: 5, kind: output, shape index: {}]
  %s6 = sld [smem:[#allocation0]]
  $region76: #{essl_vicreg_forward.8} parent=0
    _
  %s8 = ssub.s32 1, %s6
  %s9 = scalar_select 0, %s8, %s6
  $region1: #{essl_vicreg_forward.8} parent=0
    #allocation2 [shape = 'u8[2097152]{0}', space=vmem, size = 0x200000, scoped, tag = 'input window, operand 1']
    loop: start=0, step=1, limit=4
    $region2: #{essl_vicreg_forward.8} parent=1 // loop_pre_header
      _
    $region3: #{essl_vicreg_forward.8} parent=1 // loop_header
      %s11 = sphi 0, %s15
      %p12 = scmp.ge.s32.totalorder %s11, 4
      %s19 = sphi 0, %s19
      %s21 = sphi 0, %s19
      %s22 = sphi 0, %s21
      %s36 = sphi 0, %s22
      %s42 = sphi 0, %s44
      %s45 = sphi 0, %s42
      %s46 = sphi 0, %s45
      %s62 = sphi 0, %s46
      %s68 = sphi 0, %s70
      %s71 = sphi 0, %s68
      %s72 = sphi 0, %s71
      %s88 = sphi 0, %s72
      %s94 = sphi 0, %s96
      %s97 = sphi 0, %s94
      %s98 = sphi 0, %s97
      %s114 = sphi 0, %s98
      %s120 = sphi 0, %s122
      %s123 = sphi 0, %s120
      %s124 = sphi 0, %s123
      %s140 = sphi 0, %s124
      %s146 = sphi 0, %s148
      %s149 = sphi 0, %s146
      %s150 = sphi 0, %s149
      %s166 = sphi 0, %s150
    $region4: #{essl_vicreg_forward.8} parent=1 // loop_header_branch
      %14 = sbr.rel (%p12) target = $region8
    $region5: #{essl_vicreg_forward.8} parent=1 // loop_body
      %s16 = ssub.s32 %s11, 1
      %s17 = ssub.s32 %s11, 2
      %s18 = sadd.s32 %s11, 1
      %s20 = sadd.s32 %s19, 1
      %p23 = scmp.eq.s32.totalorder %s11, 1
      %p24 = scmp.ne.s32.totalorder %s19, %s21
      %p25 = scmp.eq.s32.totalorder %s11, 0
      %p26 = por %p24, %p25
      %p27 = scmp.ne.s32.totalorder %s19, %s21
      %p28 = scmp.eq.s32.totalorder %s16, 1
      %p29 = por %p27, %p28
      %p30 = scmp.ne.s32.totalorder %s21, %s22
      %p31 = scmp.eq.s32.totalorder %s16, 0
      %p32 = por %p30, %p31
      %p33 = scmp.ne.s32.totalorder %s21, %s22
      %p34 = scmp.eq.s32.totalorder %s17, 1
      %p35 = por %p33, %p34
      %p37 = scmp.ne.s32.totalorder %s22, %s36
      %p38 = scmp.eq.s32.totalorder %s17, 0
      %p39 = por %p37, %p38
      %s40 = ssub.s32 %s11, %s18
      %p41 = scmp.eq.s32.totalorder %s40, 0
      %s43 = sadd.s32 %s42, 1
      %s44 = scalar_select %p41, %s42, %s43
      %p47 = pneg %p41
      %p48 = scmp.eq.s32.totalorder %s11, 1
      %p49 = por %p47, %p48
      %p50 = scmp.ne.s32.totalorder %s42, %s45
      %p51 = scmp.eq.s32.totalorder %s11, 0
      %p52 = por %p50, %p51
      %p53 = scmp.ne.s32.totalorder %s42, %s45
      %p54 = scmp.eq.s32.totalorder %s16, 1
      %p55 = por %p53, %p54
      %p56 = scmp.ne.s32.totalorder %s45, %s46
      %p57 = scmp.eq.s32.totalorder %s16, 0
      %p58 = por %p56, %p57
      %p59 = scmp.ne.s32.totalorder %s45, %s46
      %p60 = scmp.eq.s32.totalorder %s17, 1
      %p61 = por %p59, %p60
      %p63 = scmp.ne.s32.totalorder %s46, %s62
      %p64 = scmp.eq.s32.totalorder %s17, 0
      %p65 = por %p63, %p64
      %s66 = ssub.s32 %s11, %s18
      %p67 = scmp.eq.s32.totalorder %s66, 0
      %s69 = sadd.s32 %s68, 1
      %s70 = scalar_select %p67, %s68, %s69
      %p73 = pneg %p67
      %p74 = scmp.eq.s32.totalorder %s11, 1
      %p75 = por %p73, %p74
      %p76 = scmp.ne.s32.totalorder %s68, %s71
      %p77 = scmp.eq.s32.totalorder %s11, 0
      %p78 = por %p76, %p77
      %p79 = scmp.ne.s32.totalorder %s68, %s71
      %p80 = scmp.eq.s32.totalorder %s16, 1
      %p81 = por %p79, %p80
      %p82 = scmp.ne.s32.totalorder %s71, %s72
      %p83 = scmp.eq.s32.totalorder %s16, 0
      %p84 = por %p82, %p83
      %p85 = scmp.ne.s32.totalorder %s71, %s72
      %p86 = scmp.eq.s32.totalorder %s17, 1
      %p87 = por %p85, %p86
      %p89 = scmp.ne.s32.totalorder %s72, %s88
      %p90 = scmp.eq.s32.totalorder %s17, 0
      %p91 = por %p89, %p90
      %s92 = ssub.s32 %s11, %s18
      %p93 = scmp.eq.s32.totalorder %s92, 0
      %s95 = sadd.s32 %s94, 1
      %s96 = scalar_select %p93, %s94, %s95
      %p99 = pneg %p93
      %p100 = scmp.eq.s32.totalorder %s11, 1
      %p101 = por %p99, %p100
      %p102 = scmp.ne.s32.totalorder %s94, %s97
      %p103 = scmp.eq.s32.totalorder %s11, 0
      %p104 = por %p102, %p103
      %p105 = scmp.ne.s32.totalorder %s94, %s97
      %p106 = scmp.eq.s32.totalorder %s16, 1
      %p107 = por %p105, %p106
      %p108 = scmp.ne.s32.totalorder %s97, %s98
      %p109 = scmp.eq.s32.totalorder %s16, 0
      %p110 = por %p108, %p109
      %p111 = scmp.ne.s32.totalorder %s97, %s98
      %p112 = scmp.eq.s32.totalorder %s17, 1
      %p113 = por %p111, %p112
      %p115 = scmp.ne.s32.totalorder %s98, %s114
      %p116 = scmp.eq.s32.totalorder %s17, 0
      %p117 = por %p115, %p116
      %s118 = ssub.s32 %s11, %s18
      %p119 = scmp.eq.s32.totalorder %s118, 0
      %s121 = sadd.s32 %s120, 1
      %s122 = scalar_select %p119, %s120, %s121
      %p125 = pneg %p119
      %p126 = scmp.eq.s32.totalorder %s11, 1
      %p127 = por %p125, %p126
      %p128 = scmp.ne.s32.totalorder %s120, %s123
      %p129 = scmp.eq.s32.totalorder %s11, 0
      %p130 = por %p128, %p129
      %p131 = scmp.ne.s32.totalorder %s120, %s123
      %p132 = scmp.eq.s32.totalorder %s16, 1
      %p133 = por %p131, %p132
      %p134 = scmp.ne.s32.totalorder %s123, %s124
      %p135 = scmp.eq.s32.totalorder %s16, 0
      %p136 = por %p134, %p135
      %p137 = scmp.ne.s32.totalorder %s123, %s124
      %p138 = scmp.eq.s32.totalorder %s17, 1
      %p139 = por %p137, %p138
      %p141 = scmp.ne.s32.totalorder %s124, %s140
      %p142 = scmp.eq.s32.totalorder %s17, 0
      %p143 = por %p141, %p142
      %s144 = ssub.s32 %s11, %s18
      %p145 = scmp.eq.s32.totalorder %s144, 0
      %s147 = sadd.s32 %s146, 1
      %s148 = scalar_select %p145, %s146, %s147
      %p151 = pneg %p145
      %p152 = scmp.eq.s32.totalorder %s11, 1
      %p153 = por %p151, %p152
      %p154 = scmp.ne.s32.totalorder %s146, %s149
      %p155 = scmp.eq.s32.totalorder %s11, 0
      %p156 = por %p154, %p155
      %p157 = scmp.ne.s32.totalorder %s146, %s149
      %p158 = scmp.eq.s32.totalorder %s16, 1
      %p159 = por %p157, %p158
      %p160 = scmp.ne.s32.totalorder %s149, %s150
      %p161 = scmp.eq.s32.totalorder %s16, 0
      %p162 = por %p160, %p161
      %p163 = scmp.ne.s32.totalorder %s149, %s150
      %p164 = scmp.eq.s32.totalorder %s17, 1
      %p165 = por %p163, %p164
      %p167 = scmp.ne.s32.totalorder %s150, %s166
      %p168 = scmp.eq.s32.totalorder %s17, 0
      %p169 = por %p167, %p168
      %p170 = scmp.le.s32.totalorder 1, %s11
      %p171 = scmp.lt.s32.totalorder %s11, 3
      %p172 = pnand %p170, %p171
      %p173 = pneg %p172
      // Predicated region
      $region9: #{essl_vicreg_forward.8} parent=5 // pred_check
        _
      $region10: #{essl_vicreg_forward.8} parent=5 // pred_check_branch
        %175 = sbr.rel (%p172) target = $region12
      $region11: #{essl_vicreg_forward.8} parent=5 // pred_region
        %s176 = ssub.s32 %s11, 1
        // Predicated region
        $region13: #{essl_vicreg_forward.8} parent=11 // pred_check
          %p177 = pneg %p32
        $region14: #{essl_vicreg_forward.8} parent=11 // pred_check_branch
          %179 = sbr.rel (%p177) target = $region16
        $region15: #{essl_vicreg_forward.8} parent=11 // pred_region
          _
        $region16: #{essl_vicreg_forward.8} parent=11 // pred_fallthru
          _
      $region12: #{essl_vicreg_forward.8} parent=5 // pred_fallthru
        _
      %p180 = scmp.lt.s32.totalorder %s11, 2
      // Predicated region
      $region17: #{essl_vicreg_forward.8} parent=5 // pred_check
        %p181 = pneg %p180
      $region18: #{essl_vicreg_forward.8} parent=5 // pred_check_branch
        %183 = sbr.rel (%p181) target = $region20
      $region19: #{essl_vicreg_forward.8} parent=5 // pred_region
        // Predicated region
        $region21: #{essl_vicreg_forward.8} parent=19 // pred_check
          %p184 = pneg %p52
        $region22: #{essl_vicreg_forward.8} parent=19 // pred_check_branch
          %186 = sbr.rel (%p184) target = $region24
        $region23: #{essl_vicreg_forward.8} parent=19 // pred_region
          %s187 = sand.u32 %s42, 1
          %s188 = sand.u32 %s42, 1
          %s189 = smul.addr %s188, 2048
          %s190 = scalar_lea.vmem [#allocation2], %s189
          %s191 = smul.u32 4, %s11
          %s192 = smul.addr %s191, 4
          %s193 = scalar_lea.vmem %s1, %s192
          // Predicated region
          $region25: #{essl_vicreg_forward.8} parent=23 // pred_check
            _
          $region26: #{essl_vicreg_forward.8} parent=23 // pred_check_branch
            %195 = sbr.rel (0) target = $region28
          $region27: #{essl_vicreg_forward.8} parent=23 // pred_region
            // Predicated region
            $region29: #{essl_vicreg_forward.8} parent=27 // pred_check
              _
            $region30: #{essl_vicreg_forward.8} parent=27 // pred_check_branch
              %197 = sbr.rel (0) target = $region32
            $region31: #{essl_vicreg_forward.8} parent=27 // pred_region
              loop: start=0, step=1, limit=1
              $region33: #{essl_vicreg_forward.8} parent=31 // loop_pre_header
                _
              $region34: #{essl_vicreg_forward.8} parent=31 // loop_header
                %s199 = sphi 0, %s203
                %p200 = scmp.ge.s32.totalorder %s199, 1
                %s204 = sphi %s193, %s193
                %s205 = sphi %s190, %s190
              $region35: #{essl_vicreg_forward.8} parent=31 // loop_header_branch
                %202 = sbr.rel (%p200) target = $region39
              $region36: #{essl_vicreg_forward.8} parent=31 // loop_body
                %v206 = vld [vmem:[%s204] sm:$0xff]
                %207 = vst [vmem:[%s205] sm:$0xff] %v206
                %v208 = vld [vmem:[%s204 + $0x8] sm:$0xff]
                %209 = vst [vmem:[%s205 + $0x8] sm:$0xff] %v208
                %v210 = vld [vmem:[%s204 + $0x20] sm:$0xff]
                %211 = vst [vmem:[%s205 + $0x10] sm:$0xff] %v210
                %v212 = vld [vmem:[%s204 + $0x28] sm:$0xff]
                %213 = vst [vmem:[%s205 + $0x18] sm:$0xff] %v212
                %v214 = vld [vmem:[%s204 + $0x40] sm:$0xff]
                %215 = vst [vmem:[%s205 + $0x20] sm:$0xff] %v214
                %v216 = vld [vmem:[%s204 + $0x48] sm:$0xff]
                %217 = vst [vmem:[%s205 + $0x28] sm:$0xff] %v216
                %v218 = vld [vmem:[%s204 + $0x60] sm:$0xff]
                %219 = vst [vmem:[%s205 + $0x30] sm:$0xff] %v218
                %v220 = vld [vmem:[%s204 + $0x68] sm:$0xff]
                %221 = vst [vmem:[%s205 + $0x38] sm:$0xff] %v220
                %v222 = vld [vmem:[%s204 + $0x80] sm:$0xff]
                %223 = vst [vmem:[%s205 + $0x40] sm:$0xff] %v222
                %v224 = vld [vmem:[%s204 + $0x88] sm:$0xff]
                %225 = vst [vmem:[%s205 + $0x48] sm:$0xff] %v224
                %v226 = vld [vmem:[%s204 + $0xa0] sm:$0xff]
                %227 = vst [vmem:[%s205 + $0x50] sm:$0xff] %v226
                %v228 = vld [vmem:[%s204 + $0xa8] sm:$0xff]
                %229 = vst [vmem:[%s205 + $0x58] sm:$0xff] %v228
                %v230 = vld [vmem:[%s204 + $0xc0] sm:$0xff]
                %231 = vst [vmem:[%s205 + $0x60] sm:$0xff] %v230
                %v232 = vld [vmem:[%s204 + $0xc8] sm:$0xff]
                %233 = vst [vmem:[%s205 + $0x68] sm:$0xff] %v232
                %v234 = vld [vmem:[%s204 + $0xe0] sm:$0xff]
                %235 = vst [vmem:[%s205 + $0x70] sm:$0xff] %v234
                %v236 = vld [vmem:[%s204 + $0xe8] sm:$0xff]
                %237 = vst [vmem:[%s205 + $0x78] sm:$0xff] %v236
                %v238 = vld [vmem:[%s204 + $0x100] sm:$0xff]
                %239 = vst [vmem:[%s205 + $0x80] sm:$0xff] %v238
                %v240 = vld [vmem:[%s204 + $0x108] sm:$0xff]
                %241 = vst [vmem:[%s205 + $0x88] sm:$0xff] %v240
                %v242 = vld [vmem:[%s204 + $0x120] sm:$0xff]
                %243 = vst [vmem:[%s205 + $0x90] sm:$0xff] %v242
                %v244 = vld [vmem:[%s204 + $0x128] sm:$0xff]
                %245 = vst [vmem:[%s205 + $0x98] sm:$0xff] %v244
                %v246 = vld [vmem:[%s204 + $0x140] sm:$0xff]
                %247 = vst [vmem:[%s205 + $0xa0] sm:$0xff] %v246
                %v248 = vld [vmem:[%s204 + $0x148] sm:$0xff]
                %249 = vst [vmem:[%s205 + $0xa8] sm:$0xff] %v248
                %v250 = vld [vmem:[%s204 + $0x160] sm:$0xff]
                %251 = vst [vmem:[%s205 + $0xb0] sm:$0xff] %v250
                %v252 = vld [vmem:[%s204 + $0x168] sm:$0xff]
                %253 = vst [vmem:[%s205 + $0xb8] sm:$0xff] %v252
                %v254 = vld [vmem:[%s204 + $0x180] sm:$0xff]
                %255 = vst [vmem:[%s205 + $0xc0] sm:$0xff] %v254
                %v256 = vld [vmem:[%s204 + $0x188] sm:$0xff]
                %257 = vst [vmem:[%s205 + $0xc8] sm:$0xff] %v256
                %v258 = vld [vmem:[%s204 + $0x1a0] sm:$0xff]
                %259 = vst [vmem:[%s205 + $0xd0] sm:$0xff] %v258
                %v260 = vld [vmem:[%s204 + $0x1a8] sm:$0xff]
                %261 = vst [vmem:[%s205 + $0xd8] sm:$0xff] %v260
                %v262 = vld [vmem:[%s204 + $0x1c0] sm:$0xff]
                %263 = vst [vmem:[%s205 + $0xe0] sm:$0xff] %v262
                %v264 = vld [vmem:[%s204 + $0x1c8] sm:$0xff]
                %265 = vst [vmem:[%s205 + $0xe8] sm:$0xff] %v264
                %v266 = vld [vmem:[%s204 + $0x1e0] sm:$0xff]
                %267 = vst [vmem:[%s205 + $0xf0] sm:$0xff] %v266
                %v268 = vld [vmem:[%s204 + $0x1e8] sm:$0xff]
                %269 = vst [vmem:[%s205 + $0xf8] sm:$0xff] %v268
                %v270 = vld [vmem:[%s204 + $0x200] sm:$0xff]
                %271 = vst [vmem:[%s205 + $0x100] sm:$0xff] %v270
                %v272 = vld [vmem:[%s204 + $0x208] sm:$0xff]
                %273 = vst [vmem:[%s205 + $0x108] sm:$0xff] %v272
                %v274 = vld [vmem:[%s204 + $0x220] sm:$0xff]
                %275 = vst [vmem:[%s205 + $0x110] sm:$0xff] %v274
                %v276 = vld [vmem:[%s204 + $0x228] sm:$0xff]
                %277 = vst [vmem:[%s205 + $0x118] sm:$0xff] %v276
                %v278 = vld [vmem:[%s204 + $0x240] sm:$0xff]
                %279 = vst [vmem:[%s205 + $0x120] sm:$0xff] %v278
                %v280 = vld [vmem:[%s204 + $0x248] sm:$0xff]
                %281 = vst [vmem:[%s205 + $0x128] sm:$0xff] %v280
                %v282 = vld [vmem:[%s204 + $0x260] sm:$0xff]
                %283 = vst [vmem:[%s205 + $0x130] sm:$0xff] %v282
                %v284 = vld [vmem:[%s204 + $0x268] sm:$0xff]
                %285 = vst [vmem:[%s205 + $0x138] sm:$0xff] %v284
                %v286 = vld [vmem:[%s204 + $0x280] sm:$0xff]
                %287 = vst [vmem:[%s205 + $0x140] sm:$0xff] %v286
                %v288 = vld [vmem:[%s204 + $0x288] sm:$0xff]
                %289 = vst [vmem:[%s205 + $0x148] sm:$0xff] %v288
                %v290 = vld [vmem:[%s204 + $0x2a0] sm:$0xff]
                %291 = vst [vmem:[%s205 + $0x150] sm:$0xff] %v290
                %v292 = vld [vmem:[%s204 + $0x2a8] sm:$0xff]
                %293 = vst [vmem:[%s205 + $0x158] sm:$0xff] %v292
                %v294 = vld [vmem:[%s204 + $0x2c0] sm:$0xff]
                %295 = vst [vmem:[%s205 + $0x160] sm:$0xff] %v294
                %v296 = vld [vmem:[%s204 + $0x2c8] sm:$0xff]
                %297 = vst [vmem:[%s205 + $0x168] sm:$0xff] %v296
                %v298 = vld [vmem:[%s204 + $0x2e0] sm:$0xff]
                %299 = vst [vmem:[%s205 + $0x170] sm:$0xff] %v298
                %v300 = vld [vmem:[%s204 + $0x2e8] sm:$0xff]
                %301 = vst [vmem:[%s205 + $0x178] sm:$0xff] %v300
                %v302 = vld [vmem:[%s204 + $0x300] sm:$0xff]
                %303 = vst [vmem:[%s205 + $0x180] sm:$0xff] %v302
                %v304 = vld [vmem:[%s204 + $0x308] sm:$0xff]
                %305 = vst [vmem:[%s205 + $0x188] sm:$0xff] %v304
                %v306 = vld [vmem:[%s204 + $0x320] sm:$0xff]
                %307 = vst [vmem:[%s205 + $0x190] sm:$0xff] %v306
                %v308 = vld [vmem:[%s204 + $0x328] sm:$0xff]
                %309 = vst [vmem:[%s205 + $0x198] sm:$0xff] %v308
                %v310 = vld [vmem:[%s204 + $0x340] sm:$0xff]
                %311 = vst [vmem:[%s205 + $0x1a0] sm:$0xff] %v310
                %v312 = vld [vmem:[%s204 + $0x348] sm:$0xff]
                %313 = vst [vmem:[%s205 + $0x1a8] sm:$0xff] %v312
                %v314 = vld [vmem:[%s204 + $0x360] sm:$0xff]
                %315 = vst [vmem:[%s205 + $0x1b0] sm:$0xff] %v314
                %v316 = vld [vmem:[%s204 + $0x368] sm:$0xff]
                %317 = vst [vmem:[%s205 + $0x1b8] sm:$0xff] %v316
                %v318 = vld [vmem:[%s204 + $0x380] sm:$0xff]
                %319 = vst [vmem:[%s205 + $0x1c0] sm:$0xff] %v318
                %v320 = vld [vmem:[%s204 + $0x388] sm:$0xff]
                %321 = vst [vmem:[%s205 + $0x1c8] sm:$0xff] %v320
                %v322 = vld [vmem:[%s204 + $0x3a0] sm:$0xff]
                %323 = vst [vmem:[%s205 + $0x1d0] sm:$0xff] %v322
                %v324 = vld [vmem:[%s204 + $0x3a8] sm:$0xff]
                %325 = vst [vmem:[%s205 + $0x1d8] sm:$0xff] %v324
                %v326 = vld [vmem:[%s204 + $0x3c0] sm:$0xff]
                %327 = vst [vmem:[%s205 + $0x1e0] sm:$0xff] %v326
                %v328 = vld [vmem:[%s204 + $0x3c8] sm:$0xff]
                %329 = vst [vmem:[%s205 + $0x1e8] sm:$0xff] %v328
                %v330 = vld [vmem:[%s204 + $0x3e0] sm:$0xff]
                %331 = vst [vmem:[%s205 + $0x1f0] sm:$0xff] %v330
                %v332 = vld [vmem:[%s204 + $0x3e8] sm:$0xff]
                %333 = vst [vmem:[%s205 + $0x1f8] sm:$0xff] %v332
                %v334 = vld [vmem:[%s204 + $0x400] sm:$0xff]
                %335 = vst [vmem:[%s205 + $0x200] sm:$0xff] %v334
                %v336 = vld [vmem:[%s204 + $0x408] sm:$0xff]
                %337 = vst [vmem:[%s205 + $0x208] sm:$0xff] %v336
                %v338 = vld [vmem:[%s204 + $0x420] sm:$0xff]
                %339 = vst [vmem:[%s205 + $0x210] sm:$0xff] %v338
                %v340 = vld [vmem:[%s204 + $0x428] sm:$0xff]
                %341 = vst [vmem:[%s205 + $0x218] sm:$0xff] %v340
                %v342 = vld [vmem:[%s204 + $0x440] sm:$0xff]
                %343 = vst [vmem:[%s205 + $0x220] sm:$0xff] %v342
                %v344 = vld [vmem:[%s204 + $0x448] sm:$0xff]
                %345 = vst [vmem:[%s205 + $0x228] sm:$0xff] %v344
                %v346 = vld [vmem:[%s204 + $0x460] sm:$0xff]
                %347 = vst [vmem:[%s205 + $0x230] sm:$0xff] %v346
                %v348 = vld [vmem:[%s204 + $0x468] sm:$0xff]
                %349 = vst [vmem:[%s205 + $0x238] sm:$0xff] %v348
                %v350 = vld [vmem:[%s204 + $0x480] sm:$0xff]
                %351 = vst [vmem:[%s205 + $0x240] sm:$0xff] %v350
                %v352 = vld [vmem:[%s204 + $0x488] sm:$0xff]
                %353 = vst [vmem:[%s205 + $0x248] sm:$0xff] %v352
                %v354 = vld [vmem:[%s204 + $0x4a0] sm:$0xff]
                %355 = vst [vmem:[%s205 + $0x250] sm:$0xff] %v354
                %v356 = vld [vmem:[%s204 + $0x4a8] sm:$0xff]
                %357 = vst [vmem:[%s205 + $0x258] sm:$0xff] %v356
                %v358 = vld [vmem:[%s204 + $0x4c0] sm:$0xff]
                %359 = vst [vmem:[%s205 + $0x260] sm:$0xff] %v358
                %v360 = vld [vmem:[%s204 + $0x4c8] sm:$0xff]
                %361 = vst [vmem:[%s205 + $0x268] sm:$0xff] %v360
                %v362 = vld [vmem:[%s204 + $0x4e0] sm:$0xff]
                %363 = vst [vmem:[%s205 + $0x270] sm:$0xff] %v362
                %v364 = vld [vmem:[%s204 + $0x4e8] sm:$0xff]
                %365 = vst [vmem:[%s205 + $0x278] sm:$0xff] %v364
                %v366 = vld [vmem:[%s204 + $0x500] sm:$0xff]
                %367 = vst [vmem:[%s205 + $0x280] sm:$0xff] %v366
                %v368 = vld [vmem:[%s204 + $0x508] sm:$0xff]
                %369 = vst [vmem:[%s205 + $0x288] sm:$0xff] %v368
                %v370 = vld [vmem:[%s204 + $0x520] sm:$0xff]
                %371 = vst [vmem:[%s205 + $0x290] sm:$0xff] %v370
                %v372 = vld [vmem:[%s204 + $0x528] sm:$0xff]
                %373 = vst [vmem:[%s205 + $0x298] sm:$0xff] %v372
                %v374 = vld [vmem:[%s204 + $0x540] sm:$0xff]
                %375 = vst [vmem:[%s205 + $0x2a0] sm:$0xff] %v374
                %v376 = vld [vmem:[%s204 + $0x548] sm:$0xff]
                %377 = vst [vmem:[%s205 + $0x2a8] sm:$0xff] %v376
                %v378 = vld [vmem:[%s204 + $0x560] sm:$0xff]
                %379 = vst [vmem:[%s205 + $0x2b0] sm:$0xff] %v378
                %v380 = vld [vmem:[%s204 + $0x568] sm:$0xff]
                %381 = vst [vmem:[%s205 + $0x2b8] sm:$0xff] %v380
                %v382 = vld [vmem:[%s204 + $0x580] sm:$0xff]
                %383 = vst [vmem:[%s205 + $0x2c0] sm:$0xff] %v382
                %v384 = vld [vmem:[%s204 + $0x588] sm:$0xff]
                %385 = vst [vmem:[%s205 + $0x2c8] sm:$0xff] %v384
                %v386 = vld [vmem:[%s204 + $0x5a0] sm:$0xff]
                %387 = vst [vmem:[%s205 + $0x2d0] sm:$0xff] %v386
                %v388 = vld [vmem:[%s204 + $0x5a8] sm:$0xff]
                %389 = vst [vmem:[%s205 + $0x2d8] sm:$0xff] %v388
                %v390 = vld [vmem:[%s204 + $0x5c0] sm:$0xff]
                %391 = vst [vmem:[%s205 + $0x2e0] sm:$0xff] %v390
                %v392 = vld [vmem:[%s204 + $0x5c8] sm:$0xff]
                %393 = vst [vmem:[%s205 + $0x2e8] sm:$0xff] %v392
                %v394 = vld [vmem:[%s204 + $0x5e0] sm:$0xff]
                %395 = vst [vmem:[%s205 + $0x2f0] sm:$0xff] %v394
                %v396 = vld [vmem:[%s204 + $0x5e8] sm:$0xff]
                %397 = vst [vmem:[%s205 + $0x2f8] sm:$0xff] %v396
                %v398 = vld [vmem:[%s204 + $0x600] sm:$0xff]
                %399 = vst [vmem:[%s205 + $0x300] sm:$0xff] %v398
                %v400 = vld [vmem:[%s204 + $0x608] sm:$0xff]
                %401 = vst [vmem:[%s205 + $0x308] sm:$0xff] %v400
                %v402 = vld [vmem:[%s204 + $0x620] sm:$0xff]
                %403 = vst [vmem:[%s205 + $0x310] sm:$0xff] %v402
                %v404 = vld [vmem:[%s204 + $0x628] sm:$0xff]
                %405 = vst [vmem:[%s205 + $0x318] sm:$0xff] %v404
                %v406 = vld [vmem:[%s204 + $0x640] sm:$0xff]
                %407 = vst [vmem:[%s205 + $0x320] sm:$0xff] %v406
                %v408 = vld [vmem:[%s204 + $0x648] sm:$0xff]
                %409 = vst [vmem:[%s205 + $0x328] sm:$0xff] %v408
                %v410 = vld [vmem:[%s204 + $0x660] sm:$0xff]
                %411 = vst [vmem:[%s205 + $0x330] sm:$0xff] %v410
                %v412 = vld [vmem:[%s204 + $0x668] sm:$0xff]
                %413 = vst [vmem:[%s205 + $0x338] sm:$0xff] %v412
                %v414 = vld [vmem:[%s204 + $0x680] sm:$0xff]
                %415 = vst [vmem:[%s205 + $0x340] sm:$0xff] %v414
                %v416 = vld [vmem:[%s204 + $0x688] sm:$0xff]
                %417 = vst [vmem:[%s205 + $0x348] sm:$0xff] %v416
                %v418 = vld [vmem:[%s204 + $0x6a0] sm:$0xff]
                %419 = vst [vmem:[%s205 + $0x350] sm:$0xff] %v418
                %v420 = vld [vmem:[%s204 + $0x6a8] sm:$0xff]
                %421 = vst [vmem:[%s205 + $0x358] sm:$0xff] %v420
                %v422 = vld [vmem:[%s204 + $0x6c0] sm:$0xff]
                %423 = vst [vmem:[%s205 + $0x360] sm:$0xff] %v422
                %v424 = vld [vmem:[%s204 + $0x6c8] sm:$0xff]
                %425 = vst [vmem:[%s205 + $0x368] sm:$0xff] %v424
                %v426 = vld [vmem:[%s204 + $0x6e0] sm:$0xff]
                %427 = vst [vmem:[%s205 + $0x370] sm:$0xff] %v426
                %v428 = vld [vmem:[%s204 + $0x6e8] sm:$0xff]
                %429 = vst [vmem:[%s205 + $0x378] sm:$0xff] %v428
                %v430 = vld [vmem:[%s204 + $0x700] sm:$0xff]
                %431 = vst [vmem:[%s205 + $0x380] sm:$0xff] %v430
                %v432 = vld [vmem:[%s204 + $0x708] sm:$0xff]
                %433 = vst [vmem:[%s205 + $0x388] sm:$0xff] %v432
                %v434 = vld [vmem:[%s204 + $0x720] sm:$0xff]
                %435 = vst [vmem:[%s205 + $0x390] sm:$0xff] %v434
                %v436 = vld [vmem:[%s204 + $0x728] sm:$0xff]
                %437 = vst [vmem:[%s205 + $0x398] sm:$0xff] %v436
                %v438 = vld [vmem:[%s204 + $0x740] sm:$0xff]
                %439 = vst [vmem:[%s205 + $0x3a0] sm:$0xff] %v438
                %v440 = vld [vmem:[%s204 + $0x748] sm:$0xff]
                %441 = vst [vmem:[%s205 + $0x3a8] sm:$0xff] %v440
                %v442 = vld [vmem:[%s204 + $0x760] sm:$0xff]
                %443 = vst [vmem:[%s205 + $0x3b0] sm:$0xff] %v442
                %v444 = vld [vmem:[%s204 + $0x768] sm:$0xff]
                %445 = vst [vmem:[%s205 + $0x3b8] sm:$0xff] %v444
                %v446 = vld [vmem:[%s204 + $0x780] sm:$0xff]
                %447 = vst [vmem:[%s205 + $0x3c0] sm:$0xff] %v446
                %v448 = vld [vmem:[%s204 + $0x788] sm:$0xff]
                %449 = vst [vmem:[%s205 + $0x3c8] sm:$0xff] %v448
                %v450 = vld [vmem:[%s204 + $0x7a0] sm:$0xff]
                %451 = vst [vmem:[%s205 + $0x3d0] sm:$0xff] %v450
                %v452 = vld [vmem:[%s204 + $0x7a8] sm:$0xff]
                %453 = vst [vmem:[%s205 + $0x3d8] sm:$0xff] %v452
                %v454 = vld [vmem:[%s204 + $0x7c0] sm:$0xff]
                %455 = vst [vmem:[%s205 + $0x3e0] sm:$0xff] %v454
                %v456 = vld [vmem:[%s204 + $0x7c8] sm:$0xff]
                %457 = vst [vmem:[%s205 + $0x3e8] sm:$0xff] %v456
                %v458 = vld [vmem:[%s204 + $0x7e0] sm:$0xff]
                %459 = vst [vmem:[%s205 + $0x3f0] sm:$0xff] %v458
                %v460 = vld [vmem:[%s204 + $0x7e8] sm:$0xff]
                %461 = vst [vmem:[%s205 + $0x3f8] sm:$0xff] %v460
                %v462 = vld [vmem:[%s204 + $0x800] sm:$0xff]
                %463 = vst [vmem:[%s205 + $0x400] sm:$0xff] %v462
                %v464 = vld [vmem:[%s204 + $0x808] sm:$0xff]
                %465 = vst [vmem:[%s205 + $0x408] sm:$0xff] %v464
                %v466 = vld [vmem:[%s204 + $0x820] sm:$0xff]
                %467 = vst [vmem:[%s205 + $0x410] sm:$0xff] %v466
                %v468 = vld [vmem:[%s204 + $0x828] sm:$0xff]
                %469 = vst [vmem:[%s205 + $0x418] sm:$0xff] %v468
                %v470 = vld [vmem:[%s204 + $0x840] sm:$0xff]
                %471 = vst [vmem:[%s205 + $0x420] sm:$0xff] %v470
                %v472 = vld [vmem:[%s204 + $0x848] sm:$0xff]
                %473 = vst [vmem:[%s205 + $0x428] sm:$0xff] %v472
                %v474 = vld [vmem:[%s204 + $0x860] sm:$0xff]
                %475 = vst [vmem:[%s205 + $0x430] sm:$0xff] %v474
                %v476 = vld [vmem:[%s204 + $0x868] sm:$0xff]
                %477 = vst [vmem:[%s205 + $0x438] sm:$0xff] %v476
                %v478 = vld [vmem:[%s204 + $0x880] sm:$0xff]
                %479 = vst [vmem:[%s205 + $0x440] sm:$0xff] %v478
                %v480 = vld [vmem:[%s204 + $0x888] sm:$0xff]
                %481 = vst [vmem:[%s205 + $0x448] sm:$0xff] %v480
                %v482 = vld [vmem:[%s204 + $0x8a0] sm:$0xff]
                %483 = vst [vmem:[%s205 + $0x450] sm:$0xff] %v482
                %v484 = vld [vmem:[%s204 + $0x8a8] sm:$0xff]
                %485 = vst [vmem:[%s205 + $0x458] sm:$0xff] %v484
                %v486 = vld [vmem:[%s204 + $0x8c0] sm:$0xff]
                %487 = vst [vmem:[%s205 + $0x460] sm:$0xff] %v486
                %v488 = vld [vmem:[%s204 + $0x8c8] sm:$0xff]
                %489 = vst [vmem:[%s205 + $0x468] sm:$0xff] %v488
                %v490 = vld [vmem:[%s204 + $0x8e0] sm:$0xff]
                %491 = vst [vmem:[%s205 + $0x470] sm:$0xff] %v490
                %v492 = vld [vmem:[%s204 + $0x8e8] sm:$0xff]
                %493 = vst [vmem:[%s205 + $0x478] sm:$0xff] %v492
                %v494 = vld [vmem:[%s204 + $0x900] sm:$0xff]
                %495 = vst [vmem:[%s205 + $0x480] sm:$0xff] %v494
                %v496 = vld [vmem:[%s204 + $0x908] sm:$0xff]
                %497 = vst [vmem:[%s205 + $0x488] sm:$0xff] %v496
                %v498 = vld [vmem:[%s204 + $0x920] sm:$0xff]
                %499 = vst [vmem:[%s205 + $0x490] sm:$0xff] %v498
                %v500 = vld [vmem:[%s204 + $0x928] sm:$0xff]
                %501 = vst [vmem:[%s205 + $0x498] sm:$0xff] %v500
                %v502 = vld [vmem:[%s204 + $0x940] sm:$0xff]
                %503 = vst [vmem:[%s205 + $0x4a0] sm:$0xff] %v502
                %v504 = vld [vmem:[%s204 + $0x948] sm:$0xff]
                %505 = vst [vmem:[%s205 + $0x4a8] sm:$0xff] %v504
                %v506 = vld [vmem:[%s204 + $0x960] sm:$0xff]
                %507 = vst [vmem:[%s205 + $0x4b0] sm:$0xff] %v506
                %v508 = vld [vmem:[%s204 + $0x968] sm:$0xff]
                %509 = vst [vmem:[%s205 + $0x4b8] sm:$0xff] %v508
                %v510 = vld [vmem:[%s204 + $0x980] sm:$0xff]
                %511 = vst [vmem:[%s205 + $0x4c0] sm:$0xff] %v510
                %v512 = vld [vmem:[%s204 + $0x988] sm:$0xff]
                %513 = vst [vmem:[%s205 + $0x4c8] sm:$0xff] %v512
                %v514 = vld [vmem:[%s204 + $0x9a0] sm:$0xff]
                %515 = vst [vmem:[%s205 + $0x4d0] sm:$0xff] %v514
                %v516 = vld [vmem:[%s204 + $0x9a8] sm:$0xff]
                %517 = vst [vmem:[%s205 + $0x4d8] sm:$0xff] %v516
                %v518 = vld [vmem:[%s204 + $0x9c0] sm:$0xff]
                %519 = vst [vmem:[%s205 + $0x4e0] sm:$0xff] %v518
                %v520 = vld [vmem:[%s204 + $0x9c8] sm:$0xff]
                %521 = vst [vmem:[%s205 + $0x4e8] sm:$0xff] %v520
                %v522 = vld [vmem:[%s204 + $0x9e0] sm:$0xff]
                %523 = vst [vmem:[%s205 + $0x4f0] sm:$0xff] %v522
                %v524 = vld [vmem:[%s204 + $0x9e8] sm:$0xff]
                %525 = vst [vmem:[%s205 + $0x4f8] sm:$0xff] %v524
                %v526 = vld [vmem:[%s204 + $0xa00] sm:$0xff]
                %527 = vst [vmem:[%s205 + $0x500] sm:$0xff] %v526
                %v528 = vld [vmem:[%s204 + $0xa08] sm:$0xff]
                %529 = vst [vmem:[%s205 + $0x508] sm:$0xff] %v528
                %v530 = vld [vmem:[%s204 + $0xa20] sm:$0xff]
                %531 = vst [vmem:[%s205 + $0x510] sm:$0xff] %v530
                %v532 = vld [vmem:[%s204 + $0xa28] sm:$0xff]
                %533 = vst [vmem:[%s205 + $0x518] sm:$0xff] %v532
                %v534 = vld [vmem:[%s204 + $0xa40] sm:$0xff]
                %535 = vst [vmem:[%s205 + $0x520] sm:$0xff] %v534
                %v536 = vld [vmem:[%s204 + $0xa48] sm:$0xff]
                %537 = vst [vmem:[%s205 + $0x528] sm:$0xff] %v536
                %v538 = vld [vmem:[%s204 + $0xa60] sm:$0xff]
                %539 = vst [vmem:[%s205 + $0x530] sm:$0xff] %v538
                %v540 = vld [vmem:[%s204 + $0xa68] sm:$0xff]
                %541 = vst [vmem:[%s205 + $0x538] sm:$0xff] %v540
                %v542 = vld [vmem:[%s204 + $0xa80] sm:$0xff]
                %543 = vst [vmem:[%s205 + $0x540] sm:$0xff] %v542
                %v544 = vld [vmem:[%s204 + $0xa88] sm:$0xff]
                %545 = vst [vmem:[%s205 + $0x548] sm:$0xff] %v544
                %v546 = vld [vmem:[%s204 + $0xaa0] sm:$0xff]
                %547 = vst [vmem:[%s205 + $0x550] sm:$0xff] %v546
                %v548 = vld [vmem:[%s204 + $0xaa8] sm:$0xff]
                %549 = vst [vmem:[%s205 + $0x558] sm:$0xff] %v548
                %v550 = vld [vmem:[%s204 + $0xac0] sm:$0xff]
                %551 = vst [vmem:[%s205 + $0x560] sm:$0xff] %v550
                %v552 = vld [vmem:[%s204 + $0xac8] sm:$0xff]
                %553 = vst [vmem:[%s205 + $0x568] sm:$0xff] %v552
                %v554 = vld [vmem:[%s204 + $0xae0] sm:$0xff]
                %555 = vst [vmem:[%s205 + $0x570] sm:$0xff] %v554
                %v556 = vld [vmem:[%s204 + $0xae8] sm:$0xff]
                %557 = vst [vmem:[%s205 + $0x578] sm:$0xff] %v556
                %v558 = vld [vmem:[%s204 + $0xb00] sm:$0xff]
                %559 = vst [vmem:[%s205 + $0x580] sm:$0xff] %v558
                %v560 = vld [vmem:[%s204 + $0xb08] sm:$0xff]
                %561 = vst [vmem:[%s205 + $0x588] sm:$0xff] %v560
                %v562 = vld [vmem:[%s204 + $0xb20] sm:$0xff]
                %563 = vst [vmem:[%s205 + $0x590] sm:$0xff] %v562
                %v564 = vld [vmem:[%s204 + $0xb28] sm:$0xff]
                %565 = vst [vmem:[%s205 + $0x598] sm:$0xff] %v564
                %v566 = vld [vmem:[%s204 + $0xb40] sm:$0xff]
                %567 = vst [vmem:[%s205 + $0x5a0] sm:$0xff] %v566
                %v568 = vld [vmem:[%s204 + $0xb48] sm:$0xff]
                %569 = vst [vmem:[%s205 + $0x5a8] sm:$0xff] %v568
                %v570 = vld [vmem:[%s204 + $0xb60] sm:$0xff]
                %571 = vst [vmem:[%s205 + $0x5b0] sm:$0xff] %v570
                %v572 = vld [vmem:[%s204 + $0xb68] sm:$0xff]
                %573 = vst [vmem:[%s205 + $0x5b8] sm:$0xff] %v572
                %v574 = vld [vmem:[%s204 + $0xb80] sm:$0xff]
                %575 = vst [vmem:[%s205 + $0x5c0] sm:$0xff] %v574
                %v576 = vld [vmem:[%s204 + $0xb88] sm:$0xff]
                %577 = vst [vmem:[%s205 + $0x5c8] sm:$0xff] %v576
                %v578 = vld [vmem:[%s204 + $0xba0] sm:$0xff]
                %579 = vst [vmem:[%s205 + $0x5d0] sm:$0xff] %v578
                %v580 = vld [vmem:[%s204 + $0xba8] sm:$0xff]
                %581 = vst [vmem:[%s205 + $0x5d8] sm:$0xff] %v580
                %v582 = vld [vmem:[%s204 + $0xbc0] sm:$0xff]
                %583 = vst [vmem:[%s205 + $0x5e0] sm:$0xff] %v582
                %v584 = vld [vmem:[%s204 + $0xbc8] sm:$0xff]
                %585 = vst [vmem:[%s205 + $0x5e8] sm:$0xff] %v584
                %v586 = vld [vmem:[%s204 + $0xbe0] sm:$0xff]
                %587 = vst [vmem:[%s205 + $0x5f0] sm:$0xff] %v586
                %v588 = vld [vmem:[%s204 + $0xbe8] sm:$0xff]
                %589 = vst [vmem:[%s205 + $0x5f8] sm:$0xff] %v588
                %v590 = vld [vmem:[%s204 + $0xc00] sm:$0xff]
                %591 = vst [vmem:[%s205 + $0x600] sm:$0xff] %v590
                %v592 = vld [vmem:[%s204 + $0xc08] sm:$0xff]
                %593 = vst [vmem:[%s205 + $0x608] sm:$0xff] %v592
                %v594 = vld [vmem:[%s204 + $0xc20] sm:$0xff]
                %595 = vst [vmem:[%s205 + $0x610] sm:$0xff] %v594
                %v596 = vld [vmem:[%s204 + $0xc28] sm:$0xff]
                %597 = vst [vmem:[%s205 + $0x618] sm:$0xff] %v596
                %v598 = vld [vmem:[%s204 + $0xc40] sm:$0xff]
                %599 = vst [vmem:[%s205 + $0x620] sm:$0xff] %v598
                %v600 = vld [vmem:[%s204 + $0xc48] sm:$0xff]
                %601 = vst [vmem:[%s205 + $0x628] sm:$0xff] %v600
                %v602 = vld [vmem:[%s204 + $0xc60] sm:$0xff]
                %603 = vst [vmem:[%s205 + $0x630] sm:$0xff] %v602
                %v604 = vld [vmem:[%s204 + $0xc68] sm:$0xff]
                %605 = vst [vmem:[%s205 + $0x638] sm:$0xff] %v604
                %v606 = vld [vmem:[%s204 + $0xc80] sm:$0xff]
                %607 = vst [vmem:[%s205 + $0x640] sm:$0xff] %v606
                %v608 = vld [vmem:[%s204 + $0xc88] sm:$0xff]
                %609 = vst [vmem:[%s205 + $0x648] sm:$0xff] %v608
                %v610 = vld [vmem:[%s204 + $0xca0] sm:$0xff]
                %611 = vst [vmem:[%s205 + $0x650] sm:$0xff] %v610
                %v612 = vld [vmem:[%s204 + $0xca8] sm:$0xff]
                %613 = vst [vmem:[%s205 + $0x658] sm:$0xff] %v612
                %v614 = vld [vmem:[%s204 + $0xcc0] sm:$0xff]
                %615 = vst [vmem:[%s205 + $0x660] sm:$0xff] %v614
                %v616 = vld [vmem:[%s204 + $0xcc8] sm:$0xff]
                %617 = vst [vmem:[%s205 + $0x668] sm:$0xff] %v616
                %v618 = vld [vmem:[%s204 + $0xce0] sm:$0xff]
                %619 = vst [vmem:[%s205 + $0x670] sm:$0xff] %v618
                %v620 = vld [vmem:[%s204 + $0xce8] sm:$0xff]
                %621 = vst [vmem:[%s205 + $0x678] sm:$0xff] %v620
                %v622 = vld [vmem:[%s204 + $0xd00] sm:$0xff]
                %623 = vst [vmem:[%s205 + $0x680] sm:$0xff] %v622
                %v624 = vld [vmem:[%s204 + $0xd08] sm:$0xff]
                %625 = vst [vmem:[%s205 + $0x688] sm:$0xff] %v624
                %v626 = vld [vmem:[%s204 + $0xd20] sm:$0xff]
                %627 = vst [vmem:[%s205 + $0x690] sm:$0xff] %v626
                %v628 = vld [vmem:[%s204 + $0xd28] sm:$0xff]
                %629 = vst [vmem:[%s205 + $0x698] sm:$0xff] %v628
                %v630 = vld [vmem:[%s204 + $0xd40] sm:$0xff]
                %631 = vst [vmem:[%s205 + $0x6a0] sm:$0xff] %v630
                %v632 = vld [vmem:[%s204 + $0xd48] sm:$0xff]
                %633 = vst [vmem:[%s205 + $0x6a8] sm:$0xff] %v632
                %v634 = vld [vmem:[%s204 + $0xd60] sm:$0xff]
                %635 = vst [vmem:[%s205 + $0x6b0] sm:$0xff] %v634
                %v636 = vld [vmem:[%s204 + $0xd68] sm:$0xff]
                %637 = vst [vmem:[%s205 + $0x6b8] sm:$0xff] %v636
                %v638 = vld [vmem:[%s204 + $0xd80] sm:$0xff]
                %639 = vst [vmem:[%s205 + $0x6c0] sm:$0xff] %v638
                %v640 = vld [vmem:[%s204 + $0xd88] sm:$0xff]
                %641 = vst [vmem:[%s205 + $0x6c8] sm:$0xff] %v640
                %v642 = vld [vmem:[%s204 + $0xda0] sm:$0xff]
                %643 = vst [vmem:[%s205 + $0x6d0] sm:$0xff] %v642
                %v644 = vld [vmem:[%s204 + $0xda8] sm:$0xff]
                %645 = vst [vmem:[%s205 + $0x6d8] sm:$0xff] %v644
                %v646 = vld [vmem:[%s204 + $0xdc0] sm:$0xff]
                %647 = vst [vmem:[%s205 + $0x6e0] sm:$0xff] %v646
                %v648 = vld [vmem:[%s204 + $0xdc8] sm:$0xff]
                %649 = vst [vmem:[%s205 + $0x6e8] sm:$0xff] %v648
                %v650 = vld [vmem:[%s204 + $0xde0] sm:$0xff]
                %651 = vst [vmem:[%s205 + $0x6f0] sm:$0xff] %v650
                %v652 = vld [vmem:[%s204 + $0xde8] sm:$0xff]
                %653 = vst [vmem:[%s205 + $0x6f8] sm:$0xff] %v652
                %v654 = vld [vmem:[%s204 + $0xe00] sm:$0xff]
                %655 = vst [vmem:[%s205 + $0x700] sm:$0xff] %v654
                %v656 = vld [vmem:[%s204 + $0xe08] sm:$0xff]
                %657 = vst [vmem:[%s205 + $0x708] sm:$0xff] %v656
                %v658 = vld [vmem:[%s204 + $0xe20] sm:$0xff]
                %659 = vst [vmem:[%s205 + $0x710] sm:$0xff] %v658
                %v660 = vld [vmem:[%s204 + $0xe28] sm:$0xff]
                %661 = vst [vmem:[%s205 + $0x718] sm:$0xff] %v660
                %v662 = vld [vmem:[%s204 + $0xe40] sm:$0xff]
                %663 = vst [vmem:[%s205 + $0x720] sm:$0xff] %v662
                %v664 = vld [vmem:[%s204 + $0xe48] sm:$0xff]
                %665 = vst [vmem:[%s205 + $0x728] sm:$0xff] %v664
                %v666 = vld [vmem:[%s204 + $0xe60] sm:$0xff]
                %667 = vst [vmem:[%s205 + $0x730] sm:$0xff] %v666
                %v668 = vld [vmem:[%s204 + $0xe68] sm:$0xff]
                %669 = vst [vmem:[%s205 + $0x738] sm:$0xff] %v668
                %v670 = vld [vmem:[%s204 + $0xe80] sm:$0xff]
                %671 = vst [vmem:[%s205 + $0x740] sm:$0xff] %v670
                %v672 = vld [vmem:[%s204 + $0xe88] sm:$0xff]
                %673 = vst [vmem:[%s205 + $0x748] sm:$0xff] %v672
                %v674 = vld [vmem:[%s204 + $0xea0] sm:$0xff]
                %675 = vst [vmem:[%s205 + $0x750] sm:$0xff] %v674
                %v676 = vld [vmem:[%s204 + $0xea8] sm:$0xff]
                %677 = vst [vmem:[%s205 + $0x758] sm:$0xff] %v676
                %v678 = vld [vmem:[%s204 + $0xec0] sm:$0xff]
                %679 = vst [vmem:[%s205 + $0x760] sm:$0xff] %v678
                %v680 = vld [vmem:[%s204 + $0xec8] sm:$0xff]
                %681 = vst [vmem:[%s205 + $0x768] sm:$0xff] %v680
                %v682 = vld [vmem:[%s204 + $0xee0] sm:$0xff]
                %683 = vst [vmem:[%s205 + $0x770] sm:$0xff] %v682
                %v684 = vld [vmem:[%s204 + $0xee8] sm:$0xff]
                %685 = vst [vmem:[%s205 + $0x778] sm:$0xff] %v684
                %v686 = vld [vmem:[%s204 + $0xf00] sm:$0xff]
                %687 = vst [vmem:[%s205 + $0x780] sm:$0xff] %v686
                %v688 = vld [vmem:[%s204 + $0xf08] sm:$0xff]
                %689 = vst [vmem:[%s205 + $0x788] sm:$0xff] %v688
                %v690 = vld [vmem:[%s204 + $0xf20] sm:$0xff]
                %691 = vst [vmem:[%s205 + $0x790] sm:$0xff] %v690
                %v692 = vld [vmem:[%s204 + $0xf28] sm:$0xff]
                %693 = vst [vmem:[%s205 + $0x798] sm:$0xff] %v692
                %v694 = vld [vmem:[%s204 + $0xf40] sm:$0xff]
                %695 = vst [vmem:[%s205 + $0x7a0] sm:$0xff] %v694
                %v696 = vld [vmem:[%s204 + $0xf48] sm:$0xff]
                %697 = vst [vmem:[%s205 + $0x7a8] sm:$0xff] %v696
                %v698 = vld [vmem:[%s204 + $0xf60] sm:$0xff]
                %699 = vst [vmem:[%s205 + $0x7b0] sm:$0xff] %v698
                %v700 = vld [vmem:[%s204 + $0xf68] sm:$0xff]
                %701 = vst [vmem:[%s205 + $0x7b8] sm:$0xff] %v700
                %v702 = vld [vmem:[%s204 + $0xf80] sm:$0xff]
                %703 = vst [vmem:[%s205 + $0x7c0] sm:$0xff] %v702
                %v704 = vld [vmem:[%s204 + $0xf88] sm:$0xff]
                %705 = vst [vmem:[%s205 + $0x7c8] sm:$0xff] %v704
                %v706 = vld [vmem:[%s204 + $0xfa0] sm:$0xff]
                %707 = vst [vmem:[%s205 + $0x7d0] sm:$0xff] %v706
                %v708 = vld [vmem:[%s204 + $0xfa8] sm:$0xff]
                %709 = vst [vmem:[%s205 + $0x7d8] sm:$0xff] %v708
                %v710 = vld [vmem:[%s204 + $0xfc0] sm:$0xff]
                %711 = vst [vmem:[%s205 + $0x7e0] sm:$0xff] %v710
                %v712 = vld [vmem:[%s204 + $0xfc8] sm:$0xff]
                %713 = vst [vmem:[%s205 + $0x7e8] sm:$0xff] %v712
                %v714 = vld [vmem:[%s204 + $0xfe0] sm:$0xff]
                %715 = vst [vmem:[%s205 + $0x7f0] sm:$0xff] %v714
                %v716 = vld [vmem:[%s204 + $0xfe8] sm:$0xff]
                %717 = vst [vmem:[%s205 + $0x7f8] sm:$0xff] %v716
              $region37: #{essl_vicreg_forward.8} parent=31 // loop_footer
                %s203 = sadd.s32 1, %s199
              $region38: #{essl_vicreg_forward.8} parent=31 // loop_footer_branch
                %198 = sbr.rel target = $region34
              $region39: #{essl_vicreg_forward.8} parent=31 // loop_exit
                _
            $region32: #{essl_vicreg_forward.8} parent=27 // pred_fallthru
              _
            // Predicated region
            $region40: #{essl_vicreg_forward.8} parent=27 // pred_check
              _
            $region41: #{essl_vicreg_forward.8} parent=27 // pred_check_branch
              %719 = sbr.rel target = $region43
            $region42: #{essl_vicreg_forward.8} parent=27 // pred_region
              _
            $region43: #{essl_vicreg_forward.8} parent=27 // pred_fallthru
              _
          $region28: #{essl_vicreg_forward.8} parent=23 // pred_fallthru
            _
          %720 = vnop
        $region24: #{essl_vicreg_forward.8} parent=19 // pred_fallthru
          _
        // Predicated region
        $region44: #{essl_vicreg_forward.8} parent=19 // pred_check
          %p721 = pneg %p78
        $region45: #{essl_vicreg_forward.8} parent=19 // pred_check_branch
          %723 = sbr.rel (%p721) target = $region47
        $region46: #{essl_vicreg_forward.8} parent=19 // pred_region
          %s724 = smul.u32 4, %s11
          %p725 = scmp.lt.s32.totalorder %s724, 7
          %s726 = scalar_select %p725, %s724, 7
          %s727 = scalar_lea.vmem %s2, %s726
          %s728 = smul.u32 4, %s11
        $region47: #{essl_vicreg_forward.8} parent=19 // pred_fallthru
          _
        // Predicated region
        $region48: #{essl_vicreg_forward.8} parent=19 // pred_check
          %p729 = pneg %p104
        $region49: #{essl_vicreg_forward.8} parent=19 // pred_check_branch
          %731 = sbr.rel (%p729) target = $region51
        $region50: #{essl_vicreg_forward.8} parent=19 // pred_region
          %s732 = smul.u32 4, %s11
          %p733 = scmp.lt.s32.totalorder %s732, 7
          %s734 = scalar_select %p733, %s732, 7
          %s735 = scalar_lea.vmem %s3, %s734
          %s736 = smul.u32 4, %s11
        $region51: #{essl_vicreg_forward.8} parent=19 // pred_fallthru
          _
        // Predicated region
        $region52: #{essl_vicreg_forward.8} parent=19 // pred_check
          %p737 = pneg %p130
        $region53: #{essl_vicreg_forward.8} parent=19 // pred_check_branch
          %739 = sbr.rel (%p737) target = $region55
        $region54: #{essl_vicreg_forward.8} parent=19 // pred_region
          %s740 = smul.u32 4, %s11
          %p741 = scmp.lt.s32.totalorder %s740, 7
          %s742 = scalar_select %p741, %s740, 7
          %s743 = scalar_lea.vmem %s4, %s742
          %s744 = smul.u32 4, %s11
        $region55: #{essl_vicreg_forward.8} parent=19 // pred_fallthru
          _
      $region20: #{essl_vicreg_forward.8} parent=5 // pred_fallthru
        _
      %p745 = scmp.le.s32.totalorder 1, %s11
      %p746 = scmp.lt.s32.totalorder %s11, 3
      %p747 = pnand %p745, %p746
      %p748 = pneg %p747
      // Predicated region
      $region56: #{essl_vicreg_forward.8} parent=5 // pred_check
        _
      $region57: #{essl_vicreg_forward.8} parent=5 // pred_check_branch
        %750 = sbr.rel (%p747) target = $region59
      $region58: #{essl_vicreg_forward.8} parent=5 // pred_region
        %s751 = ssub.s32 %s11, 1
        %s752 = sand.u32 %s45, 1
        %s753 = sand.u32 %s45, 1
        %s754 = smul.addr %s753, 2048
        %s755 = scalar_lea.vmem [#allocation2], %s754
        // Predicated region
        $region60: #{essl_vicreg_forward.8} parent=58 // pred_check
          %p756 = pneg %p58
        $region61: #{essl_vicreg_forward.8} parent=58 // pred_check_branch
          %758 = sbr.rel (%p756) target = $region63
        $region62: #{essl_vicreg_forward.8} parent=58 // pred_region
          _
        $region63: #{essl_vicreg_forward.8} parent=58 // pred_fallthru
          _
        %p759 = pneg %p32
        %p760 = pneg %p29
        %s761 = sand.u32 %s45, 1
        %s762 = sand.u32 %s45, 1
        %s763 = smul.addr %s762, 2048
        %s764 = scalar_lea.vmem [#allocation2], %s763
        %p765 = pneg %p58
        %p766 = pneg %p55
        %s767 = smul.u32 4, %s16
        %p768 = scmp.lt.s32.totalorder %s767, 7
        %s769 = scalar_select %p768, %s767, 7
        %s770 = scalar_lea.vmem %s2, %s769
        %p771 = pneg %p84
        %p772 = pneg %p81
        %s773 = smul.u32 4, %s16
        %p774 = scmp.lt.s32.totalorder %s773, 7
        %s775 = scalar_select %p774, %s773, 7
        %s776 = scalar_lea.vmem %s3, %s775
        %p777 = pneg %p110
        %p778 = pneg %p107
        %s779 = smul.u32 4, %s16
        %p780 = scmp.lt.s32.totalorder %s779, 7
        %s781 = scalar_select %p780, %s779, 7
        %s782 = scalar_lea.vmem %s4, %s781
        %p783 = pneg %p136
        %p784 = pneg %p133
        %p785 = pneg %p162
        %p786 = pneg %p159
        %s787 = smul.u32 4, %s16
        %p788 = scmp.lt.s32.totalorder %s787, 7
        %s789 = scalar_select %p788, %s787, 7
        %s790 = smul.addr %s789, 2
        %s791 = scalar_lea.vmem %s5, %s790
        %s792 = smul.u32 4, %s16
        %s793 = smul.u32 4, %s16
        %p794 = scmp.lt.s32.totalorder %s793, 7
        %s795 = scalar_select %p794, %s793, 7
        %s796 = scalar_lea.vmem %s2, %s795
        %s797 = smul.u32 4, %s16
        %s798 = smul.u32 4, %s16
        %p799 = scmp.lt.s32.totalorder %s798, 7
        %s800 = scalar_select %p799, %s798, 7
        %s801 = scalar_lea.vmem %s3, %s800
        %s802 = smul.u32 4, %s16
        %s803 = smul.u32 4, %s16
        %p804 = scmp.lt.s32.totalorder %s803, 7
        %s805 = scalar_select %p804, %s803, 7
        %s806 = scalar_lea.vmem %s4, %s805
        %s807 = smul.u32 4, %s16
        %s808 = smul.u32 4, %s16
        %p809 = scmp.lt.s32.totalorder %s808, 7
        %s810 = scalar_select %p809, %s808, 7
        %s811 = smul.addr %s810, 2
        %s812 = scalar_lea.vmem %s5, %s811
        %s813 = smul.u32 4, %s16
        %v814 = vld [vmem:[%s796] sm:$0xf]
        %v815 = vld [vmem:[%s801] sm:$0xf]
        %v816 = vld [vmem:[%s806] sm:$0xf]
        %v817 = vld [vmem:[%s0] sm:$0xff]
        %v818 = vld [vmem:[%s0 + $0x8] sm:$0xff]
        %v819 = vld [vmem:[%s755] sm:$0xff]
        %v820 = vld [vmem:[%s755 + $0x8] sm:$0xff]
        %v821 = vld [vmem:[%s755 + $0x10] sm:$0xff]
        %v822 = vld [vmem:[%s755 + $0x18] sm:$0xff]
        %v823 = vld [vmem:[%s755 + $0x20] sm:$0xff]
        %v824 = vld [vmem:[%s755 + $0x28] sm:$0xff]
        %v825 = vld [vmem:[%s755 + $0x30] sm:$0xff]
        %v826 = vld [vmem:[%s755 + $0x38] sm:$0xff]
        %v827 = vld [vmem:[%s755 + $0x40] sm:$0xff]
        %v828 = vld [vmem:[%s755 + $0x48] sm:$0xff]
        %v829 = vld [vmem:[%s755 + $0x50] sm:$0xff]
        %v830 = vld [vmem:[%s755 + $0x58] sm:$0xff]
        %v831 = vld [vmem:[%s755 + $0x60] sm:$0xff]
        %v832 = vld [vmem:[%s755 + $0x68] sm:$0xff]
        %v833 = vld [vmem:[%s755 + $0x70] sm:$0xff]
        %v834 = vld [vmem:[%s755 + $0x78] sm:$0xff]
        %v835 = vld [vmem:[%s755 + $0x80] sm:$0xff]
        %v836 = vld [vmem:[%s755 + $0x88] sm:$0xff]
        %v837 = vld [vmem:[%s755 + $0x90] sm:$0xff]
        %v838 = vld [vmem:[%s755 + $0x98] sm:$0xff]
        %v839 = vld [vmem:[%s755 + $0xa0] sm:$0xff]
        %v840 = vld [vmem:[%s755 + $0xa8] sm:$0xff]
        %v841 = vld [vmem:[%s755 + $0xb0] sm:$0xff]
        %v842 = vld [vmem:[%s755 + $0xb8] sm:$0xff]
        %v843 = vld [vmem:[%s755 + $0xc0] sm:$0xff]
        %v844 = vld [vmem:[%s755 + $0xc8] sm:$0xff]
        %v845 = vld [vmem:[%s755 + $0xd0] sm:$0xff]
        %v846 = vld [vmem:[%s755 + $0xd8] sm:$0xff]
        %v847 = vld [vmem:[%s755 + $0xe0] sm:$0xff]
        %v848 = vld [vmem:[%s755 + $0xe8] sm:$0xff]
        %v849 = vld [vmem:[%s755 + $0xf0] sm:$0xff]
        %v850 = vld [vmem:[%s755 + $0xf8] sm:$0xff]
        %v851 = vld [vmem:[%s755 + $0x100] sm:$0xff]
        %v852 = vld [vmem:[%s755 + $0x108] sm:$0xff]
        %v853 = vld [vmem:[%s755 + $0x110] sm:$0xff]
        %v854 = vld [vmem:[%s755 + $0x118] sm:$0xff]
        %v855 = vld [vmem:[%s755 + $0x120] sm:$0xff]
        %v856 = vld [vmem:[%s755 + $0x128] sm:$0xff]
        %v857 = vld [vmem:[%s755 + $0x130] sm:$0xff]
        %v858 = vld [vmem:[%s755 + $0x138] sm:$0xff]
        %v859 = vld [vmem:[%s755 + $0x140] sm:$0xff]
        %v860 = vld [vmem:[%s755 + $0x148] sm:$0xff]
        %v861 = vld [vmem:[%s755 + $0x150] sm:$0xff]
        %v862 = vld [vmem:[%s755 + $0x158] sm:$0xff]
        %v863 = vld [vmem:[%s755 + $0x160] sm:$0xff]
        %v864 = vld [vmem:[%s755 + $0x168] sm:$0xff]
        %v865 = vld [vmem:[%s755 + $0x170] sm:$0xff]
        %v866 = vld [vmem:[%s755 + $0x178] sm:$0xff]
        %v867 = vld [vmem:[%s755 + $0x180] sm:$0xff]
        %v868 = vld [vmem:[%s755 + $0x188] sm:$0xff]
        %v869 = vld [vmem:[%s755 + $0x190] sm:$0xff]
        %v870 = vld [vmem:[%s755 + $0x198] sm:$0xff]
        %v871 = vld [vmem:[%s755 + $0x1a0] sm:$0xff]
        %v872 = vld [vmem:[%s755 + $0x1a8] sm:$0xff]
        %v873 = vld [vmem:[%s755 + $0x1b0] sm:$0xff]
        %v874 = vld [vmem:[%s755 + $0x1b8] sm:$0xff]
        %v875 = vld [vmem:[%s755 + $0x1c0] sm:$0xff]
        %v876 = vld [vmem:[%s755 + $0x1c8] sm:$0xff]
        %v877 = vld [vmem:[%s755 + $0x1d0] sm:$0xff]
        %v878 = vld [vmem:[%s755 + $0x1d8] sm:$0xff]
        %v879 = vld [vmem:[%s755 + $0x1e0] sm:$0xff]
        %v880 = vld [vmem:[%s755 + $0x1e8] sm:$0xff]
        %v881 = vld [vmem:[%s755 + $0x1f0] sm:$0xff]
        %v882 = vld [vmem:[%s755 + $0x1f8] sm:$0xff]
        %v883 = vld [vmem:[%s755 + $0x200] sm:$0xff]
        %v884 = vld [vmem:[%s755 + $0x208] sm:$0xff]
        %v885 = vld [vmem:[%s755 + $0x210] sm:$0xff]
        %v886 = vld [vmem:[%s755 + $0x218] sm:$0xff]
        %v887 = vld [vmem:[%s755 + $0x220] sm:$0xff]
        %v888 = vld [vmem:[%s755 + $0x228] sm:$0xff]
        %v889 = vld [vmem:[%s755 + $0x230] sm:$0xff]
        %v890 = vld [vmem:[%s755 + $0x238] sm:$0xff]
        %v891 = vld [vmem:[%s755 + $0x240] sm:$0xff]
        %v892 = vld [vmem:[%s755 + $0x248] sm:$0xff]
        %v893 = vld [vmem:[%s755 + $0x250] sm:$0xff]
        %v894 = vld [vmem:[%s755 + $0x258] sm:$0xff]
        %v895 = vld [vmem:[%s755 + $0x260] sm:$0xff]
        %v896 = vld [vmem:[%s755 + $0x268] sm:$0xff]
        %v897 = vld [vmem:[%s755 + $0x270] sm:$0xff]
        %v898 = vld [vmem:[%s755 + $0x278] sm:$0xff]
        %v899 = vld [vmem:[%s755 + $0x280] sm:$0xff]
        %v900 = vld [vmem:[%s755 + $0x288] sm:$0xff]
        %v901 = vld [vmem:[%s755 + $0x290] sm:$0xff]
        %v902 = vld [vmem:[%s755 + $0x298] sm:$0xff]
        %v903 = vld [vmem:[%s755 + $0x2a0] sm:$0xff]
        %v904 = vld [vmem:[%s755 + $0x2a8] sm:$0xff]
        %v905 = vld [vmem:[%s755 + $0x2b0] sm:$0xff]
        %v906 = vld [vmem:[%s755 + $0x2b8] sm:$0xff]
        %v907 = vld [vmem:[%s755 + $0x2c0] sm:$0xff]
        %v908 = vld [vmem:[%s755 + $0x2c8] sm:$0xff]
        %v909 = vld [vmem:[%s755 + $0x2d0] sm:$0xff]
        %v910 = vld [vmem:[%s755 + $0x2d8] sm:$0xff]
        %v911 = vld [vmem:[%s755 + $0x2e0] sm:$0xff]
        %v912 = vld [vmem:[%s755 + $0x2e8] sm:$0xff]
        %v913 = vld [vmem:[%s755 + $0x2f0] sm:$0xff]
        %v914 = vld [vmem:[%s755 + $0x2f8] sm:$0xff]
        %v915 = vld [vmem:[%s755 + $0x300] sm:$0xff]
        %v916 = vld [vmem:[%s755 + $0x308] sm:$0xff]
        %v917 = vld [vmem:[%s755 + $0x310] sm:$0xff]
        %v918 = vld [vmem:[%s755 + $0x318] sm:$0xff]
        %v919 = vld [vmem:[%s755 + $0x320] sm:$0xff]
        %v920 = vld [vmem:[%s755 + $0x328] sm:$0xff]
        %v921 = vld [vmem:[%s755 + $0x330] sm:$0xff]
        %v922 = vld [vmem:[%s755 + $0x338] sm:$0xff]
        %v923 = vld [vmem:[%s755 + $0x340] sm:$0xff]
        %v924 = vld [vmem:[%s755 + $0x348] sm:$0xff]
        %v925 = vld [vmem:[%s755 + $0x350] sm:$0xff]
        %v926 = vld [vmem:[%s755 + $0x358] sm:$0xff]
        %v927 = vld [vmem:[%s755 + $0x360] sm:$0xff]
        %v928 = vld [vmem:[%s755 + $0x368] sm:$0xff]
        %v929 = vld [vmem:[%s755 + $0x370] sm:$0xff]
        %v930 = vld [vmem:[%s755 + $0x378] sm:$0xff]
        %v931 = vld [vmem:[%s755 + $0x380] sm:$0xff]
        %v932 = vld [vmem:[%s755 + $0x388] sm:$0xff]
        %v933 = vld [vmem:[%s755 + $0x390] sm:$0xff]
        %v934 = vld [vmem:[%s755 + $0x398] sm:$0xff]
        %v935 = vld [vmem:[%s755 + $0x3a0] sm:$0xff]
        %v936 = vld [vmem:[%s755 + $0x3a8] sm:$0xff]
        %v937 = vld [vmem:[%s755 + $0x3b0] sm:$0xff]
        %v938 = vld [vmem:[%s755 + $0x3b8] sm:$0xff]
        %v939 = vld [vmem:[%s755 + $0x3c0] sm:$0xff]
        %v940 = vld [vmem:[%s755 + $0x3c8] sm:$0xff]
        %v941 = vld [vmem:[%s755 + $0x3d0] sm:$0xff]
        %v942 = vld [vmem:[%s755 + $0x3d8] sm:$0xff]
        %v943 = vld [vmem:[%s755 + $0x3e0] sm:$0xff]
        %v944 = vld [vmem:[%s755 + $0x3e8] sm:$0xff]
        %v945 = vld [vmem:[%s755 + $0x3f0] sm:$0xff]
        %v946 = vld [vmem:[%s755 + $0x3f8] sm:$0xff]
        %v947 = vld [vmem:[%s755 + $0x400] sm:$0xff]
        %v948 = vld [vmem:[%s755 + $0x408] sm:$0xff]
        %v949 = vld [vmem:[%s755 + $0x410] sm:$0xff]
        %v950 = vld [vmem:[%s755 + $0x418] sm:$0xff]
        %v951 = vld [vmem:[%s755 + $0x420] sm:$0xff]
        %v952 = vld [vmem:[%s755 + $0x428] sm:$0xff]
        %v953 = vld [vmem:[%s755 + $0x430] sm:$0xff]
        %v954 = vld [vmem:[%s755 + $0x438] sm:$0xff]
        %v955 = vld [vmem:[%s755 + $0x440] sm:$0xff]
        %v956 = vld [vmem:[%s755 + $0x448] sm:$0xff]
        %v957 = vld [vmem:[%s755 + $0x450] sm:$0xff]
        %v958 = vld [vmem:[%s755 + $0x458] sm:$0xff]
        %v959 = vld [vmem:[%s755 + $0x460] sm:$0xff]
        %v960 = vld [vmem:[%s755 + $0x468] sm:$0xff]
        %v961 = vld [vmem:[%s755 + $0x470] sm:$0xff]
        %v962 = vld [vmem:[%s755 + $0x478] sm:$0xff]
        %v963 = vld [vmem:[%s755 + $0x480] sm:$0xff]
        %v964 = vld [vmem:[%s755 + $0x488] sm:$0xff]
        %v965 = vld [vmem:[%s755 + $0x490] sm:$0xff]
        %v966 = vld [vmem:[%s755 + $0x498] sm:$0xff]
        %v967 = vld [vmem:[%s755 + $0x4a0] sm:$0xff]
        %v968 = vld [vmem:[%s755 + $0x4a8] sm:$0xff]
        %v969 = vld [vmem:[%s755 + $0x4b0] sm:$0xff]
        %v970 = vld [vmem:[%s755 + $0x4b8] sm:$0xff]
        %v971 = vld [vmem:[%s755 + $0x4c0] sm:$0xff]
        %v972 = vld [vmem:[%s755 + $0x4c8] sm:$0xff]
        %v973 = vld [vmem:[%s755 + $0x4d0] sm:$0xff]
        %v974 = vld [vmem:[%s755 + $0x4d8] sm:$0xff]
        %v975 = vld [vmem:[%s755 + $0x4e0] sm:$0xff]
        %v976 = vld [vmem:[%s755 + $0x4e8] sm:$0xff]
        %v977 = vld [vmem:[%s755 + $0x4f0] sm:$0xff]
        %v978 = vld [vmem:[%s755 + $0x4f8] sm:$0xff]
        %v979 = vld [vmem:[%s755 + $0x500] sm:$0xff]
        %v980 = vld [vmem:[%s755 + $0x508] sm:$0xff]
        %v981 = vld [vmem:[%s755 + $0x510] sm:$0xff]
        %v982 = vld [vmem:[%s755 + $0x518] sm:$0xff]
        %v983 = vld [vmem:[%s755 + $0x520] sm:$0xff]
        %v984 = vld [vmem:[%s755 + $0x528] sm:$0xff]
        %v985 = vld [vmem:[%s755 + $0x530] sm:$0xff]
        %v986 = vld [vmem:[%s755 + $0x538] sm:$0xff]
        %v987 = vld [vmem:[%s755 + $0x540] sm:$0xff]
        %v988 = vld [vmem:[%s755 + $0x548] sm:$0xff]
        %v989 = vld [vmem:[%s755 + $0x550] sm:$0xff]
        %v990 = vld [vmem:[%s755 + $0x558] sm:$0xff]
        %v991 = vld [vmem:[%s755 + $0x560] sm:$0xff]
        %v992 = vld [vmem:[%s755 + $0x568] sm:$0xff]
        %v993 = vld [vmem:[%s755 + $0x570] sm:$0xff]
        %v994 = vld [vmem:[%s755 + $0x578] sm:$0xff]
        %v995 = vld [vmem:[%s755 + $0x580] sm:$0xff]
        %v996 = vld [vmem:[%s755 + $0x588] sm:$0xff]
        %v997 = vld [vmem:[%s755 + $0x590] sm:$0xff]
        %v998 = vld [vmem:[%s755 + $0x598] sm:$0xff]
        %v999 = vld [vmem:[%s755 + $0x5a0] sm:$0xff]
        %v1000 = vld [vmem:[%s755 + $0x5a8] sm:$0xff]
        %v1001 = vld [vmem:[%s755 + $0x5b0] sm:$0xff]
        %v1002 = vld [vmem:[%s755 + $0x5b8] sm:$0xff]
        %v1003 = vld [vmem:[%s755 + $0x5c0] sm:$0xff]
        %v1004 = vld [vmem:[%s755 + $0x5c8] sm:$0xff]
        %v1005 = vld [vmem:[%s755 + $0x5d0] sm:$0xff]
        %v1006 = vld [vmem:[%s755 + $0x5d8] sm:$0xff]
        %v1007 = vld [vmem:[%s755 + $0x5e0] sm:$0xff]
        %v1008 = vld [vmem:[%s755 + $0x5e8] sm:$0xff]
        %v1009 = vld [vmem:[%s755 + $0x5f0] sm:$0xff]
        %v1010 = vld [vmem:[%s755 + $0x5f8] sm:$0xff]
        %v1011 = vld [vmem:[%s755 + $0x600] sm:$0xff]
        %v1012 = vld [vmem:[%s755 + $0x608] sm:$0xff]
        %v1013 = vld [vmem:[%s755 + $0x610] sm:$0xff]
        %v1014 = vld [vmem:[%s755 + $0x618] sm:$0xff]
        %v1015 = vld [vmem:[%s755 + $0x620] sm:$0xff]
        %v1016 = vld [vmem:[%s755 + $0x628] sm:$0xff]
        %v1017 = vld [vmem:[%s755 + $0x630] sm:$0xff]
        %v1018 = vld [vmem:[%s755 + $0x638] sm:$0xff]
        %v1019 = vld [vmem:[%s755 + $0x640] sm:$0xff]
        %v1020 = vld [vmem:[%s755 + $0x648] sm:$0xff]
        %v1021 = vld [vmem:[%s755 + $0x650] sm:$0xff]
        %v1022 = vld [vmem:[%s755 + $0x658] sm:$0xff]
        %v1023 = vld [vmem:[%s755 + $0x660] sm:$0xff]
        %v1024 = vld [vmem:[%s755 + $0x668] sm:$0xff]
        %v1025 = vld [vmem:[%s755 + $0x670] sm:$0xff]
        %v1026 = vld [vmem:[%s755 + $0x678] sm:$0xff]
        %v1027 = vld [vmem:[%s755 + $0x680] sm:$0xff]
        %v1028 = vld [vmem:[%s755 + $0x688] sm:$0xff]
        %v1029 = vld [vmem:[%s755 + $0x690] sm:$0xff]
        %v1030 = vld [vmem:[%s755 + $0x698] sm:$0xff]
        %v1031 = vld [vmem:[%s755 + $0x6a0] sm:$0xff]
        %v1032 = vld [vmem:[%s755 + $0x6a8] sm:$0xff]
        %v1033 = vld [vmem:[%s755 + $0x6b0] sm:$0xff]
        %v1034 = vld [vmem:[%s755 + $0x6b8] sm:$0xff]
        %v1035 = vld [vmem:[%s755 + $0x6c0] sm:$0xff]
        %v1036 = vld [vmem:[%s755 + $0x6c8] sm:$0xff]
        %v1037 = vld [vmem:[%s755 + $0x6d0] sm:$0xff]
        %v1038 = vld [vmem:[%s755 + $0x6d8] sm:$0xff]
        %v1039 = vld [vmem:[%s755 + $0x6e0] sm:$0xff]
        %v1040 = vld [vmem:[%s755 + $0x6e8] sm:$0xff]
        %v1041 = vld [vmem:[%s755 + $0x6f0] sm:$0xff]
        %v1042 = vld [vmem:[%s755 + $0x6f8] sm:$0xff]
        %v1043 = vld [vmem:[%s755 + $0x700] sm:$0xff]
        %v1044 = vld [vmem:[%s755 + $0x708] sm:$0xff]
        %v1045 = vld [vmem:[%s755 + $0x710] sm:$0xff]
        %v1046 = vld [vmem:[%s755 + $0x718] sm:$0xff]
        %v1047 = vld [vmem:[%s755 + $0x720] sm:$0xff]
        %v1048 = vld [vmem:[%s755 + $0x728] sm:$0xff]
        %v1049 = vld [vmem:[%s755 + $0x730] sm:$0xff]
        %v1050 = vld [vmem:[%s755 + $0x738] sm:$0xff]
        %v1051 = vld [vmem:[%s755 + $0x740] sm:$0xff]
        %v1052 = vld [vmem:[%s755 + $0x748] sm:$0xff]
        %v1053 = vld [vmem:[%s755 + $0x750] sm:$0xff]
        %v1054 = vld [vmem:[%s755 + $0x758] sm:$0xff]
        %v1055 = vld [vmem:[%s755 + $0x760] sm:$0xff]
        %v1056 = vld [vmem:[%s755 + $0x768] sm:$0xff]
        %v1057 = vld [vmem:[%s755 + $0x770] sm:$0xff]
        %v1058 = vld [vmem:[%s755 + $0x778] sm:$0xff]
        %v1059 = vld [vmem:[%s755 + $0x780] sm:$0xff]
        %v1060 = vld [vmem:[%s755 + $0x788] sm:$0xff]
        %v1061 = vld [vmem:[%s755 + $0x790] sm:$0xff]
        %v1062 = vld [vmem:[%s755 + $0x798] sm:$0xff]
        %v1063 = vld [vmem:[%s755 + $0x7a0] sm:$0xff]
        %v1064 = vld [vmem:[%s755 + $0x7a8] sm:$0xff]
        %v1065 = vld [vmem:[%s755 + $0x7b0] sm:$0xff]
        %v1066 = vld [vmem:[%s755 + $0x7b8] sm:$0xff]
        %v1067 = vld [vmem:[%s755 + $0x7c0] sm:$0xff]
        %v1068 = vld [vmem:[%s755 + $0x7c8] sm:$0xff]
        %v1069 = vld [vmem:[%s755 + $0x7d0] sm:$0xff]
        %v1070 = vld [vmem:[%s755 + $0x7d8] sm:$0xff]
        %v1071 = vld [vmem:[%s755 + $0x7e0] sm:$0xff]
        %v1072 = vld [vmem:[%s755 + $0x7e8] sm:$0xff]
        %v1073 = vld [vmem:[%s755 + $0x7f0] sm:$0xff]
        %v1074 = vld [vmem:[%s755 + $0x7f8] sm:$0xff]
        %v1076 = vlaneseq
        %v1077 = vshrl.u32 %v1076, 7
        %v1078 = vsub.s32 0, %v1077
        %v1079 = vrot.slane %v814, %v1078
        %v1080 = vlaneseq
        %v1081 = vshrl.u32 %v1080, 7
        %v1082 = vsub.s32 1, %v1081
        %v1083 = vrot.slane %v814, %v1082
        %v1084 = vlaneseq
        %v1085 = vshrl.u32 %v1084, 7
        %v1086 = vsub.s32 2, %v1085
        %v1087 = vrot.slane %v814, %v1086
        %v1088 = vlaneseq
        %v1089 = vshrl.u32 %v1088, 7
        %v1090 = vsub.s32 3, %v1089
        %v1091 = vrot.slane %v814, %v1090
        %v1098 = vcombine.high %v817, %v817
        %v1100 = vunpack.c.l.s4 1983009808
        %v1101 = vunpack.c.0.s8 %v1100
        %v1102 = vlaneseq
        %v1103 = vshrl.u32 %v1102, 7
        %v1104 = vsub.s32 %v1101, %v1103
        %v1105 = vrot.slane %v817, %v1104
        %v1107 = vunpack.c.l.s4 1983009808
        %v1108 = vunpack.c.0.s8 %v1107
        %v1109 = vlaneseq
        %v1110 = vshrl.u32 %v1109, 7
        %v1111 = vsub.s32 %v1108, %v1110
        %v1112 = vrot.slane %v1098, %v1111
        %v1113 = vcombine.high %v1105, %v1105
        %v1114 = vcombine.high %v1112, %v1112
        %v1115 = vcombine.high %v818, %v818
        %v1117 = vunpack.c.l.s4 1983009808
        %v1118 = vunpack.c.0.s8 %v1117
        %v1119 = vlaneseq
        %v1120 = vshrl.u32 %v1119, 7
        %v1121 = vsub.s32 %v1118, %v1120
        %v1122 = vrot.slane %v818, %v1121
        %v1124 = vunpack.c.l.s4 1983009808
        %v1125 = vunpack.c.0.s8 %v1124
        %v1126 = vlaneseq
        %v1127 = vshrl.u32 %v1126, 7
        %v1128 = vsub.s32 %v1125, %v1127
        %v1129 = vrot.slane %v1115, %v1128
        %v1130 = vcombine.high %v1122, %v1122
        %v1131 = vcombine.high %v1129, %v1129
        %v1396 = vunpack.c.l.b16 %v819
        %v1397 = vunpack.c.h.b16 %v819
        %v1398 = vunpack.c.l.b16 %v820
        %v1399 = vunpack.c.h.b16 %v820
        %v1400 = vunpack.c.l.b16 %v821
        %v1401 = vunpack.c.h.b16 %v821
        %v1402 = vunpack.c.l.b16 %v822
        %v1403 = vunpack.c.h.b16 %v822
        %v1404 = vunpack.c.l.b16 %v823
        %v1405 = vunpack.c.h.b16 %v823
        %v1406 = vunpack.c.l.b16 %v824
        %v1407 = vunpack.c.h.b16 %v824
        %v1408 = vunpack.c.l.b16 %v825
        %v1409 = vunpack.c.h.b16 %v825
        %v1410 = vunpack.c.l.b16 %v826
        %v1411 = vunpack.c.h.b16 %v826
        %v1412 = vunpack.c.l.b16 %v827
        %v1413 = vunpack.c.h.b16 %v827
        %v1414 = vunpack.c.l.b16 %v828
        %v1415 = vunpack.c.h.b16 %v828
        %v1416 = vunpack.c.l.b16 %v829
        %v1417 = vunpack.c.h.b16 %v829
        %v1418 = vunpack.c.l.b16 %v830
        %v1419 = vunpack.c.h.b16 %v830
        %v1420 = vunpack.c.l.b16 %v831
        %v1421 = vunpack.c.h.b16 %v831
        %v1422 = vunpack.c.l.b16 %v832
        %v1423 = vunpack.c.h.b16 %v832
        %v1424 = vunpack.c.l.b16 %v833
        %v1425 = vunpack.c.h.b16 %v833
        %v1426 = vunpack.c.l.b16 %v834
        %v1427 = vunpack.c.h.b16 %v834
        %v1428 = vunpack.c.l.b16 %v835
        %v1429 = vunpack.c.h.b16 %v835
        %v1430 = vunpack.c.l.b16 %v836
        %v1431 = vunpack.c.h.b16 %v836
        %v1432 = vunpack.c.l.b16 %v837
        %v1433 = vunpack.c.h.b16 %v837
        %v1434 = vunpack.c.l.b16 %v838
        %v1435 = vunpack.c.h.b16 %v838
        %v1436 = vunpack.c.l.b16 %v839
        %v1437 = vunpack.c.h.b16 %v839
        %v1438 = vunpack.c.l.b16 %v840
        %v1439 = vunpack.c.h.b16 %v840
        %v1440 = vunpack.c.l.b16 %v841
        %v1441 = vunpack.c.h.b16 %v841
        %v1442 = vunpack.c.l.b16 %v842
        %v1443 = vunpack.c.h.b16 %v842
        %v1444 = vunpack.c.l.b16 %v843
        %v1445 = vunpack.c.h.b16 %v843
        %v1446 = vunpack.c.l.b16 %v844
        %v1447 = vunpack.c.h.b16 %v844
        %v1448 = vunpack.c.l.b16 %v845
        %v1449 = vunpack.c.h.b16 %v845
        %v1450 = vunpack.c.l.b16 %v846
        %v1451 = vunpack.c.h.b16 %v846
        %v1452 = vunpack.c.l.b16 %v847
        %v1453 = vunpack.c.h.b16 %v847
        %v1454 = vunpack.c.l.b16 %v848
        %v1455 = vunpack.c.h.b16 %v848
        %v1456 = vunpack.c.l.b16 %v849
        %v1457 = vunpack.c.h.b16 %v849
        %v1458 = vunpack.c.l.b16 %v850
        %v1459 = vunpack.c.h.b16 %v850
        %v1460 = vunpack.c.l.b16 %v851
        %v1461 = vunpack.c.h.b16 %v851
        %v1462 = vunpack.c.l.b16 %v852
        %v1463 = vunpack.c.h.b16 %v852
        %v1464 = vunpack.c.l.b16 %v853
        %v1465 = vunpack.c.h.b16 %v853
        %v1466 = vunpack.c.l.b16 %v854
        %v1467 = vunpack.c.h.b16 %v854
        %v1468 = vunpack.c.l.b16 %v855
        %v1469 = vunpack.c.h.b16 %v855
        %v1470 = vunpack.c.l.b16 %v856
        %v1471 = vunpack.c.h.b16 %v856
        %v1472 = vunpack.c.l.b16 %v857
        %v1473 = vunpack.c.h.b16 %v857
        %v1474 = vunpack.c.l.b16 %v858
        %v1475 = vunpack.c.h.b16 %v858
        %v1476 = vunpack.c.l.b16 %v859
        %v1477 = vunpack.c.h.b16 %v859
        %v1478 = vunpack.c.l.b16 %v860
        %v1479 = vunpack.c.h.b16 %v860
        %v1480 = vunpack.c.l.b16 %v861
        %v1481 = vunpack.c.h.b16 %v861
        %v1482 = vunpack.c.l.b16 %v862
        %v1483 = vunpack.c.h.b16 %v862
        %v1484 = vunpack.c.l.b16 %v863
        %v1485 = vunpack.c.h.b16 %v863
        %v1486 = vunpack.c.l.b16 %v864
        %v1487 = vunpack.c.h.b16 %v864
        %v1488 = vunpack.c.l.b16 %v865
        %v1489 = vunpack.c.h.b16 %v865
        %v1490 = vunpack.c.l.b16 %v866
        %v1491 = vunpack.c.h.b16 %v866
        %v1492 = vunpack.c.l.b16 %v867
        %v1493 = vunpack.c.h.b16 %v867
        %v1494 = vunpack.c.l.b16 %v868
        %v1495 = vunpack.c.h.b16 %v868
        %v1496 = vunpack.c.l.b16 %v869
        %v1497 = vunpack.c.h.b16 %v869
        %v1498 = vunpack.c.l.b16 %v870
        %v1499 = vunpack.c.h.b16 %v870
        %v1500 = vunpack.c.l.b16 %v871
        %v1501 = vunpack.c.h.b16 %v871
        %v1502 = vunpack.c.l.b16 %v872
        %v1503 = vunpack.c.h.b16 %v872
        %v1504 = vunpack.c.l.b16 %v873
        %v1505 = vunpack.c.h.b16 %v873
        %v1506 = vunpack.c.l.b16 %v874
        %v1507 = vunpack.c.h.b16 %v874
        %v1508 = vunpack.c.l.b16 %v875
        %v1509 = vunpack.c.h.b16 %v875
        %v1510 = vunpack.c.l.b16 %v876
        %v1511 = vunpack.c.h.b16 %v876
        %v1512 = vunpack.c.l.b16 %v877
        %v1513 = vunpack.c.h.b16 %v877
        %v1514 = vunpack.c.l.b16 %v878
        %v1515 = vunpack.c.h.b16 %v878
        %v1516 = vunpack.c.l.b16 %v879
        %v1517 = vunpack.c.h.b16 %v879
        %v1518 = vunpack.c.l.b16 %v880
        %v1519 = vunpack.c.h.b16 %v880
        %v1520 = vunpack.c.l.b16 %v881
        %v1521 = vunpack.c.h.b16 %v881
        %v1522 = vunpack.c.l.b16 %v882
        %v1523 = vunpack.c.h.b16 %v882
        %v1524 = vunpack.c.l.b16 %v883
        %v1525 = vunpack.c.h.b16 %v883
        %v1526 = vunpack.c.l.b16 %v884
        %v1527 = vunpack.c.h.b16 %v884
        %v1528 = vunpack.c.l.b16 %v885
        %v1529 = vunpack.c.h.b16 %v885
        %v1530 = vunpack.c.l.b16 %v886
        %v1531 = vunpack.c.h.b16 %v886
        %v1532 = vunpack.c.l.b16 %v887
        %v1533 = vunpack.c.h.b16 %v887
        %v1534 = vunpack.c.l.b16 %v888
        %v1535 = vunpack.c.h.b16 %v888
        %v1536 = vunpack.c.l.b16 %v889
        %v1537 = vunpack.c.h.b16 %v889
        %v1538 = vunpack.c.l.b16 %v890
        %v1539 = vunpack.c.h.b16 %v890
        %v1540 = vunpack.c.l.b16 %v891
        %v1541 = vunpack.c.h.b16 %v891
        %v1542 = vunpack.c.l.b16 %v892
        %v1543 = vunpack.c.h.b16 %v892
        %v1544 = vunpack.c.l.b16 %v893
        %v1545 = vunpack.c.h.b16 %v893
        %v1546 = vunpack.c.l.b16 %v894
        %v1547 = vunpack.c.h.b16 %v894
        %v1548 = vunpack.c.l.b16 %v895
        %v1549 = vunpack.c.h.b16 %v895
        %v1550 = vunpack.c.l.b16 %v896
        %v1551 = vunpack.c.h.b16 %v896
        %v1552 = vunpack.c.l.b16 %v897
        %v1553 = vunpack.c.h.b16 %v897
        %v1554 = vunpack.c.l.b16 %v898
        %v1555 = vunpack.c.h.b16 %v898
        %v1556 = vunpack.c.l.b16 %v899
        %v1557 = vunpack.c.h.b16 %v899
        %v1558 = vunpack.c.l.b16 %v900
        %v1559 = vunpack.c.h.b16 %v900
        %v1560 = vunpack.c.l.b16 %v901
        %v1561 = vunpack.c.h.b16 %v901
        %v1562 = vunpack.c.l.b16 %v902
        %v1563 = vunpack.c.h.b16 %v902
        %v1564 = vunpack.c.l.b16 %v903
        %v1565 = vunpack.c.h.b16 %v903
        %v1566 = vunpack.c.l.b16 %v904
        %v1567 = vunpack.c.h.b16 %v904
        %v1568 = vunpack.c.l.b16 %v905
        %v1569 = vunpack.c.h.b16 %v905
        %v1570 = vunpack.c.l.b16 %v906
        %v1571 = vunpack.c.h.b16 %v906
        %v1572 = vunpack.c.l.b16 %v907
        %v1573 = vunpack.c.h.b16 %v907
        %v1574 = vunpack.c.l.b16 %v908
        %v1575 = vunpack.c.h.b16 %v908
        %v1576 = vunpack.c.l.b16 %v909
        %v1577 = vunpack.c.h.b16 %v909
        %v1578 = vunpack.c.l.b16 %v910
        %v1579 = vunpack.c.h.b16 %v910
        %v1580 = vunpack.c.l.b16 %v911
        %v1581 = vunpack.c.h.b16 %v911
        %v1582 = vunpack.c.l.b16 %v912
        %v1583 = vunpack.c.h.b16 %v912
        %v1584 = vunpack.c.l.b16 %v913
        %v1585 = vunpack.c.h.b16 %v913
        %v1586 = vunpack.c.l.b16 %v914
        %v1587 = vunpack.c.h.b16 %v914
        %v1588 = vunpack.c.l.b16 %v915
        %v1589 = vunpack.c.h.b16 %v915
        %v1590 = vunpack.c.l.b16 %v916
        %v1591 = vunpack.c.h.b16 %v916
        %v1592 = vunpack.c.l.b16 %v917
        %v1593 = vunpack.c.h.b16 %v917
        %v1594 = vunpack.c.l.b16 %v918
        %v1595 = vunpack.c.h.b16 %v918
        %v1596 = vunpack.c.l.b16 %v919
        %v1597 = vunpack.c.h.b16 %v919
        %v1598 = vunpack.c.l.b16 %v920
        %v1599 = vunpack.c.h.b16 %v920
        %v1600 = vunpack.c.l.b16 %v921
        %v1601 = vunpack.c.h.b16 %v921
        %v1602 = vunpack.c.l.b16 %v922
        %v1603 = vunpack.c.h.b16 %v922
        %v1604 = vunpack.c.l.b16 %v923
        %v1605 = vunpack.c.h.b16 %v923
        %v1606 = vunpack.c.l.b16 %v924
        %v1607 = vunpack.c.h.b16 %v924
        %v1608 = vunpack.c.l.b16 %v925
        %v1609 = vunpack.c.h.b16 %v925
        %v1610 = vunpack.c.l.b16 %v926
        %v1611 = vunpack.c.h.b16 %v926
        %v1612 = vunpack.c.l.b16 %v927
        %v1613 = vunpack.c.h.b16 %v927
        %v1614 = vunpack.c.l.b16 %v928
        %v1615 = vunpack.c.h.b16 %v928
        %v1616 = vunpack.c.l.b16 %v929
        %v1617 = vunpack.c.h.b16 %v929
        %v1618 = vunpack.c.l.b16 %v930
        %v1619 = vunpack.c.h.b16 %v930
        %v1620 = vunpack.c.l.b16 %v931
        %v1621 = vunpack.c.h.b16 %v931
        %v1622 = vunpack.c.l.b16 %v932
        %v1623 = vunpack.c.h.b16 %v932
        %v1624 = vunpack.c.l.b16 %v933
        %v1625 = vunpack.c.h.b16 %v933
        %v1626 = vunpack.c.l.b16 %v934
        %v1627 = vunpack.c.h.b16 %v934
        %v1628 = vunpack.c.l.b16 %v935
        %v1629 = vunpack.c.h.b16 %v935
        %v1630 = vunpack.c.l.b16 %v936
        %v1631 = vunpack.c.h.b16 %v936
        %v1632 = vunpack.c.l.b16 %v937
        %v1633 = vunpack.c.h.b16 %v937
        %v1634 = vunpack.c.l.b16 %v938
        %v1635 = vunpack.c.h.b16 %v938
        %v1636 = vunpack.c.l.b16 %v939
        %v1637 = vunpack.c.h.b16 %v939
        %v1638 = vunpack.c.l.b16 %v940
        %v1639 = vunpack.c.h.b16 %v940
        %v1640 = vunpack.c.l.b16 %v941
        %v1641 = vunpack.c.h.b16 %v941
        %v1642 = vunpack.c.l.b16 %v942
        %v1643 = vunpack.c.h.b16 %v942
        %v1644 = vunpack.c.l.b16 %v943
        %v1645 = vunpack.c.h.b16 %v943
        %v1646 = vunpack.c.l.b16 %v944
        %v1647 = vunpack.c.h.b16 %v944
        %v1648 = vunpack.c.l.b16 %v945
        %v1649 = vunpack.c.h.b16 %v945
        %v1650 = vunpack.c.l.b16 %v946
        %v1651 = vunpack.c.h.b16 %v946
        %v1652 = vunpack.c.l.b16 %v947
        %v1653 = vunpack.c.h.b16 %v947
        %v1654 = vunpack.c.l.b16 %v948
        %v1655 = vunpack.c.h.b16 %v948
        %v1656 = vunpack.c.l.b16 %v949
        %v1657 = vunpack.c.h.b16 %v949
        %v1658 = vunpack.c.l.b16 %v950
        %v1659 = vunpack.c.h.b16 %v950
        %v1660 = vunpack.c.l.b16 %v951
        %v1661 = vunpack.c.h.b16 %v951
        %v1662 = vunpack.c.l.b16 %v952
        %v1663 = vunpack.c.h.b16 %v952
        %v1664 = vunpack.c.l.b16 %v953
        %v1665 = vunpack.c.h.b16 %v953
        %v1666 = vunpack.c.l.b16 %v954
        %v1667 = vunpack.c.h.b16 %v954
        %v1668 = vunpack.c.l.b16 %v955
        %v1669 = vunpack.c.h.b16 %v955
        %v1670 = vunpack.c.l.b16 %v956
        %v1671 = vunpack.c.h.b16 %v956
        %v1672 = vunpack.c.l.b16 %v957
        %v1673 = vunpack.c.h.b16 %v957
        %v1674 = vunpack.c.l.b16 %v958
        %v1675 = vunpack.c.h.b16 %v958
        %v1676 = vunpack.c.l.b16 %v959
        %v1677 = vunpack.c.h.b16 %v959
        %v1678 = vunpack.c.l.b16 %v960
        %v1679 = vunpack.c.h.b16 %v960
        %v1680 = vunpack.c.l.b16 %v961
        %v1681 = vunpack.c.h.b16 %v961
        %v1682 = vunpack.c.l.b16 %v962
        %v1683 = vunpack.c.h.b16 %v962
        %v1684 = vunpack.c.l.b16 %v963
        %v1685 = vunpack.c.h.b16 %v963
        %v1686 = vunpack.c.l.b16 %v964
        %v1687 = vunpack.c.h.b16 %v964
        %v1688 = vunpack.c.l.b16 %v965
        %v1689 = vunpack.c.h.b16 %v965
        %v1690 = vunpack.c.l.b16 %v966
        %v1691 = vunpack.c.h.b16 %v966
        %v1692 = vunpack.c.l.b16 %v967
        %v1693 = vunpack.c.h.b16 %v967
        %v1694 = vunpack.c.l.b16 %v968
        %v1695 = vunpack.c.h.b16 %v968
        %v1696 = vunpack.c.l.b16 %v969
        %v1697 = vunpack.c.h.b16 %v969
        %v1698 = vunpack.c.l.b16 %v970
        %v1699 = vunpack.c.h.b16 %v970
        %v1700 = vunpack.c.l.b16 %v971
        %v1701 = vunpack.c.h.b16 %v971
        %v1702 = vunpack.c.l.b16 %v972
        %v1703 = vunpack.c.h.b16 %v972
        %v1704 = vunpack.c.l.b16 %v973
        %v1705 = vunpack.c.h.b16 %v973
        %v1706 = vunpack.c.l.b16 %v974
        %v1707 = vunpack.c.h.b16 %v974
        %v1708 = vunpack.c.l.b16 %v975
        %v1709 = vunpack.c.h.b16 %v975
        %v1710 = vunpack.c.l.b16 %v976
        %v1711 = vunpack.c.h.b16 %v976
        %v1712 = vunpack.c.l.b16 %v977
        %v1713 = vunpack.c.h.b16 %v977
        %v1714 = vunpack.c.l.b16 %v978
        %v1715 = vunpack.c.h.b16 %v978
        %v1716 = vunpack.c.l.b16 %v979
        %v1717 = vunpack.c.h.b16 %v979
        %v1718 = vunpack.c.l.b16 %v980
        %v1719 = vunpack.c.h.b16 %v980
        %v1720 = vunpack.c.l.b16 %v981
        %v1721 = vunpack.c.h.b16 %v981
        %v1722 = vunpack.c.l.b16 %v982
        %v1723 = vunpack.c.h.b16 %v982
        %v1724 = vunpack.c.l.b16 %v983
        %v1725 = vunpack.c.h.b16 %v983
        %v1726 = vunpack.c.l.b16 %v984
        %v1727 = vunpack.c.h.b16 %v984
        %v1728 = vunpack.c.l.b16 %v985
        %v1729 = vunpack.c.h.b16 %v985
        %v1730 = vunpack.c.l.b16 %v986
        %v1731 = vunpack.c.h.b16 %v986
        %v1732 = vunpack.c.l.b16 %v987
        %v1733 = vunpack.c.h.b16 %v987
        %v1734 = vunpack.c.l.b16 %v988
        %v1735 = vunpack.c.h.b16 %v988
        %v1736 = vunpack.c.l.b16 %v989
        %v1737 = vunpack.c.h.b16 %v989
        %v1738 = vunpack.c.l.b16 %v990
        %v1739 = vunpack.c.h.b16 %v990
        %v1740 = vunpack.c.l.b16 %v991
        %v1741 = vunpack.c.h.b16 %v991
        %v1742 = vunpack.c.l.b16 %v992
        %v1743 = vunpack.c.h.b16 %v992
        %v1744 = vunpack.c.l.b16 %v993
        %v1745 = vunpack.c.h.b16 %v993
        %v1746 = vunpack.c.l.b16 %v994
        %v1747 = vunpack.c.h.b16 %v994
        %v1748 = vunpack.c.l.b16 %v995
        %v1749 = vunpack.c.h.b16 %v995
        %v1750 = vunpack.c.l.b16 %v996
        %v1751 = vunpack.c.h.b16 %v996
        %v1752 = vunpack.c.l.b16 %v997
        %v1753 = vunpack.c.h.b16 %v997
        %v1754 = vunpack.c.l.b16 %v998
        %v1755 = vunpack.c.h.b16 %v998
        %v1756 = vunpack.c.l.b16 %v999
        %v1757 = vunpack.c.h.b16 %v999
        %v1758 = vunpack.c.l.b16 %v1000
        %v1759 = vunpack.c.h.b16 %v1000
        %v1760 = vunpack.c.l.b16 %v1001
        %v1761 = vunpack.c.h.b16 %v1001
        %v1762 = vunpack.c.l.b16 %v1002
        %v1763 = vunpack.c.h.b16 %v1002
        %v1764 = vunpack.c.l.b16 %v1003
        %v1765 = vunpack.c.h.b16 %v1003
        %v1766 = vunpack.c.l.b16 %v1004
        %v1767 = vunpack.c.h.b16 %v1004
        %v1768 = vunpack.c.l.b16 %v1005
        %v1769 = vunpack.c.h.b16 %v1005
        %v1770 = vunpack.c.l.b16 %v1006
        %v1771 = vunpack.c.h.b16 %v1006
        %v1772 = vunpack.c.l.b16 %v1007
        %v1773 = vunpack.c.h.b16 %v1007
        %v1774 = vunpack.c.l.b16 %v1008
        %v1775 = vunpack.c.h.b16 %v1008
        %v1776 = vunpack.c.l.b16 %v1009
        %v1777 = vunpack.c.h.b16 %v1009
        %v1778 = vunpack.c.l.b16 %v1010
        %v1779 = vunpack.c.h.b16 %v1010
        %v1780 = vunpack.c.l.b16 %v1011
        %v1781 = vunpack.c.h.b16 %v1011
        %v1782 = vunpack.c.l.b16 %v1012
        %v1783 = vunpack.c.h.b16 %v1012
        %v1784 = vunpack.c.l.b16 %v1013
        %v1785 = vunpack.c.h.b16 %v1013
        %v1786 = vunpack.c.l.b16 %v1014
        %v1787 = vunpack.c.h.b16 %v1014
        %v1788 = vunpack.c.l.b16 %v1015
        %v1789 = vunpack.c.h.b16 %v1015
        %v1790 = vunpack.c.l.b16 %v1016
        %v1791 = vunpack.c.h.b16 %v1016
        %v1792 = vunpack.c.l.b16 %v1017
        %v1793 = vunpack.c.h.b16 %v1017
        %v1794 = vunpack.c.l.b16 %v1018
        %v1795 = vunpack.c.h.b16 %v1018
        %v1796 = vunpack.c.l.b16 %v1019
        %v1797 = vunpack.c.h.b16 %v1019
        %v1798 = vunpack.c.l.b16 %v1020
        %v1799 = vunpack.c.h.b16 %v1020
        %v1800 = vunpack.c.l.b16 %v1021
        %v1801 = vunpack.c.h.b16 %v1021
        %v1802 = vunpack.c.l.b16 %v1022
        %v1803 = vunpack.c.h.b16 %v1022
        %v1804 = vunpack.c.l.b16 %v1023
        %v1805 = vunpack.c.h.b16 %v1023
        %v1806 = vunpack.c.l.b16 %v1024
        %v1807 = vunpack.c.h.b16 %v1024
        %v1808 = vunpack.c.l.b16 %v1025
        %v1809 = vunpack.c.h.b16 %v1025
        %v1810 = vunpack.c.l.b16 %v1026
        %v1811 = vunpack.c.h.b16 %v1026
        %v1812 = vunpack.c.l.b16 %v1027
        %v1813 = vunpack.c.h.b16 %v1027
        %v1814 = vunpack.c.l.b16 %v1028
        %v1815 = vunpack.c.h.b16 %v1028
        %v1816 = vunpack.c.l.b16 %v1029
        %v1817 = vunpack.c.h.b16 %v1029
        %v1818 = vunpack.c.l.b16 %v1030
        %v1819 = vunpack.c.h.b16 %v1030
        %v1820 = vunpack.c.l.b16 %v1031
        %v1821 = vunpack.c.h.b16 %v1031
        %v1822 = vunpack.c.l.b16 %v1032
        %v1823 = vunpack.c.h.b16 %v1032
        %v1824 = vunpack.c.l.b16 %v1033
        %v1825 = vunpack.c.h.b16 %v1033
        %v1826 = vunpack.c.l.b16 %v1034
        %v1827 = vunpack.c.h.b16 %v1034
        %v1828 = vunpack.c.l.b16 %v1035
        %v1829 = vunpack.c.h.b16 %v1035
        %v1830 = vunpack.c.l.b16 %v1036
        %v1831 = vunpack.c.h.b16 %v1036
        %v1832 = vunpack.c.l.b16 %v1037
        %v1833 = vunpack.c.h.b16 %v1037
        %v1834 = vunpack.c.l.b16 %v1038
        %v1835 = vunpack.c.h.b16 %v1038
        %v1836 = vunpack.c.l.b16 %v1039
        %v1837 = vunpack.c.h.b16 %v1039
        %v1838 = vunpack.c.l.b16 %v1040
        %v1839 = vunpack.c.h.b16 %v1040
        %v1840 = vunpack.c.l.b16 %v1041
        %v1841 = vunpack.c.h.b16 %v1041
        %v1842 = vunpack.c.l.b16 %v1042
        %v1843 = vunpack.c.h.b16 %v1042
        %v1844 = vunpack.c.l.b16 %v1043
        %v1845 = vunpack.c.h.b16 %v1043
        %v1846 = vunpack.c.l.b16 %v1044
        %v1847 = vunpack.c.h.b16 %v1044
        %v1848 = vunpack.c.l.b16 %v1045
        %v1849 = vunpack.c.h.b16 %v1045
        %v1850 = vunpack.c.l.b16 %v1046
        %v1851 = vunpack.c.h.b16 %v1046
        %v1852 = vunpack.c.l.b16 %v1047
        %v1853 = vunpack.c.h.b16 %v1047
        %v1854 = vunpack.c.l.b16 %v1048
        %v1855 = vunpack.c.h.b16 %v1048
        %v1856 = vunpack.c.l.b16 %v1049
        %v1857 = vunpack.c.h.b16 %v1049
        %v1858 = vunpack.c.l.b16 %v1050
        %v1859 = vunpack.c.h.b16 %v1050
        %v1860 = vunpack.c.l.b16 %v1051
        %v1861 = vunpack.c.h.b16 %v1051
        %v1862 = vunpack.c.l.b16 %v1052
        %v1863 = vunpack.c.h.b16 %v1052
        %v1864 = vunpack.c.l.b16 %v1053
        %v1865 = vunpack.c.h.b16 %v1053
        %v1866 = vunpack.c.l.b16 %v1054
        %v1867 = vunpack.c.h.b16 %v1054
        %v1868 = vunpack.c.l.b16 %v1055
        %v1869 = vunpack.c.h.b16 %v1055
        %v1870 = vunpack.c.l.b16 %v1056
        %v1871 = vunpack.c.h.b16 %v1056
        %v1872 = vunpack.c.l.b16 %v1057
        %v1873 = vunpack.c.h.b16 %v1057
        %v1874 = vunpack.c.l.b16 %v1058
        %v1875 = vunpack.c.h.b16 %v1058
        %v1876 = vunpack.c.l.b16 %v1059
        %v1877 = vunpack.c.h.b16 %v1059
        %v1878 = vunpack.c.l.b16 %v1060
        %v1879 = vunpack.c.h.b16 %v1060
        %v1880 = vunpack.c.l.b16 %v1061
        %v1881 = vunpack.c.h.b16 %v1061
        %v1882 = vunpack.c.l.b16 %v1062
        %v1883 = vunpack.c.h.b16 %v1062
        %v1884 = vunpack.c.l.b16 %v1063
        %v1885 = vunpack.c.h.b16 %v1063
        %v1886 = vunpack.c.l.b16 %v1064
        %v1887 = vunpack.c.h.b16 %v1064
        %v1888 = vunpack.c.l.b16 %v1065
        %v1889 = vunpack.c.h.b16 %v1065
        %v1890 = vunpack.c.l.b16 %v1066
        %v1891 = vunpack.c.h.b16 %v1066
        %v1892 = vunpack.c.l.b16 %v1067
        %v1893 = vunpack.c.h.b16 %v1067
        %v1894 = vunpack.c.l.b16 %v1068
        %v1895 = vunpack.c.h.b16 %v1068
        %v1896 = vunpack.c.l.b16 %v1069
        %v1897 = vunpack.c.h.b16 %v1069
        %v1898 = vunpack.c.l.b16 %v1070
        %v1899 = vunpack.c.h.b16 %v1070
        %v1900 = vunpack.c.l.b16 %v1071
        %v1901 = vunpack.c.h.b16 %v1071
        %v1902 = vunpack.c.l.b16 %v1072
        %v1903 = vunpack.c.h.b16 %v1072
        %v1904 = vunpack.c.l.b16 %v1073
        %v1905 = vunpack.c.h.b16 %v1073
        %v1906 = vunpack.c.l.b16 %v1074
        %v1907 = vunpack.c.h.b16 %v1074
        %v1908 = vpack.c.b16 %v1400, %v1396
        %v1909 = vpack.c.b16 %v1401, %v1397
        %v1910 = vpack.c.b16 %v1402, %v1398
        %v1911 = vpack.c.b16 %v1403, %v1399
        %v1912 = vpack.c.b16 %v1408, %v1404
        %v1913 = vpack.c.b16 %v1409, %v1405
        %v1914 = vpack.c.b16 %v1410, %v1406
        %v1915 = vpack.c.b16 %v1411, %v1407
        %v1916 = vpack.c.b16 %v1416, %v1412
        %v1917 = vpack.c.b16 %v1417, %v1413
        %v1918 = vpack.c.b16 %v1418, %v1414
        %v1919 = vpack.c.b16 %v1419, %v1415
        %v1920 = vpack.c.b16 %v1424, %v1420
        %v1921 = vpack.c.b16 %v1425, %v1421
        %v1922 = vpack.c.b16 %v1426, %v1422
        %v1923 = vpack.c.b16 %v1427, %v1423
        %v1924 = vpack.c.b16 %v1432, %v1428
        %v1925 = vpack.c.b16 %v1433, %v1429
        %v1926 = vpack.c.b16 %v1434, %v1430
        %v1927 = vpack.c.b16 %v1435, %v1431
        %v1928 = vpack.c.b16 %v1440, %v1436
        %v1929 = vpack.c.b16 %v1441, %v1437
        %v1930 = vpack.c.b16 %v1442, %v1438
        %v1931 = vpack.c.b16 %v1443, %v1439
        %v1932 = vpack.c.b16 %v1448, %v1444
        %v1933 = vpack.c.b16 %v1449, %v1445
        %v1934 = vpack.c.b16 %v1450, %v1446
        %v1935 = vpack.c.b16 %v1451, %v1447
        %v1936 = vpack.c.b16 %v1456, %v1452
        %v1937 = vpack.c.b16 %v1457, %v1453
        %v1938 = vpack.c.b16 %v1458, %v1454
        %v1939 = vpack.c.b16 %v1459, %v1455
        %v1940 = vpack.c.b16 %v1464, %v1460
        %v1941 = vpack.c.b16 %v1465, %v1461
        %v1942 = vpack.c.b16 %v1466, %v1462
        %v1943 = vpack.c.b16 %v1467, %v1463
        %v1944 = vpack.c.b16 %v1472, %v1468
        %v1945 = vpack.c.b16 %v1473, %v1469
        %v1946 = vpack.c.b16 %v1474, %v1470
        %v1947 = vpack.c.b16 %v1475, %v1471
        %v1948 = vpack.c.b16 %v1480, %v1476
        %v1949 = vpack.c.b16 %v1481, %v1477
        %v1950 = vpack.c.b16 %v1482, %v1478
        %v1951 = vpack.c.b16 %v1483, %v1479
        %v1952 = vpack.c.b16 %v1488, %v1484
        %v1953 = vpack.c.b16 %v1489, %v1485
        %v1954 = vpack.c.b16 %v1490, %v1486
        %v1955 = vpack.c.b16 %v1491, %v1487
        %v1956 = vpack.c.b16 %v1496, %v1492
        %v1957 = vpack.c.b16 %v1497, %v1493
        %v1958 = vpack.c.b16 %v1498, %v1494
        %v1959 = vpack.c.b16 %v1499, %v1495
        %v1960 = vpack.c.b16 %v1504, %v1500
        %v1961 = vpack.c.b16 %v1505, %v1501
        %v1962 = vpack.c.b16 %v1506, %v1502
        %v1963 = vpack.c.b16 %v1507, %v1503
        %v1964 = vpack.c.b16 %v1512, %v1508
        %v1965 = vpack.c.b16 %v1513, %v1509
        %v1966 = vpack.c.b16 %v1514, %v1510
        %v1967 = vpack.c.b16 %v1515, %v1511
        %v1968 = vpack.c.b16 %v1520, %v1516
        %v1969 = vpack.c.b16 %v1521, %v1517
        %v1970 = vpack.c.b16 %v1522, %v1518
        %v1971 = vpack.c.b16 %v1523, %v1519
        %v1972 = vpack.c.b16 %v1528, %v1524
        %v1973 = vpack.c.b16 %v1529, %v1525
        %v1974 = vpack.c.b16 %v1530, %v1526
        %v1975 = vpack.c.b16 %v1531, %v1527
        %v1976 = vpack.c.b16 %v1536, %v1532
        %v1977 = vpack.c.b16 %v1537, %v1533
        %v1978 = vpack.c.b16 %v1538, %v1534
        %v1979 = vpack.c.b16 %v1539, %v1535
        %v1980 = vpack.c.b16 %v1544, %v1540
        %v1981 = vpack.c.b16 %v1545, %v1541
        %v1982 = vpack.c.b16 %v1546, %v1542
        %v1983 = vpack.c.b16 %v1547, %v1543
        %v1984 = vpack.c.b16 %v1552, %v1548
        %v1985 = vpack.c.b16 %v1553, %v1549
        %v1986 = vpack.c.b16 %v1554, %v1550
        %v1987 = vpack.c.b16 %v1555, %v1551
        %v1988 = vpack.c.b16 %v1560, %v1556
        %v1989 = vpack.c.b16 %v1561, %v1557
        %v1990 = vpack.c.b16 %v1562, %v1558
        %v1991 = vpack.c.b16 %v1563, %v1559
        %v1992 = vpack.c.b16 %v1568, %v1564
        %v1993 = vpack.c.b16 %v1569, %v1565
        %v1994 = vpack.c.b16 %v1570, %v1566
        %v1995 = vpack.c.b16 %v1571, %v1567
        %v1996 = vpack.c.b16 %v1576, %v1572
        %v1997 = vpack.c.b16 %v1577, %v1573
        %v1998 = vpack.c.b16 %v1578, %v1574
        %v1999 = vpack.c.b16 %v1579, %v1575
        %v2000 = vpack.c.b16 %v1584, %v1580
        %v2001 = vpack.c.b16 %v1585, %v1581
        %v2002 = vpack.c.b16 %v1586, %v1582
        %v2003 = vpack.c.b16 %v1587, %v1583
        %v2004 = vpack.c.b16 %v1592, %v1588
        %v2005 = vpack.c.b16 %v1593, %v1589
        %v2006 = vpack.c.b16 %v1594, %v1590
        %v2007 = vpack.c.b16 %v1595, %v1591
        %v2008 = vpack.c.b16 %v1600, %v1596
        %v2009 = vpack.c.b16 %v1601, %v1597
        %v2010 = vpack.c.b16 %v1602, %v1598
        %v2011 = vpack.c.b16 %v1603, %v1599
        %v2012 = vpack.c.b16 %v1608, %v1604
        %v2013 = vpack.c.b16 %v1609, %v1605
        %v2014 = vpack.c.b16 %v1610, %v1606
        %v2015 = vpack.c.b16 %v1611, %v1607
        %v2016 = vpack.c.b16 %v1616, %v1612
        %v2017 = vpack.c.b16 %v1617, %v1613
        %v2018 = vpack.c.b16 %v1618, %v1614
        %v2019 = vpack.c.b16 %v1619, %v1615
        %v2020 = vpack.c.b16 %v1624, %v1620
        %v2021 = vpack.c.b16 %v1625, %v1621
        %v2022 = vpack.c.b16 %v1626, %v1622
        %v2023 = vpack.c.b16 %v1627, %v1623
        %v2024 = vpack.c.b16 %v1632, %v1628
        %v2025 = vpack.c.b16 %v1633, %v1629
        %v2026 = vpack.c.b16 %v1634, %v1630
        %v2027 = vpack.c.b16 %v1635, %v1631
        %v2028 = vpack.c.b16 %v1640, %v1636
        %v2029 = vpack.c.b16 %v1641, %v1637
        %v2030 = vpack.c.b16 %v1642, %v1638
        %v2031 = vpack.c.b16 %v1643, %v1639
        %v2032 = vpack.c.b16 %v1648, %v1644
        %v2033 = vpack.c.b16 %v1649, %v1645
        %v2034 = vpack.c.b16 %v1650, %v1646
        %v2035 = vpack.c.b16 %v1651, %v1647
        %v2036 = vpack.c.b16 %v1656, %v1652
        %v2037 = vpack.c.b16 %v1657, %v1653
        %v2038 = vpack.c.b16 %v1658, %v1654
        %v2039 = vpack.c.b16 %v1659, %v1655
        %v2040 = vpack.c.b16 %v1664, %v1660
        %v2041 = vpack.c.b16 %v1665, %v1661
        %v2042 = vpack.c.b16 %v1666, %v1662
        %v2043 = vpack.c.b16 %v1667, %v1663
        %v2044 = vpack.c.b16 %v1672, %v1668
        %v2045 = vpack.c.b16 %v1673, %v1669
        %v2046 = vpack.c.b16 %v1674, %v1670
        %v2047 = vpack.c.b16 %v1675, %v1671
        %v2048 = vpack.c.b16 %v1680, %v1676
        %v2049 = vpack.c.b16 %v1681, %v1677
        %v2050 = vpack.c.b16 %v1682, %v1678
        %v2051 = vpack.c.b16 %v1683, %v1679
        %v2052 = vpack.c.b16 %v1688, %v1684
        %v2053 = vpack.c.b16 %v1689, %v1685
        %v2054 = vpack.c.b16 %v1690, %v1686
        %v2055 = vpack.c.b16 %v1691, %v1687
        %v2056 = vpack.c.b16 %v1696, %v1692
        %v2057 = vpack.c.b16 %v1697, %v1693
        %v2058 = vpack.c.b16 %v1698, %v1694
        %v2059 = vpack.c.b16 %v1699, %v1695
        %v2060 = vpack.c.b16 %v1704, %v1700
        %v2061 = vpack.c.b16 %v1705, %v1701
        %v2062 = vpack.c.b16 %v1706, %v1702
        %v2063 = vpack.c.b16 %v1707, %v1703
        %v2064 = vpack.c.b16 %v1712, %v1708
        %v2065 = vpack.c.b16 %v1713, %v1709
        %v2066 = vpack.c.b16 %v1714, %v1710
        %v2067 = vpack.c.b16 %v1715, %v1711
        %v2068 = vpack.c.b16 %v1720, %v1716
        %v2069 = vpack.c.b16 %v1721, %v1717
        %v2070 = vpack.c.b16 %v1722, %v1718
        %v2071 = vpack.c.b16 %v1723, %v1719
        %v2072 = vpack.c.b16 %v1728, %v1724
        %v2073 = vpack.c.b16 %v1729, %v1725
        %v2074 = vpack.c.b16 %v1730, %v1726
        %v2075 = vpack.c.b16 %v1731, %v1727
        %v2076 = vpack.c.b16 %v1736, %v1732
        %v2077 = vpack.c.b16 %v1737, %v1733
        %v2078 = vpack.c.b16 %v1738, %v1734
        %v2079 = vpack.c.b16 %v1739, %v1735
        %v2080 = vpack.c.b16 %v1744, %v1740
        %v2081 = vpack.c.b16 %v1745, %v1741
        %v2082 = vpack.c.b16 %v1746, %v1742
        %v2083 = vpack.c.b16 %v1747, %v1743
        %v2084 = vpack.c.b16 %v1752, %v1748
        %v2085 = vpack.c.b16 %v1753, %v1749
        %v2086 = vpack.c.b16 %v1754, %v1750
        %v2087 = vpack.c.b16 %v1755, %v1751
        %v2088 = vpack.c.b16 %v1760, %v1756
        %v2089 = vpack.c.b16 %v1761, %v1757
        %v2090 = vpack.c.b16 %v1762, %v1758
        %v2091 = vpack.c.b16 %v1763, %v1759
        %v2092 = vpack.c.b16 %v1768, %v1764
        %v2093 = vpack.c.b16 %v1769, %v1765
        %v2094 = vpack.c.b16 %v1770, %v1766
        %v2095 = vpack.c.b16 %v1771, %v1767
        %v2096 = vpack.c.b16 %v1776, %v1772
        %v2097 = vpack.c.b16 %v1777, %v1773
        %v2098 = vpack.c.b16 %v1778, %v1774
        %v2099 = vpack.c.b16 %v1779, %v1775
        %v2100 = vpack.c.b16 %v1784, %v1780
        %v2101 = vpack.c.b16 %v1785, %v1781
        %v2102 = vpack.c.b16 %v1786, %v1782
        %v2103 = vpack.c.b16 %v1787, %v1783
        %v2104 = vpack.c.b16 %v1792, %v1788
        %v2105 = vpack.c.b16 %v1793, %v1789
        %v2106 = vpack.c.b16 %v1794, %v1790
        %v2107 = vpack.c.b16 %v1795, %v1791
        %v2108 = vpack.c.b16 %v1800, %v1796
        %v2109 = vpack.c.b16 %v1801, %v1797
        %v2110 = vpack.c.b16 %v1802, %v1798
        %v2111 = vpack.c.b16 %v1803, %v1799
        %v2112 = vpack.c.b16 %v1808, %v1804
        %v2113 = vpack.c.b16 %v1809, %v1805
        %v2114 = vpack.c.b16 %v1810, %v1806
        %v2115 = vpack.c.b16 %v1811, %v1807
        %v2116 = vpack.c.b16 %v1816, %v1812
        %v2117 = vpack.c.b16 %v1817, %v1813
        %v2118 = vpack.c.b16 %v1818, %v1814
        %v2119 = vpack.c.b16 %v1819, %v1815
        %v2120 = vpack.c.b16 %v1824, %v1820
        %v2121 = vpack.c.b16 %v1825, %v1821
        %v2122 = vpack.c.b16 %v1826, %v1822
        %v2123 = vpack.c.b16 %v1827, %v1823
        %v2124 = vpack.c.b16 %v1832, %v1828
        %v2125 = vpack.c.b16 %v1833, %v1829
        %v2126 = vpack.c.b16 %v1834, %v1830
        %v2127 = vpack.c.b16 %v1835, %v1831
        %v2128 = vpack.c.b16 %v1840, %v1836
        %v2129 = vpack.c.b16 %v1841, %v1837
        %v2130 = vpack.c.b16 %v1842, %v1838
        %v2131 = vpack.c.b16 %v1843, %v1839
        %v2132 = vpack.c.b16 %v1848, %v1844
        %v2133 = vpack.c.b16 %v1849, %v1845
        %v2134 = vpack.c.b16 %v1850, %v1846
        %v2135 = vpack.c.b16 %v1851, %v1847
        %v2136 = vpack.c.b16 %v1856, %v1852
        %v2137 = vpack.c.b16 %v1857, %v1853
        %v2138 = vpack.c.b16 %v1858, %v1854
        %v2139 = vpack.c.b16 %v1859, %v1855
        %v2140 = vpack.c.b16 %v1864, %v1860
        %v2141 = vpack.c.b16 %v1865, %v1861
        %v2142 = vpack.c.b16 %v1866, %v1862
        %v2143 = vpack.c.b16 %v1867, %v1863
        %v2144 = vpack.c.b16 %v1872, %v1868
        %v2145 = vpack.c.b16 %v1873, %v1869
        %v2146 = vpack.c.b16 %v1874, %v1870
        %v2147 = vpack.c.b16 %v1875, %v1871
        %v2148 = vpack.c.b16 %v1880, %v1876
        %v2149 = vpack.c.b16 %v1881, %v1877
        %v2150 = vpack.c.b16 %v1882, %v1878
        %v2151 = vpack.c.b16 %v1883, %v1879
        %v2152 = vpack.c.b16 %v1888, %v1884
        %v2153 = vpack.c.b16 %v1889, %v1885
        %v2154 = vpack.c.b16 %v1890, %v1886
        %v2155 = vpack.c.b16 %v1891, %v1887
        %v2156 = vpack.c.b16 %v1896, %v1892
        %v2157 = vpack.c.b16 %v1897, %v1893
        %v2158 = vpack.c.b16 %v1898, %v1894
        %v2159 = vpack.c.b16 %v1899, %v1895
        %v2160 = vpack.c.b16 %v1904, %v1900
        %v2161 = vpack.c.b16 %v1905, %v1901
        %v2162 = vpack.c.b16 %v1906, %v1902
        %v2163 = vpack.c.b16 %v1907, %v1903
        %2420 = vmatprep.subr.bf16.mxu0 %v1937
        %2421 = vmatpush1.bf16.msra.mxu0 %v1936
        %2422 = vmatprep.subr.bf16.mxu0 %v1933
        %2423 = vmatpush1.bf16.msra.mxu0 %v1932
        %2424 = vmatprep.subr.bf16.mxu0 %v1929
        %2425 = vmatpush1.bf16.msra.mxu0 %v1928
        %2426 = vmatprep.subr.bf16.mxu0 %v1925
        %2427 = vmatpush1.bf16.msra.mxu0 %v1924
        %2428 = vmatprep.subr.bf16.mxu0 %v1921
        %2429 = vmatpush1.bf16.msra.mxu0 %v1920
        %2430 = vmatprep.subr.bf16.mxu0 %v1917
        %2431 = vmatpush1.bf16.msra.mxu0 %v1916
        %2432 = vmatprep.subr.bf16.mxu0 %v1913
        %2433 = vmatpush1.bf16.msra.mxu0 %v1912
        %2434 = vmatprep.subr.bf16.mxu0 %v1909
        %2435 = vmatpush1.bf16.msra.mxu0 %v1908
        %2436 = vmatprep.subr.bf16.mxu0 %v1969
        %2437 = vmatpush2.bf16.msra.mxu0 %v1968
        %2438 = vmatprep.subr.bf16.mxu0 %v1965
        %2439 = vmatpush2.bf16.msra.mxu0 %v1964
        %2440 = vmatprep.subr.bf16.mxu0 %v1961
        %2441 = vmatpush2.bf16.msra.mxu0 %v1960
        %2442 = vmatprep.subr.bf16.mxu0 %v1957
        %2443 = vmatpush2.bf16.msra.mxu0 %v1956
        %2444 = vmatprep.subr.bf16.mxu0 %v1953
        %2445 = vmatpush2.bf16.msra.mxu0 %v1952
        %2446 = vmatprep.subr.bf16.mxu0 %v1949
        %2447 = vmatpush2.bf16.msra.mxu0 %v1948
        %2448 = vmatprep.subr.bf16.mxu0 %v1945
        %2449 = vmatpush2.bf16.msra.mxu0 %v1944
        %2450 = vmatprep.subr.bf16.mxu0 %v1941
        %2451 = vmatpush2.bf16.msra.mxu0 %v1940
        %2452 = vmatprep.mubr.bf16.mxu0 %v1113
        %2453 = vmatmul.mubr.bf16.gmra.mxu0 %v1105
        %v2454 = vpop.f32.mrf.mxu0
        %v2455 = vadd.f32 %v1079, %v2454
        %v2456 = vpop.f32.mrf.mxu0
        %v2457 = vadd.f32 %v1083, %v2456
        %v2458 = vpop.f32.mrf.mxu0
        %v2459 = vpop.f32.mrf.mxu0
        %2460 = vdwg.mxu0
        %2461 = vmatprep.subr.bf16.mxu0 %v2001
        %2462 = vmatpush1.bf16.msra.mxu0 %v2000
        %2463 = vmatprep.subr.bf16.mxu0 %v1997
        %2464 = vmatpush1.bf16.msra.mxu0 %v1996
        %2465 = vmatprep.subr.bf16.mxu0 %v1993
        %2466 = vmatpush1.bf16.msra.mxu0 %v1992
        %2467 = vmatprep.subr.bf16.mxu0 %v1989
        %2468 = vmatpush1.bf16.msra.mxu0 %v1988
        %2469 = vmatprep.subr.bf16.mxu0 %v1985
        %2470 = vmatpush1.bf16.msra.mxu0 %v1984
        %2471 = vmatprep.subr.bf16.mxu0 %v1981
        %2472 = vmatpush1.bf16.msra.mxu0 %v1980
        %2473 = vmatprep.subr.bf16.mxu0 %v1977
        %2474 = vmatpush1.bf16.msra.mxu0 %v1976
        %2475 = vmatprep.subr.bf16.mxu0 %v1973
        %2476 = vmatpush1.bf16.msra.mxu0 %v1972
        %2477 = vmatprep.subr.bf16.mxu0 %v2033
        %2478 = vmatpush2.bf16.msra.mxu0 %v2032
        %2479 = vmatprep.subr.bf16.mxu0 %v2029
        %2480 = vmatpush2.bf16.msra.mxu0 %v2028
        %2481 = vmatprep.subr.bf16.mxu0 %v2025
        %2482 = vmatpush2.bf16.msra.mxu0 %v2024
        %2483 = vmatprep.subr.bf16.mxu0 %v2021
        %2484 = vmatpush2.bf16.msra.mxu0 %v2020
        %2485 = vmatprep.subr.bf16.mxu0 %v2017
        %2486 = vmatpush2.bf16.msra.mxu0 %v2016
        %2487 = vmatprep.subr.bf16.mxu0 %v2013
        %2488 = vmatpush2.bf16.msra.mxu0 %v2012
        %2489 = vmatprep.subr.bf16.mxu0 %v2009
        %2490 = vmatpush2.bf16.msra.mxu0 %v2008
        %2491 = vmatprep.subr.bf16.mxu0 %v2005
        %2492 = vmatpush2.bf16.msra.mxu0 %v2004
        %2493 = vmatprep.mubr.bf16.mxu0 %v1114
        %2494 = vmatmul.mubr.bf16.gmra.mxu0 %v1112
        %v2495 = vpop.f32.mrf.mxu0
        %v2496 = vadd.f32 %v2455, %v2495
        %v2497 = vpop.f32.mrf.mxu0
        %v2498 = vadd.f32 %v2457, %v2497
        %v2499 = vpop.f32.mrf.mxu0
        %v2500 = vpop.f32.mrf.mxu0
        %2501 = vdwg.mxu0
        %2502 = vmatprep.subr.bf16.mxu0 %v2065
        %2503 = vmatpush1.bf16.msra.mxu0 %v2064
        %2504 = vmatprep.subr.bf16.mxu0 %v2061
        %2505 = vmatpush1.bf16.msra.mxu0 %v2060
        %2506 = vmatprep.subr.bf16.mxu0 %v2057
        %2507 = vmatpush1.bf16.msra.mxu0 %v2056
        %2508 = vmatprep.subr.bf16.mxu0 %v2053
        %2509 = vmatpush1.bf16.msra.mxu0 %v2052
        %2510 = vmatprep.subr.bf16.mxu0 %v2049
        %2511 = vmatpush1.bf16.msra.mxu0 %v2048
        %2512 = vmatprep.subr.bf16.mxu0 %v2045
        %2513 = vmatpush1.bf16.msra.mxu0 %v2044
        %2514 = vmatprep.subr.bf16.mxu0 %v2041
        %2515 = vmatpush1.bf16.msra.mxu0 %v2040
        %2516 = vmatprep.subr.bf16.mxu0 %v2037
        %2517 = vmatpush1.bf16.msra.mxu0 %v2036
        %2518 = vmatprep.subr.bf16.mxu0 %v2097
        %2519 = vmatpush2.bf16.msra.mxu0 %v2096
        %2520 = vmatprep.subr.bf16.mxu0 %v2093
        %2521 = vmatpush2.bf16.msra.mxu0 %v2092
        %2522 = vmatprep.subr.bf16.mxu0 %v2089
        %2523 = vmatpush2.bf16.msra.mxu0 %v2088
        %2524 = vmatprep.subr.bf16.mxu0 %v2085
        %2525 = vmatpush2.bf16.msra.mxu0 %v2084
        %2526 = vmatprep.subr.bf16.mxu0 %v2081
        %2527 = vmatpush2.bf16.msra.mxu0 %v2080
        %2528 = vmatprep.subr.bf16.mxu0 %v2077
        %2529 = vmatpush2.bf16.msra.mxu0 %v2076
        %2530 = vmatprep.subr.bf16.mxu0 %v2073
        %2531 = vmatpush2.bf16.msra.mxu0 %v2072
        %2532 = vmatprep.subr.bf16.mxu0 %v2069
        %2533 = vmatpush2.bf16.msra.mxu0 %v2068
        %2534 = vmatprep.mubr.bf16.mxu0 %v1130
        %2535 = vmatmul.mubr.bf16.gmra.mxu0 %v1122
        %v2536 = vpop.f32.mrf.mxu0
        %v2537 = vadd.f32 %v2496, %v2536
        %v2538 = vpop.f32.mrf.mxu0
        %v2539 = vadd.f32 %v2498, %v2538
        %v2540 = vpop.f32.mrf.mxu0
        %v2541 = vpop.f32.mrf.mxu0
        %2542 = vdwg.mxu0
        %2543 = vmatprep.subr.bf16.mxu0 %v2129
        %2544 = vmatpush1.bf16.msra.mxu0 %v2128
        %2545 = vmatprep.subr.bf16.mxu0 %v2125
        %2546 = vmatpush1.bf16.msra.mxu0 %v2124
        %2547 = vmatprep.subr.bf16.mxu0 %v2121
        %2548 = vmatpush1.bf16.msra.mxu0 %v2120
        %2549 = vmatprep.subr.bf16.mxu0 %v2117
        %2550 = vmatpush1.bf16.msra.mxu0 %v2116
        %2551 = vmatprep.subr.bf16.mxu0 %v2113
        %2552 = vmatpush1.bf16.msra.mxu0 %v2112
        %2553 = vmatprep.subr.bf16.mxu0 %v2109
        %2554 = vmatpush1.bf16.msra.mxu0 %v2108
        %2555 = vmatprep.subr.bf16.mxu0 %v2105
        %2556 = vmatpush1.bf16.msra.mxu0 %v2104
        %2557 = vmatprep.subr.bf16.mxu0 %v2101
        %2558 = vmatpush1.bf16.msra.mxu0 %v2100
        %2559 = vmatprep.subr.bf16.mxu0 %v2161
        %2560 = vmatpush2.bf16.msra.mxu0 %v2160
        %2561 = vmatprep.subr.bf16.mxu0 %v2157
        %2562 = vmatpush2.bf16.msra.mxu0 %v2156
        %2563 = vmatprep.subr.bf16.mxu0 %v2153
        %2564 = vmatpush2.bf16.msra.mxu0 %v2152
        %2565 = vmatprep.subr.bf16.mxu0 %v2149
        %2566 = vmatpush2.bf16.msra.mxu0 %v2148
        %2567 = vmatprep.subr.bf16.mxu0 %v2145
        %2568 = vmatpush2.bf16.msra.mxu0 %v2144
        %2569 = vmatprep.subr.bf16.mxu0 %v2141
        %2570 = vmatpush2.bf16.msra.mxu0 %v2140
        %2571 = vmatprep.subr.bf16.mxu0 %v2137
        %2572 = vmatpush2.bf16.msra.mxu0 %v2136
        %2573 = vmatprep.subr.bf16.mxu0 %v2133
        %2574 = vmatpush2.bf16.msra.mxu0 %v2132
        %2575 = vmatprep.mubr.bf16.mxu0 %v1131
        %2576 = vmatmul.mubr.bf16.gmra.mxu0 %v1129
        %v2577 = vpop.f32.mrf.mxu0
        %v2578 = vadd.f32 %v2537, %v2577
        %v2579 = vpop.f32.mrf.mxu0
        %v2580 = vadd.f32 %v2539, %v2579
        %v2581 = vpop.f32.mrf.mxu0
        %v2582 = vpop.f32.mrf.mxu0
        %2583 = vdwg.mxu0
        %2584 = vmatprep.subr.bf16.mxu0 %v1939
        %2585 = vmatpush1.bf16.msra.mxu0 %v1938
        %2586 = vmatprep.subr.bf16.mxu0 %v1935
        %2587 = vmatpush1.bf16.msra.mxu0 %v1934
        %2588 = vmatprep.subr.bf16.mxu0 %v1931
        %2589 = vmatpush1.bf16.msra.mxu0 %v1930
        %2590 = vmatprep.subr.bf16.mxu0 %v1927
        %2591 = vmatpush1.bf16.msra.mxu0 %v1926
        %2592 = vmatprep.subr.bf16.mxu0 %v1923
        %2593 = vmatpush1.bf16.msra.mxu0 %v1922
        %2594 = vmatprep.subr.bf16.mxu0 %v1919
        %2595 = vmatpush1.bf16.msra.mxu0 %v1918
        %2596 = vmatprep.subr.bf16.mxu0 %v1915
        %2597 = vmatpush1.bf16.msra.mxu0 %v1914
        %2598 = vmatprep.subr.bf16.mxu0 %v1911
        %2599 = vmatpush1.bf16.msra.mxu0 %v1910
        %2600 = vmatprep.subr.bf16.mxu0 %v1971
        %2601 = vmatpush2.bf16.msra.mxu0 %v1970
        %2602 = vmatprep.subr.bf16.mxu0 %v1967
        %2603 = vmatpush2.bf16.msra.mxu0 %v1966
        %2604 = vmatprep.subr.bf16.mxu0 %v1963
        %2605 = vmatpush2.bf16.msra.mxu0 %v1962
        %2606 = vmatprep.subr.bf16.mxu0 %v1959
        %2607 = vmatpush2.bf16.msra.mxu0 %v1958
        %2608 = vmatprep.subr.bf16.mxu0 %v1955
        %2609 = vmatpush2.bf16.msra.mxu0 %v1954
        %2610 = vmatprep.subr.bf16.mxu0 %v1951
        %2611 = vmatpush2.bf16.msra.mxu0 %v1950
        %2612 = vmatprep.subr.bf16.mxu0 %v1947
        %2613 = vmatpush2.bf16.msra.mxu0 %v1946
        %2614 = vmatprep.subr.bf16.mxu0 %v1943
        %2615 = vmatpush2.bf16.msra.mxu0 %v1942
        %2616 = vmatprep.mubr.bf16.mxu0 %v1113
        %2617 = vmatmul.mubr.bf16.gmra.mxu0 %v1105
        %v2618 = vpop.f32.mrf.mxu0
        %v2619 = vadd.f32 %v1087, %v2618
        %v2620 = vpop.f32.mrf.mxu0
        %v2621 = vadd.f32 %v1091, %v2620
        %v2622 = vpop.f32.mrf.mxu0
        %v2623 = vpop.f32.mrf.mxu0
        %2624 = vdwg.mxu0
        %2625 = vmatprep.subr.bf16.mxu0 %v2003
        %2626 = vmatpush1.bf16.msra.mxu0 %v2002
        %2627 = vmatprep.subr.bf16.mxu0 %v1999
        %2628 = vmatpush1.bf16.msra.mxu0 %v1998
        %2629 = vmatprep.subr.bf16.mxu0 %v1995
        %2630 = vmatpush1.bf16.msra.mxu0 %v1994
        %2631 = vmatprep.subr.bf16.mxu0 %v1991
        %2632 = vmatpush1.bf16.msra.mxu0 %v1990
        %2633 = vmatprep.subr.bf16.mxu0 %v1987
        %2634 = vmatpush1.bf16.msra.mxu0 %v1986
        %2635 = vmatprep.subr.bf16.mxu0 %v1983
        %2636 = vmatpush1.bf16.msra.mxu0 %v1982
        %2637 = vmatprep.subr.bf16.mxu0 %v1979
        %2638 = vmatpush1.bf16.msra.mxu0 %v1978
        %2639 = vmatprep.subr.bf16.mxu0 %v1975
        %2640 = vmatpush1.bf16.msra.mxu0 %v1974
        %2641 = vmatprep.subr.bf16.mxu0 %v2035
        %2642 = vmatpush2.bf16.msra.mxu0 %v2034
        %2643 = vmatprep.subr.bf16.mxu0 %v2031
        %2644 = vmatpush2.bf16.msra.mxu0 %v2030
        %2645 = vmatprep.subr.bf16.mxu0 %v2027
        %2646 = vmatpush2.bf16.msra.mxu0 %v2026
        %2647 = vmatprep.subr.bf16.mxu0 %v2023
        %2648 = vmatpush2.bf16.msra.mxu0 %v2022
        %2649 = vmatprep.subr.bf16.mxu0 %v2019
        %2650 = vmatpush2.bf16.msra.mxu0 %v2018
        %2651 = vmatprep.subr.bf16.mxu0 %v2015
        %2652 = vmatpush2.bf16.msra.mxu0 %v2014
        %2653 = vmatprep.subr.bf16.mxu0 %v2011
        %2654 = vmatpush2.bf16.msra.mxu0 %v2010
        %2655 = vmatprep.subr.bf16.mxu0 %v2007
        %2656 = vmatpush2.bf16.msra.mxu0 %v2006
        %2657 = vmatprep.mubr.bf16.mxu0 %v1114
        %2658 = vmatmul.mubr.bf16.gmra.mxu0 %v1112
        %v2659 = vpop.f32.mrf.mxu0
        %v2660 = vadd.f32 %v2619, %v2659
        %v2661 = vpop.f32.mrf.mxu0
        %v2662 = vadd.f32 %v2621, %v2661
        %v2663 = vpop.f32.mrf.mxu0
        %v2664 = vpop.f32.mrf.mxu0
        %2665 = vdwg.mxu0
        %2666 = vmatprep.subr.bf16.mxu0 %v2067
        %2667 = vmatpush1.bf16.msra.mxu0 %v2066
        %2668 = vmatprep.subr.bf16.mxu0 %v2063
        %2669 = vmatpush1.bf16.msra.mxu0 %v2062
        %2670 = vmatprep.subr.bf16.mxu0 %v2059
        %2671 = vmatpush1.bf16.msra.mxu0 %v2058
        %2672 = vmatprep.subr.bf16.mxu0 %v2055
        %2673 = vmatpush1.bf16.msra.mxu0 %v2054
        %2674 = vmatprep.subr.bf16.mxu0 %v2051
        %2675 = vmatpush1.bf16.msra.mxu0 %v2050
        %2676 = vmatprep.subr.bf16.mxu0 %v2047
        %2677 = vmatpush1.bf16.msra.mxu0 %v2046
        %2678 = vmatprep.subr.bf16.mxu0 %v2043
        %2679 = vmatpush1.bf16.msra.mxu0 %v2042
        %2680 = vmatprep.subr.bf16.mxu0 %v2039
        %2681 = vmatpush1.bf16.msra.mxu0 %v2038
        %2682 = vmatprep.subr.bf16.mxu0 %v2099
        %2683 = vmatpush2.bf16.msra.mxu0 %v2098
        %2684 = vmatprep.subr.bf16.mxu0 %v2095
        %2685 = vmatpush2.bf16.msra.mxu0 %v2094
        %2686 = vmatprep.subr.bf16.mxu0 %v2091
        %2687 = vmatpush2.bf16.msra.mxu0 %v2090
        %2688 = vmatprep.subr.bf16.mxu0 %v2087
        %2689 = vmatpush2.bf16.msra.mxu0 %v2086
        %2690 = vmatprep.subr.bf16.mxu0 %v2083
        %2691 = vmatpush2.bf16.msra.mxu0 %v2082
        %2692 = vmatprep.subr.bf16.mxu0 %v2079
        %2693 = vmatpush2.bf16.msra.mxu0 %v2078
        %2694 = vmatprep.subr.bf16.mxu0 %v2075
        %2695 = vmatpush2.bf16.msra.mxu0 %v2074
        %2696 = vmatprep.subr.bf16.mxu0 %v2071
        %2697 = vmatpush2.bf16.msra.mxu0 %v2070
        %2698 = vmatprep.mubr.bf16.mxu0 %v1130
        %2699 = vmatmul.mubr.bf16.gmra.mxu0 %v1122
        %v2700 = vpop.f32.mrf.mxu0
        %v2701 = vadd.f32 %v2660, %v2700
        %v2702 = vpop.f32.mrf.mxu0
        %v2703 = vadd.f32 %v2662, %v2702
        %v2704 = vpop.f32.mrf.mxu0
        %v2705 = vpop.f32.mrf.mxu0
        %2706 = vdwg.mxu0
        %2707 = vmatprep.subr.bf16.mxu0 %v2131
        %2708 = vmatpush1.bf16.msra.mxu0 %v2130
        %2709 = vmatprep.subr.bf16.mxu0 %v2127
        %2710 = vmatpush1.bf16.msra.mxu0 %v2126
        %2711 = vmatprep.subr.bf16.mxu0 %v2123
        %2712 = vmatpush1.bf16.msra.mxu0 %v2122
        %2713 = vmatprep.subr.bf16.mxu0 %v2119
        %2714 = vmatpush1.bf16.msra.mxu0 %v2118
        %2715 = vmatprep.subr.bf16.mxu0 %v2115
        %2716 = vmatpush1.bf16.msra.mxu0 %v2114
        %2717 = vmatprep.subr.bf16.mxu0 %v2111
        %2718 = vmatpush1.bf16.msra.mxu0 %v2110
        %2719 = vmatprep.subr.bf16.mxu0 %v2107
        %2720 = vmatpush1.bf16.msra.mxu0 %v2106
        %2721 = vmatprep.subr.bf16.mxu0 %v2103
        %2722 = vmatpush1.bf16.msra.mxu0 %v2102
        %2723 = vmatprep.subr.bf16.mxu0 %v2163
        %2724 = vmatpush2.bf16.msra.mxu0 %v2162
        %2725 = vmatprep.subr.bf16.mxu0 %v2159
        %2726 = vmatpush2.bf16.msra.mxu0 %v2158
        %2727 = vmatprep.subr.bf16.mxu0 %v2155
        %2728 = vmatpush2.bf16.msra.mxu0 %v2154
        %2729 = vmatprep.subr.bf16.mxu0 %v2151
        %2730 = vmatpush2.bf16.msra.mxu0 %v2150
        %2731 = vmatprep.subr.bf16.mxu0 %v2147
        %2732 = vmatpush2.bf16.msra.mxu0 %v2146
        %2733 = vmatprep.subr.bf16.mxu0 %v2143
        %2734 = vmatpush2.bf16.msra.mxu0 %v2142
        %2735 = vmatprep.subr.bf16.mxu0 %v2139
        %2736 = vmatpush2.bf16.msra.mxu0 %v2138
        %2737 = vmatprep.subr.bf16.mxu0 %v2135
        %2738 = vmatpush2.bf16.msra.mxu0 %v2134
        %2739 = vmatprep.mubr.bf16.mxu0 %v1131
        %2740 = vmatmul.mubr.bf16.gmra.mxu0 %v1129
        %v2741 = vpop.f32.mrf.mxu0
        %v2742 = vadd.f32 %v2701, %v2741
        %v2743 = vpop.f32.mrf.mxu0
        %v2744 = vadd.f32 %v2703, %v2743
        %v2745 = vpop.f32.mrf.mxu0
        %v2746 = vpop.f32.mrf.mxu0
        %2747 = vdwg.mxu0
        %vm2748 = vcmask 1041408
        %v2749 = vsel %vm2748, %v2578, 0.0
        %v2750 = vrot.slane %v2749, 4
        %v2751 = vadd.f32 %v2749, %v2750
        %v2752 = vrot.slane %v2751, 2
        %v2753 = vadd.f32 %v2751, %v2752
        %v2754 = vrot.slane %v2753, 1
        %v2755 = vadd.f32 %v2753, %v2754
        %v2756 = vsel %vm2748, %v2580, 0.0
        %v2757 = vrot.slane %v2756, 4
        %v2758 = vadd.f32 %v2756, %v2757
        %v2759 = vrot.slane %v2758, 2
        %v2760 = vadd.f32 %v2758, %v2759
        %v2761 = vrot.slane %v2760, 1
        %v2762 = vadd.f32 %v2760, %v2761
        %v2763 = vsel %vm2748, %v2742, 0.0
        %v2764 = vrot.slane %v2763, 4
        %v2765 = vadd.f32 %v2763, %v2764
        %v2766 = vrot.slane %v2765, 2
        %v2767 = vadd.f32 %v2765, %v2766
        %v2768 = vrot.slane %v2767, 1
        %v2769 = vadd.f32 %v2767, %v2768
        %v2770 = vsel %vm2748, %v2744, 0.0
        %v2771 = vrot.slane %v2770, 4
        %v2772 = vadd.f32 %v2770, %v2771
        %v2773 = vrot.slane %v2772, 2
        %v2774 = vadd.f32 %v2772, %v2773
        %v2775 = vrot.slane %v2774, 1
        %v2776 = vadd.f32 %v2774, %v2775
        %v2777 = vmul.f32 %v2755, 0.5
        %v2778 = vmul.f32 %v2762, 0.5
        %v2779 = vmul.f32 %v2769, 0.5
        %v2780 = vmul.f32 %v2776, 0.5
        %v2781 = vsub.f32 %v2578, %v2777
        %v2782 = vsub.f32 %v2580, %v2778
        %v2783 = vsub.f32 %v2742, %v2779
        %v2784 = vsub.f32 %v2744, %v2780
        %v2785 = vmul.f32 %v2781, %v2781
        %v2786 = vmul.f32 %v2782, %v2782
        %v2787 = vmul.f32 %v2783, %v2783
        %v2788 = vmul.f32 %v2784, %v2784
        %v2789 = vsel %vm2748, %v2785, 0.0
        %v2790 = vrot.slane %v2789, 4
        %v2791 = vadd.f32 %v2789, %v2790
        %v2792 = vrot.slane %v2791, 2
        %v2793 = vadd.f32 %v2791, %v2792
        %v2794 = vrot.slane %v2793, 1
        %v2795 = vadd.f32 %v2793, %v2794
        %v2796 = vsel %vm2748, %v2786, 0.0
        %v2797 = vrot.slane %v2796, 4
        %v2798 = vadd.f32 %v2796, %v2797
        %v2799 = vrot.slane %v2798, 2
        %v2800 = vadd.f32 %v2798, %v2799
        %v2801 = vrot.slane %v2800, 1
        %v2802 = vadd.f32 %v2800, %v2801
        %v2803 = vsel %vm2748, %v2787, 0.0
        %v2804 = vrot.slane %v2803, 4
        %v2805 = vadd.f32 %v2803, %v2804
        %v2806 = vrot.slane %v2805, 2
        %v2807 = vadd.f32 %v2805, %v2806
        %v2808 = vrot.slane %v2807, 1
        %v2809 = vadd.f32 %v2807, %v2808
        %v2810 = vsel %vm2748, %v2788, 0.0
        %v2811 = vrot.slane %v2810, 4
        %v2812 = vadd.f32 %v2810, %v2811
        %v2813 = vrot.slane %v2812, 2
        %v2814 = vadd.f32 %v2812, %v2813
        %v2815 = vrot.slane %v2814, 1
        %v2816 = vadd.f32 %v2814, %v2815
        %v2817 = vmul.f32 %v2795, 0.5
        %v2818 = vmul.f32 %v2802, 0.5
        %v2819 = vmul.f32 %v2809, 0.5
        %v2820 = vmul.f32 %v2816, 0.5
        %v2821 = vadd.f32 %v2817, 1e-05
        %v2822 = vadd.f32 %v2818, 1e-05
        %v2823 = vadd.f32 %v2819, 1e-05
        %v2824 = vadd.f32 %v2820, 1e-05
        %v2825 = vrsqrt.pop %v2821
        %v2826 = vrsqrt.pop %v2822
        %v2827 = vrsqrt.pop %v2823
        %v2828 = vrsqrt.pop %v2824
        %v2833 = vcombine.low %v2825, %v2826
        %v2834 = vcombine.low %v2827, %v2828
        %v2836 = vunpack.c.l.s4 1966171168
        %v2837 = vunpack.c.0.s8 %v2836
        %v2838 = vlaneseq
        %v2839 = vshrl.u32 %v2838, 7
        %v2840 = vsub.s32 %v2837, %v2839
        %v2841 = vrot.slane %v2833, %v2840
        %v2843 = vunpack.c.l.s4 1966171168
        %v2844 = vunpack.c.0.s8 %v2843
        %v2845 = vlaneseq
        %v2846 = vshrl.u32 %v2845, 7
        %v2847 = vsub.s32 %v2844, %v2846
        %v2848 = vrot.slane %v2834, %v2847
        %v2849 = vcombine.low %v2841, %v2848
        %v2851 = vunpack.c.l.s4 1966171168
        %v2852 = vunpack.c.0.s8 %v2851
        %v2853 = vlaneseq
        %v2854 = vshrl.u32 %v2853, 7
        %v2855 = vsub.s32 %v2852, %v2854
        %v2856 = vrot.slane %v2849, %v2855
        %v2858 = vmul.f32 %v815, %v2856
        %v2860 = vlaneseq
        %v2861 = vshrl.u32 %v2860, 7
        %v2862 = vsub.s32 0, %v2861
        %v2863 = vrot.slane %v2858, %v2862
        %v2864 = vlaneseq
        %v2865 = vshrl.u32 %v2864, 7
        %v2866 = vsub.s32 1, %v2865
        %v2867 = vrot.slane %v2858, %v2866
        %v2868 = vlaneseq
        %v2869 = vshrl.u32 %v2868, 7
        %v2870 = vsub.s32 2, %v2869
        %v2871 = vrot.slane %v2858, %v2870
        %v2872 = vlaneseq
        %v2873 = vshrl.u32 %v2872, 7
        %v2874 = vsub.s32 3, %v2873
        %v2875 = vrot.slane %v2858, %v2874
        %v2880 = vmul.f32 %v2781, %v2863
        %v2881 = vmul.f32 %v2782, %v2867
        %v2882 = vmul.f32 %v2783, %v2871
        %v2883 = vmul.f32 %v2784, %v2875
        %v2885 = vlaneseq
        %v2886 = vshrl.u32 %v2885, 7
        %v2887 = vsub.s32 0, %v2886
        %v2888 = vrot.slane %v816, %v2887
        %v2889 = vlaneseq
        %v2890 = vshrl.u32 %v2889, 7
        %v2891 = vsub.s32 1, %v2890
        %v2892 = vrot.slane %v816, %v2891
        %v2893 = vlaneseq
        %v2894 = vshrl.u32 %v2893, 7
        %v2895 = vsub.s32 2, %v2894
        %v2896 = vrot.slane %v816, %v2895
        %v2897 = vlaneseq
        %v2898 = vshrl.u32 %v2897, 7
        %v2899 = vsub.s32 3, %v2898
        %v2900 = vrot.slane %v816, %v2899
        %v2905 = vadd.f32 %v2880, %v2888
        %v2906 = vadd.f32 %v2881, %v2892
        %v2907 = vadd.f32 %v2882, %v2896
        %v2908 = vadd.f32 %v2883, %v2900
        %v2913 = vrot.slane %v2578, 2
        %v2914 = vrot.slane %v2580, 2
        %v2915 = vrot.slane %v2742, 2
        %v2916 = vrot.slane %v2744, 2
        %v2921 = vsel %vm2748, %v2913, 0.0
        %v2922 = vrot.slane %v2921, 4
        %v2923 = vadd.f32 %v2921, %v2922
        %v2924 = vrot.slane %v2923, 2
        %v2925 = vadd.f32 %v2923, %v2924
        %v2926 = vrot.slane %v2925, 1
        %v2927 = vadd.f32 %v2925, %v2926
        %v2928 = vsel %vm2748, %v2914, 0.0
        %v2929 = vrot.slane %v2928, 4
        %v2930 = vadd.f32 %v2928, %v2929
        %v2931 = vrot.slane %v2930, 2
        %v2932 = vadd.f32 %v2930, %v2931
        %v2933 = vrot.slane %v2932, 1
        %v2934 = vadd.f32 %v2932, %v2933
        %v2935 = vsel %vm2748, %v2915, 0.0
        %v2936 = vrot.slane %v2935, 4
        %v2937 = vadd.f32 %v2935, %v2936
        %v2938 = vrot.slane %v2937, 2
        %v2939 = vadd.f32 %v2937, %v2938
        %v2940 = vrot.slane %v2939, 1
        %v2941 = vadd.f32 %v2939, %v2940
        %v2942 = vsel %vm2748, %v2916, 0.0
        %v2943 = vrot.slane %v2942, 4
        %v2944 = vadd.f32 %v2942, %v2943
        %v2945 = vrot.slane %v2944, 2
        %v2946 = vadd.f32 %v2944, %v2945
        %v2947 = vrot.slane %v2946, 1
        %v2948 = vadd.f32 %v2946, %v2947
        %v2949 = vmul.f32 %v2927, 0.5
        %v2950 = vmul.f32 %v2934, 0.5
        %v2951 = vmul.f32 %v2941, 0.5
        %v2952 = vmul.f32 %v2948, 0.5
        %v2953 = vsub.f32 %v2578, %v2949
        %v2954 = vsub.f32 %v2580, %v2950
        %v2955 = vsub.f32 %v2742, %v2951
        %v2956 = vsub.f32 %v2744, %v2952
        %v2957 = vmul.f32 %v2953, %v2953
        %v2958 = vmul.f32 %v2954, %v2954
        %v2959 = vmul.f32 %v2955, %v2955
        %v2960 = vmul.f32 %v2956, %v2956
        %v2965 = vrot.slane %v2957, 2
        %v2966 = vrot.slane %v2958, 2
        %v2967 = vrot.slane %v2959, 2
        %v2968 = vrot.slane %v2960, 2
        %v2973 = vsel %vm2748, %v2965, 0.0
        %v2974 = vrot.slane %v2973, 4
        %v2975 = vadd.f32 %v2973, %v2974
        %v2976 = vrot.slane %v2975, 2
        %v2977 = vadd.f32 %v2975, %v2976
        %v2978 = vrot.slane %v2977, 1
        %v2979 = vadd.f32 %v2977, %v2978
        %v2980 = vsel %vm2748, %v2966, 0.0
        %v2981 = vrot.slane %v2980, 4
        %v2982 = vadd.f32 %v2980, %v2981
        %v2983 = vrot.slane %v2982, 2
        %v2984 = vadd.f32 %v2982, %v2983
        %v2985 = vrot.slane %v2984, 1
        %v2986 = vadd.f32 %v2984, %v2985
        %v2987 = vsel %vm2748, %v2967, 0.0
        %v2988 = vrot.slane %v2987, 4
        %v2989 = vadd.f32 %v2987, %v2988
        %v2990 = vrot.slane %v2989, 2
        %v2991 = vadd.f32 %v2989, %v2990
        %v2992 = vrot.slane %v2991, 1
        %v2993 = vadd.f32 %v2991, %v2992
        %v2994 = vsel %vm2748, %v2968, 0.0
        %v2995 = vrot.slane %v2994, 4
        %v2996 = vadd.f32 %v2994, %v2995
        %v2997 = vrot.slane %v2996, 2
        %v2998 = vadd.f32 %v2996, %v2997
        %v2999 = vrot.slane %v2998, 1
        %v3000 = vadd.f32 %v2998, %v2999
        %v3001 = vmul.f32 %v2979, 0.5
        %v3002 = vmul.f32 %v2986, 0.5
        %v3003 = vmul.f32 %v2993, 0.5
        %v3004 = vmul.f32 %v3000, 0.5
        %v3005 = vadd.f32 %v3001, 1e-05
        %v3006 = vadd.f32 %v3002, 1e-05
        %v3007 = vadd.f32 %v3003, 1e-05
        %v3008 = vadd.f32 %v3004, 1e-05
        %v3009 = vrsqrt.pop %v3005
        %v3010 = vrsqrt.pop %v3006
        %v3011 = vrsqrt.pop %v3007
        %v3012 = vrsqrt.pop %v3008
        %v3017 = vcombine.low %v3009, %v3010
        %v3018 = vcombine.low %v3011, %v3012
        %v3020 = vunpack.c.l.s4 1966171168
        %v3021 = vunpack.c.0.s8 %v3020
        %v3022 = vlaneseq
        %v3023 = vshrl.u32 %v3022, 7
        %v3024 = vsub.s32 %v3021, %v3023
        %v3025 = vrot.slane %v3017, %v3024
        %v3027 = vunpack.c.l.s4 1966171168
        %v3028 = vunpack.c.0.s8 %v3027
        %v3029 = vlaneseq
        %v3030 = vshrl.u32 %v3029, 7
        %v3031 = vsub.s32 %v3028, %v3030
        %v3032 = vrot.slane %v3018, %v3031
        %v3033 = vcombine.low %v3025, %v3032
        %v3035 = vunpack.c.l.s4 1966171168
        %v3036 = vunpack.c.0.s8 %v3035
        %v3037 = vlaneseq
        %v3038 = vshrl.u32 %v3037, 7
        %v3039 = vsub.s32 %v3036, %v3038
        %v3040 = vrot.slane %v3033, %v3039
        %v3042 = vmul.f32 %v815, %v3040
        %v3044 = vlaneseq
        %v3045 = vshrl.u32 %v3044, 7
        %v3046 = vsub.s32 0, %v3045
        %v3047 = vrot.slane %v3042, %v3046
        %v3048 = vlaneseq
        %v3049 = vshrl.u32 %v3048, 7
        %v3050 = vsub.s32 1, %v3049
        %v3051 = vrot.slane %v3042, %v3050
        %v3052 = vlaneseq
        %v3053 = vshrl.u32 %v3052, 7
        %v3054 = vsub.s32 2, %v3053
        %v3055 = vrot.slane %v3042, %v3054
        %v3056 = vlaneseq
        %v3057 = vshrl.u32 %v3056, 7
        %v3058 = vsub.s32 3, %v3057
        %v3059 = vrot.slane %v3042, %v3058
        %v3064 = vmul.f32 %v2953, %v3047
        %v3065 = vmul.f32 %v2954, %v3051
        %v3066 = vmul.f32 %v2955, %v3055
        %v3067 = vmul.f32 %v2956, %v3059
        %v3068 = vadd.f32 %v3064, %v2888
        %v3069 = vadd.f32 %v3065, %v2892
        %v3070 = vadd.f32 %v3066, %v2896
        %v3071 = vadd.f32 %v3067, %v2900
        %v3072 = vsel %vm2748, %v2905, %v3068
        %v3073 = vsel %vm2748, %v2906, %v3069
        %v3074 = vsel %vm2748, %v2907, %v3070
        %v3075 = vsel %vm2748, %v2908, %v3071
        %v3076 = vmax.f32 %v3072, 0.0
        %v3077 = vmax.f32 %v3073, 0.0
        %v3078 = vmax.f32 %v3074, 0.0
        %v3079 = vmax.f32 %v3075, 0.0
        %v3080 = vpack.c.bf16 %v3076, %v3076
        %v3081 = vpack.c.bf16 %v3077, %v3077
        %v3082 = vpack.c.bf16 %v3078, %v3078
        %v3083 = vpack.c.bf16 %v3079, %v3079
        %v3088 = vcombine.low %v3080, %v3081
        %v3089 = vcombine.low %v3082, %v3083
        %v3091 = vunpack.c.l.s4 1983009808
        %v3092 = vunpack.c.0.s8 %v3091
        %v3093 = vlaneseq
        %v3094 = vshrl.u32 %v3093, 7
        %v3095 = vsub.s32 %v3092, %v3094
        %v3096 = vrot.slane %v3088, %v3095
        %v3098 = vunpack.c.l.s4 1983009808
        %v3099 = vunpack.c.0.s8 %v3098
        %v3100 = vlaneseq
        %v3101 = vshrl.u32 %v3100, 7
        %v3102 = vsub.s32 %v3099, %v3101
        %v3103 = vrot.slane %v3089, %v3102
        %v3104 = vcombine.low %v3096, %v3103
        %3106 = vst [vmem:[%s812] sm:$0xff] %v3104
        %s3107 = smul.u32 4, %s16
        %p3108 = scmp.lt.s32.totalorder %s3107, 7
        %s3109 = scalar_select %p3108, %s3107, 7
        %s3110 = smul.addr %s3109, 2
        %s3111 = scalar_lea.vmem %s5, %s3110
        // Predicated region
        $region64: #{essl_vicreg_forward.8} parent=58 // pred_check
          %p3112 = pneg %p159
        $region65: #{essl_vicreg_forward.8} parent=58 // pred_check_branch
          %3114 = sbr.rel (%p3112) target = $region67
        $region66: #{essl_vicreg_forward.8} parent=58 // pred_region
          %s3115 = smul.u32 4, %s16
        $region67: #{essl_vicreg_forward.8} parent=58 // pred_fallthru
          _
      $region59: #{essl_vicreg_forward.8} parent=5 // pred_fallthru
        _
      %p3116 = scmp.le.s32.totalorder 2, %s11
      // Predicated region
      $region68: #{essl_vicreg_forward.8} parent=5 // pred_check
        %p3117 = pneg %p3116
      $region69: #{essl_vicreg_forward.8} parent=5 // pred_check_branch
        %3119 = sbr.rel (%p3117) target = $region71
      $region70: #{essl_vicreg_forward.8} parent=5 // pred_region
        %s3120 = ssub.s32 %s11, 2
        // Predicated region
        $region72: #{essl_vicreg_forward.8} parent=70 // pred_check
          %p3121 = pneg %p165
        $region73: #{essl_vicreg_forward.8} parent=70 // pred_check_branch
          %3123 = sbr.rel (%p3121) target = $region75
        $region74: #{essl_vicreg_forward.8} parent=70 // pred_region
          %s3124 = smul.u32 4, %s17
          %p3125 = scmp.lt.s32.totalorder %s3124, 7
          %s3126 = scalar_select %p3125, %s3124, 7
          %s3127 = smul.addr %s3126, 2
          %s3128 = scalar_lea.vmem %s5, %s3127
        $region75: #{essl_vicreg_forward.8} parent=70 // pred_fallthru
          _
      $region71: #{essl_vicreg_forward.8} parent=5 // pred_fallthru
        _
    $region6: #{essl_vicreg_forward.8} parent=1 // loop_footer
      %s15 = sadd.s32 1, %s11
    $region7: #{essl_vicreg_forward.8} parent=1 // loop_footer_branch
      %10 = sbr.rel target = $region3
    $region8: #{essl_vicreg_forward.8} parent=1 // loop_exit
      _

// kernel: essl_vicreg_forward.9
$region0: #{essl_vicreg_forward.9}
  #allocation0 [shape = 'u32[]', space=smem, size = 0x4, offset = 0x4, fixed_abs, tag = 'smem constant byte address 0x4 - core index']
  #allocation1 [shape = 'u32[144,128]{1,0:T(1,128)}', space=vmem, size = 0x12000, scoped, tag = 'internal scratch']
  %s0 = inlined_call_operand.vmem [shape: bf16[4,1024], index: 0, kind: input, shape index: {}]
  %s1 = inlined_call_operand.vmem [shape: bf16[1024,128], index: 1, kind: input, shape index: {}]
  %s2 = inlined_call_operand.vmem [shape: f32[4,128], index: 2, kind: output, shape index: {}]
  %s3 = sld [smem:[#allocation0]]
  $region18: #{essl_vicreg_forward.9} parent=0
    _
  %s5 = ssub.s32 1, %s3
  %s6 = scalar_select 0, %s5, %s3
  // Predicated region
  $region2: #{essl_vicreg_forward.9} parent=0 // pred_check
    _
  $region3: #{essl_vicreg_forward.9} parent=0 // pred_check_branch
    %8 = sbr.rel (0) target = $region5
  $region4: #{essl_vicreg_forward.9} parent=0 // pred_region
    _
  $region5: #{essl_vicreg_forward.9} parent=0 // pred_fallthru
    _
  // Predicated region
  $region6: #{essl_vicreg_forward.9} parent=0 // pred_check
    _
  $region7: #{essl_vicreg_forward.9} parent=0 // pred_check_branch
    %10 = sbr.rel (0) target = $region9
  $region8: #{essl_vicreg_forward.9} parent=0 // pred_region
    _
  $region9: #{essl_vicreg_forward.9} parent=0 // pred_fallthru
    _
  %v12 = vld [vmem:[%s0] sm:$0xff]
  %v13 = vld [vmem:[%s0 + $0x8] sm:$0xff]
  %v14 = vld [vmem:[%s1] sm:$0xf]
  %v15 = vld [vmem:[%s1 + $0x4] sm:$0xf]
  %v16 = vld [vmem:[%s1 + $0x8] sm:$0xf]
  %v17 = vld [vmem:[%s1 + $0xc] sm:$0xf]
  %v18 = vld [vmem:[%s1 + $0x10] sm:$0xf]
  %v19 = vld [vmem:[%s1 + $0x14] sm:$0xf]
  %v20 = vld [vmem:[%s1 + $0x18] sm:$0xf]
  %v21 = vld [vmem:[%s1 + $0x1c] sm:$0xf]
  %v22 = vld [vmem:[%s1 + $0x20] sm:$0xf]
  %v23 = vld [vmem:[%s1 + $0x24] sm:$0xf]
  %v24 = vld [vmem:[%s1 + $0x28] sm:$0xf]
  %v25 = vld [vmem:[%s1 + $0x2c] sm:$0xf]
  %v26 = vld [vmem:[%s1 + $0x30] sm:$0xf]
  %v27 = vld [vmem:[%s1 + $0x34] sm:$0xf]
  %v28 = vld [vmem:[%s1 + $0x38] sm:$0xf]
  %v29 = vld [vmem:[%s1 + $0x3c] sm:$0xf]
  %v30 = vld [vmem:[%s1 + $0x40] sm:$0xf]
  %v31 = vld [vmem:[%s1 + $0x44] sm:$0xf]
  %v32 = vld [vmem:[%s1 + $0x48] sm:$0xf]
  %v33 = vld [vmem:[%s1 + $0x4c] sm:$0xf]
  %v34 = vld [vmem:[%s1 + $0x50] sm:$0xf]
  %v35 = vld [vmem:[%s1 + $0x54] sm:$0xf]
  %v36 = vld [vmem:[%s1 + $0x58] sm:$0xf]
  %v37 = vld [vmem:[%s1 + $0x5c] sm:$0xf]
  %v38 = vld [vmem:[%s1 + $0x60] sm:$0xf]
  %v39 = vld [vmem:[%s1 + $0x64] sm:$0xf]
  %v40 = vld [vmem:[%s1 + $0x68] sm:$0xf]
  %v41 = vld [vmem:[%s1 + $0x6c] sm:$0xf]
  %v42 = vld [vmem:[%s1 + $0x70] sm:$0xf]
  %v43 = vld [vmem:[%s1 + $0x74] sm:$0xf]
  %v44 = vld [vmem:[%s1 + $0x78] sm:$0xf]
  %v45 = vld [vmem:[%s1 + $0x7c] sm:$0xf]
  %v46 = vld [vmem:[%s1 + $0x80] sm:$0xf]
  %v47 = vld [vmem:[%s1 + $0x84] sm:$0xf]
  %v48 = vld [vmem:[%s1 + $0x88] sm:$0xf]
  %v49 = vld [vmem:[%s1 + $0x8c] sm:$0xf]
  %v50 = vld [vmem:[%s1 + $0x90] sm:$0xf]
  %v51 = vld [vmem:[%s1 + $0x94] sm:$0xf]
  %v52 = vld [vmem:[%s1 + $0x98] sm:$0xf]
  %v53 = vld [vmem:[%s1 + $0x9c] sm:$0xf]
  %v54 = vld [vmem:[%s1 + $0xa0] sm:$0xf]
  %v55 = vld [vmem:[%s1 + $0xa4] sm:$0xf]
  %v56 = vld [vmem:[%s1 + $0xa8] sm:$0xf]
  %v57 = vld [vmem:[%s1 + $0xac] sm:$0xf]
  %v58 = vld [vmem:[%s1 + $0xb0] sm:$0xf]
  %v59 = vld [vmem:[%s1 + $0xb4] sm:$0xf]
  %v60 = vld [vmem:[%s1 + $0xb8] sm:$0xf]
  %v61 = vld [vmem:[%s1 + $0xbc] sm:$0xf]
  %v62 = vld [vmem:[%s1 + $0xc0] sm:$0xf]
  %v63 = vld [vmem:[%s1 + $0xc4] sm:$0xf]
  %v64 = vld [vmem:[%s1 + $0xc8] sm:$0xf]
  %v65 = vld [vmem:[%s1 + $0xcc] sm:$0xf]
  %v66 = vld [vmem:[%s1 + $0xd0] sm:$0xf]
  %v67 = vld [vmem:[%s1 + $0xd4] sm:$0xf]
  %v68 = vld [vmem:[%s1 + $0xd8] sm:$0xf]
  %v69 = vld [vmem:[%s1 + $0xdc] sm:$0xf]
  %v70 = vld [vmem:[%s1 + $0xe0] sm:$0xf]
  %v71 = vld [vmem:[%s1 + $0xe4] sm:$0xf]
  %v72 = vld [vmem:[%s1 + $0xe8] sm:$0xf]
  %v73 = vld [vmem:[%s1 + $0xec] sm:$0xf]
  %v74 = vld [vmem:[%s1 + $0xf0] sm:$0xf]
  %v75 = vld [vmem:[%s1 + $0xf4] sm:$0xf]
  %v76 = vld [vmem:[%s1 + $0xf8] sm:$0xf]
  %v77 = vld [vmem:[%s1 + $0xfc] sm:$0xf]
  %v78 = vld [vmem:[%s1 + $0x100] sm:$0xf]
  %v79 = vld [vmem:[%s1 + $0x104] sm:$0xf]
  %v80 = vld [vmem:[%s1 + $0x108] sm:$0xf]
  %v81 = vld [vmem:[%s1 + $0x10c] sm:$0xf]
  %v82 = vld [vmem:[%s1 + $0x110] sm:$0xf]
  %v83 = vld [vmem:[%s1 + $0x114] sm:$0xf]
  %v84 = vld [vmem:[%s1 + $0x118] sm:$0xf]
  %v85 = vld [vmem:[%s1 + $0x11c] sm:$0xf]
  %v86 = vld [vmem:[%s1 + $0x120] sm:$0xf]
  %v87 = vld [vmem:[%s1 + $0x124] sm:$0xf]
  %v88 = vld [vmem:[%s1 + $0x128] sm:$0xf]
  %v89 = vld [vmem:[%s1 + $0x12c] sm:$0xf]
  %v90 = vld [vmem:[%s1 + $0x130] sm:$0xf]
  %v91 = vld [vmem:[%s1 + $0x134] sm:$0xf]
  %v92 = vld [vmem:[%s1 + $0x138] sm:$0xf]
  %v93 = vld [vmem:[%s1 + $0x13c] sm:$0xf]
  %v94 = vld [vmem:[%s1 + $0x140] sm:$0xf]
  %v95 = vld [vmem:[%s1 + $0x144] sm:$0xf]
  %v96 = vld [vmem:[%s1 + $0x148] sm:$0xf]
  %v97 = vld [vmem:[%s1 + $0x14c] sm:$0xf]
  %v98 = vld [vmem:[%s1 + $0x150] sm:$0xf]
  %v99 = vld [vmem:[%s1 + $0x154] sm:$0xf]
  %v100 = vld [vmem:[%s1 + $0x158] sm:$0xf]
  %v101 = vld [vmem:[%s1 + $0x15c] sm:$0xf]
  %v102 = vld [vmem:[%s1 + $0x160] sm:$0xf]
  %v103 = vld [vmem:[%s1 + $0x164] sm:$0xf]
  %v104 = vld [vmem:[%s1 + $0x168] sm:$0xf]
  %v105 = vld [vmem:[%s1 + $0x16c] sm:$0xf]
  %v106 = vld [vmem:[%s1 + $0x170] sm:$0xf]
  %v107 = vld [vmem:[%s1 + $0x174] sm:$0xf]
  %v108 = vld [vmem:[%s1 + $0x178] sm:$0xf]
  %v109 = vld [vmem:[%s1 + $0x17c] sm:$0xf]
  %v110 = vld [vmem:[%s1 + $0x180] sm:$0xf]
  %v111 = vld [vmem:[%s1 + $0x184] sm:$0xf]
  %v112 = vld [vmem:[%s1 + $0x188] sm:$0xf]
  %v113 = vld [vmem:[%s1 + $0x18c] sm:$0xf]
  %v114 = vld [vmem:[%s1 + $0x190] sm:$0xf]
  %v115 = vld [vmem:[%s1 + $0x194] sm:$0xf]
  %v116 = vld [vmem:[%s1 + $0x198] sm:$0xf]
  %v117 = vld [vmem:[%s1 + $0x19c] sm:$0xf]
  %v118 = vld [vmem:[%s1 + $0x1a0] sm:$0xf]
  %v119 = vld [vmem:[%s1 + $0x1a4] sm:$0xf]
  %v120 = vld [vmem:[%s1 + $0x1a8] sm:$0xf]
  %v121 = vld [vmem:[%s1 + $0x1ac] sm:$0xf]
  %v122 = vld [vmem:[%s1 + $0x1b0] sm:$0xf]
  %v123 = vld [vmem:[%s1 + $0x1b4] sm:$0xf]
  %v124 = vld [vmem:[%s1 + $0x1b8] sm:$0xf]
  %v125 = vld [vmem:[%s1 + $0x1bc] sm:$0xf]
  %v126 = vld [vmem:[%s1 + $0x1c0] sm:$0xf]
  %v127 = vld [vmem:[%s1 + $0x1c4] sm:$0xf]
  %v128 = vld [vmem:[%s1 + $0x1c8] sm:$0xf]
  %v129 = vld [vmem:[%s1 + $0x1cc] sm:$0xf]
  %v130 = vld [vmem:[%s1 + $0x1d0] sm:$0xf]
  %v131 = vld [vmem:[%s1 + $0x1d4] sm:$0xf]
  %v132 = vld [vmem:[%s1 + $0x1d8] sm:$0xf]
  %v133 = vld [vmem:[%s1 + $0x1dc] sm:$0xf]
  %v134 = vld [vmem:[%s1 + $0x1e0] sm:$0xf]
  %v135 = vld [vmem:[%s1 + $0x1e4] sm:$0xf]
  %v136 = vld [vmem:[%s1 + $0x1e8] sm:$0xf]
  %v137 = vld [vmem:[%s1 + $0x1ec] sm:$0xf]
  %v138 = vld [vmem:[%s1 + $0x1f0] sm:$0xf]
  %v139 = vld [vmem:[%s1 + $0x1f4] sm:$0xf]
  %v140 = vld [vmem:[%s1 + $0x1f8] sm:$0xf]
  %v141 = vld [vmem:[%s1 + $0x1fc] sm:$0xf]
  %v144 = vcombine.high %v12, %v12
  %v146 = vunpack.c.l.s4 1983009808
  %v147 = vunpack.c.0.s8 %v146
  %v148 = vlaneseq
  %v149 = vshrl.u32 %v148, 7
  %v150 = vsub.s32 %v147, %v149
  %v151 = vrot.slane %v12, %v150
  %v153 = vunpack.c.l.s4 1983009808
  %v154 = vunpack.c.0.s8 %v153
  %v155 = vlaneseq
  %v156 = vshrl.u32 %v155, 7
  %v157 = vsub.s32 %v154, %v156
  %v158 = vrot.slane %v144, %v157
  %v159 = vcombine.high %v151, %v151
  %v160 = vcombine.high %v158, %v158
  %v161 = vcombine.high %v13, %v13
  %v163 = vunpack.c.l.s4 1983009808
  %v164 = vunpack.c.0.s8 %v163
  %v165 = vlaneseq
  %v166 = vshrl.u32 %v165, 7
  %v167 = vsub.s32 %v164, %v166
  %v168 = vrot.slane %v13, %v167
  %v170 = vunpack.c.l.s4 1983009808
  %v171 = vunpack.c.0.s8 %v170
  %v172 = vlaneseq
  %v173 = vshrl.u32 %v172, 7
  %v174 = vsub.s32 %v171, %v173
  %v175 = vrot.slane %v161, %v174
  %v176 = vcombine.high %v168, %v168
  %v177 = vcombine.high %v175, %v175
  %v314 = vunpack.c.l.b16 %v14
  %v315 = vunpack.c.l.b16 %v15
  %v316 = vunpack.c.l.b16 %v16
  %v317 = vunpack.c.l.b16 %v17
  %v318 = vunpack.c.l.b16 %v18
  %v319 = vunpack.c.l.b16 %v19
  %v320 = vunpack.c.l.b16 %v20
  %v321 = vunpack.c.l.b16 %v21
  %v322 = vunpack.c.l.b16 %v22
  %v323 = vunpack.c.l.b16 %v23
  %v324 = vunpack.c.l.b16 %v24
  %v325 = vunpack.c.l.b16 %v25
  %v326 = vunpack.c.l.b16 %v26
  %v327 = vunpack.c.l.b16 %v27
  %v328 = vunpack.c.l.b16 %v28
  %v329 = vunpack.c.l.b16 %v29
  %v330 = vunpack.c.l.b16 %v30
  %v331 = vunpack.c.l.b16 %v31
  %v332 = vunpack.c.l.b16 %v32
  %v333 = vunpack.c.l.b16 %v33
  %v334 = vunpack.c.l.b16 %v34
  %v335 = vunpack.c.l.b16 %v35
  %v336 = vunpack.c.l.b16 %v36
  %v337 = vunpack.c.l.b16 %v37
  %v338 = vunpack.c.l.b16 %v38
  %v339 = vunpack.c.l.b16 %v39
  %v340 = vunpack.c.l.b16 %v40
  %v341 = vunpack.c.l.b16 %v41
  %v342 = vunpack.c.l.b16 %v42
  %v343 = vunpack.c.l.b16 %v43
  %v344 = vunpack.c.l.b16 %v44
  %v345 = vunpack.c.l.b16 %v45
  %v346 = vunpack.c.l.b16 %v46
  %v347 = vunpack.c.l.b16 %v47
  %v348 = vunpack.c.l.b16 %v48
  %v349 = vunpack.c.l.b16 %v49
  %v350 = vunpack.c.l.b16 %v50
  %v351 = vunpack.c.l.b16 %v51
  %v352 = vunpack.c.l.b16 %v52
  %v353 = vunpack.c.l.b16 %v53
  %v354 = vunpack.c.l.b16 %v54
  %v355 = vunpack.c.l.b16 %v55
  %v356 = vunpack.c.l.b16 %v56
  %v357 = vunpack.c.l.b16 %v57
  %v358 = vunpack.c.l.b16 %v58
  %v359 = vunpack.c.l.b16 %v59
  %v360 = vunpack.c.l.b16 %v60
  %v361 = vunpack.c.l.b16 %v61
  %v362 = vunpack.c.l.b16 %v62
  %v363 = vunpack.c.l.b16 %v63
  %v364 = vunpack.c.l.b16 %v64
  %v365 = vunpack.c.l.b16 %v65
  %v366 = vunpack.c.l.b16 %v66
  %v367 = vunpack.c.l.b16 %v67
  %v368 = vunpack.c.l.b16 %v68
  %v369 = vunpack.c.l.b16 %v69
  %v370 = vunpack.c.l.b16 %v70
  %v371 = vunpack.c.l.b16 %v71
  %v372 = vunpack.c.l.b16 %v72
  %v373 = vunpack.c.l.b16 %v73
  %v374 = vunpack.c.l.b16 %v74
  %v375 = vunpack.c.l.b16 %v75
  %v376 = vunpack.c.l.b16 %v76
  %v377 = vunpack.c.l.b16 %v77
  %v378 = vunpack.c.l.b16 %v78
  %v379 = vunpack.c.l.b16 %v79
  %v380 = vunpack.c.l.b16 %v80
  %v381 = vunpack.c.l.b16 %v81
  %v382 = vunpack.c.l.b16 %v82
  %v383 = vunpack.c.l.b16 %v83
  %v384 = vunpack.c.l.b16 %v84
  %v385 = vunpack.c.l.b16 %v85
  %v386 = vunpack.c.l.b16 %v86
  %v387 = vunpack.c.l.b16 %v87
  %v388 = vunpack.c.l.b16 %v88
  %v389 = vunpack.c.l.b16 %v89
  %v390 = vunpack.c.l.b16 %v90
  %v391 = vunpack.c.l.b16 %v91
  %v392 = vunpack.c.l.b16 %v92
  %v393 = vunpack.c.l.b16 %v93
  %v394 = vunpack.c.l.b16 %v94
  %v395 = vunpack.c.l.b16 %v95
  %v396 = vunpack.c.l.b16 %v96
  %v397 = vunpack.c.l.b16 %v97
  %v398 = vunpack.c.l.b16 %v98
  %v399 = vunpack.c.l.b16 %v99
  %v400 = vunpack.c.l.b16 %v100
  %v401 = vunpack.c.l.b16 %v101
  %v402 = vunpack.c.l.b16 %v102
  %v403 = vunpack.c.l.b16 %v103
  %v404 = vunpack.c.l.b16 %v104
  %v405 = vunpack.c.l.b16 %v105
  %v406 = vunpack.c.l.b16 %v106
  %v407 = vunpack.c.l.b16 %v107
  %v408 = vunpack.c.l.b16 %v108
  %v409 = vunpack.c.l.b16 %v109
  %v410 = vunpack.c.l.b16 %v110
  %v411 = vunpack.c.l.b16 %v111
  %v412 = vunpack.c.l.b16 %v112
  %v413 = vunpack.c.l.b16 %v113
  %v414 = vunpack.c.l.b16 %v114
  %v415 = vunpack.c.l.b16 %v115
  %v416 = vunpack.c.l.b16 %v116
  %v417 = vunpack.c.l.b16 %v117
  %v418 = vunpack.c.l.b16 %v118
  %v419 = vunpack.c.l.b16 %v119
  %v420 = vunpack.c.l.b16 %v120
  %v421 = vunpack.c.l.b16 %v121
  %v422 = vunpack.c.l.b16 %v122
  %v423 = vunpack.c.l.b16 %v123
  %v424 = vunpack.c.l.b16 %v124
  %v425 = vunpack.c.l.b16 %v125
  %v426 = vunpack.c.l.b16 %v126
  %v427 = vunpack.c.l.b16 %v127
  %v428 = vunpack.c.l.b16 %v128
  %v429 = vunpack.c.l.b16 %v129
  %v430 = vunpack.c.l.b16 %v130
  %v431 = vunpack.c.l.b16 %v131
  %v432 = vunpack.c.l.b16 %v132
  %v433 = vunpack.c.l.b16 %v133
  %v434 = vunpack.c.l.b16 %v134
  %v435 = vunpack.c.l.b16 %v135
  %v436 = vunpack.c.l.b16 %v136
  %v437 = vunpack.c.l.b16 %v137
  %v438 = vunpack.c.l.b16 %v138
  %v439 = vunpack.c.l.b16 %v139
  %v440 = vunpack.c.l.b16 %v140
  %v441 = vunpack.c.l.b16 %v141
  %v442 = vpack.c.b16 %v315, %v314
  %v443 = vpack.c.b16 %v317, %v316
  %v444 = vpack.c.b16 %v319, %v318
  %v445 = vpack.c.b16 %v321, %v320
  %v446 = vpack.c.b16 %v323, %v322
  %v447 = vpack.c.b16 %v325, %v324
  %v448 = vpack.c.b16 %v327, %v326
  %v449 = vpack.c.b16 %v329, %v328
  %v450 = vpack.c.b16 %v331, %v330
  %v451 = vpack.c.b16 %v333, %v332
  %v452 = vpack.c.b16 %v335, %v334
  %v453 = vpack.c.b16 %v337, %v336
  %v454 = vpack.c.b16 %v339, %v338
  %v455 = vpack.c.b16 %v341, %v340
  %v456 = vpack.c.b16 %v343, %v342
  %v457 = vpack.c.b16 %v345, %v344
  %v458 = vpack.c.b16 %v347, %v346
  %v459 = vpack.c.b16 %v349, %v348
  %v460 = vpack.c.b16 %v351, %v350
  %v461 = vpack.c.b16 %v353, %v352
  %v462 = vpack.c.b16 %v355, %v354
  %v463 = vpack.c.b16 %v357, %v356
  %v464 = vpack.c.b16 %v359, %v358
  %v465 = vpack.c.b16 %v361, %v360
  %v466 = vpack.c.b16 %v363, %v362
  %v467 = vpack.c.b16 %v365, %v364
  %v468 = vpack.c.b16 %v367, %v366
  %v469 = vpack.c.b16 %v369, %v368
  %v470 = vpack.c.b16 %v371, %v370
  %v471 = vpack.c.b16 %v373, %v372
  %v472 = vpack.c.b16 %v375, %v374
  %v473 = vpack.c.b16 %v377, %v376
  %v474 = vpack.c.b16 %v379, %v378
  %v475 = vpack.c.b16 %v381, %v380
  %v476 = vpack.c.b16 %v383, %v382
  %v477 = vpack.c.b16 %v385, %v384
  %v478 = vpack.c.b16 %v387, %v386
  %v479 = vpack.c.b16 %v389, %v388
  %v480 = vpack.c.b16 %v391, %v390
  %v481 = vpack.c.b16 %v393, %v392
  %v482 = vpack.c.b16 %v395, %v394
  %v483 = vpack.c.b16 %v397, %v396
  %v484 = vpack.c.b16 %v399, %v398
  %v485 = vpack.c.b16 %v401, %v400
  %v486 = vpack.c.b16 %v403, %v402
  %v487 = vpack.c.b16 %v405, %v404
  %v488 = vpack.c.b16 %v407, %v406
  %v489 = vpack.c.b16 %v409, %v408
  %v490 = vpack.c.b16 %v411, %v410
  %v491 = vpack.c.b16 %v413, %v412
  %v492 = vpack.c.b16 %v415, %v414
  %v493 = vpack.c.b16 %v417, %v416
  %v494 = vpack.c.b16 %v419, %v418
  %v495 = vpack.c.b16 %v421, %v420
  %v496 = vpack.c.b16 %v423, %v422
  %v497 = vpack.c.b16 %v425, %v424
  %v498 = vpack.c.b16 %v427, %v426
  %v499 = vpack.c.b16 %v429, %v428
  %v500 = vpack.c.b16 %v431, %v430
  %v501 = vpack.c.b16 %v433, %v432
  %v502 = vpack.c.b16 %v435, %v434
  %v503 = vpack.c.b16 %v437, %v436
  %v504 = vpack.c.b16 %v439, %v438
  %v505 = vpack.c.b16 %v441, %v440
  %570 = vmatprep.subr.bf16.mxu0 0
  %571 = vmatpush1.bf16.msra.mxu0 %v449
  %572 = vmatprep.subr.bf16.mxu0 0
  %573 = vmatpush1.bf16.msra.mxu0 %v448
  %574 = vmatprep.subr.bf16.mxu0 0
  %575 = vmatpush1.bf16.msra.mxu0 %v447
  %576 = vmatprep.subr.bf16.mxu0 0
  %577 = vmatpush1.bf16.msra.mxu0 %v446
  %578 = vmatprep.subr.bf16.mxu0 0
  %579 = vmatpush1.bf16.msra.mxu0 %v445
  %580 = vmatprep.subr.bf16.mxu0 0
  %581 = vmatpush1.bf16.msra.mxu0 %v444
  %582 = vmatprep.subr.bf16.mxu0 0
  %583 = vmatpush1.bf16.msra.mxu0 %v443
  %584 = vmatprep.subr.bf16.mxu0 0
  %585 = vmatpush1.bf16.msra.mxu0 %v442
  %586 = vmatprep.subr.bf16.mxu0 0
  %587 = vmatpush2.bf16.msra.mxu0 %v457
  %588 = vmatprep.subr.bf16.mxu0 0
  %589 = vmatpush2.bf16.msra.mxu0 %v456
  %590 = vmatprep.subr.bf16.mxu0 0
  %591 = vmatpush2.bf16.msra.mxu0 %v455
  %592 = vmatprep.subr.bf16.mxu0 0
  %593 = vmatpush2.bf16.msra.mxu0 %v454
  %594 = vmatprep.subr.bf16.mxu0 0
  %595 = vmatpush2.bf16.msra.mxu0 %v453
  %596 = vmatprep.subr.bf16.mxu0 0
  %597 = vmatpush2.bf16.msra.mxu0 %v452
  %598 = vmatprep.subr.bf16.mxu0 0
  %599 = vmatpush2.bf16.msra.mxu0 %v451
  %600 = vmatprep.subr.bf16.mxu0 0
  %601 = vmatpush2.bf16.msra.mxu0 %v450
  %602 = vmatprep.mubr.bf16.mxu0 %v159
  %603 = vmatmul.mubr.bf16.gmra.mxu0 %v151
  %v604 = vpop.f32.mrf.mxu0
  %v605 = vadd.f32 0.0, %v604
  %v606 = vpop.f32.mrf.mxu0
  %v607 = vpop.f32.mrf.mxu0
  %v608 = vpop.f32.mrf.mxu0
  %609 = vdwg.mxu0
  %610 = vmatprep.subr.bf16.mxu0 0
  %611 = vmatpush1.bf16.msra.mxu0 %v465
  %612 = vmatprep.subr.bf16.mxu0 0
  %613 = vmatpush1.bf16.msra.mxu0 %v464
  %614 = vmatprep.subr.bf16.mxu0 0
  %615 = vmatpush1.bf16.msra.mxu0 %v463
  %616 = vmatprep.subr.bf16.mxu0 0
  %617 = vmatpush1.bf16.msra.mxu0 %v462
  %618 = vmatprep.subr.bf16.mxu0 0
  %619 = vmatpush1.bf16.msra.mxu0 %v461
  %620 = vmatprep.subr.bf16.mxu0 0
  %621 = vmatpush1.bf16.msra.mxu0 %v460
  %622 = vmatprep.subr.bf16.mxu0 0
  %623 = vmatpush1.bf16.msra.mxu0 %v459
  %624 = vmatprep.subr.bf16.mxu0 0
  %625 = vmatpush1.bf16.msra.mxu0 %v458
  %626 = vmatprep.subr.bf16.mxu0 0
  %627 = vmatpush2.bf16.msra.mxu0 %v473
  %628 = vmatprep.subr.bf16.mxu0 0
  %629 = vmatpush2.bf16.msra.mxu0 %v472
  %630 = vmatprep.subr.bf16.mxu0 0
  %631 = vmatpush2.bf16.msra.mxu0 %v471
  %632 = vmatprep.subr.bf16.mxu0 0
  %633 = vmatpush2.bf16.msra.mxu0 %v470
  %634 = vmatprep.subr.bf16.mxu0 0
  %635 = vmatpush2.bf16.msra.mxu0 %v469
  %636 = vmatprep.subr.bf16.mxu0 0
  %637 = vmatpush2.bf16.msra.mxu0 %v468
  %638 = vmatprep.subr.bf16.mxu0 0
  %639 = vmatpush2.bf16.msra.mxu0 %v467
  %640 = vmatprep.subr.bf16.mxu0 0
  %641 = vmatpush2.bf16.msra.mxu0 %v466
  %642 = vmatprep.mubr.bf16.mxu0 %v160
  %643 = vmatmul.mubr.bf16.gmra.mxu0 %v158
  %v644 = vpop.f32.mrf.mxu0
  %v645 = vadd.f32 %v605, %v644
  %v646 = vpop.f32.mrf.mxu0
  %v647 = vpop.f32.mrf.mxu0
  %v648 = vpop.f32.mrf.mxu0
  %649 = vdwg.mxu0
  %650 = vmatprep.subr.bf16.mxu0 0
  %651 = vmatpush1.bf16.msra.mxu0 %v481
  %652 = vmatprep.subr.bf16.mxu0 0
  %653 = vmatpush1.bf16.msra.mxu0 %v480
  %654 = vmatprep.subr.bf16.mxu0 0
  %655 = vmatpush1.bf16.msra.mxu0 %v479
  %656 = vmatprep.subr.bf16.mxu0 0
  %657 = vmatpush1.bf16.msra.mxu0 %v478
  %658 = vmatprep.subr.bf16.mxu0 0
  %659 = vmatpush1.bf16.msra.mxu0 %v477
  %660 = vmatprep.subr.bf16.mxu0 0
  %661 = vmatpush1.bf16.msra.mxu0 %v476
  %662 = vmatprep.subr.bf16.mxu0 0
  %663 = vmatpush1.bf16.msra.mxu0 %v475
  %664 = vmatprep.subr.bf16.mxu0 0
  %665 = vmatpush1.bf16.msra.mxu0 %v474
  %666 = vmatprep.subr.bf16.mxu0 0
  %667 = vmatpush2.bf16.msra.mxu0 %v489
  %668 = vmatprep.subr.bf16.mxu0 0
  %669 = vmatpush2.bf16.msra.mxu0 %v488
  %670 = vmatprep.subr.bf16.mxu0 0
  %671 = vmatpush2.bf16.msra.mxu0 %v487
  %672 = vmatprep.subr.bf16.mxu0 0
  %673 = vmatpush2.bf16.msra.mxu0 %v486
  %674 = vmatprep.subr.bf16.mxu0 0
  %675 = vmatpush2.bf16.msra.mxu0 %v485
  %676 = vmatprep.subr.bf16.mxu0 0
  %677 = vmatpush2.bf16.msra.mxu0 %v484
  %678 = vmatprep.subr.bf16.mxu0 0
  %679 = vmatpush2.bf16.msra.mxu0 %v483
  %680 = vmatprep.subr.bf16.mxu0 0
  %681 = vmatpush2.bf16.msra.mxu0 %v482
  %682 = vmatprep.mubr.bf16.mxu0 %v176
  %683 = vmatmul.mubr.bf16.gmra.mxu0 %v168
  %v684 = vpop.f32.mrf.mxu0
  %v685 = vadd.f32 %v645, %v684
  %v686 = vpop.f32.mrf.mxu0
  %v687 = vpop.f32.mrf.mxu0
  %v688 = vpop.f32.mrf.mxu0
  %689 = vdwg.mxu0
  %690 = vmatprep.subr.bf16.mxu0 0
  %691 = vmatpush1.bf16.msra.mxu0 %v497
  %692 = vmatprep.subr.bf16.mxu0 0
  %693 = vmatpush1.bf16.msra.mxu0 %v496
  %694 = vmatprep.subr.bf16.mxu0 0
  %695 = vmatpush1.bf16.msra.mxu0 %v495
  %696 = vmatprep.subr.bf16.mxu0 0
  %697 = vmatpush1.bf16.msra.mxu0 %v494
  %698 = vmatprep.subr.bf16.mxu0 0
  %699 = vmatpush1.bf16.msra.mxu0 %v493
  %700 = vmatprep.subr.bf16.mxu0 0
  %701 = vmatpush1.bf16.msra.mxu0 %v492
  %702 = vmatprep.subr.bf16.mxu0 0
  %703 = vmatpush1.bf16.msra.mxu0 %v491
  %704 = vmatprep.subr.bf16.mxu0 0
  %705 = vmatpush1.bf16.msra.mxu0 %v490
  %706 = vmatprep.subr.bf16.mxu0 0
  %707 = vmatpush2.bf16.msra.mxu0 %v505
  %708 = vmatprep.subr.bf16.mxu0 0
  %709 = vmatpush2.bf16.msra.mxu0 %v504
  %710 = vmatprep.subr.bf16.mxu0 0
  %711 = vmatpush2.bf16.msra.mxu0 %v503
  %712 = vmatprep.subr.bf16.mxu0 0
  %713 = vmatpush2.bf16.msra.mxu0 %v502
  %714 = vmatprep.subr.bf16.mxu0 0
  %715 = vmatpush2.bf16.msra.mxu0 %v501
  %716 = vmatprep.subr.bf16.mxu0 0
  %717 = vmatpush2.bf16.msra.mxu0 %v500
  %718 = vmatprep.subr.bf16.mxu0 0
  %719 = vmatpush2.bf16.msra.mxu0 %v499
  %720 = vmatprep.subr.bf16.mxu0 0
  %721 = vmatpush2.bf16.msra.mxu0 %v498
  %722 = vmatprep.mubr.bf16.mxu0 %v177
  %723 = vmatmul.mubr.bf16.gmra.mxu0 %v175
  %v724 = vpop.f32.mrf.mxu0
  %v725 = vadd.f32 %v685, %v724
  %v726 = vpop.f32.mrf.mxu0
  %v727 = vpop.f32.mrf.mxu0
  %v728 = vpop.f32.mrf.mxu0
  %729 = vdwg.mxu0
  %730 = vst [vmem:[%s2] sm:$0xf] %v725
  // Predicated region
  $region10: #{essl_vicreg_forward.9} parent=0 // pred_check
    _
  $region11: #{essl_vicreg_forward.9} parent=0 // pred_check_branch
    %732 = sbr.rel (0) target = $region13
  $region12: #{essl_vicreg_forward.9} parent=0 // pred_region
    _
  $region13: #{essl_vicreg_forward.9} parent=0 // pred_fallthru
    _
  // Predicated region
  $region14: #{essl_vicreg_forward.9} parent=0 // pred_check
    _
  $region15: #{essl_vicreg_forward.9} parent=0 // pred_check_branch
    %734 = sbr.rel (0) target = $region17
  $region16: #{essl_vicreg_forward.9} parent=0 // pred_region
    _
  $region17: #{essl_vicreg_forward.9} parent=0 // pred_fallthru
    _

// kernel: essl_vicreg_forward.5
$region0: #{essl_vicreg_forward.5}
  #allocation0 [shape = 'u32[]', space=smem, size = 0x4, offset = 0x4, fixed_abs, tag = 'smem constant byte address 0x4 - core index']
  #allocation1 [shape = 'u32[144,128]{1,0:T(1,128)}', space=vmem, size = 0x12000, scoped, tag = 'internal scratch']
  %s0 = inlined_call_operand.vmem [shape: bf16[8,18,18,128], index: 0, kind: input, shape index: {}]
  %s1 = inlined_call_operand.vmem [shape: bf16[9,128,128], index: 1, kind: input, shape index: {}]
  %s2 = inlined_call_operand.vmem [shape: f32[1,128], index: 2, kind: input, shape index: {}]
  %s3 = inlined_call_operand.vmem [shape: f32[8,1,128], index: 3, kind: output, shape index: {}]
  %s4 = sld [smem:[#allocation0]]
  $region45: #{essl_vicreg_forward.5} parent=0
    _
  %s6 = ssub.s32 1, %s4
  %s7 = scalar_select 0, %s6, %s4
  loop: start=0, step=1, limit=10
  $region2: #{essl_vicreg_forward.5} parent=0 // loop_pre_header
    _
  $region3: #{essl_vicreg_forward.5} parent=0 // loop_header
    %s9 = sphi 0, %s13
    %p10 = scmp.ge.s32.totalorder %s9, 10
    %s19 = sphi 0, %s21
    %s22 = sphi 0, %s19
    %s23 = sphi 0, %s22
    %s39 = sphi 0, %s23
    %s43 = sphi 0, %s43
    %s45 = sphi 0, %s43
    %s46 = sphi 0, %s45
    %s60 = sphi 0, %s46
    %s64 = sphi 0, %s64
    %s66 = sphi 0, %s64
    %s67 = sphi 0, %s66
    %s81 = sphi 0, %s67
    %s87 = sphi 0, %s89
    %s90 = sphi 0, %s87
    %s91 = sphi 0, %s90
    %s107 = sphi 0, %s91
  $region4: #{essl_vicreg_forward.5} parent=0 // loop_header_branch
    %12 = sbr.rel (%p10) target = $region8
  $region5: #{essl_vicreg_forward.5} parent=0 // loop_body
    %s14 = ssub.s32 %s9, 1
    %s15 = ssub.s32 %s9, 2
    %s16 = sadd.s32 %s9, 1
    %s17 = ssub.s32 %s9, %s16
    %p18 = scmp.eq.s32.totalorder %s17, 0
    %s20 = sadd.s32 %s19, 1
    %s21 = scalar_select %p18, %s19, %s20
    %p24 = pneg %p18
    %p25 = scmp.eq.s32.totalorder %s9, 7
    %p26 = por %p24, %p25
    %p27 = scmp.ne.s32.totalorder %s19, %s22
    %p28 = scmp.eq.s32.totalorder %s9, 0
    %p29 = por %p27, %p28
    %p30 = scmp.ne.s32.totalorder %s19, %s22
    %p31 = scmp.eq.s32.totalorder %s14, 7
    %p32 = por %p30, %p31
    %p33 = scmp.ne.s32.totalorder %s22, %s23
    %p34 = scmp.eq.s32.totalorder %s14, 0
    %p35 = por %p33, %p34
    %p36 = scmp.ne.s32.totalorder %s22, %s23
    %p37 = scmp.eq.s32.totalorder %s15, 7
    %p38 = por %p36, %p37
    %p40 = scmp.ne.s32.totalorder %s23, %s39
    %p41 = scmp.eq.s32.totalorder %s15, 0
    %p42 = por %p40, %p41
    %s44 = sadd.s32 %s43, 1
    %p47 = scmp.eq.s32.totalorder %s9, 7
    %p48 = scmp.ne.s32.totalorder %s43, %s45
    %p49 = scmp.eq.s32.totalorder %s9, 0
    %p50 = por %p48, %p49
    %p51 = scmp.ne.s32.totalorder %s43, %s45
    %p52 = scmp.eq.s32.totalorder %s14, 7
    %p53 = por %p51, %p52
    %p54 = scmp.ne.s32.totalorder %s45, %s46
    %p55 = scmp.eq.s32.totalorder %s14, 0
    %p56 = por %p54, %p55
    %p57 = scmp.ne.s32.totalorder %s45, %s46
    %p58 = scmp.eq.s32.totalorder %s15, 7
    %p59 = por %p57, %p58
    %p61 = scmp.ne.s32.totalorder %s46, %s60
    %p62 = scmp.eq.s32.totalorder %s15, 0
    %p63 = por %p61, %p62
    %s65 = sadd.s32 %s64, 1
    %p68 = scmp.eq.s32.totalorder %s9, 7
    %p69 = scmp.ne.s32.totalorder %s64, %s66
    %p70 = scmp.eq.s32.totalorder %s9, 0
    %p71 = por %p69, %p70
    %p72 = scmp.ne.s32.totalorder %s64, %s66
    %p73 = scmp.eq.s32.totalorder %s14, 7
    %p74 = por %p72, %p73
    %p75 = scmp.ne.s32.totalorder %s66, %s67
    %p76 = scmp.eq.s32.totalorder %s14, 0
    %p77 = por %p75, %p76
    %p78 = scmp.ne.s32.totalorder %s66, %s67
    %p79 = scmp.eq.s32.totalorder %s15, 7
    %p80 = por %p78, %p79
    %p82 = scmp.ne.s32.totalorder %s67, %s81
    %p83 = scmp.eq.s32.totalorder %s15, 0
    %p84 = por %p82, %p83
    %s85 = ssub.s32 %s9, %s16
    %p86 = scmp.eq.s32.totalorder %s85, 0
    %s88 = sadd.s32 %s87, 1
    %s89 = scalar_select %p86, %s87, %s88
    %p92 = pneg %p86
    %p93 = scmp.eq.s32.totalorder %s9, 7
    %p94 = por %p92, %p93
    %p95 = scmp.ne.s32.totalorder %s87, %s90
    %p96 = scmp.eq.s32.totalorder %s9, 0
    %p97 = por %p95, %p96
    %p98 = scmp.ne.s32.totalorder %s87, %s90
    %p99 = scmp.eq.s32.totalorder %s14, 7
    %p100 = por %p98, %p99
    %p101 = scmp.ne.s32.totalorder %s90, %s91
    %p102 = scmp.eq.s32.totalorder %s14, 0
    %p103 = por %p101, %p102
    %p104 = scmp.ne.s32.totalorder %s90, %s91
    %p105 = scmp.eq.s32.totalorder %s15, 7
    %p106 = por %p104, %p105
    %p108 = scmp.ne.s32.totalorder %s91, %s107
    %p109 = scmp.eq.s32.totalorder %s15, 0
    %p110 = por %p108, %p109
    %p111 = scmp.le.s32.totalorder 1, %s9
    %p112 = scmp.lt.s32.totalorder %s9, 9
    %p113 = pnand %p111, %p112
    %p114 = pneg %p113
    // Predicated region
    $region9: #{essl_vicreg_forward.5} parent=5 // pred_check
      _
    $region10: #{essl_vicreg_forward.5} parent=5 // pred_check_branch
      %116 = sbr.rel (%p113) target = $region12
    $region11: #{essl_vicreg_forward.5} parent=5 // pred_region
      %s117 = ssub.s32 %s9, 1
      // Predicated region
      $region13: #{essl_vicreg_forward.5} parent=11 // pred_check
        %p118 = pneg %p56
      $region14: #{essl_vicreg_forward.5} parent=11 // pred_check_branch
        %120 = sbr.rel (%p118) target = $region16
      $region15: #{essl_vicreg_forward.5} parent=11 // pred_region
        _
      $region16: #{essl_vicreg_forward.5} parent=11 // pred_fallthru
        _
      // Predicated region
      $region17: #{essl_vicreg_forward.5} parent=11 // pred_check
        %p121 = pneg %p77
      $region18: #{essl_vicreg_forward.5} parent=11 // pred_check_branch
        %123 = sbr.rel (%p121) target = $region20
      $region19: #{essl_vicreg_forward.5} parent=11 // pred_region
        _
      $region20: #{essl_vicreg_forward.5} parent=11 // pred_fallthru
        _
    $region12: #{essl_vicreg_forward.5} parent=5 // pred_fallthru
      _
    %p124 = scmp.lt.s32.totalorder %s9, 8
    // Predicated region
    $region21: #{essl_vicreg_forward.5} parent=5 // pred_check
      %p125 = pneg %p124
    $region22: #{essl_vicreg_forward.5} parent=5 // pred_check_branch
      %127 = sbr.rel (%p125) target = $region24
    $region23: #{essl_vicreg_forward.5} parent=5 // pred_region
      // Predicated region
      $region25: #{essl_vicreg_forward.5} parent=23 // pred_check
        %p128 = pneg %p29
      $region26: #{essl_vicreg_forward.5} parent=23 // pred_check_branch
        %130 = sbr.rel (%p128) target = $region28
      $region27: #{essl_vicreg_forward.5} parent=23 // pred_region
        %p131 = scmp.lt.s32.totalorder %s9, 7
        %s132 = scalar_select %p131, %s9, 7
        %s133 = smul.addr %s132, 54
        %s134 = smul.addr %s133, 4
        %s135 = scalar_lea.vmem %s0, %s134
      $region28: #{essl_vicreg_forward.5} parent=23 // pred_fallthru
        _
    $region24: #{essl_vicreg_forward.5} parent=5 // pred_fallthru
      _
    %p136 = scmp.le.s32.totalorder 1, %s9
    %p137 = scmp.lt.s32.totalorder %s9, 9
    %p138 = pnand %p136, %p137
    %p139 = pneg %p138
    // Predicated region
    $region29: #{essl_vicreg_forward.5} parent=5 // pred_check
      _
    $region30: #{essl_vicreg_forward.5} parent=5 // pred_check_branch
      %141 = sbr.rel (%p138) target = $region32
    $region31: #{essl_vicreg_forward.5} parent=5 // pred_region
      %s142 = ssub.s32 %s9, 1
      %p143 = scmp.lt.s32.totalorder %s14, 7
      %s144 = scalar_select %p143, %s14, 7
      %s145 = smul.addr %s144, 54
      %s146 = smul.addr %s145, 4
      %s147 = scalar_lea.vmem %s0, %s146
      %p148 = pneg %p35
      %p149 = pneg %p32
      %p150 = pneg %p56
      %p151 = pneg %p53
      %p152 = pneg %p77
      %p153 = pneg %p74
      %p154 = pneg %p103
      %p155 = pneg %p100
      %p156 = scmp.lt.s32.totalorder %s14, 7
      %s157 = scalar_select %p156, %s14, 7
      %s158 = scalar_lea.vmem %s3, %s157
      %p159 = scmp.lt.s32.totalorder %s14, 7
      %s160 = scalar_select %p159, %s14, 7
      %s161 = smul.addr %s160, 54
      %s162 = smul.addr %s161, 4
      %s163 = scalar_lea.vmem %s0, %s162
      %p164 = scmp.lt.s32.totalorder %s14, 7
      %s165 = scalar_select %p164, %s14, 7
      %s166 = scalar_lea.vmem %s3, %s165
      %v168 = vld [vmem:[%s163] sm:$0xf]
      %v169 = vld [vmem:[%s163 + $0x4] sm:$0xf]
      %v170 = vld [vmem:[%s163 + $0x8] sm:$0x1]
      %v171 = vld [vmem:[%s163 + $0xc] sm:$0xf]
      %v172 = vld [vmem:[%s163 + $0x10] sm:$0xf]
      %v173 = vld [vmem:[%s163 + $0x14] sm:$0x1]
      %v174 = vld [vmem:[%s163 + $0x18] sm:$0xf]
      %v175 = vld [vmem:[%s163 + $0x1c] sm:$0xf]
      %v176 = vld [vmem:[%s163 + $0x20] sm:$0x1]
      %v177 = vld [vmem:[%s163 + $0x24] sm:$0xf]
      %v178 = vld [vmem:[%s163 + $0x28] sm:$0xf]
      %v179 = vld [vmem:[%s163 + $0x2c] sm:$0x1]
      %v180 = vld [vmem:[%s163 + $0x30] sm:$0xf]
      %v181 = vld [vmem:[%s163 + $0x34] sm:$0xf]
      %v182 = vld [vmem:[%s163 + $0x38] sm:$0x1]
      %v183 = vld [vmem:[%s163 + $0x3c] sm:$0xf]
      %v184 = vld [vmem:[%s163 + $0x40] sm:$0xf]
      %v185 = vld [vmem:[%s163 + $0x44] sm:$0x1]
      %v186 = vld [vmem:[%s163 + $0x48] sm:$0xf]
      %v187 = vld [vmem:[%s163 + $0x4c] sm:$0xf]
      %v188 = vld [vmem:[%s163 + $0x50] sm:$0x1]
      %v189 = vld [vmem:[%s163 + $0x54] sm:$0xf]
      %v190 = vld [vmem:[%s163 + $0x58] sm:$0xf]
      %v191 = vld [vmem:[%s163 + $0x5c] sm:$0x1]
      %v192 = vld [vmem:[%s163 + $0x60] sm:$0xf]
      %v193 = vld [vmem:[%s163 + $0x64] sm:$0xf]
      %v194 = vld [vmem:[%s163 + $0x68] sm:$0x1]
      %v195 = vld [vmem:[%s163 + $0x6c] sm:$0xf]
      %v196 = vld [vmem:[%s163 + $0x70] sm:$0xf]
      %v197 = vld [vmem:[%s163 + $0x74] sm:$0x1]
      %v198 = vld [vmem:[%s163 + $0x78] sm:$0xf]
      %v199 = vld [vmem:[%s163 + $0x7c] sm:$0xf]
      %v200 = vld [vmem:[%s163 + $0x80] sm:$0x1]
      %v201 = vld [vmem:[%s163 + $0x84] sm:$0xf]
      %v202 = vld [vmem:[%s163 + $0x88] sm:$0xf]
      %v203 = vld [vmem:[%s163 + $0x8c] sm:$0x1]
      %v204 = vld [vmem:[%s163 + $0x90] sm:$0xf]
      %v205 = vld [vmem:[%s163 + $0x94] sm:$0xf]
      %v206 = vld [vmem:[%s163 + $0x98] sm:$0x1]
      %v207 = vld [vmem:[%s163 + $0x9c] sm:$0xf]
      %v208 = vld [vmem:[%s163 + $0xa0] sm:$0xf]
      %v209 = vld [vmem:[%s163 + $0xa4] sm:$0x1]
      %v210 = vld [vmem:[%s163 + $0xa8] sm:$0xf]
      %v211 = vld [vmem:[%s163 + $0xac] sm:$0xf]
      %v212 = vld [vmem:[%s163 + $0xb0] sm:$0x1]
      %v213 = vld [vmem:[%s163 + $0xb4] sm:$0xf]
      %v214 = vld [vmem:[%s163 + $0xb8] sm:$0xf]
      %v215 = vld [vmem:[%s163 + $0xbc] sm:$0x1]
      %v216 = vld [vmem:[%s163 + $0xc0] sm:$0xf]
      %v217 = vld [vmem:[%s163 + $0xc4] sm:$0xf]
      %v218 = vld [vmem:[%s163 + $0xc8] sm:$0x1]
      %v219 = vld [vmem:[%s163 + $0xcc] sm:$0xf]
      %v220 = vld [vmem:[%s163 + $0xd0] sm:$0xf]
      %v221 = vld [vmem:[%s163 + $0xd4] sm:$0x1]
      %v222 = vld [vmem:[%s1] sm:$0xf]
      %v223 = vld [vmem:[%s1 + $0x4] sm:$0xf]
      %v224 = vld [vmem:[%s1 + $0x8] sm:$0xf]
      %v225 = vld [vmem:[%s1 + $0xc] sm:$0xf]
      %v226 = vld [vmem:[%s1 + $0x10] sm:$0xf]
      %v227 = vld [vmem:[%s1 + $0x14] sm:$0xf]
      %v228 = vld [vmem:[%s1 + $0x18] sm:$0xf]
      %v229 = vld [vmem:[%s1 + $0x1c] sm:$0xf]
      %v230 = vld [vmem:[%s1 + $0x20] sm:$0xf]
      %v231 = vld [vmem:[%s1 + $0x24] sm:$0xf]
      %v232 = vld [vmem:[%s1 + $0x28] sm:$0xf]
      %v233 = vld [vmem:[%s1 + $0x2c] sm:$0xf]
      %v234 = vld [vmem:[%s1 + $0x30] sm:$0xf]
      %v235 = vld [vmem:[%s1 + $0x34] sm:$0xf]
      %v236 = vld [vmem:[%s1 + $0x38] sm:$0xf]
      %v237 = vld [vmem:[%s1 + $0x3c] sm:$0xf]
      %vm238 = vsmask.f32 3328
      %vm239 = vsmask.f32 7440
      %vm240 = vmor %vm238, %vm239
      %v242 = vshrl.u32 %v168, 16
      %v244 = vrot.slane %v242, 4
      %v245 = vshll.u32 %v168, 16
      %v247 = vrot.slane %v245, 5
      %v248 = vor.u32 %v244, %v247
      %v249 = vrot.slane %v248, 4
      %v251 = vshll.u32 %v169, 16
      %v253 = vrot.slane %v251, 5
      %v254 = vsel %vm240, %v249, %v253
      %v255 = vshrl.u32 %v169, 16
      %v257 = vrot.slane %v255, 4
      %v258 = vor.u32 %v257, %v253
      %v259 = vrot.slane %v258, 4
      %v261 = vshll.u32 %v170, 16
      %v263 = vrot.slane %v261, 5
      %v264 = vsel %vm240, %v259, %v263
      %v266 = vshrl.u32 %v171, 16
      %v268 = vrot.slane %v266, 4
      %v269 = vshll.u32 %v171, 16
      %v271 = vrot.slane %v269, 5
      %v272 = vor.u32 %v268, %v271
      %v273 = vrot.slane %v272, 4
      %v275 = vshll.u32 %v172, 16
      %v277 = vrot.slane %v275, 5
      %v278 = vsel %vm240, %v273, %v277
      %v279 = vshrl.u32 %v172, 16
      %v281 = vrot.slane %v279, 4
      %v282 = vor.u32 %v281, %v277
      %v283 = vrot.slane %v282, 4
      %v285 = vshll.u32 %v173, 16
      %v287 = vrot.slane %v285, 5
      %v288 = vsel %vm240, %v283, %v287
      %v290 = vshrl.u32 %v174, 16
      %v292 = vrot.slane %v290, 4
      %v293 = vshll.u32 %v174, 16
      %v295 = vrot.slane %v293, 5
      %v296 = vor.u32 %v292, %v295
      %v297 = vrot.slane %v296, 4
      %v299 = vshll.u32 %v175, 16
      %v301 = vrot.slane %v299, 5
      %v302 = vsel %vm240, %v297, %v301
      %v303 = vshrl.u32 %v175, 16
      %v305 = vrot.slane %v303, 4
      %v306 = vor.u32 %v305, %v301
      %v307 = vrot.slane %v306, 4
      %v309 = vshll.u32 %v176, 16
      %v311 = vrot.slane %v309, 5
      %v312 = vsel %vm240, %v307, %v311
      %v314 = vshrl.u32 %v177, 16
      %v316 = vrot.slane %v314, 4
      %v317 = vshll.u32 %v177, 16
      %v319 = vrot.slane %v317, 5
      %v320 = vor.u32 %v316, %v319
      %v321 = vrot.slane %v320, 4
      %v323 = vshll.u32 %v178, 16
      %v325 = vrot.slane %v323, 5
      %v326 = vsel %vm240, %v321, %v325
      %v327 = vshrl.u32 %v178, 16
      %v329 = vrot.slane %v327, 4
      %v330 = vor.u32 %v329, %v325
      %v331 = vrot.slane %v330, 4
      %v333 = vshll.u32 %v179, 16
      %v335 = vrot.slane %v333, 5
      %v336 = vsel %vm240, %v331, %v335
      %v338 = vshrl.u32 %v180, 16
      %v340 = vrot.slane %v338, 4
      %v341 = vshll.u32 %v180, 16
      %v343 = vrot.slane %v341, 5
      %v344 = vor.u32 %v340, %v343
      %v345 = vrot.slane %v344, 4
      %v347 = vshll.u32 %v181, 16
      %v349 = vrot.slane %v347, 5
      %v350 = vsel %vm240, %v345, %v349
      %v351 = vshrl.u32 %v181, 16
      %v353 = vrot.slane %v351, 4
      %v354 = vor.u32 %v353, %v349
      %v355 = vrot.slane %v354, 4
      %v357 = vshll.u32 %v182, 16
      %v359 = vrot.slane %v357, 5
      %v360 = vsel %vm240, %v355, %v359
      %v362 = vshrl.u32 %v183, 16
      %v364 = vrot.slane %v362, 4
      %v365 = vshll.u32 %v183, 16
      %v367 = vrot.slane %v365, 5
      %v368 = vor.u32 %v364, %v367
      %v369 = vrot.slane %v368, 4
      %v371 = vshll.u32 %v184, 16
      %v373 = vrot.slane %v371, 5
      %v374 = vsel %vm240, %v369, %v373
      %v375 = vshrl.u32 %v184, 16
      %v377 = vrot.slane %v375, 4
      %v378 = vor.u32 %v377, %v373
      %v379 = vrot.slane %v378, 4
      %v381 = vshll.u32 %v185, 16
      %v383 = vrot.slane %v381, 5
      %v384 = vsel %vm240, %v379, %v383
      %v386 = vshrl.u32 %v186, 16
      %v388 = vrot.slane %v386, 4
      %v389 = vshll.u32 %v186, 16
      %v391 = vrot.slane %v389, 5
      %v392 = vor.u32 %v388, %v391
      %v393 = vrot.slane %v392, 4
      %v395 = vshll.u32 %v187, 16
      %v397 = vrot.slane %v395, 5
      %v398 = vsel %vm240, %v393, %v397
      %v399 = vshrl.u32 %v187, 16
      %v401 = vrot.slane %v399, 4
      %v402 = vor.u32 %v401, %v397
      %v403 = vrot.slane %v402, 4
      %v405 = vshll.u32 %v188, 16
      %v407 = vrot.slane %v405, 5
      %v408 = vsel %vm240, %v403, %v407
      %v410 = vshrl.u32 %v189, 16
      %v412 = vrot.slane %v410, 4
      %v413 = vshll.u32 %v189, 16
      %v415 = vrot.slane %v413, 5
      %v416 = vor.u32 %v412, %v415
      %v417 = vrot.slane %v416, 4
      %v419 = vshll.u32 %v190, 16
      %v421 = vrot.slane %v419, 5
      %v422 = vsel %vm240, %v417, %v421
      %v423 = vshrl.u32 %v190, 16
      %v425 = vrot.slane %v423, 4
      %v426 = vor.u32 %v425, %v421
      %v427 = vrot.slane %v426, 4
      %v429 = vshll.u32 %v191, 16
      %v431 = vrot.slane %v429, 5
      %v432 = vsel %vm240, %v427, %v431
      %v434 = vshrl.u32 %v192, 16
      %v436 = vrot.slane %v434, 4
      %v437 = vshll.u32 %v192, 16
      %v439 = vrot.slane %v437, 5
      %v440 = vor.u32 %v436, %v439
      %v441 = vrot.slane %v440, 4
      %v443 = vshll.u32 %v193, 16
      %v445 = vrot.slane %v443, 5
      %v446 = vsel %vm240, %v441, %v445
      %v447 = vshrl.u32 %v193, 16
      %v449 = vrot.slane %v447, 4
      %v450 = vor.u32 %v449, %v445
      %v451 = vrot.slane %v450, 4
      %v453 = vshll.u32 %v194, 16
      %v455 = vrot.slane %v453, 5
      %v456 = vsel %vm240, %v451, %v455
      %v458 = vshrl.u32 %v195, 16
      %v460 = vrot.slane %v458, 4
      %v461 = vshll.u32 %v195, 16
      %v463 = vrot.slane %v461, 5
      %v464 = vor.u32 %v460, %v463
      %v465 = vrot.slane %v464, 4
      %v467 = vshll.u32 %v196, 16
      %v469 = vrot.slane %v467, 5
      %v470 = vsel %vm240, %v465, %v469
      %v471 = vshrl.u32 %v196, 16
      %v473 = vrot.slane %v471, 4
      %v474 = vor.u32 %v473, %v469
      %v475 = vrot.slane %v474, 4
      %v477 = vshll.u32 %v197, 16
      %v479 = vrot.slane %v477, 5
      %v480 = vsel %vm240, %v475, %v479
      %v482 = vshrl.u32 %v198, 16
      %v484 = vrot.slane %v482, 4
      %v485 = vshll.u32 %v198, 16
      %v487 = vrot.slane %v485, 5
      %v488 = vor.u32 %v484, %v487
      %v489 = vrot.slane %v488, 4
      %v491 = vshll.u32 %v199, 16
      %v493 = vrot.slane %v491, 5
      %v494 = vsel %vm240, %v489, %v493
      %v495 = vshrl.u32 %v199, 16
      %v497 = vrot.slane %v495, 4
      %v498 = vor.u32 %v497, %v493
      %v499 = vrot.slane %v498, 4
      %v501 = vshll.u32 %v200, 16
      %v503 = vrot.slane %v501, 5
      %v504 = vsel %vm240, %v499, %v503
      %v506 = vshrl.u32 %v201, 16
      %v508 = vrot.slane %v506, 4
      %v509 = vshll.u32 %v201, 16
      %v511 = vrot.slane %v509, 5
      %v512 = vor.u32 %v508, %v511
      %v513 = vrot.slane %v512, 4
      %v515 = vshll.u32 %v202, 16
      %v517 = vrot.slane %v515, 5
      %v518 = vsel %vm240, %v513, %v517
      %v519 = vshrl.u32 %v202, 16
      %v521 = vrot.slane %v519, 4
      %v522 = vor.u32 %v521, %v517
      %v523 = vrot.slane %v522, 4
      %v525 = vshll.u32 %v203, 16
      %v527 = vrot.slane %v525, 5
      %v528 = vsel %vm240, %v523, %v527
      %v530 = vshrl.u32 %v204, 16
      %v532 = vrot.slane %v530, 4
      %v533 = vshll.u32 %v204, 16
      %v535 = vrot.slane %v533, 5
      %v536 = vor.u32 %v532, %v535
      %v537 = vrot.slane %v536, 4
      %v539 = vshll.u32 %v205, 16
      %v541 = vrot.slane %v539, 5
      %v542 = vsel %vm240, %v537, %v541
      %v543 = vshrl.u32 %v205, 16
      %v545 = vrot.slane %v543, 4
      %v546 = vor.u32 %v545, %v541
      %v547 = vrot.slane %v546, 4
      %v549 = vshll.u32 %v206, 16
      %v551 = vrot.slane %v549, 5
      %v552 = vsel %vm240, %v547, %v551
      %v554 = vshrl.u32 %v207, 16
      %v556 = vrot.slane %v554, 4
      %v557 = vshll.u32 %v207, 16
      %v559 = vrot.slane %v557, 5
      %v560 = vor.u32 %v556, %v559
      %v561 = vrot.slane %v560, 4
      %v563 = vshll.u32 %v208, 16
      %v565 = vrot.slane %v563, 5
      %v566 = vsel %vm240, %v561, %v565
      %v567 = vshrl.u32 %v208, 16
      %v569 = vrot.slane %v567, 4
      %v570 = vor.u32 %v569, %v565
      %v571 = vrot.slane %v570, 4
      %v573 = vshll.u32 %v209, 16
      %v575 = vrot.slane %v573, 5
      %v576 = vsel %vm240, %v571, %v575
      %v578 = vshrl.u32 %v210, 16
      %v580 = vrot.slane %v578, 4
      %v581 = vshll.u32 %v210, 16
      %v583 = vrot.slane %v581, 5
      %v584 = vor.u32 %v580, %v583
      %v585 = vrot.slane %v584, 4
      %v587 = vshll.u32 %v211, 16
      %v589 = vrot.slane %v587, 5
      %v590 = vsel %vm240, %v585, %v589
      %v591 = vshrl.u32 %v211, 16
      %v593 = vrot.slane %v591, 4
      %v594 = vor.u32 %v593, %v589
      %v595 = vrot.slane %v594, 4
      %v597 = vshll.u32 %v212, 16
      %v599 = vrot.slane %v597, 5
      %v600 = vsel %vm240, %v595, %v599
      %v602 = vshrl.u32 %v213, 16
      %v604 = vrot.slane %v602, 4
      %v605 = vshll.u32 %v213, 16
      %v607 = vrot.slane %v605, 5
      %v608 = vor.u32 %v604, %v607
      %v609 = vrot.slane %v608, 4
      %v611 = vshll.u32 %v214, 16
      %v613 = vrot.slane %v611, 5
      %v614 = vsel %vm240, %v609, %v613
      %v615 = vshrl.u32 %v214, 16
      %v617 = vrot.slane %v615, 4
      %v618 = vor.u32 %v617, %v613
      %v619 = vrot.slane %v618, 4
      %v621 = vshll.u32 %v215, 16
      %v623 = vrot.slane %v621, 5
      %v624 = vsel %vm240, %v619, %v623
      %s625 = scalar_lea.vmem %s1, 64
      %v626 = vld [vmem:[%s625] sm:$0xf]
      %v627 = vld [vmem:[%s625 + $0x4] sm:$0xf]
      %v628 = vld [vmem:[%s625 + $0x8] sm:$0xf]
      %v629 = vld [vmem:[%s625 + $0xc] sm:$0xf]
      %v630 = vld [vmem:[%s625 + $0x10] sm:$0xf]
      %v631 = vld [vmem:[%s625 + $0x14] sm:$0xf]
      %v632 = vld [vmem:[%s625 + $0x18] sm:$0xf]
      %v633 = vld [vmem:[%s625 + $0x1c] sm:$0xf]
      %v634 = vld [vmem:[%s625 + $0x20] sm:$0xf]
      %v635 = vld [vmem:[%s625 + $0x24] sm:$0xf]
      %v636 = vld [vmem:[%s625 + $0x28] sm:$0xf]
      %v637 = vld [vmem:[%s625 + $0x2c] sm:$0xf]
      %v638 = vld [vmem:[%s625 + $0x30] sm:$0xf]
      %v639 = vld [vmem:[%s625 + $0x34] sm:$0xf]
      %v640 = vld [vmem:[%s625 + $0x38] sm:$0xf]
      %v641 = vld [vmem:[%s625 + $0x3c] sm:$0xf]
      %v642 = vunpack.c.l.b16 %v254
      %v643 = vunpack.c.l.b16 %v264
      %v644 = vunpack.c.l.b16 %v278
      %v645 = vunpack.c.l.b16 %v288
      %v646 = vunpack.c.l.b16 %v302
      %v647 = vunpack.c.l.b16 %v312
      %v648 = vunpack.c.l.b16 %v326
      %v649 = vunpack.c.l.b16 %v336
      %v650 = vunpack.c.l.b16 %v350
      %v651 = vunpack.c.l.b16 %v360
      %v652 = vunpack.c.l.b16 %v374
      %v653 = vunpack.c.l.b16 %v384
      %v654 = vunpack.c.l.b16 %v398
      %v655 = vunpack.c.l.b16 %v408
      %v656 = vunpack.c.l.b16 %v422
      %v657 = vunpack.c.l.b16 %v432
      %v658 = vunpack.c.l.b16 %v446
      %v659 = vunpack.c.l.b16 %v456
      %v660 = vunpack.c.l.b16 %v470
      %v661 = vunpack.c.l.b16 %v480
      %v662 = vunpack.c.l.b16 %v494
      %v663 = vunpack.c.l.b16 %v504
      %v664 = vunpack.c.l.b16 %v518
      %v665 = vunpack.c.l.b16 %v528
      %v666 = vunpack.c.l.b16 %v542
      %v667 = vunpack.c.l.b16 %v552
      %v668 = vunpack.c.l.b16 %v566
      %v669 = vunpack.c.l.b16 %v576
      %v670 = vunpack.c.l.b16 %v590
      %v671 = vunpack.c.l.b16 %v600
      %v672 = vunpack.c.l.b16 %v614
      %v673 = vunpack.c.l.b16 %v624
      %v674 = vpack.c.b16 %v643, %v642
      %v675 = vpack.c.b16 %v645, %v644
      %v676 = vpack.c.b16 %v647, %v646
      %v677 = vpack.c.b16 %v649, %v648
      %v678 = vpack.c.b16 %v651, %v650
      %v679 = vpack.c.b16 %v653, %v652
      %v680 = vpack.c.b16 %v655, %v654
      %v681 = vpack.c.b16 %v657, %v656
      %v682 = vpack.c.b16 %v659, %v658
      %v683 = vpack.c.b16 %v661, %v660
      %v684 = vpack.c.b16 %v663, %v662
      %v685 = vpack.c.b16 %v665, %v664
      %v686 = vpack.c.b16 %v667, %v666
      %v687 = vpack.c.b16 %v669, %v668
      %v688 = vpack.c.b16 %v671, %v670
      %v689 = vpack.c.b16 %v673, %v672
      %v722 = vunpack.c.l.b16 %v626
      %v723 = vunpack.c.l.b16 %v627
      %v724 = vunpack.c.l.b16 %v628
      %v725 = vunpack.c.l.b16 %v629
      %v726 = vunpack.c.l.b16 %v630
      %v727 = vunpack.c.l.b16 %v631
      %v728 = vunpack.c.l.b16 %v632
      %v729 = vunpack.c.l.b16 %v633
      %v730 = vunpack.c.l.b16 %v634
      %v731 = vunpack.c.l.b16 %v635
      %v732 = vunpack.c.l.b16 %v636
      %v733 = vunpack.c.l.b16 %v637
      %v734 = vunpack.c.l.b16 %v638
      %v735 = vunpack.c.l.b16 %v639
      %v736 = vunpack.c.l.b16 %v640
      %v737 = vunpack.c.l.b16 %v641
      %v738 = vpack.c.b16 %v723, %v722
      %v739 = vpack.c.b16 %v725, %v724
      %v740 = vpack.c.b16 %v727, %v726
      %v741 = vpack.c.b16 %v729, %v728
      %v742 = vpack.c.b16 %v731, %v730
      %v743 = vpack.c.b16 %v733, %v732
      %v744 = vpack.c.b16 %v735, %v734
      %v745 = vpack.c.b16 %v737, %v736
      %754 = vmatprep.subr.bf16.mxu0 0
      %755 = vmatpush1.bf16.msra.mxu0 %v745
      %756 = vmatprep.subr.bf16.mxu0 0
      %757 = vmatpush1.bf16.msra.mxu0 %v744
      %758 = vmatprep.subr.bf16.mxu0 0
      %759 = vmatpush1.bf16.msra.mxu0 %v743
      %760 = vmatprep.subr.bf16.mxu0 0
      %761 = vmatpush1.bf16.msra.mxu0 %v742
      %762 = vmatprep.subr.bf16.mxu0 0
      %763 = vmatpush1.bf16.msra.mxu0 %v741
      %764 = vmatprep.subr.bf16.mxu0 0
      %765 = vmatpush1.bf16.msra.mxu0 %v740
      %766 = vmatprep.subr.bf16.mxu0 0
      %767 = vmatpush1.bf16.msra.mxu0 %v739
      %768 = vmatprep.subr.bf16.mxu0 0
      %769 = vmatpush1.bf16.msra.mxu0 %v738
      %770 = vmatprep.subr.bf16.mxu0 0
      %771 = vmatpush2.bf16.msra.mxu0 0
      %772 = vmatprep.subr.bf16.mxu0 0
      %773 = vmatpush2.bf16.msra.mxu0 0
      %774 = vmatprep.subr.bf16.mxu0 0
      %775 = vmatpush2.bf16.msra.mxu0 0
      %776 = vmatprep.subr.bf16.mxu0 0
      %777 = vmatpush2.bf16.msra.mxu0 0
      %778 = vmatprep.subr.bf16.mxu0 0
      %779 = vmatpush2.bf16.msra.mxu0 0
      %780 = vmatprep.subr.bf16.mxu0 0
      %781 = vmatpush2.bf16.msra.mxu0 0
      %782 = vmatprep.subr.bf16.mxu0 0
      %783 = vmatpush2.bf16.msra.mxu0 0
      %784 = vmatprep.subr.bf16.mxu0 0
      %785 = vmatpush2.bf16.msra.mxu0 0
      %786 = vmatprep.mubr.bf16.mxu0 0
      %787 = vmatmul.mubr.bf16.gmra.mxu0 %v674
      %v788 = vpop.f32.mrf.mxu0
      %v789 = vadd.f32 0.0, %v788
      %v790 = vpop.f32.mrf.mxu0
      %v791 = vpop.f32.mrf.mxu0
      %v792 = vadd.f32 0.0, %v791
      %v793 = vpop.f32.mrf.mxu0
      %794 = vmatprep.mubr.bf16.mxu0 0
      %795 = vmatmul.mubr.bf16.gmra.mxu0 %v675
      %v796 = vpop.f32.mrf.mxu0
      %v797 = vadd.f32 0.0, %v796
      %v798 = vpop.f32.mrf.mxu0
      %v799 = vpop.f32.mrf.mxu0
      %v800 = vadd.f32 0.0, %v799
      %v801 = vpop.f32.mrf.mxu0
      %802 = vmatprep.mubr.bf16.mxu0 0
      %803 = vmatmul.mubr.bf16.gmra.mxu0 %v676
      %v804 = vpop.f32.mrf.mxu0
      %v805 = vadd.f32 0.0, %v804
      %v806 = vpop.f32.mrf.mxu0
      %v807 = vpop.f32.mrf.mxu0
      %v808 = vadd.f32 0.0, %v807
      %v809 = vpop.f32.mrf.mxu0
      %810 = vmatprep.mubr.bf16.mxu0 0
      %811 = vmatmul.mubr.bf16.gmra.mxu0 %v677
      %v812 = vpop.f32.mrf.mxu0
      %v813 = vadd.f32 0.0, %v812
      %v814 = vpop.f32.mrf.mxu0
      %v815 = vpop.f32.mrf.mxu0
      %v816 = vadd.f32 0.0, %v815
      %v817 = vpop.f32.mrf.mxu0
      %818 = vmatprep.mubr.bf16.mxu0 0
      %819 = vmatmul.mubr.bf16.gmra.mxu0 %v678
      %v820 = vpop.f32.mrf.mxu0
      %v821 = vadd.f32 0.0, %v820
      %v822 = vpop.f32.mrf.mxu0
      %v823 = vpop.f32.mrf.mxu0
      %v824 = vadd.f32 0.0, %v823
      %v825 = vpop.f32.mrf.mxu0
      %826 = vmatprep.mubr.bf16.mxu0 0
      %827 = vmatmul.mubr.bf16.gmra.mxu0 %v679
      %v828 = vpop.f32.mrf.mxu0
      %v829 = vadd.f32 0.0, %v828
      %v830 = vpop.f32.mrf.mxu0
      %v831 = vpop.f32.mrf.mxu0
      %v832 = vadd.f32 0.0, %v831
      %v833 = vpop.f32.mrf.mxu0
      %834 = vmatprep.mubr.bf16.mxu0 0
      %835 = vmatmul.mubr.bf16.gmra.mxu0 %v680
      %v836 = vpop.f32.mrf.mxu0
      %v837 = vadd.f32 0.0, %v836
      %v838 = vpop.f32.mrf.mxu0
      %v839 = vpop.f32.mrf.mxu0
      %v840 = vadd.f32 0.0, %v839
      %v841 = vpop.f32.mrf.mxu0
      %842 = vmatprep.mubr.bf16.mxu0 0
      %843 = vmatmul.mubr.bf16.gmra.mxu0 %v681
      %v844 = vpop.f32.mrf.mxu0
      %v845 = vadd.f32 0.0, %v844
      %v846 = vpop.f32.mrf.mxu0
      %v847 = vpop.f32.mrf.mxu0
      %v848 = vadd.f32 0.0, %v847
      %v849 = vpop.f32.mrf.mxu0
      %850 = vmatprep.mubr.bf16.mxu0 0
      %851 = vmatmul.mubr.bf16.gmra.mxu0 %v682
      %v852 = vpop.f32.mrf.mxu0
      %v853 = vadd.f32 0.0, %v852
      %v854 = vpop.f32.mrf.mxu0
      %v855 = vpop.f32.mrf.mxu0
      %v856 = vadd.f32 0.0, %v855
      %v857 = vpop.f32.mrf.mxu0
      %858 = vmatprep.mubr.bf16.mxu0 0
      %859 = vmatmul.mubr.bf16.gmra.mxu0 %v683
      %v860 = vpop.f32.mrf.mxu0
      %v861 = vadd.f32 0.0, %v860
      %v862 = vpop.f32.mrf.mxu0
      %v863 = vpop.f32.mrf.mxu0
      %v864 = vadd.f32 0.0, %v863
      %v865 = vpop.f32.mrf.mxu0
      %866 = vmatprep.mubr.bf16.mxu0 0
      %867 = vmatmul.mubr.bf16.gmra.mxu0 %v684
      %v868 = vpop.f32.mrf.mxu0
      %v869 = vadd.f32 0.0, %v868
      %v870 = vpop.f32.mrf.mxu0
      %v871 = vpop.f32.mrf.mxu0
      %v872 = vadd.f32 0.0, %v871
      %v873 = vpop.f32.mrf.mxu0
      %874 = vmatprep.mubr.bf16.mxu0 0
      %875 = vmatmul.mubr.bf16.gmra.mxu0 %v685
      %v876 = vpop.f32.mrf.mxu0
      %v877 = vadd.f32 0.0, %v876
      %v878 = vpop.f32.mrf.mxu0
      %v879 = vpop.f32.mrf.mxu0
      %v880 = vadd.f32 0.0, %v879
      %v881 = vpop.f32.mrf.mxu0
      %882 = vmatprep.mubr.bf16.mxu0 0
      %883 = vmatmul.mubr.bf16.gmra.mxu0 %v686
      %v884 = vpop.f32.mrf.mxu0
      %v885 = vadd.f32 0.0, %v884
      %v886 = vpop.f32.mrf.mxu0
      %v887 = vpop.f32.mrf.mxu0
      %v888 = vadd.f32 0.0, %v887
      %v889 = vpop.f32.mrf.mxu0
      %890 = vmatprep.mubr.bf16.mxu0 0
      %891 = vmatmul.mubr.bf16.gmra.mxu0 %v687
      %v892 = vpop.f32.mrf.mxu0
      %v893 = vadd.f32 0.0, %v892
      %v894 = vpop.f32.mrf.mxu0
      %v895 = vpop.f32.mrf.mxu0
      %v896 = vadd.f32 0.0, %v895
      %v897 = vpop.f32.mrf.mxu0
      %898 = vmatprep.mubr.bf16.mxu0 0
      %899 = vmatmul.mubr.bf16.gmra.mxu0 %v688
      %v900 = vpop.f32.mrf.mxu0
      %v901 = vadd.f32 0.0, %v900
      %v902 = vpop.f32.mrf.mxu0
      %v903 = vpop.f32.mrf.mxu0
      %v904 = vadd.f32 0.0, %v903
      %v905 = vpop.f32.mrf.mxu0
      %906 = vmatprep.mubr.bf16.mxu0 0
      %907 = vmatmul.mubr.bf16.gmra.mxu0 %v689
      %v908 = vpop.f32.mrf.mxu0
      %v909 = vadd.f32 0.0, %v908
      %v910 = vpop.f32.mrf.mxu0
      %v911 = vpop.f32.mrf.mxu0
      %v912 = vadd.f32 0.0, %v911
      %v913 = vpop.f32.mrf.mxu0
      %914 = vdwg.mxu0
      %v947 = vunpack.c.l.b16 %v168
      %v948 = vunpack.c.l.b16 %v169
      %v949 = vunpack.c.l.b16 %v171
      %v950 = vunpack.c.l.b16 %v172
      %v951 = vunpack.c.l.b16 %v174
      %v952 = vunpack.c.l.b16 %v175
      %v953 = vunpack.c.l.b16 %v177
      %v954 = vunpack.c.l.b16 %v178
      %v955 = vunpack.c.l.b16 %v180
      %v956 = vunpack.c.l.b16 %v181
      %v957 = vunpack.c.l.b16 %v183
      %v958 = vunpack.c.l.b16 %v184
      %v959 = vunpack.c.l.b16 %v186
      %v960 = vunpack.c.l.b16 %v187
      %v961 = vunpack.c.l.b16 %v189
      %v962 = vunpack.c.l.b16 %v190
      %v963 = vunpack.c.l.b16 %v192
      %v964 = vunpack.c.l.b16 %v193
      %v965 = vunpack.c.l.b16 %v195
      %v966 = vunpack.c.l.b16 %v196
      %v967 = vunpack.c.l.b16 %v198
      %v968 = vunpack.c.l.b16 %v199
      %v969 = vunpack.c.l.b16 %v201
      %v970 = vunpack.c.l.b16 %v202
      %v971 = vunpack.c.l.b16 %v204
      %v972 = vunpack.c.l.b16 %v205
      %v973 = vunpack.c.l.b16 %v207
      %v974 = vunpack.c.l.b16 %v208
      %v975 = vunpack.c.l.b16 %v210
      %v976 = vunpack.c.l.b16 %v211
      %v977 = vunpack.c.l.b16 %v213
      %v978 = vunpack.c.l.b16 %v214
      %v979 = vpack.c.b16 %v948, %v947
      %v980 = vpack.c.b16 %v950, %v949
      %v981 = vpack.c.b16 %v952, %v951
      %v982 = vpack.c.b16 %v954, %v953
      %v983 = vpack.c.b16 %v956, %v955
      %v984 = vpack.c.b16 %v958, %v957
      %v985 = vpack.c.b16 %v960, %v959
      %v986 = vpack.c.b16 %v962, %v961
      %v987 = vpack.c.b16 %v964, %v963
      %v988 = vpack.c.b16 %v966, %v965
      %v989 = vpack.c.b16 %v968, %v967
      %v990 = vpack.c.b16 %v970, %v969
      %v991 = vpack.c.b16 %v972, %v971
      %v992 = vpack.c.b16 %v974, %v973
      %v993 = vpack.c.b16 %v976, %v975
      %v994 = vpack.c.b16 %v978, %v977
      %v1027 = vunpack.c.l.b16 %v222
      %v1028 = vunpack.c.l.b16 %v223
      %v1029 = vunpack.c.l.b16 %v224
      %v1030 = vunpack.c.l.b16 %v225
      %v1031 = vunpack.c.l.b16 %v226
      %v1032 = vunpack.c.l.b16 %v227
      %v1033 = vunpack.c.l.b16 %v228
      %v1034 = vunpack.c.l.b16 %v229
      %v1035 = vunpack.c.l.b16 %v230
      %v1036 = vunpack.c.l.b16 %v231
      %v1037 = vunpack.c.l.b16 %v232
      %v1038 = vunpack.c.l.b16 %v233
      %v1039 = vunpack.c.l.b16 %v234
      %v1040 = vunpack.c.l.b16 %v235
      %v1041 = vunpack.c.l.b16 %v236
      %v1042 = vunpack.c.l.b16 %v237
      %v1043 = vpack.c.b16 %v1028, %v1027
      %v1044 = vpack.c.b16 %v1030, %v1029
      %v1045 = vpack.c.b16 %v1032, %v1031
      %v1046 = vpack.c.b16 %v1034, %v1033
      %v1047 = vpack.c.b16 %v1036, %v1035
      %v1048 = vpack.c.b16 %v1038, %v1037
      %v1049 = vpack.c.b16 %v1040, %v1039
      %v1050 = vpack.c.b16 %v1042, %v1041
      %1059 = vmatprep.subr.bf16.mxu0 0
      %1060 = vmatpush1.bf16.msra.mxu0 %v1050
      %1061 = vmatprep.subr.bf16.mxu0 0
      %1062 = vmatpush1.bf16.msra.mxu0 %v1049
      %1063 = vmatprep.subr.bf16.mxu0 0
      %1064 = vmatpush1.bf16.msra.mxu0 %v1048
      %1065 = vmatprep.subr.bf16.mxu0 0
      %1066 = vmatpush1.bf16.msra.mxu0 %v1047
      %1067 = vmatprep.subr.bf16.mxu0 0
      %1068 = vmatpush1.bf16.msra.mxu0 %v1046
      %1069 = vmatprep.subr.bf16.mxu0 0
      %1070 = vmatpush1.bf16.msra.mxu0 %v1045
      %1071 = vmatprep.subr.bf16.mxu0 0
      %1072 = vmatpush1.bf16.msra.mxu0 %v1044
      %1073 = vmatprep.subr.bf16.mxu0 0
      %1074 = vmatpush1.bf16.msra.mxu0 %v1043
      %1075 = vmatprep.subr.bf16.mxu0 0
      %1076 = vmatpush2.bf16.msra.mxu0 0
      %1077 = vmatprep.subr.bf16.mxu0 0
      %1078 = vmatpush2.bf16.msra.mxu0 0
      %1079 = vmatprep.subr.bf16.mxu0 0
      %1080 = vmatpush2.bf16.msra.mxu0 0
      %1081 = vmatprep.subr.bf16.mxu0 0
      %1082 = vmatpush2.bf16.msra.mxu0 0
      %1083 = vmatprep.subr.bf16.mxu0 0
      %1084 = vmatpush2.bf16.msra.mxu0 0
      %1085 = vmatprep.subr.bf16.mxu0 0
      %1086 = vmatpush2.bf16.msra.mxu0 0
      %1087 = vmatprep.subr.bf16.mxu0 0
      %1088 = vmatpush2.bf16.msra.mxu0 0
      %1089 = vmatprep.subr.bf16.mxu0 0
      %1090 = vmatpush2.bf16.msra.mxu0 0
      %1091 = vmatprep.mubr.bf16.mxu0 0
      %1092 = vmatmul.mubr.bf16.gmra.mxu0 %v979
      %v1093 = vpop.f32.mrf.mxu0
      %v1094 = vadd.f32 %v789, %v1093
      %v1095 = vpop.f32.mrf.mxu0
      %v1096 = vpop.f32.mrf.mxu0
      %v1097 = vadd.f32 %v792, %v1096
      %v1098 = vpop.f32.mrf.mxu0
      %1099 = vmatprep.mubr.bf16.mxu0 0
      %1100 = vmatmul.mubr.bf16.gmra.mxu0 %v980
      %v1101 = vpop.f32.mrf.mxu0
      %v1102 = vadd.f32 %v797, %v1101
      %v1103 = vpop.f32.mrf.mxu0
      %v1104 = vpop.f32.mrf.mxu0
      %v1105 = vadd.f32 %v800, %v1104
      %v1106 = vpop.f32.mrf.mxu0
      %1107 = vmatprep.mubr.bf16.mxu0 0
      %1108 = vmatmul.mubr.bf16.gmra.mxu0 %v981
      %v1109 = vpop.f32.mrf.mxu0
      %v1110 = vadd.f32 %v805, %v1109
      %v1111 = vpop.f32.mrf.mxu0
      %v1112 = vpop.f32.mrf.mxu0
      %v1113 = vadd.f32 %v808, %v1112
      %v1114 = vpop.f32.mrf.mxu0
      %1115 = vmatprep.mubr.bf16.mxu0 0
      %1116 = vmatmul.mubr.bf16.gmra.mxu0 %v982
      %v1117 = vpop.f32.mrf.mxu0
      %v1118 = vadd.f32 %v813, %v1117
      %v1119 = vpop.f32.mrf.mxu0
      %v1120 = vpop.f32.mrf.mxu0
      %v1121 = vadd.f32 %v816, %v1120
      %v1122 = vpop.f32.mrf.mxu0
      %1123 = vmatprep.mubr.bf16.mxu0 0
      %1124 = vmatmul.mubr.bf16.gmra.mxu0 %v983
      %v1125 = vpop.f32.mrf.mxu0
      %v1126 = vadd.f32 %v821, %v1125
      %v1127 = vpop.f32.mrf.mxu0
      %v1128 = vpop.f32.mrf.mxu0
      %v1129 = vadd.f32 %v824, %v1128
      %v1130 = vpop.f32.mrf.mxu0
      %1131 = vmatprep.mubr.bf16.mxu0 0
      %1132 = vmatmul.mubr.bf16.gmra.mxu0 %v984
      %v1133 = vpop.f32.mrf.mxu0
      %v1134 = vadd.f32 %v829, %v1133
      %v1135 = vpop.f32.mrf.mxu0
      %v1136 = vpop.f32.mrf.mxu0
      %v1137 = vadd.f32 %v832, %v1136
      %v1138 = vpop.f32.mrf.mxu0
      %1139 = vmatprep.mubr.bf16.mxu0 0
      %1140 = vmatmul.mubr.bf16.gmra.mxu0 %v985
      %v1141 = vpop.f32.mrf.mxu0
      %v1142 = vadd.f32 %v837, %v1141
      %v1143 = vpop.f32.mrf.mxu0
      %v1144 = vpop.f32.mrf.mxu0
      %v1145 = vadd.f32 %v840, %v1144
      %v1146 = vpop.f32.mrf.mxu0
      %1147 = vmatprep.mubr.bf16.mxu0 0
      %1148 = vmatmul.mubr.bf16.gmra.mxu0 %v986
      %v1149 = vpop.f32.mrf.mxu0
      %v1150 = vadd.f32 %v845, %v1149
      %v1151 = vpop.f32.mrf.mxu0
      %v1152 = vpop.f32.mrf.mxu0
      %v1153 = vadd.f32 %v848, %v1152
      %v1154 = vpop.f32.mrf.mxu0
      %1155 = vmatprep.mubr.bf16.mxu0 0
      %1156 = vmatmul.mubr.bf16.gmra.mxu0 %v987
      %v1157 = vpop.f32.mrf.mxu0
      %v1158 = vadd.f32 %v853, %v1157
      %v1159 = vpop.f32.mrf.mxu0
      %v1160 = vpop.f32.mrf.mxu0
      %v1161 = vadd.f32 %v856, %v1160
      %v1162 = vpop.f32.mrf.mxu0
      %1163 = vmatprep.mubr.bf16.mxu0 0
      %1164 = vmatmul.mubr.bf16.gmra.mxu0 %v988
      %v1165 = vpop.f32.mrf.mxu0
      %v1166 = vadd.f32 %v861, %v1165
      %v1167 = vpop.f32.mrf.mxu0
      %v1168 = vpop.f32.mrf.mxu0
      %v1169 = vadd.f32 %v864, %v1168
      %v1170 = vpop.f32.mrf.mxu0
      %1171 = vmatprep.mubr.bf16.mxu0 0
      %1172 = vmatmul.mubr.bf16.gmra.mxu0 %v989
      %v1173 = vpop.f32.mrf.mxu0
      %v1174 = vadd.f32 %v869, %v1173
      %v1175 = vpop.f32.mrf.mxu0
      %v1176 = vpop.f32.mrf.mxu0
      %v1177 = vadd.f32 %v872, %v1176
      %v1178 = vpop.f32.mrf.mxu0
      %1179 = vmatprep.mubr.bf16.mxu0 0
      %1180 = vmatmul.mubr.bf16.gmra.mxu0 %v990
      %v1181 = vpop.f32.mrf.mxu0
      %v1182 = vadd.f32 %v877, %v1181
      %v1183 = vpop.f32.mrf.mxu0
      %v1184 = vpop.f32.mrf.mxu0
      %v1185 = vadd.f32 %v880, %v1184
      %v1186 = vpop.f32.mrf.mxu0
      %1187 = vmatprep.mubr.bf16.mxu0 0
      %1188 = vmatmul.mubr.bf16.gmra.mxu0 %v991
      %v1189 = vpop.f32.mrf.mxu0
      %v1190 = vadd.f32 %v885, %v1189
      %v1191 = vpop.f32.mrf.mxu0
      %v1192 = vpop.f32.mrf.mxu0
      %v1193 = vadd.f32 %v888, %v1192
      %v1194 = vpop.f32.mrf.mxu0
      %1195 = vmatprep.mubr.bf16.mxu0 0
      %1196 = vmatmul.mubr.bf16.gmra.mxu0 %v992
      %v1197 = vpop.f32.mrf.mxu0
      %v1198 = vadd.f32 %v893, %v1197
      %v1199 = vpop.f32.mrf.mxu0
      %v1200 = vpop.f32.mrf.mxu0
      %v1201 = vadd.f32 %v896, %v1200
      %v1202 = vpop.f32.mrf.mxu0
      %1203 = vmatprep.mubr.bf16.mxu0 0
      %1204 = vmatmul.mubr.bf16.gmra.mxu0 %v993
      %v1205 = vpop.f32.mrf.mxu0
      %v1206 = vadd.f32 %v901, %v1205
      %v1207 = vpop.f32.mrf.mxu0
      %v1208 = vpop.f32.mrf.mxu0
      %v1209 = vadd.f32 %v904, %v1208
      %v1210 = vpop.f32.mrf.mxu0
      %1211 = vmatprep.mubr.bf16.mxu0 0
      %1212 = vmatmul.mubr.bf16.gmra.mxu0 %v994
      %v1213 = vpop.f32.mrf.mxu0
      %v1214 = vadd.f32 %v909, %v1213
      %v1215 = vpop.f32.mrf.mxu0
      %v1216 = vpop.f32.mrf.mxu0
      %v1217 = vadd.f32 %v912, %v1216
      %v1218 = vpop.f32.mrf.mxu0
      %1219 = vdwg.mxu0
      %vm1236 = vcmask 1042432
      %vm1237 = vcmask 1046532
      %vm1238 = vmor %vm1236, %vm1237
      %v1239 = vrot.slane %v168, 5
      %v1240 = vrot.slane %v1239, 4
      %v1241 = vrot.slane %v169, 5
      %v1242 = vsel %vm1238, %v1240, %v1241
      %v1243 = vrot.slane %v1241, 4
      %v1244 = vrot.slane %v170, 5
      %v1245 = vsel %vm1238, %v1243, %v1244
      %v1246 = vrot.slane %v171, 5
      %v1247 = vrot.slane %v1246, 4
      %v1248 = vrot.slane %v172, 5
      %v1249 = vsel %vm1238, %v1247, %v1248
      %v1250 = vrot.slane %v1248, 4
      %v1251 = vrot.slane %v173, 5
      %v1252 = vsel %vm1238, %v1250, %v1251
      %v1253 = vrot.slane %v174, 5
      %v1254 = vrot.slane %v1253, 4
      %v1255 = vrot.slane %v175, 5
      %v1256 = vsel %vm1238, %v1254, %v1255
      %v1257 = vrot.slane %v1255, 4
      %v1258 = vrot.slane %v176, 5
      %v1259 = vsel %vm1238, %v1257, %v1258
      %v1260 = vrot.slane %v177, 5
      %v1261 = vrot.slane %v1260, 4
      %v1262 = vrot.slane %v178, 5
      %v1263 = vsel %vm1238, %v1261, %v1262
      %v1264 = vrot.slane %v1262, 4
      %v1265 = vrot.slane %v179, 5
      %v1266 = vsel %vm1238, %v1264, %v1265
      %v1267 = vrot.slane %v180, 5
      %v1268 = vrot.slane %v1267, 4
      %v1269 = vrot.slane %v181, 5
      %v1270 = vsel %vm1238, %v1268, %v1269
      %v1271 = vrot.slane %v1269, 4
      %v1272 = vrot.slane %v182, 5
      %v1273 = vsel %vm1238, %v1271, %v1272
      %v1274 = vrot.slane %v183, 5
      %v1275 = vrot.slane %v1274, 4
      %v1276 = vrot.slane %v184, 5
      %v1277 = vsel %vm1238, %v1275, %v1276
      %v1278 = vrot.slane %v1276, 4
      %v1279 = vrot.slane %v185, 5
      %v1280 = vsel %vm1238, %v1278, %v1279
      %v1281 = vrot.slane %v186, 5
      %v1282 = vrot.slane %v1281, 4
      %v1283 = vrot.slane %v187, 5
      %v1284 = vsel %vm1238, %v1282, %v1283
      %v1285 = vrot.slane %v1283, 4
      %v1286 = vrot.slane %v188, 5
      %v1287 = vsel %vm1238, %v1285, %v1286
      %v1288 = vrot.slane %v189, 5
      %v1289 = vrot.slane %v1288, 4
      %v1290 = vrot.slane %v190, 5
      %v1291 = vsel %vm1238, %v1289, %v1290
      %v1292 = vrot.slane %v1290, 4
      %v1293 = vrot.slane %v191, 5
      %v1294 = vsel %vm1238, %v1292, %v1293
      %v1295 = vrot.slane %v192, 5
      %v1296 = vrot.slane %v1295, 4
      %v1297 = vrot.slane %v193, 5
      %v1298 = vsel %vm1238, %v1296, %v1297
      %v1299 = vrot.slane %v1297, 4
      %v1300 = vrot.slane %v194, 5
      %v1301 = vsel %vm1238, %v1299, %v1300
      %v1302 = vrot.slane %v195, 5
      %v1303 = vrot.slane %v1302, 4
      %v1304 = vrot.slane %v196, 5
      %v1305 = vsel %vm1238, %v1303, %v1304
      %v1306 = vrot.slane %v1304, 4
      %v1307 = vrot.slane %v197, 5
      %v1308 = vsel %vm1238, %v1306, %v1307
      %v1309 = vrot.slane %v198, 5
      %v1310 = vrot.slane %v1309, 4
      %v1311 = vrot.slane %v199, 5
      %v1312 = vsel %vm1238, %v1310, %v1311
      %v1313 = vrot.slane %v1311, 4
      %v1314 = vrot.slane %v200, 5
      %v1315 = vsel %vm1238, %v1313, %v1314
      %v1316 = vrot.slane %v201, 5
      %v1317 = vrot.slane %v1316, 4
      %v1318 = vrot.slane %v202, 5
      %v1319 = vsel %vm1238, %v1317, %v1318
      %v1320 = vrot.slane %v1318, 4
      %v1321 = vrot.slane %v203, 5
      %v1322 = vsel %vm1238, %v1320, %v1321
      %v1323 = vrot.slane %v204, 5
      %v1324 = vrot.slane %v1323, 4
      %v1325 = vrot.slane %v205, 5
      %v1326 = vsel %vm1238, %v1324, %v1325
      %v1327 = vrot.slane %v1325, 4
      %v1328 = vrot.slane %v206, 5
      %v1329 = vsel %vm1238, %v1327, %v1328
      %v1330 = vrot.slane %v207, 5
      %v1331 = vrot.slane %v1330, 4
      %v1332 = vrot.slane %v208, 5
      %v1333 = vsel %vm1238, %v1331, %v1332
      %v1334 = vrot.slane %v1332, 4
      %v1335 = vrot.slane %v209, 5
      %v1336 = vsel %vm1238, %v1334, %v1335
      %v1337 = vrot.slane %v210, 5
      %v1338 = vrot.slane %v1337, 4
      %v1339 = vrot.slane %v211, 5
      %v1340 = vsel %vm1238, %v1338, %v1339
      %v1341 = vrot.slane %v1339, 4
      %v1342 = vrot.slane %v212, 5
      %v1343 = vsel %vm1238, %v1341, %v1342
      %v1344 = vrot.slane %v213, 5
      %v1345 = vrot.slane %v1344, 4
      %v1346 = vrot.slane %v214, 5
      %v1347 = vsel %vm1238, %v1345, %v1346
      %v1348 = vrot.slane %v1346, 4
      %v1349 = vrot.slane %v215, 5
      %v1350 = vsel %vm1238, %v1348, %v1349
      %s1351 = scalar_lea.vmem %s1, 128
      %v1352 = vld [vmem:[%s1351] sm:$0xf]
      %v1353 = vld [vmem:[%s1351 + $0x4] sm:$0xf]
      %v1354 = vld [vmem:[%s1351 + $0x8] sm:$0xf]
      %v1355 = vld [vmem:[%s1351 + $0xc] sm:$0xf]
      %v1356 = vld [vmem:[%s1351 + $0x10] sm:$0xf]
      %v1357 = vld [vmem:[%s1351 + $0x14] sm:$0xf]
      %v1358 = vld [vmem:[%s1351 + $0x18] sm:$0xf]
      %v1359 = vld [vmem:[%s1351 + $0x1c] sm:$0xf]
      %v1360 = vld [vmem:[%s1351 + $0x20] sm:$0xf]
      %v1361 = vld [vmem:[%s1351 + $0x24] sm:$0xf]
      %v1362 = vld [vmem:[%s1351 + $0x28] sm:$0xf]
      %v1363 = vld [vmem:[%s1351 + $0x2c] sm:$0xf]
      %v1364 = vld [vmem:[%s1351 + $0x30] sm:$0xf]
      %v1365 = vld [vmem:[%s1351 + $0x34] sm:$0xf]
      %v1366 = vld [vmem:[%s1351 + $0x38] sm:$0xf]
      %v1367 = vld [vmem:[%s1351 + $0x3c] sm:$0xf]
      %v1368 = vunpack.c.l.b16 %v1242
      %v1369 = vunpack.c.l.b16 %v1245
      %v1370 = vunpack.c.l.b16 %v1249
      %v1371 = vunpack.c.l.b16 %v1252
      %v1372 = vunpack.c.l.b16 %v1256
      %v1373 = vunpack.c.l.b16 %v1259
      %v1374 = vunpack.c.l.b16 %v1263
      %v1375 = vunpack.c.l.b16 %v1266
      %v1376 = vunpack.c.l.b16 %v1270
      %v1377 = vunpack.c.l.b16 %v1273
      %v1378 = vunpack.c.l.b16 %v1277
      %v1379 = vunpack.c.l.b16 %v1280
      %v1380 = vunpack.c.l.b16 %v1284
      %v1381 = vunpack.c.l.b16 %v1287
      %v1382 = vunpack.c.l.b16 %v1291
      %v1383 = vunpack.c.l.b16 %v1294
      %v1384 = vunpack.c.l.b16 %v1298
      %v1385 = vunpack.c.l.b16 %v1301
      %v1386 = vunpack.c.l.b16 %v1305
      %v1387 = vunpack.c.l.b16 %v1308
      %v1388 = vunpack.c.l.b16 %v1312
      %v1389 = vunpack.c.l.b16 %v1315
      %v1390 = vunpack.c.l.b16 %v1319
      %v1391 = vunpack.c.l.b16 %v1322
      %v1392 = vunpack.c.l.b16 %v1326
      %v1393 = vunpack.c.l.b16 %v1329
      %v1394 = vunpack.c.l.b16 %v1333
      %v1395 = vunpack.c.l.b16 %v1336
      %v1396 = vunpack.c.l.b16 %v1340
      %v1397 = vunpack.c.l.b16 %v1343
      %v1398 = vunpack.c.l.b16 %v1347
      %v1399 = vunpack.c.l.b16 %v1350
      %v1400 = vpack.c.b16 %v1369, %v1368
      %v1401 = vpack.c.b16 %v1371, %v1370
      %v1402 = vpack.c.b16 %v1373, %v1372
      %v1403 = vpack.c.b16 %v1375, %v1374
      %v1404 = vpack.c.b16 %v1377, %v1376
      %v1405 = vpack.c.b16 %v1379, %v1378
      %v1406 = vpack.c.b16 %v1381, %v1380
      %v1407 = vpack.c.b16 %v1383, %v1382
      %v1408 = vpack.c.b16 %v1385, %v1384
      %v1409 = vpack.c.b16 %v1387, %v1386
      %v1410 = vpack.c.b16 %v1389, %v1388
      %v1411 = vpack.c.b16 %v1391, %v1390
      %v1412 = vpack.c.b16 %v1393, %v1392
      %v1413 = vpack.c.b16 %v1395, %v1394
      %v1414 = vpack.c.b16 %v1397, %v1396
      %v1415 = vpack.c.b16 %v1399, %v1398
      %v1448 = vunpack.c.l.b16 %v1352
      %v1449 = vunpack.c.l.b16 %v1353
      %v1450 = vunpack.c.l.b16 %v1354
      %v1451 = vunpack.c.l.b16 %v1355
      %v1452 = vunpack.c.l.b16 %v1356
      %v1453 = vunpack.c.l.b16 %v1357
      %v1454 = vunpack.c.l.b16 %v1358
      %v1455 = vunpack.c.l.b16 %v1359
      %v1456 = vunpack.c.l.b16 %v1360
      %v1457 = vunpack.c.l.b16 %v1361
      %v1458 = vunpack.c.l.b16 %v1362
      %v1459 = vunpack.c.l.b16 %v1363
      %v1460 = vunpack.c.l.b16 %v1364
      %v1461 = vunpack.c.l.b16 %v1365
      %v1462 = vunpack.c.l.b16 %v1366
      %v1463 = vunpack.c.l.b16 %v1367
      %v1464 = vpack.c.b16 %v1449, %v1448
      %v1465 = vpack.c.b16 %v1451, %v1450
      %v1466 = vpack.c.b16 %v1453, %v1452
      %v1467 = vpack.c.b16 %v1455, %v1454
      %v1468 = vpack.c.b16 %v1457, %v1456
      %v1469 = vpack.c.b16 %v1459, %v1458
      %v1470 = vpack.c.b16 %v1461, %v1460
      %v1471 = vpack.c.b16 %v1463, %v1462
      %1480 = vmatprep.subr.bf16.mxu0 0
      %1481 = vmatpush1.bf16.msra.mxu0 %v1471
      %1482 = vmatprep.subr.bf16.mxu0 0
      %1483 = vmatpush1.bf16.msra.mxu0 %v1470
      %1484 = vmatprep.subr.bf16.mxu0 0
      %1485 = vmatpush1.bf16.msra.mxu0 %v1469
      %1486 = vmatprep.subr.bf16.mxu0 0
      %1487 = vmatpush1.bf16.msra.mxu0 %v1468
      %1488 = vmatprep.subr.bf16.mxu0 0
      %1489 = vmatpush1.bf16.msra.mxu0 %v1467
      %1490 = vmatprep.subr.bf16.mxu0 0
      %1491 = vmatpush1.bf16.msra.mxu0 %v1466
      %1492 = vmatprep.subr.bf16.mxu0 0
      %1493 = vmatpush1.bf16.msra.mxu0 %v1465
      %1494 = vmatprep.subr.bf16.mxu0 0
      %1495 = vmatpush1.bf16.msra.mxu0 %v1464
      %1496 = vmatprep.subr.bf16.mxu0 0
      %1497 = vmatpush2.bf16.msra.mxu0 0
      %1498 = vmatprep.subr.bf16.mxu0 0
      %1499 = vmatpush2.bf16.msra.mxu0 0
      %1500 = vmatprep.subr.bf16.mxu0 0
      %1501 = vmatpush2.bf16.msra.mxu0 0
      %1502 = vmatprep.subr.bf16.mxu0 0
      %1503 = vmatpush2.bf16.msra.mxu0 0
      %1504 = vmatprep.subr.bf16.mxu0 0
      %1505 = vmatpush2.bf16.msra.mxu0 0
      %1506 = vmatprep.subr.bf16.mxu0 0
      %1507 = vmatpush2.bf16.msra.mxu0 0
      %1508 = vmatprep.subr.bf16.mxu0 0
      %1509 = vmatpush2.bf16.msra.mxu0 0
      %1510 = vmatprep.subr.bf16.mxu0 0
      %1511 = vmatpush2.bf16.msra.mxu0 0
      %1512 = vmatprep.mubr.bf16.mxu0 0
      %1513 = vmatmul.mubr.bf16.gmra.mxu0 %v1400
      %v1514 = vpop.f32.mrf.mxu0
      %v1515 = vadd.f32 0.0, %v1514
      %v1516 = vpop.f32.mrf.mxu0
      %v1517 = vpop.f32.mrf.mxu0
      %v1518 = vadd.f32 0.0, %v1517
      %v1519 = vpop.f32.mrf.mxu0
      %1520 = vmatprep.mubr.bf16.mxu0 0
      %1521 = vmatmul.mubr.bf16.gmra.mxu0 %v1401
      %v1522 = vpop.f32.mrf.mxu0
      %v1523 = vadd.f32 0.0, %v1522
      %v1524 = vpop.f32.mrf.mxu0
      %v1525 = vpop.f32.mrf.mxu0
      %v1526 = vadd.f32 0.0, %v1525
      %v1527 = vpop.f32.mrf.mxu0
      %1528 = vmatprep.mubr.bf16.mxu0 0
      %1529 = vmatmul.mubr.bf16.gmra.mxu0 %v1402
      %v1530 = vpop.f32.mrf.mxu0
      %v1531 = vadd.f32 0.0, %v1530
      %v1532 = vpop.f32.mrf.mxu0
      %v1533 = vpop.f32.mrf.mxu0
      %v1534 = vadd.f32 0.0, %v1533
      %v1535 = vpop.f32.mrf.mxu0
      %1536 = vmatprep.mubr.bf16.mxu0 0
      %1537 = vmatmul.mubr.bf16.gmra.mxu0 %v1403
      %v1538 = vpop.f32.mrf.mxu0
      %v1539 = vadd.f32 0.0, %v1538
      %v1540 = vpop.f32.mrf.mxu0
      %v1541 = vpop.f32.mrf.mxu0
      %v1542 = vadd.f32 0.0, %v1541
      %v1543 = vpop.f32.mrf.mxu0
      %1544 = vmatprep.mubr.bf16.mxu0 0
      %1545 = vmatmul.mubr.bf16.gmra.mxu0 %v1404
      %v1546 = vpop.f32.mrf.mxu0
      %v1547 = vadd.f32 0.0, %v1546
      %v1548 = vpop.f32.mrf.mxu0
      %v1549 = vpop.f32.mrf.mxu0
      %v1550 = vadd.f32 0.0, %v1549
      %v1551 = vpop.f32.mrf.mxu0
      %1552 = vmatprep.mubr.bf16.mxu0 0
      %1553 = vmatmul.mubr.bf16.gmra.mxu0 %v1405
      %v1554 = vpop.f32.mrf.mxu0
      %v1555 = vadd.f32 0.0, %v1554
      %v1556 = vpop.f32.mrf.mxu0
      %v1557 = vpop.f32.mrf.mxu0
      %v1558 = vadd.f32 0.0, %v1557
      %v1559 = vpop.f32.mrf.mxu0
      %1560 = vmatprep.mubr.bf16.mxu0 0
      %1561 = vmatmul.mubr.bf16.gmra.mxu0 %v1406
      %v1562 = vpop.f32.mrf.mxu0
      %v1563 = vadd.f32 0.0, %v1562
      %v1564 = vpop.f32.mrf.mxu0
      %v1565 = vpop.f32.mrf.mxu0
      %v1566 = vadd.f32 0.0, %v1565
      %v1567 = vpop.f32.mrf.mxu0
      %1568 = vmatprep.mubr.bf16.mxu0 0
      %1569 = vmatmul.mubr.bf16.gmra.mxu0 %v1407
      %v1570 = vpop.f32.mrf.mxu0
      %v1571 = vadd.f32 0.0, %v1570
      %v1572 = vpop.f32.mrf.mxu0
      %v1573 = vpop.f32.mrf.mxu0
      %v1574 = vadd.f32 0.0, %v1573
      %v1575 = vpop.f32.mrf.mxu0
      %1576 = vmatprep.mubr.bf16.mxu0 0
      %1577 = vmatmul.mubr.bf16.gmra.mxu0 %v1408
      %v1578 = vpop.f32.mrf.mxu0
      %v1579 = vadd.f32 0.0, %v1578
      %v1580 = vpop.f32.mrf.mxu0
      %v1581 = vpop.f32.mrf.mxu0
      %v1582 = vadd.f32 0.0, %v1581
      %v1583 = vpop.f32.mrf.mxu0
      %1584 = vmatprep.mubr.bf16.mxu0 0
      %1585 = vmatmul.mubr.bf16.gmra.mxu0 %v1409
      %v1586 = vpop.f32.mrf.mxu0
      %v1587 = vadd.f32 0.0, %v1586
      %v1588 = vpop.f32.mrf.mxu0
      %v1589 = vpop.f32.mrf.mxu0
      %v1590 = vadd.f32 0.0, %v1589
      %v1591 = vpop.f32.mrf.mxu0
      %1592 = vmatprep.mubr.bf16.mxu0 0
      %1593 = vmatmul.mubr.bf16.gmra.mxu0 %v1410
      %v1594 = vpop.f32.mrf.mxu0
      %v1595 = vadd.f32 0.0, %v1594
      %v1596 = vpop.f32.mrf.mxu0
      %v1597 = vpop.f32.mrf.mxu0
      %v1598 = vadd.f32 0.0, %v1597
      %v1599 = vpop.f32.mrf.mxu0
      %1600 = vmatprep.mubr.bf16.mxu0 0
      %1601 = vmatmul.mubr.bf16.gmra.mxu0 %v1411
      %v1602 = vpop.f32.mrf.mxu0
      %v1603 = vadd.f32 0.0, %v1602
      %v1604 = vpop.f32.mrf.mxu0
      %v1605 = vpop.f32.mrf.mxu0
      %v1606 = vadd.f32 0.0, %v1605
      %v1607 = vpop.f32.mrf.mxu0
      %1608 = vmatprep.mubr.bf16.mxu0 0
      %1609 = vmatmul.mubr.bf16.gmra.mxu0 %v1412
      %v1610 = vpop.f32.mrf.mxu0
      %v1611 = vadd.f32 0.0, %v1610
      %v1612 = vpop.f32.mrf.mxu0
      %v1613 = vpop.f32.mrf.mxu0
      %v1614 = vadd.f32 0.0, %v1613
      %v1615 = vpop.f32.mrf.mxu0
      %1616 = vmatprep.mubr.bf16.mxu0 0
      %1617 = vmatmul.mubr.bf16.gmra.mxu0 %v1413
      %v1618 = vpop.f32.mrf.mxu0
      %v1619 = vadd.f32 0.0, %v1618
      %v1620 = vpop.f32.mrf.mxu0
      %v1621 = vpop.f32.mrf.mxu0
      %v1622 = vadd.f32 0.0, %v1621
      %v1623 = vpop.f32.mrf.mxu0
      %1624 = vmatprep.mubr.bf16.mxu0 0
      %1625 = vmatmul.mubr.bf16.gmra.mxu0 %v1414
      %v1626 = vpop.f32.mrf.mxu0
      %v1627 = vadd.f32 0.0, %v1626
      %v1628 = vpop.f32.mrf.mxu0
      %v1629 = vpop.f32.mrf.mxu0
      %v1630 = vadd.f32 0.0, %v1629
      %v1631 = vpop.f32.mrf.mxu0
      %1632 = vmatprep.mubr.bf16.mxu0 0
      %1633 = vmatmul.mubr.bf16.gmra.mxu0 %v1415
      %v1634 = vpop.f32.mrf.mxu0
      %v1635 = vadd.f32 0.0, %v1634
      %v1636 = vpop.f32.mrf.mxu0
      %v1637 = vpop.f32.mrf.mxu0
      %v1638 = vadd.f32 0.0, %v1637
      %v1639 = vpop.f32.mrf.mxu0
      %1640 = vdwg.mxu0
      %v1641 = vadd.f32 %v1094, %v1515
      %v1642 = vadd.f32 %v1097, %v1518
      %v1643 = vadd.f32 %v1102, %v1523
      %v1644 = vadd.f32 %v1105, %v1526
      %v1645 = vadd.f32 %v1110, %v1531
      %v1646 = vadd.f32 %v1113, %v1534
      %v1647 = vadd.f32 %v1118, %v1539
      %v1648 = vadd.f32 %v1121, %v1542
      %v1649 = vadd.f32 %v1126, %v1547
      %v1650 = vadd.f32 %v1129, %v1550
      %v1651 = vadd.f32 %v1134, %v1555
      %v1652 = vadd.f32 %v1137, %v1558
      %v1653 = vadd.f32 %v1142, %v1563
      %v1654 = vadd.f32 %v1145, %v1566
      %v1655 = vadd.f32 %v1150, %v1571
      %v1656 = vadd.f32 %v1153, %v1574
      %v1657 = vadd.f32 %v1158, %v1579
      %v1658 = vadd.f32 %v1161, %v1582
      %v1659 = vadd.f32 %v1166, %v1587
      %v1660 = vadd.f32 %v1169, %v1590
      %v1661 = vadd.f32 %v1174, %v1595
      %v1662 = vadd.f32 %v1177, %v1598
      %v1663 = vadd.f32 %v1182, %v1603
      %v1664 = vadd.f32 %v1185, %v1606
      %v1665 = vadd.f32 %v1190, %v1611
      %v1666 = vadd.f32 %v1193, %v1614
      %v1667 = vadd.f32 %v1198, %v1619
      %v1668 = vadd.f32 %v1201, %v1622
      %v1669 = vadd.f32 %v1206, %v1627
      %v1670 = vadd.f32 %v1209, %v1630
      %v1671 = vadd.f32 %v1214, %v1635
      %v1672 = vadd.f32 %v1217, %v1638
      %s1673 = scalar_lea.vmem %s1, 192
      %v1674 = vld [vmem:[%s1673] sm:$0xf]
      %v1675 = vld [vmem:[%s1673 + $0x4] sm:$0xf]
      %v1676 = vld [vmem:[%s1673 + $0x8] sm:$0xf]
      %v1677 = vld [vmem:[%s1673 + $0xc] sm:$0xf]
      %v1678 = vld [vmem:[%s1673 + $0x10] sm:$0xf]
      %v1679 = vld [vmem:[%s1673 + $0x14] sm:$0xf]
      %v1680 = vld [vmem:[%s1673 + $0x18] sm:$0xf]
      %v1681 = vld [vmem:[%s1673 + $0x1c] sm:$0xf]
      %v1682 = vld [vmem:[%s1673 + $0x20] sm:$0xf]
      %v1683 = vld [vmem:[%s1673 + $0x24] sm:$0xf]
      %v1684 = vld [vmem:[%s1673 + $0x28] sm:$0xf]
      %v1685 = vld [vmem:[%s1673 + $0x2c] sm:$0xf]
      %v1686 = vld [vmem:[%s1673 + $0x30] sm:$0xf]
      %v1687 = vld [vmem:[%s1673 + $0x34] sm:$0xf]
      %v1688 = vld [vmem:[%s1673 + $0x38] sm:$0xf]
      %v1689 = vld [vmem:[%s1673 + $0x3c] sm:$0xf]
      %v1692 = vunpack.c.l.b16 %v216
      %v1693 = vunpack.c.l.b16 %v217
      %v1694 = vpack.c.b16 %v1693, %v1692
      %v1712 = vunpack.c.l.b16 %v1674
      %v1713 = vunpack.c.l.b16 %v1675
      %v1714 = vunpack.c.l.b16 %v1676
      %v1715 = vunpack.c.l.b16 %v1677
      %v1716 = vunpack.c.l.b16 %v1678
      %v1717 = vunpack.c.l.b16 %v1679
      %v1718 = vunpack.c.l.b16 %v1680
      %v1719 = vunpack.c.l.b16 %v1681
      %v1720 = vunpack.c.l.b16 %v1682
      %v1721 = vunpack.c.l.b16 %v1683
      %v1722 = vunpack.c.l.b16 %v1684
      %v1723 = vunpack.c.l.b16 %v1685
      %v1724 = vunpack.c.l.b16 %v1686
      %v1725 = vunpack.c.l.b16 %v1687
      %v1726 = vunpack.c.l.b16 %v1688
      %v1727 = vunpack.c.l.b16 %v1689
      %v1728 = vpack.c.b16 %v1713, %v1712
      %v1729 = vpack.c.b16 %v1715, %v1714
      %v1730 = vpack.c.b16 %v1717, %v1716
      %v1731 = vpack.c.b16 %v1719, %v1718
      %v1732 = vpack.c.b16 %v1721, %v1720
      %v1733 = vpack.c.b16 %v1723, %v1722
      %v1734 = vpack.c.b16 %v1725, %v1724
      %v1735 = vpack.c.b16 %v1727, %v1726
      %1744 = vmatprep.subr.bf16.mxu0 0
      %1745 = vmatpush1.bf16.msra.mxu0 %v1735
      %1746 = vmatprep.subr.bf16.mxu0 0
      %1747 = vmatpush1.bf16.msra.mxu0 %v1734
      %1748 = vmatprep.subr.bf16.mxu0 0
      %1749 = vmatpush1.bf16.msra.mxu0 %v1733
      %1750 = vmatprep.subr.bf16.mxu0 0
      %1751 = vmatpush1.bf16.msra.mxu0 %v1732
      %1752 = vmatprep.subr.bf16.mxu0 0
      %1753 = vmatpush1.bf16.msra.mxu0 %v1731
      %1754 = vmatprep.subr.bf16.mxu0 0
      %1755 = vmatpush1.bf16.msra.mxu0 %v1730
      %1756 = vmatprep.subr.bf16.mxu0 0
      %1757 = vmatpush1.bf16.msra.mxu0 %v1729
      %1758 = vmatprep.subr.bf16.mxu0 0
      %1759 = vmatpush1.bf16.msra.mxu0 %v1728
      %1760 = vmatprep.subr.bf16.mxu0 0
      %1761 = vmatpush2.bf16.msra.mxu0 0
      %1762 = vmatprep.subr.bf16.mxu0 0
      %1763 = vmatpush2.bf16.msra.mxu0 0
      %1764 = vmatprep.subr.bf16.mxu0 0
      %1765 = vmatpush2.bf16.msra.mxu0 0
      %1766 = vmatprep.subr.bf16.mxu0 0
      %1767 = vmatpush2.bf16.msra.mxu0 0
      %1768 = vmatprep.subr.bf16.mxu0 0
      %1769 = vmatpush2.bf16.msra.mxu0 0
      %1770 = vmatprep.subr.bf16.mxu0 0
      %1771 = vmatpush2.bf16.msra.mxu0 0
      %1772 = vmatprep.subr.bf16.mxu0 0
      %1773 = vmatpush2.bf16.msra.mxu0 0
      %1774 = vmatprep.subr.bf16.mxu0 0
      %1775 = vmatpush2.bf16.msra.mxu0 0
      %1776 = vmatprep.mubr.bf16.mxu0 0
      %1777 = vmatmul.mubr.bf16.gmra.mxu0 %v980
      %v1778 = vpop.f32.mrf.mxu0
      %v1779 = vadd.f32 0.0, %v1778
      %v1780 = vpop.f32.mrf.mxu0
      %v1781 = vpop.f32.mrf.mxu0
      %v1782 = vadd.f32 0.0, %v1781
      %v1783 = vpop.f32.mrf.mxu0
      %1784 = vmatprep.mubr.bf16.mxu0 0
      %1785 = vmatmul.mubr.bf16.gmra.mxu0 %v981
      %v1786 = vpop.f32.mrf.mxu0
      %v1787 = vadd.f32 0.0, %v1786
      %v1788 = vpop.f32.mrf.mxu0
      %v1789 = vpop.f32.mrf.mxu0
      %v1790 = vadd.f32 0.0, %v1789
      %v1791 = vpop.f32.mrf.mxu0
      %1792 = vmatprep.mubr.bf16.mxu0 0
      %1793 = vmatmul.mubr.bf16.gmra.mxu0 %v982
      %v1794 = vpop.f32.mrf.mxu0
      %v1795 = vadd.f32 0.0, %v1794
      %v1796 = vpop.f32.mrf.mxu0
      %v1797 = vpop.f32.mrf.mxu0
      %v1798 = vadd.f32 0.0, %v1797
      %v1799 = vpop.f32.mrf.mxu0
      %1800 = vmatprep.mubr.bf16.mxu0 0
      %1801 = vmatmul.mubr.bf16.gmra.mxu0 %v983
      %v1802 = vpop.f32.mrf.mxu0
      %v1803 = vadd.f32 0.0, %v1802
      %v1804 = vpop.f32.mrf.mxu0
      %v1805 = vpop.f32.mrf.mxu0
      %v1806 = vadd.f32 0.0, %v1805
      %v1807 = vpop.f32.mrf.mxu0
      %1808 = vmatprep.mubr.bf16.mxu0 0
      %1809 = vmatmul.mubr.bf16.gmra.mxu0 %v984
      %v1810 = vpop.f32.mrf.mxu0
      %v1811 = vadd.f32 0.0, %v1810
      %v1812 = vpop.f32.mrf.mxu0
      %v1813 = vpop.f32.mrf.mxu0
      %v1814 = vadd.f32 0.0, %v1813
      %v1815 = vpop.f32.mrf.mxu0
      %1816 = vmatprep.mubr.bf16.mxu0 0
      %1817 = vmatmul.mubr.bf16.gmra.mxu0 %v985
      %v1818 = vpop.f32.mrf.mxu0
      %v1819 = vadd.f32 0.0, %v1818
      %v1820 = vpop.f32.mrf.mxu0
      %v1821 = vpop.f32.mrf.mxu0
      %v1822 = vadd.f32 0.0, %v1821
      %v1823 = vpop.f32.mrf.mxu0
      %1824 = vmatprep.mubr.bf16.mxu0 0
      %1825 = vmatmul.mubr.bf16.gmra.mxu0 %v986
      %v1826 = vpop.f32.mrf.mxu0
      %v1827 = vadd.f32 0.0, %v1826
      %v1828 = vpop.f32.mrf.mxu0
      %v1829 = vpop.f32.mrf.mxu0
      %v1830 = vadd.f32 0.0, %v1829
      %v1831 = vpop.f32.mrf.mxu0
      %1832 = vmatprep.mubr.bf16.mxu0 0
      %1833 = vmatmul.mubr.bf16.gmra.mxu0 %v987
      %v1834 = vpop.f32.mrf.mxu0
      %v1835 = vadd.f32 0.0, %v1834
      %v1836 = vpop.f32.mrf.mxu0
      %v1837 = vpop.f32.mrf.mxu0
      %v1838 = vadd.f32 0.0, %v1837
      %v1839 = vpop.f32.mrf.mxu0
      %1840 = vmatprep.mubr.bf16.mxu0 0
      %1841 = vmatmul.mubr.bf16.gmra.mxu0 %v988
      %v1842 = vpop.f32.mrf.mxu0
      %v1843 = vadd.f32 0.0, %v1842
      %v1844 = vpop.f32.mrf.mxu0
      %v1845 = vpop.f32.mrf.mxu0
      %v1846 = vadd.f32 0.0, %v1845
      %v1847 = vpop.f32.mrf.mxu0
      %1848 = vmatprep.mubr.bf16.mxu0 0
      %1849 = vmatmul.mubr.bf16.gmra.mxu0 %v989
      %v1850 = vpop.f32.mrf.mxu0
      %v1851 = vadd.f32 0.0, %v1850
      %v1852 = vpop.f32.mrf.mxu0
      %v1853 = vpop.f32.mrf.mxu0
      %v1854 = vadd.f32 0.0, %v1853
      %v1855 = vpop.f32.mrf.mxu0
      %1856 = vmatprep.mubr.bf16.mxu0 0
      %1857 = vmatmul.mubr.bf16.gmra.mxu0 %v990
      %v1858 = vpop.f32.mrf.mxu0
      %v1859 = vadd.f32 0.0, %v1858
      %v1860 = vpop.f32.mrf.mxu0
      %v1861 = vpop.f32.mrf.mxu0
      %v1862 = vadd.f32 0.0, %v1861
      %v1863 = vpop.f32.mrf.mxu0
      %1864 = vmatprep.mubr.bf16.mxu0 0
      %1865 = vmatmul.mubr.bf16.gmra.mxu0 %v991
      %v1866 = vpop.f32.mrf.mxu0
      %v1867 = vadd.f32 0.0, %v1866
      %v1868 = vpop.f32.mrf.mxu0
      %v1869 = vpop.f32.mrf.mxu0
      %v1870 = vadd.f32 0.0, %v1869
      %v1871 = vpop.f32.mrf.mxu0
      %1872 = vmatprep.mubr.bf16.mxu0 0
      %1873 = vmatmul.mubr.bf16.gmra.mxu0 %v992
      %v1874 = vpop.f32.mrf.mxu0
      %v1875 = vadd.f32 0.0, %v1874
      %v1876 = vpop.f32.mrf.mxu0
      %v1877 = vpop.f32.mrf.mxu0
      %v1878 = vadd.f32 0.0, %v1877
      %v1879 = vpop.f32.mrf.mxu0
      %1880 = vmatprep.mubr.bf16.mxu0 0
      %1881 = vmatmul.mubr.bf16.gmra.mxu0 %v993
      %v1882 = vpop.f32.mrf.mxu0
      %v1883 = vadd.f32 0.0, %v1882
      %v1884 = vpop.f32.mrf.mxu0
      %v1885 = vpop.f32.mrf.mxu0
      %v1886 = vadd.f32 0.0, %v1885
      %v1887 = vpop.f32.mrf.mxu0
      %1888 = vmatprep.mubr.bf16.mxu0 0
      %1889 = vmatmul.mubr.bf16.gmra.mxu0 %v994
      %v1890 = vpop.f32.mrf.mxu0
      %v1891 = vadd.f32 0.0, %v1890
      %v1892 = vpop.f32.mrf.mxu0
      %v1893 = vpop.f32.mrf.mxu0
      %v1894 = vadd.f32 0.0, %v1893
      %v1895 = vpop.f32.mrf.mxu0
      %1896 = vmatprep.mubr.bf16.mxu0 0
      %1897 = vmatmul.mubr.bf16.gmra.mxu0 %v1694
      %v1898 = vpop.f32.mrf.mxu0
      %v1899 = vadd.f32 0.0, %v1898
      %v1900 = vpop.f32.mrf.mxu0
      %v1901 = vpop.f32.mrf.mxu0
      %v1902 = vadd.f32 0.0, %v1901
      %v1903 = vpop.f32.mrf.mxu0
      %1904 = vdwg.mxu0
      %v1905 = vadd.f32 %v1641, %v1779
      %v1906 = vadd.f32 %v1642, %v1782
      %v1907 = vadd.f32 %v1643, %v1787
      %v1908 = vadd.f32 %v1644, %v1790
      %v1909 = vadd.f32 %v1645, %v1795
      %v1910 = vadd.f32 %v1646, %v1798
      %v1911 = vadd.f32 %v1647, %v1803
      %v1912 = vadd.f32 %v1648, %v1806
      %v1913 = vadd.f32 %v1649, %v1811
      %v1914 = vadd.f32 %v1650, %v1814
      %v1915 = vadd.f32 %v1651, %v1819
      %v1916 = vadd.f32 %v1652, %v1822
      %v1917 = vadd.f32 %v1653, %v1827
      %v1918 = vadd.f32 %v1654, %v1830
      %v1919 = vadd.f32 %v1655, %v1835
      %v1920 = vadd.f32 %v1656, %v1838
      %v1921 = vadd.f32 %v1657, %v1843
      %v1922 = vadd.f32 %v1658, %v1846
      %v1923 = vadd.f32 %v1659, %v1851
      %v1924 = vadd.f32 %v1660, %v1854
      %v1925 = vadd.f32 %v1661, %v1859
      %v1926 = vadd.f32 %v1662, %v1862
      %v1927 = vadd.f32 %v1663, %v1867
      %v1928 = vadd.f32 %v1664, %v1870
      %v1929 = vadd.f32 %v1665, %v1875
      %v1930 = vadd.f32 %v1666, %v1878
      %v1931 = vadd.f32 %v1667, %v1883
      %v1932 = vadd.f32 %v1668, %v1886
      %v1933 = vadd.f32 %v1669, %v1891
      %v1934 = vadd.f32 %v1670, %v1894
      %v1935 = vadd.f32 %v1671, %v1899
      %v1936 = vadd.f32 %v1672, %v1902
      %v1938 = vshrl.u32 %v216, 16
      %v1940 = vrot.slane %v1938, 4
      %v1941 = vshll.u32 %v216, 16
      %v1943 = vrot.slane %v1941, 5
      %v1944 = vor.u32 %v1940, %v1943
      %v1945 = vrot.slane %v1944, 4
      %v1947 = vshll.u32 %v217, 16
      %v1949 = vrot.slane %v1947, 5
      %v1950 = vsel %vm240, %v1945, %v1949
      %v1951 = vshrl.u32 %v217, 16
      %v1953 = vrot.slane %v1951, 4
      %v1954 = vor.u32 %v1953, %v1949
      %v1955 = vrot.slane %v1954, 4
      %v1957 = vshll.u32 %v218, 16
      %v1959 = vrot.slane %v1957, 5
      %v1960 = vsel %vm240, %v1955, %v1959
      %s1961 = scalar_lea.vmem %s1, 256
      %v1962 = vld [vmem:[%s1961] sm:$0xf]
      %v1963 = vld [vmem:[%s1961 + $0x4] sm:$0xf]
      %v1964 = vld [vmem:[%s1961 + $0x8] sm:$0xf]
      %v1965 = vld [vmem:[%s1961 + $0xc] sm:$0xf]
      %v1966 = vld [vmem:[%s1961 + $0x10] sm:$0xf]
      %v1967 = vld [vmem:[%s1961 + $0x14] sm:$0xf]
      %v1968 = vld [vmem:[%s1961 + $0x18] sm:$0xf]
      %v1969 = vld [vmem:[%s1961 + $0x1c] sm:$0xf]
      %v1970 = vld [vmem:[%s1961 + $0x20] sm:$0xf]
      %v1971 = vld [vmem:[%s1961 + $0x24] sm:$0xf]
      %v1972 = vld [vmem:[%s1961 + $0x28] sm:$0xf]
      %v1973 = vld [vmem:[%s1961 + $0x2c] sm:$0xf]
      %v1974 = vld [vmem:[%s1961 + $0x30] sm:$0xf]
      %v1975 = vld [vmem:[%s1961 + $0x34] sm:$0xf]
      %v1976 = vld [vmem:[%s1961 + $0x38] sm:$0xf]
      %v1977 = vld [vmem:[%s1961 + $0x3c] sm:$0xf]
      %v1978 = vunpack.c.l.b16 %v1950
      %v1979 = vunpack.c.l.b16 %v1960
      %v1980 = vpack.c.b16 %v1979, %v1978
      %v1998 = vunpack.c.l.b16 %v1962
      %v1999 = vunpack.c.l.b16 %v1963
      %v2000 = vunpack.c.l.b16 %v1964
      %v2001 = vunpack.c.l.b16 %v1965
      %v2002 = vunpack.c.l.b16 %v1966
      %v2003 = vunpack.c.l.b16 %v1967
      %v2004 = vunpack.c.l.b16 %v1968
      %v2005 = vunpack.c.l.b16 %v1969
      %v2006 = vunpack.c.l.b16 %v1970
      %v2007 = vunpack.c.l.b16 %v1971
      %v2008 = vunpack.c.l.b16 %v1972
      %v2009 = vunpack.c.l.b16 %v1973
      %v2010 = vunpack.c.l.b16 %v1974
      %v2011 = vunpack.c.l.b16 %v1975
      %v2012 = vunpack.c.l.b16 %v1976
      %v2013 = vunpack.c.l.b16 %v1977
      %v2014 = vpack.c.b16 %v1999, %v1998
      %v2015 = vpack.c.b16 %v2001, %v2000
      %v2016 = vpack.c.b16 %v2003, %v2002
      %v2017 = vpack.c.b16 %v2005, %v2004
      %v2018 = vpack.c.b16 %v2007, %v2006
      %v2019 = vpack.c.b16 %v2009, %v2008
      %v2020 = vpack.c.b16 %v2011, %v2010
      %v2021 = vpack.c.b16 %v2013, %v2012
      %2030 = vmatprep.subr.bf16.mxu0 0
      %2031 = vmatpush1.bf16.msra.mxu0 %v2021
      %2032 = vmatprep.subr.bf16.mxu0 0
      %2033 = vmatpush1.bf16.msra.mxu0 %v2020
      %2034 = vmatprep.subr.bf16.mxu0 0
      %2035 = vmatpush1.bf16.msra.mxu0 %v2019
      %2036 = vmatprep.subr.bf16.mxu0 0
      %2037 = vmatpush1.bf16.msra.mxu0 %v2018
      %2038 = vmatprep.subr.bf16.mxu0 0
      %2039 = vmatpush1.bf16.msra.mxu0 %v2017
      %2040 = vmatprep.subr.bf16.mxu0 0
      %2041 = vmatpush1.bf16.msra.mxu0 %v2016
      %2042 = vmatprep.subr.bf16.mxu0 0
      %2043 = vmatpush1.bf16.msra.mxu0 %v2015
      %2044 = vmatprep.subr.bf16.mxu0 0
      %2045 = vmatpush1.bf16.msra.mxu0 %v2014
      %2046 = vmatprep.subr.bf16.mxu0 0
      %2047 = vmatpush2.bf16.msra.mxu0 0
      %2048 = vmatprep.subr.bf16.mxu0 0
      %2049 = vmatpush2.bf16.msra.mxu0 0
      %2050 = vmatprep.subr.bf16.mxu0 0
      %2051 = vmatpush2.bf16.msra.mxu0 0
      %2052 = vmatprep.subr.bf16.mxu0 0
      %2053 = vmatpush2.bf16.msra.mxu0 0
      %2054 = vmatprep.subr.bf16.mxu0 0
      %2055 = vmatpush2.bf16.msra.mxu0 0
      %2056 = vmatprep.subr.bf16.mxu0 0
      %2057 = vmatpush2.bf16.msra.mxu0 0
      %2058 = vmatprep.subr.bf16.mxu0 0
      %2059 = vmatpush2.bf16.msra.mxu0 0
      %2060 = vmatprep.subr.bf16.mxu0 0
      %2061 = vmatpush2.bf16.msra.mxu0 0
      %2062 = vmatprep.mubr.bf16.mxu0 0
      %2063 = vmatmul.mubr.bf16.gmra.mxu0 %v675
      %v2064 = vpop.f32.mrf.mxu0
      %v2065 = vadd.f32 0.0, %v2064
      %v2066 = vpop.f32.mrf.mxu0
      %v2067 = vpop.f32.mrf.mxu0
      %v2068 = vadd.f32 0.0, %v2067
      %v2069 = vpop.f32.mrf.mxu0
      %2070 = vmatprep.mubr.bf16.mxu0 0
      %2071 = vmatmul.mubr.bf16.gmra.mxu0 %v676
      %v2072 = vpop.f32.mrf.mxu0
      %v2073 = vadd.f32 0.0, %v2072
      %v2074 = vpop.f32.mrf.mxu0
      %v2075 = vpop.f32.mrf.mxu0
      %v2076 = vadd.f32 0.0, %v2075
      %v2077 = vpop.f32.mrf.mxu0
      %2078 = vmatprep.mubr.bf16.mxu0 0
      %2079 = vmatmul.mubr.bf16.gmra.mxu0 %v677
      %v2080 = vpop.f32.mrf.mxu0
      %v2081 = vadd.f32 0.0, %v2080
      %v2082 = vpop.f32.mrf.mxu0
      %v2083 = vpop.f32.mrf.mxu0
      %v2084 = vadd.f32 0.0, %v2083
      %v2085 = vpop.f32.mrf.mxu0
      %2086 = vmatprep.mubr.bf16.mxu0 0
      %2087 = vmatmul.mubr.bf16.gmra.mxu0 %v678
      %v2088 = vpop.f32.mrf.mxu0
      %v2089 = vadd.f32 0.0, %v2088
      %v2090 = vpop.f32.mrf.mxu0
      %v2091 = vpop.f32.mrf.mxu0
      %v2092 = vadd.f32 0.0, %v2091
      %v2093 = vpop.f32.mrf.mxu0
      %2094 = vmatprep.mubr.bf16.mxu0 0
      %2095 = vmatmul.mubr.bf16.gmra.mxu0 %v679
      %v2096 = vpop.f32.mrf.mxu0
      %v2097 = vadd.f32 0.0, %v2096
      %v2098 = vpop.f32.mrf.mxu0
      %v2099 = vpop.f32.mrf.mxu0
      %v2100 = vadd.f32 0.0, %v2099
      %v2101 = vpop.f32.mrf.mxu0
      %2102 = vmatprep.mubr.bf16.mxu0 0
      %2103 = vmatmul.mubr.bf16.gmra.mxu0 %v680
      %v2104 = vpop.f32.mrf.mxu0
      %v2105 = vadd.f32 0.0, %v2104
      %v2106 = vpop.f32.mrf.mxu0
      %v2107 = vpop.f32.mrf.mxu0
      %v2108 = vadd.f32 0.0, %v2107
      %v2109 = vpop.f32.mrf.mxu0
      %2110 = vmatprep.mubr.bf16.mxu0 0
      %2111 = vmatmul.mubr.bf16.gmra.mxu0 %v681
      %v2112 = vpop.f32.mrf.mxu0
      %v2113 = vadd.f32 0.0, %v2112
      %v2114 = vpop.f32.mrf.mxu0
      %v2115 = vpop.f32.mrf.mxu0
      %v2116 = vadd.f32 0.0, %v2115
      %v2117 = vpop.f32.mrf.mxu0
      %2118 = vmatprep.mubr.bf16.mxu0 0
      %2119 = vmatmul.mubr.bf16.gmra.mxu0 %v682
      %v2120 = vpop.f32.mrf.mxu0
      %v2121 = vadd.f32 0.0, %v2120
      %v2122 = vpop.f32.mrf.mxu0
      %v2123 = vpop.f32.mrf.mxu0
      %v2124 = vadd.f32 0.0, %v2123
      %v2125 = vpop.f32.mrf.mxu0
      %2126 = vmatprep.mubr.bf16.mxu0 0
      %2127 = vmatmul.mubr.bf16.gmra.mxu0 %v683
      %v2128 = vpop.f32.mrf.mxu0
      %v2129 = vadd.f32 0.0, %v2128
      %v2130 = vpop.f32.mrf.mxu0
      %v2131 = vpop.f32.mrf.mxu0
      %v2132 = vadd.f32 0.0, %v2131
      %v2133 = vpop.f32.mrf.mxu0
      %2134 = vmatprep.mubr.bf16.mxu0 0
      %2135 = vmatmul.mubr.bf16.gmra.mxu0 %v684
      %v2136 = vpop.f32.mrf.mxu0
      %v2137 = vadd.f32 0.0, %v2136
      %v2138 = vpop.f32.mrf.mxu0
      %v2139 = vpop.f32.mrf.mxu0
      %v2140 = vadd.f32 0.0, %v2139
      %v2141 = vpop.f32.mrf.mxu0
      %2142 = vmatprep.mubr.bf16.mxu0 0
      %2143 = vmatmul.mubr.bf16.gmra.mxu0 %v685
      %v2144 = vpop.f32.mrf.mxu0
      %v2145 = vadd.f32 0.0, %v2144
      %v2146 = vpop.f32.mrf.mxu0
      %v2147 = vpop.f32.mrf.mxu0
      %v2148 = vadd.f32 0.0, %v2147
      %v2149 = vpop.f32.mrf.mxu0
      %2150 = vmatprep.mubr.bf16.mxu0 0
      %2151 = vmatmul.mubr.bf16.gmra.mxu0 %v686
      %v2152 = vpop.f32.mrf.mxu0
      %v2153 = vadd.f32 0.0, %v2152
      %v2154 = vpop.f32.mrf.mxu0
      %v2155 = vpop.f32.mrf.mxu0
      %v2156 = vadd.f32 0.0, %v2155
      %v2157 = vpop.f32.mrf.mxu0
      %2158 = vmatprep.mubr.bf16.mxu0 0
      %2159 = vmatmul.mubr.bf16.gmra.mxu0 %v687
      %v2160 = vpop.f32.mrf.mxu0
      %v2161 = vadd.f32 0.0, %v2160
      %v2162 = vpop.f32.mrf.mxu0
      %v2163 = vpop.f32.mrf.mxu0
      %v2164 = vadd.f32 0.0, %v2163
      %v2165 = vpop.f32.mrf.mxu0
      %2166 = vmatprep.mubr.bf16.mxu0 0
      %2167 = vmatmul.mubr.bf16.gmra.mxu0 %v688
      %v2168 = vpop.f32.mrf.mxu0
      %v2169 = vadd.f32 0.0, %v2168
      %v2170 = vpop.f32.mrf.mxu0
      %v2171 = vpop.f32.mrf.mxu0
      %v2172 = vadd.f32 0.0, %v2171
      %v2173 = vpop.f32.mrf.mxu0
      %2174 = vmatprep.mubr.bf16.mxu0 0
      %2175 = vmatmul.mubr.bf16.gmra.mxu0 %v689
      %v2176 = vpop.f32.mrf.mxu0
      %v2177 = vadd.f32 0.0, %v2176
      %v2178 = vpop.f32.mrf.mxu0
      %v2179 = vpop.f32.mrf.mxu0
      %v2180 = vadd.f32 0.0, %v2179
      %v2181 = vpop.f32.mrf.mxu0
      %2182 = vmatprep.mubr.bf16.mxu0 0
      %2183 = vmatmul.mubr.bf16.gmra.mxu0 %v1980
      %v2184 = vpop.f32.mrf.mxu0
      %v2185 = vadd.f32 0.0, %v2184
      %v2186 = vpop.f32.mrf.mxu0
      %v2187 = vpop.f32.mrf.mxu0
      %v2188 = vadd.f32 0.0, %v2187
      %v2189 = vpop.f32.mrf.mxu0
      %2190 = vdwg.mxu0
      %v2191 = vadd.f32 %v1905, %v2065
      %v2192 = vadd.f32 %v1906, %v2068
      %v2193 = vadd.f32 %v1907, %v2073
      %v2194 = vadd.f32 %v1908, %v2076
      %v2195 = vadd.f32 %v1909, %v2081
      %v2196 = vadd.f32 %v1910, %v2084
      %v2197 = vadd.f32 %v1911, %v2089
      %v2198 = vadd.f32 %v1912, %v2092
      %v2199 = vadd.f32 %v1913, %v2097
      %v2200 = vadd.f32 %v1914, %v2100
      %v2201 = vadd.f32 %v1915, %v2105
      %v2202 = vadd.f32 %v1916, %v2108
      %v2203 = vadd.f32 %v1917, %v2113
      %v2204 = vadd.f32 %v1918, %v2116
      %v2205 = vadd.f32 %v1919, %v2121
      %v2206 = vadd.f32 %v1920, %v2124
      %v2207 = vadd.f32 %v1921, %v2129
      %v2208 = vadd.f32 %v1922, %v2132
      %v2209 = vadd.f32 %v1923, %v2137
      %v2210 = vadd.f32 %v1924, %v2140
      %v2211 = vadd.f32 %v1925, %v2145
      %v2212 = vadd.f32 %v1926, %v2148
      %v2213 = vadd.f32 %v1927, %v2153
      %v2214 = vadd.f32 %v1928, %v2156
      %v2215 = vadd.f32 %v1929, %v2161
      %v2216 = vadd.f32 %v1930, %v2164
      %v2217 = vadd.f32 %v1931, %v2169
      %v2218 = vadd.f32 %v1932, %v2172
      %v2219 = vadd.f32 %v1933, %v2177
      %v2220 = vadd.f32 %v1934, %v2180
      %v2221 = vadd.f32 %v1935, %v2185
      %v2222 = vadd.f32 %v1936, %v2188
      %v2224 = vrot.slane %v216, 5
      %v2225 = vrot.slane %v2224, 4
      %v2226 = vrot.slane %v217, 5
      %v2227 = vsel %vm1238, %v2225, %v2226
      %v2228 = vrot.slane %v2226, 4
      %v2229 = vrot.slane %v218, 5
      %v2230 = vsel %vm1238, %v2228, %v2229
      %s2231 = scalar_lea.vmem %s1, 320
      %v2232 = vld [vmem:[%s2231] sm:$0xf]
      %v2233 = vld [vmem:[%s2231 + $0x4] sm:$0xf]
      %v2234 = vld [vmem:[%s2231 + $0x8] sm:$0xf]
      %v2235 = vld [vmem:[%s2231 + $0xc] sm:$0xf]
      %v2236 = vld [vmem:[%s2231 + $0x10] sm:$0xf]
      %v2237 = vld [vmem:[%s2231 + $0x14] sm:$0xf]
      %v2238 = vld [vmem:[%s2231 + $0x18] sm:$0xf]
      %v2239 = vld [vmem:[%s2231 + $0x1c] sm:$0xf]
      %v2240 = vld [vmem:[%s2231 + $0x20] sm:$0xf]
      %v2241 = vld [vmem:[%s2231 + $0x24] sm:$0xf]
      %v2242 = vld [vmem:[%s2231 + $0x28] sm:$0xf]
      %v2243 = vld [vmem:[%s2231 + $0x2c] sm:$0xf]
      %v2244 = vld [vmem:[%s2231 + $0x30] sm:$0xf]
      %v2245 = vld [vmem:[%s2231 + $0x34] sm:$0xf]
      %v2246 = vld [vmem:[%s2231 + $0x38] sm:$0xf]
      %v2247 = vld [vmem:[%s2231 + $0x3c] sm:$0xf]
      %v2248 = vunpack.c.l.b16 %v2227
      %v2249 = vunpack.c.l.b16 %v2230
      %v2250 = vpack.c.b16 %v2249, %v2248
      %v2268 = vunpack.c.l.b16 %v2232
      %v2269 = vunpack.c.l.b16 %v2233
      %v2270 = vunpack.c.l.b16 %v2234
      %v2271 = vunpack.c.l.b16 %v2235
      %v2272 = vunpack.c.l.b16 %v2236
      %v2273 = vunpack.c.l.b16 %v2237
      %v2274 = vunpack.c.l.b16 %v2238
      %v2275 = vunpack.c.l.b16 %v2239
      %v2276 = vunpack.c.l.b16 %v2240
      %v2277 = vunpack.c.l.b16 %v2241
      %v2278 = vunpack.c.l.b16 %v2242
      %v2279 = vunpack.c.l.b16 %v2243
      %v2280 = vunpack.c.l.b16 %v2244
      %v2281 = vunpack.c.l.b16 %v2245
      %v2282 = vunpack.c.l.b16 %v2246
      %v2283 = vunpack.c.l.b16 %v2247
      %v2284 = vpack.c.b16 %v2269, %v2268
      %v2285 = vpack.c.b16 %v2271, %v2270
      %v2286 = vpack.c.b16 %v2273, %v2272
      %v2287 = vpack.c.b16 %v2275, %v2274
      %v2288 = vpack.c.b16 %v2277, %v2276
      %v2289 = vpack.c.b16 %v2279, %v2278
      %v2290 = vpack.c.b16 %v2281, %v2280
      %v2291 = vpack.c.b16 %v2283, %v2282
      %2300 = vmatprep.subr.bf16.mxu0 0
      %2301 = vmatpush1.bf16.msra.mxu0 %v2291
      %2302 = vmatprep.subr.bf16.mxu0 0
      %2303 = vmatpush1.bf16.msra.mxu0 %v2290
      %2304 = vmatprep.subr.bf16.mxu0 0
      %2305 = vmatpush1.bf16.msra.mxu0 %v2289
      %2306 = vmatprep.subr.bf16.mxu0 0
      %2307 = vmatpush1.bf16.msra.mxu0 %v2288
      %2308 = vmatprep.subr.bf16.mxu0 0
      %2309 = vmatpush1.bf16.msra.mxu0 %v2287
      %2310 = vmatprep.subr.bf16.mxu0 0
      %2311 = vmatpush1.bf16.msra.mxu0 %v2286
      %2312 = vmatprep.subr.bf16.mxu0 0
      %2313 = vmatpush1.bf16.msra.mxu0 %v2285
      %2314 = vmatprep.subr.bf16.mxu0 0
      %2315 = vmatpush1.bf16.msra.mxu0 %v2284
      %2316 = vmatprep.subr.bf16.mxu0 0
      %2317 = vmatpush2.bf16.msra.mxu0 0
      %2318 = vmatprep.subr.bf16.mxu0 0
      %2319 = vmatpush2.bf16.msra.mxu0 0
      %2320 = vmatprep.subr.bf16.mxu0 0
      %2321 = vmatpush2.bf16.msra.mxu0 0
      %2322 = vmatprep.subr.bf16.mxu0 0
      %2323 = vmatpush2.bf16.msra.mxu0 0
      %2324 = vmatprep.subr.bf16.mxu0 0
      %2325 = vmatpush2.bf16.msra.mxu0 0
      %2326 = vmatprep.subr.bf16.mxu0 0
      %2327 = vmatpush2.bf16.msra.mxu0 0
      %2328 = vmatprep.subr.bf16.mxu0 0
      %2329 = vmatpush2.bf16.msra.mxu0 0
      %2330 = vmatprep.subr.bf16.mxu0 0
      %2331 = vmatpush2.bf16.msra.mxu0 0
      %2332 = vmatprep.mubr.bf16.mxu0 0
      %2333 = vmatmul.mubr.bf16.gmra.mxu0 %v1401
      %v2334 = vpop.f32.mrf.mxu0
      %v2335 = vadd.f32 0.0, %v2334
      %v2336 = vpop.f32.mrf.mxu0
      %v2337 = vpop.f32.mrf.mxu0
      %v2338 = vadd.f32 0.0, %v2337
      %v2339 = vpop.f32.mrf.mxu0
      %2340 = vmatprep.mubr.bf16.mxu0 0
      %2341 = vmatmul.mubr.bf16.gmra.mxu0 %v1402
      %v2342 = vpop.f32.mrf.mxu0
      %v2343 = vadd.f32 0.0, %v2342
      %v2344 = vpop.f32.mrf.mxu0
      %v2345 = vpop.f32.mrf.mxu0
      %v2346 = vadd.f32 0.0, %v2345
      %v2347 = vpop.f32.mrf.mxu0
      %2348 = vmatprep.mubr.bf16.mxu0 0
      %2349 = vmatmul.mubr.bf16.gmra.mxu0 %v1403
      %v2350 = vpop.f32.mrf.mxu0
      %v2351 = vadd.f32 0.0, %v2350
      %v2352 = vpop.f32.mrf.mxu0
      %v2353 = vpop.f32.mrf.mxu0
      %v2354 = vadd.f32 0.0, %v2353
      %v2355 = vpop.f32.mrf.mxu0
      %2356 = vmatprep.mubr.bf16.mxu0 0
      %2357 = vmatmul.mubr.bf16.gmra.mxu0 %v1404
      %v2358 = vpop.f32.mrf.mxu0
      %v2359 = vadd.f32 0.0, %v2358
      %v2360 = vpop.f32.mrf.mxu0
      %v2361 = vpop.f32.mrf.mxu0
      %v2362 = vadd.f32 0.0, %v2361
      %v2363 = vpop.f32.mrf.mxu0
      %2364 = vmatprep.mubr.bf16.mxu0 0
      %2365 = vmatmul.mubr.bf16.gmra.mxu0 %v1405
      %v2366 = vpop.f32.mrf.mxu0
      %v2367 = vadd.f32 0.0, %v2366
      %v2368 = vpop.f32.mrf.mxu0
      %v2369 = vpop.f32.mrf.mxu0
      %v2370 = vadd.f32 0.0, %v2369
      %v2371 = vpop.f32.mrf.mxu0
      %2372 = vmatprep.mubr.bf16.mxu0 0
      %2373 = vmatmul.mubr.bf16.gmra.mxu0 %v1406
      %v2374 = vpop.f32.mrf.mxu0
      %v2375 = vadd.f32 0.0, %v2374
      %v2376 = vpop.f32.mrf.mxu0
      %v2377 = vpop.f32.mrf.mxu0
      %v2378 = vadd.f32 0.0, %v2377
      %v2379 = vpop.f32.mrf.mxu0
      %2380 = vmatprep.mubr.bf16.mxu0 0
      %2381 = vmatmul.mubr.bf16.gmra.mxu0 %v1407
      %v2382 = vpop.f32.mrf.mxu0
      %v2383 = vadd.f32 0.0, %v2382
      %v2384 = vpop.f32.mrf.mxu0
      %v2385 = vpop.f32.mrf.mxu0
      %v2386 = vadd.f32 0.0, %v2385
      %v2387 = vpop.f32.mrf.mxu0
      %2388 = vmatprep.mubr.bf16.mxu0 0
      %2389 = vmatmul.mubr.bf16.gmra.mxu0 %v1408
      %v2390 = vpop.f32.mrf.mxu0
      %v2391 = vadd.f32 0.0, %v2390
      %v2392 = vpop.f32.mrf.mxu0
      %v2393 = vpop.f32.mrf.mxu0
      %v2394 = vadd.f32 0.0, %v2393
      %v2395 = vpop.f32.mrf.mxu0
      %2396 = vmatprep.mubr.bf16.mxu0 0
      %2397 = vmatmul.mubr.bf16.gmra.mxu0 %v1409
      %v2398 = vpop.f32.mrf.mxu0
      %v2399 = vadd.f32 0.0, %v2398
      %v2400 = vpop.f32.mrf.mxu0
      %v2401 = vpop.f32.mrf.mxu0
      %v2402 = vadd.f32 0.0, %v2401
      %v2403 = vpop.f32.mrf.mxu0
      %2404 = vmatprep.mubr.bf16.mxu0 0
      %2405 = vmatmul.mubr.bf16.gmra.mxu0 %v1410
      %v2406 = vpop.f32.mrf.mxu0
      %v2407 = vadd.f32 0.0, %v2406
      %v2408 = vpop.f32.mrf.mxu0
      %v2409 = vpop.f32.mrf.mxu0
      %v2410 = vadd.f32 0.0, %v2409
      %v2411 = vpop.f32.mrf.mxu0
      %2412 = vmatprep.mubr.bf16.mxu0 0
      %2413 = vmatmul.mubr.bf16.gmra.mxu0 %v1411
      %v2414 = vpop.f32.mrf.mxu0
      %v2415 = vadd.f32 0.0, %v2414
      %v2416 = vpop.f32.mrf.mxu0
      %v2417 = vpop.f32.mrf.mxu0
      %v2418 = vadd.f32 0.0, %v2417
      %v2419 = vpop.f32.mrf.mxu0
      %2420 = vmatprep.mubr.bf16.mxu0 0
      %2421 = vmatmul.mubr.bf16.gmra.mxu0 %v1412
      %v2422 = vpop.f32.mrf.mxu0
      %v2423 = vadd.f32 0.0, %v2422
      %v2424 = vpop.f32.mrf.mxu0
      %v2425 = vpop.f32.mrf.mxu0
      %v2426 = vadd.f32 0.0, %v2425
      %v2427 = vpop.f32.mrf.mxu0
      %2428 = vmatprep.mubr.bf16.mxu0 0
      %2429 = vmatmul.mubr.bf16.gmra.mxu0 %v1413
      %v2430 = vpop.f32.mrf.mxu0
      %v2431 = vadd.f32 0.0, %v2430
      %v2432 = vpop.f32.mrf.mxu0
      %v2433 = vpop.f32.mrf.mxu0
      %v2434 = vadd.f32 0.0, %v2433
      %v2435 = vpop.f32.mrf.mxu0
      %2436 = vmatprep.mubr.bf16.mxu0 0
      %2437 = vmatmul.mubr.bf16.gmra.mxu0 %v1414
      %v2438 = vpop.f32.mrf.mxu0
      %v2439 = vadd.f32 0.0, %v2438
      %v2440 = vpop.f32.mrf.mxu0
      %v2441 = vpop.f32.mrf.mxu0
      %v2442 = vadd.f32 0.0, %v2441
      %v2443 = vpop.f32.mrf.mxu0
      %2444 = vmatprep.mubr.bf16.mxu0 0
      %2445 = vmatmul.mubr.bf16.gmra.mxu0 %v1415
      %v2446 = vpop.f32.mrf.mxu0
      %v2447 = vadd.f32 0.0, %v2446
      %v2448 = vpop.f32.mrf.mxu0
      %v2449 = vpop.f32.mrf.mxu0
      %v2450 = vadd.f32 0.0, %v2449
      %v2451 = vpop.f32.mrf.mxu0
      %2452 = vmatprep.mubr.bf16.mxu0 0
      %2453 = vmatmul.mubr.bf16.gmra.mxu0 %v2250
      %v2454 = vpop.f32.mrf.mxu0
      %v2455 = vadd.f32 0.0, %v2454
      %v2456 = vpop.f32.mrf.mxu0
      %v2457 = vpop.f32.mrf.mxu0
      %v2458 = vadd.f32 0.0, %v2457
      %v2459 = vpop.f32.mrf.mxu0
      %2460 = vdwg.mxu0
      %v2461 = vadd.f32 %v2191, %v2335
      %v2462 = vadd.f32 %v2192, %v2338
      %v2463 = vadd.f32 %v2193, %v2343
      %v2464 = vadd.f32 %v2194, %v2346
      %v2465 = vadd.f32 %v2195, %v2351
      %v2466 = vadd.f32 %v2196, %v2354
      %v2467 = vadd.f32 %v2197, %v2359
      %v2468 = vadd.f32 %v2198, %v2362
      %v2469 = vadd.f32 %v2199, %v2367
      %v2470 = vadd.f32 %v2200, %v2370
      %v2471 = vadd.f32 %v2201, %v2375
      %v2472 = vadd.f32 %v2202, %v2378
      %v2473 = vadd.f32 %v2203, %v2383
      %v2474 = vadd.f32 %v2204, %v2386
      %v2475 = vadd.f32 %v2205, %v2391
      %v2476 = vadd.f32 %v2206, %v2394
      %v2477 = vadd.f32 %v2207, %v2399
      %v2478 = vadd.f32 %v2208, %v2402
      %v2479 = vadd.f32 %v2209, %v2407
      %v2480 = vadd.f32 %v2210, %v2410
      %v2481 = vadd.f32 %v2211, %v2415
      %v2482 = vadd.f32 %v2212, %v2418
      %v2483 = vadd.f32 %v2213, %v2423
      %v2484 = vadd.f32 %v2214, %v2426
      %v2485 = vadd.f32 %v2215, %v2431
      %v2486 = vadd.f32 %v2216, %v2434
      %v2487 = vadd.f32 %v2217, %v2439
      %v2488 = vadd.f32 %v2218, %v2442
      %v2489 = vadd.f32 %v2219, %v2447
      %v2490 = vadd.f32 %v2220, %v2450
      %v2491 = vadd.f32 %v2221, %v2455
      %v2492 = vadd.f32 %v2222, %v2458
      %s2493 = scalar_lea.vmem %s1, 384
      %v2494 = vld [vmem:[%s2493] sm:$0xf]
      %v2495 = vld [vmem:[%s2493 + $0x4] sm:$0xf]
      %v2496 = vld [vmem:[%s2493 + $0x8] sm:$0xf]
      %v2497 = vld [vmem:[%s2493 + $0xc] sm:$0xf]
      %v2498 = vld [vmem:[%s2493 + $0x10] sm:$0xf]
      %v2499 = vld [vmem:[%s2493 + $0x14] sm:$0xf]
      %v2500 = vld [vmem:[%s2493 + $0x18] sm:$0xf]
      %v2501 = vld [vmem:[%s2493 + $0x1c] sm:$0xf]
      %v2502 = vld [vmem:[%s2493 + $0x20] sm:$0xf]
      %v2503 = vld [vmem:[%s2493 + $0x24] sm:$0xf]
      %v2504 = vld [vmem:[%s2493 + $0x28] sm:$0xf]
      %v2505 = vld [vmem:[%s2493 + $0x2c] sm:$0xf]
      %v2506 = vld [vmem:[%s2493 + $0x30] sm:$0xf]
      %v2507 = vld [vmem:[%s2493 + $0x34] sm:$0xf]
      %v2508 = vld [vmem:[%s2493 + $0x38] sm:$0xf]
      %v2509 = vld [vmem:[%s2493 + $0x3c] sm:$0xf]
      %v2512 = vunpack.c.l.b16 %v219
      %v2513 = vunpack.c.l.b16 %v220
      %v2514 = vpack.c.b16 %v2513, %v2512
      %v2532 = vunpack.c.l.b16 %v2494
      %v2533 = vunpack.c.l.b16 %v2495
      %v2534 = vunpack.c.l.b16 %v2496
      %v2535 = vunpack.c.l.b16 %v2497
      %v2536 = vunpack.c.l.b16 %v2498
      %v2537 = vunpack.c.l.b16 %v2499
      %v2538 = vunpack.c.l.b16 %v2500
      %v2539 = vunpack.c.l.b16 %v2501
      %v2540 = vunpack.c.l.b16 %v2502
      %v2541 = vunpack.c.l.b16 %v2503
      %v2542 = vunpack.c.l.b16 %v2504
      %v2543 = vunpack.c.l.b16 %v2505
      %v2544 = vunpack.c.l.b16 %v2506
      %v2545 = vunpack.c.l.b16 %v2507
      %v2546 = vunpack.c.l.b16 %v2508
      %v2547 = vunpack.c.l.b16 %v2509
      %v2548 = vpack.c.b16 %v2533, %v2532
      %v2549 = vpack.c.b16 %v2535, %v2534
      %v2550 = vpack.c.b16 %v2537, %v2536
      %v2551 = vpack.c.b16 %v2539, %v2538
      %v2552 = vpack.c.b16 %v2541, %v2540
      %v2553 = vpack.c.b16 %v2543, %v2542
      %v2554 = vpack.c.b16 %v2545, %v2544
      %v2555 = vpack.c.b16 %v2547, %v2546
      %2564 = vmatprep.subr.bf16.mxu0 0
      %2565 = vmatpush1.bf16.msra.mxu0 %v2555
      %2566 = vmatprep.subr.bf16.mxu0 0
      %2567 = vmatpush1.bf16.msra.mxu0 %v2554
      %2568 = vmatprep.subr.bf16.mxu0 0
      %2569 = vmatpush1.bf16.msra.mxu0 %v2553
      %2570 = vmatprep.subr.bf16.mxu0 0
      %2571 = vmatpush1.bf16.msra.mxu0 %v2552
      %2572 = vmatprep.subr.bf16.mxu0 0
      %2573 = vmatpush1.bf16.msra.mxu0 %v2551
      %2574 = vmatprep.subr.bf16.mxu0 0
      %2575 = vmatpush1.bf16.msra.mxu0 %v2550
      %2576 = vmatprep.subr.bf16.mxu0 0
      %2577 = vmatpush1.bf16.msra.mxu0 %v2549
      %2578 = vmatprep.subr.bf16.mxu0 0
      %2579 = vmatpush1.bf16.msra.mxu0 %v2548
      %2580 = vmatprep.subr.bf16.mxu0 0
      %2581 = vmatpush2.bf16.msra.mxu0 0
      %2582 = vmatprep.subr.bf16.mxu0 0
      %2583 = vmatpush2.bf16.msra.mxu0 0
      %2584 = vmatprep.subr.bf16.mxu0 0
      %2585 = vmatpush2.bf16.msra.mxu0 0
      %2586 = vmatprep.subr.bf16.mxu0 0
      %2587 = vmatpush2.bf16.msra.mxu0 0
      %2588 = vmatprep.subr.bf16.mxu0 0
      %2589 = vmatpush2.bf16.msra.mxu0 0
      %2590 = vmatprep.subr.bf16.mxu0 0
      %2591 = vmatpush2.bf16.msra.mxu0 0
      %2592 = vmatprep.subr.bf16.mxu0 0
      %2593 = vmatpush2.bf16.msra.mxu0 0
      %2594 = vmatprep.subr.bf16.mxu0 0
      %2595 = vmatpush2.bf16.msra.mxu0 0
      %2596 = vmatprep.mubr.bf16.mxu0 0
      %2597 = vmatmul.mubr.bf16.gmra.mxu0 %v981
      %v2598 = vpop.f32.mrf.mxu0
      %v2599 = vadd.f32 0.0, %v2598
      %v2600 = vpop.f32.mrf.mxu0
      %v2601 = vpop.f32.mrf.mxu0
      %v2602 = vadd.f32 0.0, %v2601
      %v2603 = vpop.f32.mrf.mxu0
      %2604 = vmatprep.mubr.bf16.mxu0 0
      %2605 = vmatmul.mubr.bf16.gmra.mxu0 %v982
      %v2606 = vpop.f32.mrf.mxu0
      %v2607 = vadd.f32 0.0, %v2606
      %v2608 = vpop.f32.mrf.mxu0
      %v2609 = vpop.f32.mrf.mxu0
      %v2610 = vadd.f32 0.0, %v2609
      %v2611 = vpop.f32.mrf.mxu0
      %2612 = vmatprep.mubr.bf16.mxu0 0
      %2613 = vmatmul.mubr.bf16.gmra.mxu0 %v983
      %v2614 = vpop.f32.mrf.mxu0
      %v2615 = vadd.f32 0.0, %v2614
      %v2616 = vpop.f32.mrf.mxu0
      %v2617 = vpop.f32.mrf.mxu0
      %v2618 = vadd.f32 0.0, %v2617
      %v2619 = vpop.f32.mrf.mxu0
      %2620 = vmatprep.mubr.bf16.mxu0 0
      %2621 = vmatmul.mubr.bf16.gmra.mxu0 %v984
      %v2622 = vpop.f32.mrf.mxu0
      %v2623 = vadd.f32 0.0, %v2622
      %v2624 = vpop.f32.mrf.mxu0
      %v2625 = vpop.f32.mrf.mxu0
      %v2626 = vadd.f32 0.0, %v2625
      %v2627 = vpop.f32.mrf.mxu0
      %2628 = vmatprep.mubr.bf16.mxu0 0
      %2629 = vmatmul.mubr.bf16.gmra.mxu0 %v985
      %v2630 = vpop.f32.mrf.mxu0
      %v2631 = vadd.f32 0.0, %v2630
      %v2632 = vpop.f32.mrf.mxu0
      %v2633 = vpop.f32.mrf.mxu0
      %v2634 = vadd.f32 0.0, %v2633
      %v2635 = vpop.f32.mrf.mxu0
      %2636 = vmatprep.mubr.bf16.mxu0 0
      %2637 = vmatmul.mubr.bf16.gmra.mxu0 %v986
      %v2638 = vpop.f32.mrf.mxu0
      %v2639 = vadd.f32 0.0, %v2638
      %v2640 = vpop.f32.mrf.mxu0
      %v2641 = vpop.f32.mrf.mxu0
      %v2642 = vadd.f32 0.0, %v2641
      %v2643 = vpop.f32.mrf.mxu0
      %2644 = vmatprep.mubr.bf16.mxu0 0
      %2645 = vmatmul.mubr.bf16.gmra.mxu0 %v987
      %v2646 = vpop.f32.mrf.mxu0
      %v2647 = vadd.f32 0.0, %v2646
      %v2648 = vpop.f32.mrf.mxu0
      %v2649 = vpop.f32.mrf.mxu0
      %v2650 = vadd.f32 0.0, %v2649
      %v2651 = vpop.f32.mrf.mxu0
      %2652 = vmatprep.mubr.bf16.mxu0 0
      %2653 = vmatmul.mubr.bf16.gmra.mxu0 %v988
      %v2654 = vpop.f32.mrf.mxu0
      %v2655 = vadd.f32 0.0, %v2654
      %v2656 = vpop.f32.mrf.mxu0
      %v2657 = vpop.f32.mrf.mxu0
      %v2658 = vadd.f32 0.0, %v2657
      %v2659 = vpop.f32.mrf.mxu0
      %2660 = vmatprep.mubr.bf16.mxu0 0
      %2661 = vmatmul.mubr.bf16.gmra.mxu0 %v989
      %v2662 = vpop.f32.mrf.mxu0
      %v2663 = vadd.f32 0.0, %v2662
      %v2664 = vpop.f32.mrf.mxu0
      %v2665 = vpop.f32.mrf.mxu0
      %v2666 = vadd.f32 0.0, %v2665
      %v2667 = vpop.f32.mrf.mxu0
      %2668 = vmatprep.mubr.bf16.mxu0 0
      %2669 = vmatmul.mubr.bf16.gmra.mxu0 %v990
      %v2670 = vpop.f32.mrf.mxu0
      %v2671 = vadd.f32 0.0, %v2670
      %v2672 = vpop.f32.mrf.mxu0
      %v2673 = vpop.f32.mrf.mxu0
      %v2674 = vadd.f32 0.0, %v2673
      %v2675 = vpop.f32.mrf.mxu0
      %2676 = vmatprep.mubr.bf16.mxu0 0
      %2677 = vmatmul.mubr.bf16.gmra.mxu0 %v991
      %v2678 = vpop.f32.mrf.mxu0
      %v2679 = vadd.f32 0.0, %v2678
      %v2680 = vpop.f32.mrf.mxu0
      %v2681 = vpop.f32.mrf.mxu0
      %v2682 = vadd.f32 0.0, %v2681
      %v2683 = vpop.f32.mrf.mxu0
      %2684 = vmatprep.mubr.bf16.mxu0 0
      %2685 = vmatmul.mubr.bf16.gmra.mxu0 %v992
      %v2686 = vpop.f32.mrf.mxu0
      %v2687 = vadd.f32 0.0, %v2686
      %v2688 = vpop.f32.mrf.mxu0
      %v2689 = vpop.f32.mrf.mxu0
      %v2690 = vadd.f32 0.0, %v2689
      %v2691 = vpop.f32.mrf.mxu0
      %2692 = vmatprep.mubr.bf16.mxu0 0
      %2693 = vmatmul.mubr.bf16.gmra.mxu0 %v993
      %v2694 = vpop.f32.mrf.mxu0
      %v2695 = vadd.f32 0.0, %v2694
      %v2696 = vpop.f32.mrf.mxu0
      %v2697 = vpop.f32.mrf.mxu0
      %v2698 = vadd.f32 0.0, %v2697
      %v2699 = vpop.f32.mrf.mxu0
      %2700 = vmatprep.mubr.bf16.mxu0 0
      %2701 = vmatmul.mubr.bf16.gmra.mxu0 %v994
      %v2702 = vpop.f32.mrf.mxu0
      %v2703 = vadd.f32 0.0, %v2702
      %v2704 = vpop.f32.mrf.mxu0
      %v2705 = vpop.f32.mrf.mxu0
      %v2706 = vadd.f32 0.0, %v2705
      %v2707 = vpop.f32.mrf.mxu0
      %2708 = vmatprep.mubr.bf16.mxu0 0
      %2709 = vmatmul.mubr.bf16.gmra.mxu0 %v1694
      %v2710 = vpop.f32.mrf.mxu0
      %v2711 = vadd.f32 0.0, %v2710
      %v2712 = vpop.f32.mrf.mxu0
      %v2713 = vpop.f32.mrf.mxu0
      %v2714 = vadd.f32 0.0, %v2713
      %v2715 = vpop.f32.mrf.mxu0
      %2716 = vmatprep.mubr.bf16.mxu0 0
      %2717 = vmatmul.mubr.bf16.gmra.mxu0 %v2514
      %v2718 = vpop.f32.mrf.mxu0
      %v2719 = vadd.f32 0.0, %v2718
      %v2720 = vpop.f32.mrf.mxu0
      %v2721 = vpop.f32.mrf.mxu0
      %v2722 = vadd.f32 0.0, %v2721
      %v2723 = vpop.f32.mrf.mxu0
      %2724 = vdwg.mxu0
      %v2725 = vadd.f32 %v2461, %v2599
      %v2726 = vadd.f32 %v2462, %v2602
      %v2727 = vadd.f32 %v2463, %v2607
      %v2728 = vadd.f32 %v2464, %v2610
      %v2729 = vadd.f32 %v2465, %v2615
      %v2730 = vadd.f32 %v2466, %v2618
      %v2731 = vadd.f32 %v2467, %v2623
      %v2732 = vadd.f32 %v2468, %v2626
      %v2733 = vadd.f32 %v2469, %v2631
      %v2734 = vadd.f32 %v2470, %v2634
      %v2735 = vadd.f32 %v2471, %v2639
      %v2736 = vadd.f32 %v2472, %v2642
      %v2737 = vadd.f32 %v2473, %v2647
      %v2738 = vadd.f32 %v2474, %v2650
      %v2739 = vadd.f32 %v2475, %v2655
      %v2740 = vadd.f32 %v2476, %v2658
      %v2741 = vadd.f32 %v2477, %v2663
      %v2742 = vadd.f32 %v2478, %v2666
      %v2743 = vadd.f32 %v2479, %v2671
      %v2744 = vadd.f32 %v2480, %v2674
      %v2745 = vadd.f32 %v2481, %v2679
      %v2746 = vadd.f32 %v2482, %v2682
      %v2747 = vadd.f32 %v2483, %v2687
      %v2748 = vadd.f32 %v2484, %v2690
      %v2749 = vadd.f32 %v2485, %v2695
      %v2750 = vadd.f32 %v2486, %v2698
      %v2751 = vadd.f32 %v2487, %v2703
      %v2752 = vadd.f32 %v2488, %v2706
      %v2753 = vadd.f32 %v2489, %v2711
      %v2754 = vadd.f32 %v2490, %v2714
      %v2755 = vadd.f32 %v2491, %v2719
      %v2756 = vadd.f32 %v2492, %v2722
      %v2758 = vshrl.u32 %v219, 16
      %v2760 = vrot.slane %v2758, 4
      %v2761 = vshll.u32 %v219, 16
      %v2763 = vrot.slane %v2761, 5
      %v2764 = vor.u32 %v2760, %v2763
      %v2765 = vrot.slane %v2764, 4
      %v2767 = vshll.u32 %v220, 16
      %v2769 = vrot.slane %v2767, 5
      %v2770 = vsel %vm240, %v2765, %v2769
      %v2771 = vshrl.u32 %v220, 16
      %v2773 = vrot.slane %v2771, 4
      %v2774 = vor.u32 %v2773, %v2769
      %v2775 = vrot.slane %v2774, 4
      %v2777 = vshll.u32 %v221, 16
      %v2779 = vrot.slane %v2777, 5
      %v2780 = vsel %vm240, %v2775, %v2779
      %s2781 = scalar_lea.vmem %s1, 448
      %v2782 = vld [vmem:[%s2781] sm:$0xf]
      %v2783 = vld [vmem:[%s2781 + $0x4] sm:$0xf]
      %v2784 = vld [vmem:[%s2781 + $0x8] sm:$0xf]
      %v2785 = vld [vmem:[%s2781 + $0xc] sm:$0xf]
      %v2786 = vld [vmem:[%s2781 + $0x10] sm:$0xf]
      %v2787 = vld [vmem:[%s2781 + $0x14] sm:$0xf]
      %v2788 = vld [vmem:[%s2781 + $0x18] sm:$0xf]
      %v2789 = vld [vmem:[%s2781 + $0x1c] sm:$0xf]
      %v2790 = vld [vmem:[%s2781 + $0x20] sm:$0xf]
      %v2791 = vld [vmem:[%s2781 + $0x24] sm:$0xf]
      %v2792 = vld [vmem:[%s2781 + $0x28] sm:$0xf]
      %v2793 = vld [vmem:[%s2781 + $0x2c] sm:$0xf]
      %v2794 = vld [vmem:[%s2781 + $0x30] sm:$0xf]
      %v2795 = vld [vmem:[%s2781 + $0x34] sm:$0xf]
      %v2796 = vld [vmem:[%s2781 + $0x38] sm:$0xf]
      %v2797 = vld [vmem:[%s2781 + $0x3c] sm:$0xf]
      %v2798 = vunpack.c.l.b16 %v2770
      %v2799 = vunpack.c.l.b16 %v2780
      %v2800 = vpack.c.b16 %v2799, %v2798
      %v2818 = vunpack.c.l.b16 %v2782
      %v2819 = vunpack.c.l.b16 %v2783
      %v2820 = vunpack.c.l.b16 %v2784
      %v2821 = vunpack.c.l.b16 %v2785
      %v2822 = vunpack.c.l.b16 %v2786
      %v2823 = vunpack.c.l.b16 %v2787
      %v2824 = vunpack.c.l.b16 %v2788
      %v2825 = vunpack.c.l.b16 %v2789
      %v2826 = vunpack.c.l.b16 %v2790
      %v2827 = vunpack.c.l.b16 %v2791
      %v2828 = vunpack.c.l.b16 %v2792
      %v2829 = vunpack.c.l.b16 %v2793
      %v2830 = vunpack.c.l.b16 %v2794
      %v2831 = vunpack.c.l.b16 %v2795
      %v2832 = vunpack.c.l.b16 %v2796
      %v2833 = vunpack.c.l.b16 %v2797
      %v2834 = vpack.c.b16 %v2819, %v2818
      %v2835 = vpack.c.b16 %v2821, %v2820
      %v2836 = vpack.c.b16 %v2823, %v2822
      %v2837 = vpack.c.b16 %v2825, %v2824
      %v2838 = vpack.c.b16 %v2827, %v2826
      %v2839 = vpack.c.b16 %v2829, %v2828
      %v2840 = vpack.c.b16 %v2831, %v2830
      %v2841 = vpack.c.b16 %v2833, %v2832
      %2850 = vmatprep.subr.bf16.mxu0 0
      %2851 = vmatpush1.bf16.msra.mxu0 %v2841
      %2852 = vmatprep.subr.bf16.mxu0 0
      %2853 = vmatpush1.bf16.msra.mxu0 %v2840
      %2854 = vmatprep.subr.bf16.mxu0 0
      %2855 = vmatpush1.bf16.msra.mxu0 %v2839
      %2856 = vmatprep.subr.bf16.mxu0 0
      %2857 = vmatpush1.bf16.msra.mxu0 %v2838
      %2858 = vmatprep.subr.bf16.mxu0 0
      %2859 = vmatpush1.bf16.msra.mxu0 %v2837
      %2860 = vmatprep.subr.bf16.mxu0 0
      %2861 = vmatpush1.bf16.msra.mxu0 %v2836
      %2862 = vmatprep.subr.bf16.mxu0 0
      %2863 = vmatpush1.bf16.msra.mxu0 %v2835
      %2864 = vmatprep.subr.bf16.mxu0 0
      %2865 = vmatpush1.bf16.msra.mxu0 %v2834
      %2866 = vmatprep.subr.bf16.mxu0 0
      %2867 = vmatpush2.bf16.msra.mxu0 0
      %2868 = vmatprep.subr.bf16.mxu0 0
      %2869 = vmatpush2.bf16.msra.mxu0 0
      %2870 = vmatprep.subr.bf16.mxu0 0
      %2871 = vmatpush2.bf16.msra.mxu0 0
      %2872 = vmatprep.subr.bf16.mxu0 0
      %2873 = vmatpush2.bf16.msra.mxu0 0
      %2874 = vmatprep.subr.bf16.mxu0 0
      %2875 = vmatpush2.bf16.msra.mxu0 0
      %2876 = vmatprep.subr.bf16.mxu0 0
      %2877 = vmatpush2.bf16.msra.mxu0 0
      %2878 = vmatprep.subr.bf16.mxu0 0
      %2879 = vmatpush2.bf16.msra.mxu0 0
      %2880 = vmatprep.subr.bf16.mxu0 0
      %2881 = vmatpush2.bf16.msra.mxu0 0
      %2882 = vmatprep.mubr.bf16.mxu0 0
      %2883 = vmatmul.mubr.bf16.gmra.mxu0 %v676
      %v2884 = vpop.f32.mrf.mxu0
      %v2885 = vadd.f32 0.0, %v2884
      %v2886 = vpop.f32.mrf.mxu0
      %v2887 = vpop.f32.mrf.mxu0
      %v2888 = vadd.f32 0.0, %v2887
      %v2889 = vpop.f32.mrf.mxu0
      %2890 = vmatprep.mubr.bf16.mxu0 0
      %2891 = vmatmul.mubr.bf16.gmra.mxu0 %v677
      %v2892 = vpop.f32.mrf.mxu0
      %v2893 = vadd.f32 0.0, %v2892
      %v2894 = vpop.f32.mrf.mxu0
      %v2895 = vpop.f32.mrf.mxu0
      %v2896 = vadd.f32 0.0, %v2895
      %v2897 = vpop.f32.mrf.mxu0
      %2898 = vmatprep.mubr.bf16.mxu0 0
      %2899 = vmatmul.mubr.bf16.gmra.mxu0 %v678
      %v2900 = vpop.f32.mrf.mxu0
      %v2901 = vadd.f32 0.0, %v2900
      %v2902 = vpop.f32.mrf.mxu0
      %v2903 = vpop.f32.mrf.mxu0
      %v2904 = vadd.f32 0.0, %v2903
      %v2905 = vpop.f32.mrf.mxu0
      %2906 = vmatprep.mubr.bf16.mxu0 0
      %2907 = vmatmul.mubr.bf16.gmra.mxu0 %v679
      %v2908 = vpop.f32.mrf.mxu0
      %v2909 = vadd.f32 0.0, %v2908
      %v2910 = vpop.f32.mrf.mxu0
      %v2911 = vpop.f32.mrf.mxu0
      %v2912 = vadd.f32 0.0, %v2911
      %v2913 = vpop.f32.mrf.mxu0
      %2914 = vmatprep.mubr.bf16.mxu0 0
      %2915 = vmatmul.mubr.bf16.gmra.mxu0 %v680
      %v2916 = vpop.f32.mrf.mxu0
      %v2917 = vadd.f32 0.0, %v2916
      %v2918 = vpop.f32.mrf.mxu0
      %v2919 = vpop.f32.mrf.mxu0
      %v2920 = vadd.f32 0.0, %v2919
      %v2921 = vpop.f32.mrf.mxu0
      %2922 = vmatprep.mubr.bf16.mxu0 0
      %2923 = vmatmul.mubr.bf16.gmra.mxu0 %v681
      %v2924 = vpop.f32.mrf.mxu0
      %v2925 = vadd.f32 0.0, %v2924
      %v2926 = vpop.f32.mrf.mxu0
      %v2927 = vpop.f32.mrf.mxu0
      %v2928 = vadd.f32 0.0, %v2927
      %v2929 = vpop.f32.mrf.mxu0
      %2930 = vmatprep.mubr.bf16.mxu0 0
      %2931 = vmatmul.mubr.bf16.gmra.mxu0 %v682
      %v2932 = vpop.f32.mrf.mxu0
      %v2933 = vadd.f32 0.0, %v2932
      %v2934 = vpop.f32.mrf.mxu0
      %v2935 = vpop.f32.mrf.mxu0
      %v2936 = vadd.f32 0.0, %v2935
      %v2937 = vpop.f32.mrf.mxu0
      %2938 = vmatprep.mubr.bf16.mxu0 0
      %2939 = vmatmul.mubr.bf16.gmra.mxu0 %v683
      %v2940 = vpop.f32.mrf.mxu0
      %v2941 = vadd.f32 0.0, %v2940
      %v2942 = vpop.f32.mrf.mxu0
      %v2943 = vpop.f32.mrf.mxu0
      %v2944 = vadd.f32 0.0, %v2943
      %v2945 = vpop.f32.mrf.mxu0
      %2946 = vmatprep.mubr.bf16.mxu0 0
      %2947 = vmatmul.mubr.bf16.gmra.mxu0 %v684
      %v2948 = vpop.f32.mrf.mxu0
      %v2949 = vadd.f32 0.0, %v2948
      %v2950 = vpop.f32.mrf.mxu0
      %v2951 = vpop.f32.mrf.mxu0
      %v2952 = vadd.f32 0.0, %v2951
      %v2953 = vpop.f32.mrf.mxu0
      %2954 = vmatprep.mubr.bf16.mxu0 0
      %2955 = vmatmul.mubr.bf16.gmra.mxu0 %v685
      %v2956 = vpop.f32.mrf.mxu0
      %v2957 = vadd.f32 0.0, %v2956
      %v2958 = vpop.f32.mrf.mxu0
      %v2959 = vpop.f32.mrf.mxu0
      %v2960 = vadd.f32 0.0, %v2959
      %v2961 = vpop.f32.mrf.mxu0
      %2962 = vmatprep.mubr.bf16.mxu0 0
      %2963 = vmatmul.mubr.bf16.gmra.mxu0 %v686
      %v2964 = vpop.f32.mrf.mxu0
      %v2965 = vadd.f32 0.0, %v2964
      %v2966 = vpop.f32.mrf.mxu0
      %v2967 = vpop.f32.mrf.mxu0
      %v2968 = vadd.f32 0.0, %v2967
      %v2969 = vpop.f32.mrf.mxu0
      %2970 = vmatprep.mubr.bf16.mxu0 0
      %2971 = vmatmul.mubr.bf16.gmra.mxu0 %v687
      %v2972 = vpop.f32.mrf.mxu0
      %v2973 = vadd.f32 0.0, %v2972
      %v2974 = vpop.f32.mrf.mxu0
      %v2975 = vpop.f32.mrf.mxu0
      %v2976 = vadd.f32 0.0, %v2975
      %v2977 = vpop.f32.mrf.mxu0
      %2978 = vmatprep.mubr.bf16.mxu0 0
      %2979 = vmatmul.mubr.bf16.gmra.mxu0 %v688
      %v2980 = vpop.f32.mrf.mxu0
      %v2981 = vadd.f32 0.0, %v2980
      %v2982 = vpop.f32.mrf.mxu0
      %v2983 = vpop.f32.mrf.mxu0
      %v2984 = vadd.f32 0.0, %v2983
      %v2985 = vpop.f32.mrf.mxu0
      %2986 = vmatprep.mubr.bf16.mxu0 0
      %2987 = vmatmul.mubr.bf16.gmra.mxu0 %v689
      %v2988 = vpop.f32.mrf.mxu0
      %v2989 = vadd.f32 0.0, %v2988
      %v2990 = vpop.f32.mrf.mxu0
      %v2991 = vpop.f32.mrf.mxu0
      %v2992 = vadd.f32 0.0, %v2991
      %v2993 = vpop.f32.mrf.mxu0
      %2994 = vmatprep.mubr.bf16.mxu0 0
      %2995 = vmatmul.mubr.bf16.gmra.mxu0 %v1980
      %v2996 = vpop.f32.mrf.mxu0
      %v2997 = vadd.f32 0.0, %v2996
      %v2998 = vpop.f32.mrf.mxu0
      %v2999 = vpop.f32.mrf.mxu0
      %v3000 = vadd.f32 0.0, %v2999
      %v3001 = vpop.f32.mrf.mxu0
      %3002 = vmatprep.mubr.bf16.mxu0 0
      %3003 = vmatmul.mubr.bf16.gmra.mxu0 %v2800
      %v3004 = vpop.f32.mrf.mxu0
      %v3005 = vadd.f32 0.0, %v3004
      %v3006 = vpop.f32.mrf.mxu0
      %v3007 = vpop.f32.mrf.mxu0
      %v3008 = vadd.f32 0.0, %v3007
      %v3009 = vpop.f32.mrf.mxu0
      %3010 = vdwg.mxu0
      %v3011 = vadd.f32 %v2725, %v2885
      %v3012 = vadd.f32 %v2726, %v2888
      %v3013 = vadd.f32 %v2727, %v2893
      %v3014 = vadd.f32 %v2728, %v2896
      %v3015 = vadd.f32 %v2729, %v2901
      %v3016 = vadd.f32 %v2730, %v2904
      %v3017 = vadd.f32 %v2731, %v2909
      %v3018 = vadd.f32 %v2732, %v2912
      %v3019 = vadd.f32 %v2733, %v2917
      %v3020 = vadd.f32 %v2734, %v2920
      %v3021 = vadd.f32 %v2735, %v2925
      %v3022 = vadd.f32 %v2736, %v2928
      %v3023 = vadd.f32 %v2737, %v2933
      %v3024 = vadd.f32 %v2738, %v2936
      %v3025 = vadd.f32 %v2739, %v2941
      %v3026 = vadd.f32 %v2740, %v2944
      %v3027 = vadd.f32 %v2741, %v2949
      %v3028 = vadd.f32 %v2742, %v2952
      %v3029 = vadd.f32 %v2743, %v2957
      %v3030 = vadd.f32 %v2744, %v2960
      %v3031 = vadd.f32 %v2745, %v2965
      %v3032 = vadd.f32 %v2746, %v2968
      %v3033 = vadd.f32 %v2747, %v2973
      %v3034 = vadd.f32 %v2748, %v2976
      %v3035 = vadd.f32 %v2749, %v2981
      %v3036 = vadd.f32 %v2750, %v2984
      %v3037 = vadd.f32 %v2751, %v2989
      %v3038 = vadd.f32 %v2752, %v2992
      %v3039 = vadd.f32 %v2753, %v2997
      %v3040 = vadd.f32 %v2754, %v3000
      %v3041 = vadd.f32 %v2755, %v3005
      %v3042 = vadd.f32 %v2756, %v3008
      %v3044 = vrot.slane %v219, 5
      %v3045 = vrot.slane %v3044, 4
      %v3046 = vrot.slane %v220, 5
      %v3047 = vsel %vm1238, %v3045, %v3046
      %v3048 = vrot.slane %v3046, 4
      %v3049 = vrot.slane %v221, 5
      %v3050 = vsel %vm1238, %v3048, %v3049
      %s3051 = scalar_lea.vmem %s1, 512
      %v3052 = vld [vmem:[%s3051] sm:$0xf]
      %v3053 = vld [vmem:[%s3051 + $0x4] sm:$0xf]
      %v3054 = vld [vmem:[%s3051 + $0x8] sm:$0xf]
      %v3055 = vld [vmem:[%s3051 + $0xc] sm:$0xf]
      %v3056 = vld [vmem:[%s3051 + $0x10] sm:$0xf]
      %v3057 = vld [vmem:[%s3051 + $0x14] sm:$0xf]
      %v3058 = vld [vmem:[%s3051 + $0x18] sm:$0xf]
      %v3059 = vld [vmem:[%s3051 + $0x1c] sm:$0xf]
      %v3060 = vld [vmem:[%s3051 + $0x20] sm:$0xf]
      %v3061 = vld [vmem:[%s3051 + $0x24] sm:$0xf]
      %v3062 = vld [vmem:[%s3051 + $0x28] sm:$0xf]
      %v3063 = vld [vmem:[%s3051 + $0x2c] sm:$0xf]
      %v3064 = vld [vmem:[%s3051 + $0x30] sm:$0xf]
      %v3065 = vld [vmem:[%s3051 + $0x34] sm:$0xf]
      %v3066 = vld [vmem:[%s3051 + $0x38] sm:$0xf]
      %v3067 = vld [vmem:[%s3051 + $0x3c] sm:$0xf]
      %v3068 = vunpack.c.l.b16 %v3047
      %v3069 = vunpack.c.l.b16 %v3050
      %v3070 = vpack.c.b16 %v3069, %v3068
      %v3088 = vunpack.c.l.b16 %v3052
      %v3089 = vunpack.c.l.b16 %v3053
      %v3090 = vunpack.c.l.b16 %v3054
      %v3091 = vunpack.c.l.b16 %v3055
      %v3092 = vunpack.c.l.b16 %v3056
      %v3093 = vunpack.c.l.b16 %v3057
      %v3094 = vunpack.c.l.b16 %v3058
      %v3095 = vunpack.c.l.b16 %v3059
      %v3096 = vunpack.c.l.b16 %v3060
      %v3097 = vunpack.c.l.b16 %v3061
      %v3098 = vunpack.c.l.b16 %v3062
      %v3099 = vunpack.c.l.b16 %v3063
      %v3100 = vunpack.c.l.b16 %v3064
      %v3101 = vunpack.c.l.b16 %v3065
      %v3102 = vunpack.c.l.b16 %v3066
      %v3103 = vunpack.c.l.b16 %v3067
      %v3104 = vpack.c.b16 %v3089, %v3088
      %v3105 = vpack.c.b16 %v3091, %v3090
      %v3106 = vpack.c.b16 %v3093, %v3092
      %v3107 = vpack.c.b16 %v3095, %v3094
      %v3108 = vpack.c.b16 %v3097, %v3096
      %v3109 = vpack.c.b16 %v3099, %v3098
      %v3110 = vpack.c.b16 %v3101, %v3100
      %v3111 = vpack.c.b16 %v3103, %v3102
      %3120 = vmatprep.subr.bf16.mxu0 0
      %3121 = vmatpush1.bf16.msra.mxu0 %v3111
      %3122 = vmatprep.subr.bf16.mxu0 0
      %3123 = vmatpush1.bf16.msra.mxu0 %v3110
      %3124 = vmatprep.subr.bf16.mxu0 0
      %3125 = vmatpush1.bf16.msra.mxu0 %v3109
      %3126 = vmatprep.subr.bf16.mxu0 0
      %3127 = vmatpush1.bf16.msra.mxu0 %v3108
      %3128 = vmatprep.subr.bf16.mxu0 0
      %3129 = vmatpush1.bf16.msra.mxu0 %v3107
      %3130 = vmatprep.subr.bf16.mxu0 0
      %3131 = vmatpush1.bf16.msra.mxu0 %v3106
      %3132 = vmatprep.subr.bf16.mxu0 0
      %3133 = vmatpush1.bf16.msra.mxu0 %v3105
      %3134 = vmatprep.subr.bf16.mxu0 0
      %3135 = vmatpush1.bf16.msra.mxu0 %v3104
      %3136 = vmatprep.subr.bf16.mxu0 0
      %3137 = vmatpush2.bf16.msra.mxu0 0
      %3138 = vmatprep.subr.bf16.mxu0 0
      %3139 = vmatpush2.bf16.msra.mxu0 0
      %3140 = vmatprep.subr.bf16.mxu0 0
      %3141 = vmatpush2.bf16.msra.mxu0 0
      %3142 = vmatprep.subr.bf16.mxu0 0
      %3143 = vmatpush2.bf16.msra.mxu0 0
      %3144 = vmatprep.subr.bf16.mxu0 0
      %3145 = vmatpush2.bf16.msra.mxu0 0
      %3146 = vmatprep.subr.bf16.mxu0 0
      %3147 = vmatpush2.bf16.msra.mxu0 0
      %3148 = vmatprep.subr.bf16.mxu0 0
      %3149 = vmatpush2.bf16.msra.mxu0 0
      %3150 = vmatprep.subr.bf16.mxu0 0
      %3151 = vmatpush2.bf16.msra.mxu0 0
      %3152 = vmatprep.mubr.bf16.mxu0 0
      %3153 = vmatmul.mubr.bf16.gmra.mxu0 %v1402
      %v3154 = vpop.f32.mrf.mxu0
      %v3155 = vadd.f32 0.0, %v3154
      %v3156 = vpop.f32.mrf.mxu0
      %v3157 = vpop.f32.mrf.mxu0
      %v3158 = vadd.f32 0.0, %v3157
      %v3159 = vpop.f32.mrf.mxu0
      %3160 = vmatprep.mubr.bf16.mxu0 0
      %3161 = vmatmul.mubr.bf16.gmra.mxu0 %v1403
      %v3162 = vpop.f32.mrf.mxu0
      %v3163 = vadd.f32 0.0, %v3162
      %v3164 = vpop.f32.mrf.mxu0
      %v3165 = vpop.f32.mrf.mxu0
      %v3166 = vadd.f32 0.0, %v3165
      %v3167 = vpop.f32.mrf.mxu0
      %3168 = vmatprep.mubr.bf16.mxu0 0
      %3169 = vmatmul.mubr.bf16.gmra.mxu0 %v1404
      %v3170 = vpop.f32.mrf.mxu0
      %v3171 = vadd.f32 0.0, %v3170
      %v3172 = vpop.f32.mrf.mxu0
      %v3173 = vpop.f32.mrf.mxu0
      %v3174 = vadd.f32 0.0, %v3173
      %v3175 = vpop.f32.mrf.mxu0
      %3176 = vmatprep.mubr.bf16.mxu0 0
      %3177 = vmatmul.mubr.bf16.gmra.mxu0 %v1405
      %v3178 = vpop.f32.mrf.mxu0
      %v3179 = vadd.f32 0.0, %v3178
      %v3180 = vpop.f32.mrf.mxu0
      %v3181 = vpop.f32.mrf.mxu0
      %v3182 = vadd.f32 0.0, %v3181
      %v3183 = vpop.f32.mrf.mxu0
      %3184 = vmatprep.mubr.bf16.mxu0 0
      %3185 = vmatmul.mubr.bf16.gmra.mxu0 %v1406
      %v3186 = vpop.f32.mrf.mxu0
      %v3187 = vadd.f32 0.0, %v3186
      %v3188 = vpop.f32.mrf.mxu0
      %v3189 = vpop.f32.mrf.mxu0
      %v3190 = vadd.f32 0.0, %v3189
      %v3191 = vpop.f32.mrf.mxu0
      %3192 = vmatprep.mubr.bf16.mxu0 0
      %3193 = vmatmul.mubr.bf16.gmra.mxu0 %v1407
      %v3194 = vpop.f32.mrf.mxu0
      %v3195 = vadd.f32 0.0, %v3194
      %v3196 = vpop.f32.mrf.mxu0
      %v3197 = vpop.f32.mrf.mxu0
      %v3198 = vadd.f32 0.0, %v3197
      %v3199 = vpop.f32.mrf.mxu0
      %3200 = vmatprep.mubr.bf16.mxu0 0
      %3201 = vmatmul.mubr.bf16.gmra.mxu0 %v1408
      %v3202 = vpop.f32.mrf.mxu0
      %v3203 = vadd.f32 0.0, %v3202
      %v3204 = vpop.f32.mrf.mxu0
      %v3205 = vpop.f32.mrf.mxu0
      %v3206 = vadd.f32 0.0, %v3205
      %v3207 = vpop.f32.mrf.mxu0
      %3208 = vmatprep.mubr.bf16.mxu0 0
      %3209 = vmatmul.mubr.bf16.gmra.mxu0 %v1409
      %v3210 = vpop.f32.mrf.mxu0
      %v3211 = vadd.f32 0.0, %v3210
      %v3212 = vpop.f32.mrf.mxu0
      %v3213 = vpop.f32.mrf.mxu0
      %v3214 = vadd.f32 0.0, %v3213
      %v3215 = vpop.f32.mrf.mxu0
      %3216 = vmatprep.mubr.bf16.mxu0 0
      %3217 = vmatmul.mubr.bf16.gmra.mxu0 %v1410
      %v3218 = vpop.f32.mrf.mxu0
      %v3219 = vadd.f32 0.0, %v3218
      %v3220 = vpop.f32.mrf.mxu0
      %v3221 = vpop.f32.mrf.mxu0
      %v3222 = vadd.f32 0.0, %v3221
      %v3223 = vpop.f32.mrf.mxu0
      %3224 = vmatprep.mubr.bf16.mxu0 0
      %3225 = vmatmul.mubr.bf16.gmra.mxu0 %v1411
      %v3226 = vpop.f32.mrf.mxu0
      %v3227 = vadd.f32 0.0, %v3226
      %v3228 = vpop.f32.mrf.mxu0
      %v3229 = vpop.f32.mrf.mxu0
      %v3230 = vadd.f32 0.0, %v3229
      %v3231 = vpop.f32.mrf.mxu0
      %3232 = vmatprep.mubr.bf16.mxu0 0
      %3233 = vmatmul.mubr.bf16.gmra.mxu0 %v1412
      %v3234 = vpop.f32.mrf.mxu0
      %v3235 = vadd.f32 0.0, %v3234
      %v3236 = vpop.f32.mrf.mxu0
      %v3237 = vpop.f32.mrf.mxu0
      %v3238 = vadd.f32 0.0, %v3237
      %v3239 = vpop.f32.mrf.mxu0
      %3240 = vmatprep.mubr.bf16.mxu0 0
      %3241 = vmatmul.mubr.bf16.gmra.mxu0 %v1413
      %v3242 = vpop.f32.mrf.mxu0
      %v3243 = vadd.f32 0.0, %v3242
      %v3244 = vpop.f32.mrf.mxu0
      %v3245 = vpop.f32.mrf.mxu0
      %v3246 = vadd.f32 0.0, %v3245
      %v3247 = vpop.f32.mrf.mxu0
      %3248 = vmatprep.mubr.bf16.mxu0 0
      %3249 = vmatmul.mubr.bf16.gmra.mxu0 %v1414
      %v3250 = vpop.f32.mrf.mxu0
      %v3251 = vadd.f32 0.0, %v3250
      %v3252 = vpop.f32.mrf.mxu0
      %v3253 = vpop.f32.mrf.mxu0
      %v3254 = vadd.f32 0.0, %v3253
      %v3255 = vpop.f32.mrf.mxu0
      %3256 = vmatprep.mubr.bf16.mxu0 0
      %3257 = vmatmul.mubr.bf16.gmra.mxu0 %v1415
      %v3258 = vpop.f32.mrf.mxu0
      %v3259 = vadd.f32 0.0, %v3258
      %v3260 = vpop.f32.mrf.mxu0
      %v3261 = vpop.f32.mrf.mxu0
      %v3262 = vadd.f32 0.0, %v3261
      %v3263 = vpop.f32.mrf.mxu0
      %3264 = vmatprep.mubr.bf16.mxu0 0
      %3265 = vmatmul.mubr.bf16.gmra.mxu0 %v2250
      %v3266 = vpop.f32.mrf.mxu0
      %v3267 = vadd.f32 0.0, %v3266
      %v3268 = vpop.f32.mrf.mxu0
      %v3269 = vpop.f32.mrf.mxu0
      %v3270 = vadd.f32 0.0, %v3269
      %v3271 = vpop.f32.mrf.mxu0
      %3272 = vmatprep.mubr.bf16.mxu0 0
      %3273 = vmatmul.mubr.bf16.gmra.mxu0 %v3070
      %v3274 = vpop.f32.mrf.mxu0
      %v3275 = vadd.f32 0.0, %v3274
      %v3276 = vpop.f32.mrf.mxu0
      %v3277 = vpop.f32.mrf.mxu0
      %v3278 = vadd.f32 0.0, %v3277
      %v3279 = vpop.f32.mrf.mxu0
      %3280 = vdwg.mxu0
      %v3281 = vadd.f32 %v3011, %v3155
      %v3282 = vadd.f32 %v3012, %v3158
      %v3283 = vadd.f32 %v3013, %v3163
      %v3284 = vadd.f32 %v3014, %v3166
      %v3285 = vadd.f32 %v3015, %v3171
      %v3286 = vadd.f32 %v3016, %v3174
      %v3287 = vadd.f32 %v3017, %v3179
      %v3288 = vadd.f32 %v3018, %v3182
      %v3289 = vadd.f32 %v3019, %v3187
      %v3290 = vadd.f32 %v3020, %v3190
      %v3291 = vadd.f32 %v3021, %v3195
      %v3292 = vadd.f32 %v3022, %v3198
      %v3293 = vadd.f32 %v3023, %v3203
      %v3294 = vadd.f32 %v3024, %v3206
      %v3295 = vadd.f32 %v3025, %v3211
      %v3296 = vadd.f32 %v3026, %v3214
      %v3297 = vadd.f32 %v3027, %v3219
      %v3298 = vadd.f32 %v3028, %v3222
      %v3299 = vadd.f32 %v3029, %v3227
      %v3300 = vadd.f32 %v3030, %v3230
      %v3301 = vadd.f32 %v3031, %v3235
      %v3302 = vadd.f32 %v3032, %v3238
      %v3303 = vadd.f32 %v3033, %v3243
      %v3304 = vadd.f32 %v3034, %v3246
      %v3305 = vadd.f32 %v3035, %v3251
      %v3306 = vadd.f32 %v3036, %v3254
      %v3307 = vadd.f32 %v3037, %v3259
      %v3308 = vadd.f32 %v3038, %v3262
      %v3309 = vadd.f32 %v3039, %v3267
      %v3310 = vadd.f32 %v3040, %v3270
      %v3311 = vadd.f32 %v3041, %v3275
      %v3312 = vadd.f32 %v3042, %v3278
      %v3313 = vld [vmem:[%s2] sm:$0x1]
      %v3315 = vlaneseq
      %v3316 = vshrl.u32 %v3315, 7
      %v3317 = vsub.s32 0, %v3316
      %v3318 = vrot.slane %v3313, %v3317
      %v3320 = vadd.f32 %v3281, %v3318
      %v3321 = vadd.f32 %v3282, %v3318
      %v3322 = vadd.f32 %v3283, %v3318
      %v3323 = vadd.f32 %v3284, %v3318
      %v3324 = vadd.f32 %v3285, %v3318
      %v3325 = vadd.f32 %v3286, %v3318
      %v3326 = vadd.f32 %v3287, %v3318
      %v3327 = vadd.f32 %v3288, %v3318
      %v3328 = vadd.f32 %v3289, %v3318
      %v3329 = vadd.f32 %v3290, %v3318
      %v3330 = vadd.f32 %v3291, %v3318
      %v3331 = vadd.f32 %v3292, %v3318
      %v3332 = vadd.f32 %v3293, %v3318
      %v3333 = vadd.f32 %v3294, %v3318
      %v3334 = vadd.f32 %v3295, %v3318
      %v3335 = vadd.f32 %v3296, %v3318
      %v3336 = vadd.f32 %v3297, %v3318
      %v3337 = vadd.f32 %v3298, %v3318
      %v3338 = vadd.f32 %v3299, %v3318
      %v3339 = vadd.f32 %v3300, %v3318
      %v3340 = vadd.f32 %v3301, %v3318
      %v3341 = vadd.f32 %v3302, %v3318
      %v3342 = vadd.f32 %v3303, %v3318
      %v3343 = vadd.f32 %v3304, %v3318
      %v3344 = vadd.f32 %v3305, %v3318
      %v3345 = vadd.f32 %v3306, %v3318
      %v3346 = vadd.f32 %v3307, %v3318
      %v3347 = vadd.f32 %v3308, %v3318
      %v3348 = vadd.f32 %v3309, %v3318
      %v3349 = vadd.f32 %v3310, %v3318
      %v3350 = vadd.f32 %v3311, %v3318
      %v3351 = vadd.f32 %v3312, %v3318
      %v3352 = vmax.f32 %v3320, 0.0
      %v3353 = vmax.f32 %v3321, 0.0
      %v3354 = vmax.f32 %v3322, 0.0
      %v3355 = vmax.f32 %v3323, 0.0
      %v3356 = vmax.f32 %v3324, 0.0
      %v3357 = vmax.f32 %v3325, 0.0
      %v3358 = vmax.f32 %v3326, 0.0
      %v3359 = vmax.f32 %v3327, 0.0
      %v3360 = vmax.f32 %v3328, 0.0
      %v3361 = vmax.f32 %v3329, 0.0
      %v3362 = vmax.f32 %v3330, 0.0
      %v3363 = vmax.f32 %v3331, 0.0
      %v3364 = vmax.f32 %v3332, 0.0
      %v3365 = vmax.f32 %v3333, 0.0
      %v3366 = vmax.f32 %v3334, 0.0
      %v3367 = vmax.f32 %v3335, 0.0
      %v3368 = vmax.f32 %v3336, 0.0
      %v3369 = vmax.f32 %v3337, 0.0
      %v3370 = vmax.f32 %v3338, 0.0
      %v3371 = vmax.f32 %v3339, 0.0
      %v3372 = vmax.f32 %v3340, 0.0
      %v3373 = vmax.f32 %v3341, 0.0
      %v3374 = vmax.f32 %v3342, 0.0
      %v3375 = vmax.f32 %v3343, 0.0
      %v3376 = vmax.f32 %v3344, 0.0
      %v3377 = vmax.f32 %v3345, 0.0
      %v3378 = vmax.f32 %v3346, 0.0
      %v3379 = vmax.f32 %v3347, 0.0
      %v3380 = vmax.f32 %v3348, 0.0
      %v3381 = vmax.f32 %v3349, 0.0
      %v3382 = vmax.f32 %v3350, 0.0
      %v3383 = vmax.f32 %v3351, 0.0
      %v3384 = vadd.f32 %v3352, %v3353
      %v3385 = vadd.f32 %v3384, %v3354
      %v3386 = vadd.f32 %v3385, %v3355
      %v3387 = vadd.f32 %v3386, %v3356
      %v3388 = vadd.f32 %v3387, %v3357
      %v3389 = vadd.f32 %v3388, %v3358
      %v3390 = vadd.f32 %v3389, %v3359
      %v3391 = vadd.f32 %v3390, %v3360
      %v3392 = vadd.f32 %v3391, %v3361
      %v3393 = vadd.f32 %v3392, %v3362
      %v3394 = vadd.f32 %v3393, %v3363
      %v3395 = vadd.f32 %v3394, %v3364
      %v3396 = vadd.f32 %v3395, %v3365
      %v3397 = vadd.f32 %v3396, %v3366
      %v3398 = vadd.f32 %v3397, %v3367
      %v3399 = vadd.f32 %v3398, %v3368
      %v3400 = vadd.f32 %v3399, %v3369
      %v3401 = vadd.f32 %v3400, %v3370
      %v3402 = vadd.f32 %v3401, %v3371
      %v3403 = vadd.f32 %v3402, %v3372
      %v3404 = vadd.f32 %v3403, %v3373
      %v3405 = vadd.f32 %v3404, %v3374
      %v3406 = vadd.f32 %v3405, %v3375
      %v3407 = vadd.f32 %v3406, %v3376
      %v3408 = vadd.f32 %v3407, %v3377
      %v3409 = vadd.f32 %v3408, %v3378
      %v3410 = vadd.f32 %v3409, %v3379
      %v3411 = vadd.f32 %v3410, %v3380
      %v3412 = vadd.f32 %v3411, %v3381
      %v3413 = vadd.f32 %v3412, %v3382
      %v3414 = vadd.f32 %v3413, %v3383
      %v3415 = vrot.slane %v3414, 4
      %v3416 = vadd.f32 %v3414, %v3415
      %v3417 = vrot.slane %v3416, 2
      %v3418 = vadd.f32 %v3416, %v3417
      %v3419 = vrot.slane %v3418, 1
      %v3420 = vadd.f32 %v3418, %v3419
      %v3421 = vmul.f32 %v3420, 0.00390625
      %3422 = vst [vmem:[%s166] sm:$0x1] %v3421
      %p3423 = scmp.lt.s32.totalorder %s14, 7
      %s3424 = scalar_select %p3423, %s14, 7
      %s3425 = scalar_lea.vmem %s3, %s3424
      // Predicated region
      $region33: #{essl_vicreg_forward.5} parent=31 // pred_check
        %p3426 = pneg %p100
      $region34: #{essl_vicreg_forward.5} parent=31 // pred_check_branch
        %3428 = sbr.rel (%p3426) target = $region36
      $region35: #{essl_vicreg_forward.5} parent=31 // pred_region
        _
      $region36: #{essl_vicreg_forward.5} parent=31 // pred_fallthru
        _
    $region32: #{essl_vicreg_forward.5} parent=5 // pred_fallthru
      _
    %p3429 = scmp.le.s32.totalorder 2, %s9
    // Predicated region
    $region37: #{essl_vicreg_forward.5} parent=5 // pred_check
      %p3430 = pneg %p3429
    $region38: #{essl_vicreg_forward.5} parent=5 // pred_check_branch
      %3432 = sbr.rel (%p3430) target = $region40
    $region39: #{essl_vicreg_forward.5} parent=5 // pred_region
      %s3433 = ssub.s32 %s9, 2
      // Predicated region
      $region41: #{essl_vicreg_forward.5} parent=39 // pred_check
        %p3434 = pneg %p106
      $region42: #{essl_vicreg_forward.5} parent=39 // pred_check_branch
        %3436 = sbr.rel (%p3434) target = $region44
      $region43: #{essl_vicreg_forward.5} parent=39 // pred_region
        %p3437 = scmp.lt.s32.totalorder %s15, 7
        %s3438 = scalar_select %p3437, %s15, 7
        %s3439 = scalar_lea.vmem %s3, %s3438
      $region44: #{essl_vicreg_forward.5} parent=39 // pred_fallthru
        _
    $region40: #{essl_vicreg_forward.5} parent=5 // pred_fallthru
      _
  $region6: #{essl_vicreg_forward.5} parent=0 // loop_footer
    %s13 = sadd.s32 1, %s9
  $region7: #{essl_vicreg_forward.5} parent=0 // loop_footer_branch
    %8 = sbr.rel target = $region3
  $region8: #{essl_vicreg_forward.5} parent=0 // loop_exit
    _

// kernel: essl_vicreg_forward.6
$region0: #{essl_vicreg_forward.6}
  #allocation0 [shape = 'u32[]', space=smem, size = 0x4, offset = 0x4, fixed_abs, tag = 'smem constant byte address 0x4 - core index']
  #allocation1 [shape = 'u32[144,128]{1,0:T(1,128)}', space=vmem, size = 0x12000, scoped, tag = 'internal scratch']
  %s0 = inlined_call_operand.vmem [shape: bf16[2,128], index: 0, kind: input, shape index: {}]
  %s1 = inlined_call_operand.vmem [shape: bf16[128,128], index: 1, kind: input, shape index: {}]
  %s2 = inlined_call_operand.vmem [shape: f32[1,128], index: 2, kind: input, shape index: {}, may-alias: {2,4,6,8,10}]
  %s3 = inlined_call_operand.vmem [shape: f32[1,128], index: 3, kind: input, shape index: {}]
  %s4 = inlined_call_operand.vmem [shape: f32[1,128], index: 4, kind: input, shape index: {}, may-alias: {2,4,6,8,10}]
  %s5 = inlined_call_operand.vmem [shape: bf16[128,128], index: 5, kind: input, shape index: {}]
  %s6 = inlined_call_operand.vmem [shape: f32[1,128], index: 6, kind: input, shape index: {}, may-alias: {2,4,6,8,10}]
  %s7 = inlined_call_operand.vmem [shape: f32[1,128], index: 7, kind: input, shape index: {}]
  %s8 = inlined_call_operand.vmem [shape: f32[1,128], index: 8, kind: input, shape index: {}, may-alias: {2,4,6,8,10}]
  %s9 = inlined_call_operand.vmem [shape: bf16[128,128], index: 9, kind: input, shape index: {}]
  %s10 = inlined_call_operand.vmem [shape: f32[1,128], index: 10, kind: input, shape index: {}, may-alias: {2,4,6,8,10}]
  %s11 = inlined_call_operand.vmem [shape: f32[2,128], index: 11, kind: output, shape index: {}]
  %s12 = sld [smem:[#allocation0]]
  $region54: #{essl_vicreg_forward.6} parent=0
    _
  %s14 = ssub.s32 1, %s12
  %s15 = scalar_select 0, %s14, %s12
  // Predicated region
  $region2: #{essl_vicreg_forward.6} parent=0 // pred_check
    _
  $region3: #{essl_vicreg_forward.6} parent=0 // pred_check_branch
    %17 = sbr.rel (0) target = $region5
  $region4: #{essl_vicreg_forward.6} parent=0 // pred_region
    _
  $region5: #{essl_vicreg_forward.6} parent=0 // pred_fallthru
    _
  // Predicated region
  $region6: #{essl_vicreg_forward.6} parent=0 // pred_check
    _
  $region7: #{essl_vicreg_forward.6} parent=0 // pred_check_branch
    %19 = sbr.rel (0) target = $region9
  $region8: #{essl_vicreg_forward.6} parent=0 // pred_region
    _
  $region9: #{essl_vicreg_forward.6} parent=0 // pred_fallthru
    _
  // Predicated region
  $region10: #{essl_vicreg_forward.6} parent=0 // pred_check
    _
  $region11: #{essl_vicreg_forward.6} parent=0 // pred_check_branch
    %21 = sbr.rel (0) target = $region13
  $region12: #{essl_vicreg_forward.6} parent=0 // pred_region
    _
  $region13: #{essl_vicreg_forward.6} parent=0 // pred_fallthru
    _
  // Predicated region
  $region14: #{essl_vicreg_forward.6} parent=0 // pred_check
    _
  $region15: #{essl_vicreg_forward.6} parent=0 // pred_check_branch
    %23 = sbr.rel (0) target = $region17
  $region16: #{essl_vicreg_forward.6} parent=0 // pred_region
    _
  $region17: #{essl_vicreg_forward.6} parent=0 // pred_fallthru
    _
  // Predicated region
  $region18: #{essl_vicreg_forward.6} parent=0 // pred_check
    _
  $region19: #{essl_vicreg_forward.6} parent=0 // pred_check_branch
    %25 = sbr.rel (0) target = $region21
  $region20: #{essl_vicreg_forward.6} parent=0 // pred_region
    _
  $region21: #{essl_vicreg_forward.6} parent=0 // pred_fallthru
    _
  // Predicated region
  $region22: #{essl_vicreg_forward.6} parent=0 // pred_check
    _
  $region23: #{essl_vicreg_forward.6} parent=0 // pred_check_branch
    %27 = sbr.rel (0) target = $region25
  $region24: #{essl_vicreg_forward.6} parent=0 // pred_region
    _
  $region25: #{essl_vicreg_forward.6} parent=0 // pred_fallthru
    _
  // Predicated region
  $region26: #{essl_vicreg_forward.6} parent=0 // pred_check
    _
  $region27: #{essl_vicreg_forward.6} parent=0 // pred_check_branch
    %29 = sbr.rel (0) target = $region29
  $region28: #{essl_vicreg_forward.6} parent=0 // pred_region
    _
  $region29: #{essl_vicreg_forward.6} parent=0 // pred_fallthru
    _
  // Predicated region
  $region30: #{essl_vicreg_forward.6} parent=0 // pred_check
    _
  $region31: #{essl_vicreg_forward.6} parent=0 // pred_check_branch
    %31 = sbr.rel (0) target = $region33
  $region32: #{essl_vicreg_forward.6} parent=0 // pred_region
    _
  $region33: #{essl_vicreg_forward.6} parent=0 // pred_fallthru
    _
  // Predicated region
  $region34: #{essl_vicreg_forward.6} parent=0 // pred_check
    _
  $region35: #{essl_vicreg_forward.6} parent=0 // pred_check_branch
    %33 = sbr.rel (0) target = $region37
  $region36: #{essl_vicreg_forward.6} parent=0 // pred_region
    _
  $region37: #{essl_vicreg_forward.6} parent=0 // pred_fallthru
    _
  // Predicated region
  $region38: #{essl_vicreg_forward.6} parent=0 // pred_check
    _
  $region39: #{essl_vicreg_forward.6} parent=0 // pred_check_branch
    %35 = sbr.rel (0) target = $region41
  $region40: #{essl_vicreg_forward.6} parent=0 // pred_region
    _
  $region41: #{essl_vicreg_forward.6} parent=0 // pred_fallthru
    _
  // Predicated region
  $region42: #{essl_vicreg_forward.6} parent=0 // pred_check
    _
  $region43: #{essl_vicreg_forward.6} parent=0 // pred_check_branch
    %37 = sbr.rel (0) target = $region45
  $region44: #{essl_vicreg_forward.6} parent=0 // pred_region
    _
  $region45: #{essl_vicreg_forward.6} parent=0 // pred_fallthru
    _
  %v39 = vld [vmem:[%s0] sm:$0x1]
  %v40 = vld [vmem:[%s1] sm:$0xf]
  %v41 = vld [vmem:[%s1 + $0x4] sm:$0xf]
  %v42 = vld [vmem:[%s1 + $0x8] sm:$0xf]
  %v43 = vld [vmem:[%s1 + $0xc] sm:$0xf]
  %v44 = vld [vmem:[%s1 + $0x10] sm:$0xf]
  %v45 = vld [vmem:[%s1 + $0x14] sm:$0xf]
  %v46 = vld [vmem:[%s1 + $0x18] sm:$0xf]
  %v47 = vld [vmem:[%s1 + $0x1c] sm:$0xf]
  %v48 = vld [vmem:[%s1 + $0x20] sm:$0xf]
  %v49 = vld [vmem:[%s1 + $0x24] sm:$0xf]
  %v50 = vld [vmem:[%s1 + $0x28] sm:$0xf]
  %v51 = vld [vmem:[%s1 + $0x2c] sm:$0xf]
  %v52 = vld [vmem:[%s1 + $0x30] sm:$0xf]
  %v53 = vld [vmem:[%s1 + $0x34] sm:$0xf]
  %v54 = vld [vmem:[%s1 + $0x38] sm:$0xf]
  %v55 = vld [vmem:[%s1 + $0x3c] sm:$0xf]
  %v56 = vld [vmem:[%s2] sm:$0x1]
  %v57 = vld [vmem:[%s3] sm:$0x1]
  %v58 = vld [vmem:[%s4] sm:$0x1]
  %v60 = vlaneseq
  %v61 = vshrl.u32 %v60, 7
  %v62 = vsub.s32 0, %v61
  %v63 = vrot.slane %v56, %v62
  %v81 = vunpack.c.l.b16 %v40
  %v82 = vunpack.c.l.b16 %v41
  %v83 = vunpack.c.l.b16 %v42
  %v84 = vunpack.c.l.b16 %v43
  %v85 = vunpack.c.l.b16 %v44
  %v86 = vunpack.c.l.b16 %v45
  %v87 = vunpack.c.l.b16 %v46
  %v88 = vunpack.c.l.b16 %v47
  %v89 = vunpack.c.l.b16 %v48
  %v90 = vunpack.c.l.b16 %v49
  %v91 = vunpack.c.l.b16 %v50
  %v92 = vunpack.c.l.b16 %v51
  %v93 = vunpack.c.l.b16 %v52
  %v94 = vunpack.c.l.b16 %v53
  %v95 = vunpack.c.l.b16 %v54
  %v96 = vunpack.c.l.b16 %v55
  %v97 = vpack.c.b16 %v82, %v81
  %v98 = vpack.c.b16 %v84, %v83
  %v99 = vpack.c.b16 %v86, %v85
  %v100 = vpack.c.b16 %v88, %v87
  %v101 = vpack.c.b16 %v90, %v89
  %v102 = vpack.c.b16 %v92, %v91
  %v103 = vpack.c.b16 %v94, %v93
  %v104 = vpack.c.b16 %v96, %v95
  %113 = vmatprep.subr.bf16.mxu0 0
  %114 = vmatpush1.bf16.msra.mxu0 %v104
  %115 = vmatprep.subr.bf16.mxu0 0
  %116 = vmatpush1.bf16.msra.mxu0 %v103
  %117 = vmatprep.subr.bf16.mxu0 0
  %118 = vmatpush1.bf16.msra.mxu0 %v102
  %119 = vmatprep.subr.bf16.mxu0 0
  %120 = vmatpush1.bf16.msra.mxu0 %v101
  %121 = vmatprep.subr.bf16.mxu0 0
  %122 = vmatpush1.bf16.msra.mxu0 %v100
  %123 = vmatprep.subr.bf16.mxu0 0
  %124 = vmatpush1.bf16.msra.mxu0 %v99
  %125 = vmatprep.subr.bf16.mxu0 0
  %126 = vmatpush1.bf16.msra.mxu0 %v98
  %127 = vmatprep.subr.bf16.mxu0 0
  %128 = vmatpush1.bf16.msra.mxu0 %v97
  %129 = vmatprep.subr.bf16.mxu0 0
  %130 = vmatpush2.bf16.msra.mxu0 0
  %131 = vmatprep.subr.bf16.mxu0 0
  %132 = vmatpush2.bf16.msra.mxu0 0
  %133 = vmatprep.subr.bf16.mxu0 0
  %134 = vmatpush2.bf16.msra.mxu0 0
  %135 = vmatprep.subr.bf16.mxu0 0
  %136 = vmatpush2.bf16.msra.mxu0 0
  %137 = vmatprep.subr.bf16.mxu0 0
  %138 = vmatpush2.bf16.msra.mxu0 0
  %139 = vmatprep.subr.bf16.mxu0 0
  %140 = vmatpush2.bf16.msra.mxu0 0
  %141 = vmatprep.subr.bf16.mxu0 0
  %142 = vmatpush2.bf16.msra.mxu0 0
  %143 = vmatprep.subr.bf16.mxu0 0
  %144 = vmatpush2.bf16.msra.mxu0 0
  %145 = vmatprep.mubr.bf16.mxu0 0
  %146 = vmatmul.mubr.bf16.gmra.mxu0 %v39
  %v147 = vpop.f32.mrf.mxu0
  %v148 = vadd.f32 %v63, %v147
  %v149 = vpop.f32.mrf.mxu0
  %v150 = vpop.f32.mrf.mxu0
  %v151 = vpop.f32.mrf.mxu0
  %152 = vdwg.mxu0
  %vm153 = vcmask 1041408
  %v154 = vsel %vm153, %v148, 0.0
  %v155 = vrot.slane %v154, 4
  %v156 = vadd.f32 %v154, %v155
  %v157 = vrot.slane %v156, 2
  %v158 = vadd.f32 %v156, %v157
  %v159 = vrot.slane %v158, 1
  %v160 = vadd.f32 %v158, %v159
  %v161 = vmul.f32 %v160, 0.5
  %v162 = vsub.f32 %v148, %v161
  %v163 = vmul.f32 %v162, %v162
  %v164 = vsel %vm153, %v163, 0.0
  %v165 = vrot.slane %v164, 4
  %v166 = vadd.f32 %v164, %v165
  %v167 = vrot.slane %v166, 2
  %v168 = vadd.f32 %v166, %v167
  %v169 = vrot.slane %v168, 1
  %v170 = vadd.f32 %v168, %v169
  %v171 = vmul.f32 %v170, 0.5
  %v172 = vadd.f32 %v171, 1e-05
  %v173 = vrsqrt.pop %v172
  %v174 = vmul.f32 %v57, %v173
  %v176 = vlaneseq
  %v177 = vshrl.u32 %v176, 7
  %v178 = vsub.s32 0, %v177
  %v179 = vrot.slane %v174, %v178
  %v181 = vmul.f32 %v162, %v179
  %v183 = vlaneseq
  %v184 = vshrl.u32 %v183, 7
  %v185 = vsub.s32 0, %v184
  %v186 = vrot.slane %v58, %v185
  %v188 = vadd.f32 %v181, %v186
  %v189 = vmax.f32 %v188, 0.0
  %v190 = vpack.c.bf16 %v189, %v189
  %v191 = vld [vmem:[%s5] sm:$0xf]
  %v192 = vld [vmem:[%s5 + $0x4] sm:$0xf]
  %v193 = vld [vmem:[%s5 + $0x8] sm:$0xf]
  %v194 = vld [vmem:[%s5 + $0xc] sm:$0xf]
  %v195 = vld [vmem:[%s5 + $0x10] sm:$0xf]
  %v196 = vld [vmem:[%s5 + $0x14] sm:$0xf]
  %v197 = vld [vmem:[%s5 + $0x18] sm:$0xf]
  %v198 = vld [vmem:[%s5 + $0x1c] sm:$0xf]
  %v199 = vld [vmem:[%s5 + $0x20] sm:$0xf]
  %v200 = vld [vmem:[%s5 + $0x24] sm:$0xf]
  %v201 = vld [vmem:[%s5 + $0x28] sm:$0xf]
  %v202 = vld [vmem:[%s5 + $0x2c] sm:$0xf]
  %v203 = vld [vmem:[%s5 + $0x30] sm:$0xf]
  %v204 = vld [vmem:[%s5 + $0x34] sm:$0xf]
  %v205 = vld [vmem:[%s5 + $0x38] sm:$0xf]
  %v206 = vld [vmem:[%s5 + $0x3c] sm:$0xf]
  %v207 = vld [vmem:[%s6] sm:$0x1]
  %v208 = vld [vmem:[%s7] sm:$0x1]
  %v209 = vld [vmem:[%s8] sm:$0x1]
  %v211 = vlaneseq
  %v212 = vshrl.u32 %v211, 7
  %v213 = vsub.s32 0, %v212
  %v214 = vrot.slane %v207, %v213
  %v232 = vunpack.c.l.b16 %v191
  %v233 = vunpack.c.l.b16 %v192
  %v234 = vunpack.c.l.b16 %v193
  %v235 = vunpack.c.l.b16 %v194
  %v236 = vunpack.c.l.b16 %v195
  %v237 = vunpack.c.l.b16 %v196
  %v238 = vunpack.c.l.b16 %v197
  %v239 = vunpack.c.l.b16 %v198
  %v240 = vunpack.c.l.b16 %v199
  %v241 = vunpack.c.l.b16 %v200
  %v242 = vunpack.c.l.b16 %v201
  %v243 = vunpack.c.l.b16 %v202
  %v244 = vunpack.c.l.b16 %v203
  %v245 = vunpack.c.l.b16 %v204
  %v246 = vunpack.c.l.b16 %v205
  %v247 = vunpack.c.l.b16 %v206
  %v248 = vpack.c.b16 %v233, %v232
  %v249 = vpack.c.b16 %v235, %v234
  %v250 = vpack.c.b16 %v237, %v236
  %v251 = vpack.c.b16 %v239, %v238
  %v252 = vpack.c.b16 %v241, %v240
  %v253 = vpack.c.b16 %v243, %v242
  %v254 = vpack.c.b16 %v245, %v244
  %v255 = vpack.c.b16 %v247, %v246
  %264 = vmatprep.subr.bf16.mxu0 0
  %265 = vmatpush1.bf16.msra.mxu0 %v255
  %266 = vmatprep.subr.bf16.mxu0 0
  %267 = vmatpush1.bf16.msra.mxu0 %v254
  %268 = vmatprep.subr.bf16.mxu0 0
  %269 = vmatpush1.bf16.msra.mxu0 %v253
  %270 = vmatprep.subr.bf16.mxu0 0
  %271 = vmatpush1.bf16.msra.mxu0 %v252
  %272 = vmatprep.subr.bf16.mxu0 0
  %273 = vmatpush1.bf16.msra.mxu0 %v251
  %274 = vmatprep.subr.bf16.mxu0 0
  %275 = vmatpush1.bf16.msra.mxu0 %v250
  %276 = vmatprep.subr.bf16.mxu0 0
  %277 = vmatpush1.bf16.msra.mxu0 %v249
  %278 = vmatprep.subr.bf16.mxu0 0
  %279 = vmatpush1.bf16.msra.mxu0 %v248
  %280 = vmatprep.subr.bf16.mxu0 0
  %281 = vmatpush2.bf16.msra.mxu0 0
  %282 = vmatprep.subr.bf16.mxu0 0
  %283 = vmatpush2.bf16.msra.mxu0 0
  %284 = vmatprep.subr.bf16.mxu0 0
  %285 = vmatpush2.bf16.msra.mxu0 0
  %286 = vmatprep.subr.bf16.mxu0 0
  %287 = vmatpush2.bf16.msra.mxu0 0
  %288 = vmatprep.subr.bf16.mxu0 0
  %289 = vmatpush2.bf16.msra.mxu0 0
  %290 = vmatprep.subr.bf16.mxu0 0
  %291 = vmatpush2.bf16.msra.mxu0 0
  %292 = vmatprep.subr.bf16.mxu0 0
  %293 = vmatpush2.bf16.msra.mxu0 0
  %294 = vmatprep.subr.bf16.mxu0 0
  %295 = vmatpush2.bf16.msra.mxu0 0
  %296 = vmatprep.mubr.bf16.mxu0 0
  %297 = vmatmul.mubr.bf16.gmra.mxu0 %v190
  %v298 = vpop.f32.mrf.mxu0
  %v299 = vadd.f32 %v214, %v298
  %v300 = vpop.f32.mrf.mxu0
  %v301 = vpop.f32.mrf.mxu0
  %v302 = vpop.f32.mrf.mxu0
  %303 = vdwg.mxu0
  %v304 = vsel %vm153, %v299, 0.0
  %v305 = vrot.slane %v304, 4
  %v306 = vadd.f32 %v304, %v305
  %v307 = vrot.slane %v306, 2
  %v308 = vadd.f32 %v306, %v307
  %v309 = vrot.slane %v308, 1
  %v310 = vadd.f32 %v308, %v309
  %v311 = vmul.f32 %v310, 0.5
  %v312 = vsub.f32 %v299, %v311
  %v313 = vmul.f32 %v312, %v312
  %v314 = vsel %vm153, %v313, 0.0
  %v315 = vrot.slane %v314, 4
  %v316 = vadd.f32 %v314, %v315
  %v317 = vrot.slane %v316, 2
  %v318 = vadd.f32 %v316, %v317
  %v319 = vrot.slane %v318, 1
  %v320 = vadd.f32 %v318, %v319
  %v321 = vmul.f32 %v320, 0.5
  %v322 = vadd.f32 %v321, 1e-05
  %v323 = vrsqrt.pop %v322
  %v324 = vmul.f32 %v208, %v323
  %v326 = vlaneseq
  %v327 = vshrl.u32 %v326, 7
  %v328 = vsub.s32 0, %v327
  %v329 = vrot.slane %v324, %v328
  %v331 = vmul.f32 %v312, %v329
  %v333 = vlaneseq
  %v334 = vshrl.u32 %v333, 7
  %v335 = vsub.s32 0, %v334
  %v336 = vrot.slane %v209, %v335
  %v338 = vadd.f32 %v331, %v336
  %v339 = vmax.f32 %v338, 0.0
  %v340 = vpack.c.bf16 %v339, %v339
  %v341 = vld [vmem:[%s9] sm:$0xf]
  %v342 = vld [vmem:[%s9 + $0x4] sm:$0xf]
  %v343 = vld [vmem:[%s9 + $0x8] sm:$0xf]
  %v344 = vld [vmem:[%s9 + $0xc] sm:$0xf]
  %v345 = vld [vmem:[%s9 + $0x10] sm:$0xf]
  %v346 = vld [vmem:[%s9 + $0x14] sm:$0xf]
  %v347 = vld [vmem:[%s9 + $0x18] sm:$0xf]
  %v348 = vld [vmem:[%s9 + $0x1c] sm:$0xf]
  %v349 = vld [vmem:[%s9 + $0x20] sm:$0xf]
  %v350 = vld [vmem:[%s9 + $0x24] sm:$0xf]
  %v351 = vld [vmem:[%s9 + $0x28] sm:$0xf]
  %v352 = vld [vmem:[%s9 + $0x2c] sm:$0xf]
  %v353 = vld [vmem:[%s9 + $0x30] sm:$0xf]
  %v354 = vld [vmem:[%s9 + $0x34] sm:$0xf]
  %v355 = vld [vmem:[%s9 + $0x38] sm:$0xf]
  %v356 = vld [vmem:[%s9 + $0x3c] sm:$0xf]
  %v357 = vld [vmem:[%s10] sm:$0x1]
  %v359 = vlaneseq
  %v360 = vshrl.u32 %v359, 7
  %v361 = vsub.s32 0, %v360
  %v362 = vrot.slane %v357, %v361
  %v380 = vunpack.c.l.b16 %v341
  %v381 = vunpack.c.l.b16 %v342
  %v382 = vunpack.c.l.b16 %v343
  %v383 = vunpack.c.l.b16 %v344
  %v384 = vunpack.c.l.b16 %v345
  %v385 = vunpack.c.l.b16 %v346
  %v386 = vunpack.c.l.b16 %v347
  %v387 = vunpack.c.l.b16 %v348
  %v388 = vunpack.c.l.b16 %v349
  %v389 = vunpack.c.l.b16 %v350
  %v390 = vunpack.c.l.b16 %v351
  %v391 = vunpack.c.l.b16 %v352
  %v392 = vunpack.c.l.b16 %v353
  %v393 = vunpack.c.l.b16 %v354
  %v394 = vunpack.c.l.b16 %v355
  %v395 = vunpack.c.l.b16 %v356
  %v396 = vpack.c.b16 %v381, %v380
  %v397 = vpack.c.b16 %v383, %v382
  %v398 = vpack.c.b16 %v385, %v384
  %v399 = vpack.c.b16 %v387, %v386
  %v400 = vpack.c.b16 %v389, %v388
  %v401 = vpack.c.b16 %v391, %v390
  %v402 = vpack.c.b16 %v393, %v392
  %v403 = vpack.c.b16 %v395, %v394
  %412 = vmatprep.subr.bf16.mxu0 0
  %413 = vmatpush1.bf16.msra.mxu0 %v403
  %414 = vmatprep.subr.bf16.mxu0 0
  %415 = vmatpush1.bf16.msra.mxu0 %v402
  %416 = vmatprep.subr.bf16.mxu0 0
  %417 = vmatpush1.bf16.msra.mxu0 %v401
  %418 = vmatprep.subr.bf16.mxu0 0
  %419 = vmatpush1.bf16.msra.mxu0 %v400
  %420 = vmatprep.subr.bf16.mxu0 0
  %421 = vmatpush1.bf16.msra.mxu0 %v399
  %422 = vmatprep.subr.bf16.mxu0 0
  %423 = vmatpush1.bf16.msra.mxu0 %v398
  %424 = vmatprep.subr.bf16.mxu0 0
  %425 = vmatpush1.bf16.msra.mxu0 %v397
  %426 = vmatprep.subr.bf16.mxu0 0
  %427 = vmatpush1.bf16.msra.mxu0 %v396
  %428 = vmatprep.subr.bf16.mxu0 0
  %429 = vmatpush2.bf16.msra.mxu0 0
  %430 = vmatprep.subr.bf16.mxu0 0
  %431 = vmatpush2.bf16.msra.mxu0 0
  %432 = vmatprep.subr.bf16.mxu0 0
  %433 = vmatpush2.bf16.msra.mxu0 0
  %434 = vmatprep.subr.bf16.mxu0 0
  %435 = vmatpush2.bf16.msra.mxu0 0
  %436 = vmatprep.subr.bf16.mxu0 0
  %437 = vmatpush2.bf16.msra.mxu0 0
  %438 = vmatprep.subr.bf16.mxu0 0
  %439 = vmatpush2.bf16.msra.mxu0 0
  %440 = vmatprep.subr.bf16.mxu0 0
  %441 = vmatpush2.bf16.msra.mxu0 0
  %442 = vmatprep.subr.bf16.mxu0 0
  %443 = vmatpush2.bf16.msra.mxu0 0
  %444 = vmatprep.mubr.bf16.mxu0 0
  %445 = vmatmul.mubr.bf16.gmra.mxu0 %v340
  %v446 = vpop.f32.mrf.mxu0
  %v447 = vadd.f32 %v362, %v446
  %v448 = vpop.f32.mrf.mxu0
  %v449 = vpop.f32.mrf.mxu0
  %v450 = vpop.f32.mrf.mxu0
  %451 = vdwg.mxu0
  %452 = vst [vmem:[%s11] sm:$0x3] %v447
  // Predicated region
  $region46: #{essl_vicreg_forward.6} parent=0 // pred_check
    _
  $region47: #{essl_vicreg_forward.6} parent=0 // pred_check_branch
    %454 = sbr.rel (0) target = $region49
  $region48: #{essl_vicreg_forward.6} parent=0 // pred_region
    _
  $region49: #{essl_vicreg_forward.6} parent=0 // pred_fallthru
    _
  // Predicated region
  $region50: #{essl_vicreg_forward.6} parent=0 // pred_check
    _
  $region51: #{essl_vicreg_forward.6} parent=0 // pred_check_branch
    %456 = sbr.rel (0) target = $region53
  $region52: #{essl_vicreg_forward.6} parent=0 // pred_region
    _
  $region53: #{essl_vicreg_forward.6} parent=0 // pred_fallthru
    _

</llo_original>
